<compile_context>
chip_gen: v7x
topology: tpu7x:2x2x1
jax: 0.10.0
libtpu: 0.0.40
codegen_flags: <defaults>
</compile_context>

<pallas_src>
import jax
import jax.numpy as jnp
from jax.experimental import pallas as pl
from jax.experimental.pallas import tpu as pltpu

_CONV1_KPAD = 32  # 9*3 = 27 im2col taps, zero-padded to 32 for clean layout


# ----------------------------------------------------------------------------
# Kernel factory (closes over static shapes)
# ----------------------------------------------------------------------------
def _make_kernel(B, H, W):
    HW = H * W

    def pad_store(pad_ref, act_bf16):
        """Zero the 1-pixel halo buffer and store the activation interior."""
        pad_ref[...] = jnp.zeros(pad_ref.shape, pad_ref.dtype)
        _, Hp, Wp, _ = pad_ref.shape
        pad_ref[:, 1:Hp - 1, 1:Wp - 1, :] = act_bf16

    def im2col_conv(pad_ref, w_ref, s_ref, b_ref, h, w):
        """Single MXU matmul with K = 9*Cin (good when Cin is small)."""
        Bp, _, _, Cin = pad_ref.shape
        taps = [pad_ref[:, kh:kh + h, kw:kw + w, :]
                for kh in range(3) for kw in range(3)]
        patches = jnp.concatenate(taps, axis=-1).reshape(Bp * h * w, 9 * Cin)
        y = jnp.dot(patches, w_ref[...], preferred_element_type=jnp.float32)
        return jnp.maximum(y * s_ref[...] + b_ref[...], 0.0)          # f32

    def pertap_conv(pad_ref, w_ref, s_ref, b_ref, h, w):
        """Nine per-tap accumulating dots (good when Cin is already wide)."""
        Bp, _, _, Cin = pad_ref.shape
        Cout = w_ref.shape[-1]
        acc = jnp.zeros((Bp * h * w, Cout), jnp.float32)
        for t in range(9):
            kh, kw = divmod(t, 3)
            a = pad_ref[:, kh:kh + h, kw:kw + w, :].reshape(Bp * h * w, Cin)
            acc = acc + jnp.dot(a, w_ref[t * Cin:(t + 1) * Cin, :],
                                preferred_element_type=jnp.float32)
        return jnp.maximum(acc * s_ref[...] + b_ref[...], 0.0)        # f32

    def maxpool2x2(y_flat, h, w, c):
        v = y_flat.reshape(B, h // 2, 2, w // 2, 2, c)
        v = jnp.maximum(v[:, :, 0], v[:, :, 1])          # pool along H
        v = jnp.maximum(v[:, :, :, 0], v[:, :, :, 1])    # pool along W
        return v.reshape(B * (h // 2) * (w // 2), c)

    def kernel(xp_ref,
               w1, s1, b1, w2, s2, b2, w3, s3, b3, w4, s4, b4, w5, s5, b5,
               fw1, fb1, fw2, fb2,
               o_ref,
               pad2, pad3, pad4, pad5):
        # conv1 (3 -> 16): patches precomputed in XLA -> one MXU matmul.
        p1 = xp_ref[...].reshape(B * HW, xp_ref.shape[-1])            # bf16
        y = jnp.dot(p1, w1[...], preferred_element_type=jnp.float32)
        y = jnp.maximum(y * s1[...] + b1[...], 0.0)                   # (B*HW, 16)

        # conv2 (16 -> 32): im2col, K = 144.
        pad_store(pad2, y.reshape(B, H, W, 16).astype(jnp.bfloat16))
        y = im2col_conv(pad2, w2, s2, b2, H, W)                       # (B*HW, 32)
        y = maxpool2x2(y, H, W, 32)                                   # (B*HW/4, 32)

        # conv3 (32 -> 64): im2col, K = 288.
        pad_store(pad3, y.reshape(B, H // 2, W // 2, 32).astype(jnp.bfloat16))
        y = im2col_conv(pad3, w3, s3, b3, H // 2, W // 2)             # (B*HW/4, 64)

        # conv4 (64 -> 128): nine per-tap accumulating dots, K = 64.
        pad_store(pad4, y.reshape(B, H // 2, W // 2, 64).astype(jnp.bfloat16))
        y = pertap_conv(pad4, w4, s4, b4, H // 2, W // 2)             # (B*HW/4, 128)
        y = maxpool2x2(y, H // 2, W // 2, 128)                        # (B*HW/16, 128)

        # conv5 (128 -> 256): per-tap, K = 128.
        pad_store(pad5, y.reshape(B, H // 4, W // 4, 128).astype(jnp.bfloat16))
        y = pertap_conv(pad5, w5, s5, b5, H // 4, W // 4)             # (B*HW/16, 256)

        # Head: GAP (1/(H/4*W/4) folded into fw1) + Linear + ReLU + Linear.
        pooled = jnp.sum(y.reshape(B, (H // 4) * (W // 4), 256), axis=1)   # (B, 256)
        hdn = jnp.dot(pooled.astype(jnp.bfloat16), fw1[...],
                      preferred_element_type=jnp.float32) + fb1[...]
        hdn = jnp.maximum(hdn, 0.0)
        logits = jnp.dot(hdn.astype(jnp.bfloat16), fw2[...],
                         preferred_element_type=jnp.float32) + fb2[...]    # (B, 128)
        o_ref[0] = logits.astype(o_ref.dtype)

    return kernel


# ----------------------------------------------------------------------------
# Wrapper: single pallas_call, B images per grid step
# ----------------------------------------------------------------------------
def cervical_cancer_cnn_forward(x_nchw, params, *, block_images=16):
    """x_nchw: (N, 3, H, W) float32 -> logits (N, num_classes)."""
    x = jnp.transpose(x_nchw, (0, 2, 3, 1))           # NCHW -> NHWC
    N, H, W, Cin = x.shape
    assert Cin == 3 and H % 4 == 0 and W % 4 == 0
    num_classes = params["num_classes"]
    assert num_classes <= 128

    # Images per grid step: fatten the MXU M dim, but keep the grid >= 2 so
    # v7x's two TensorCores both get work.  (32-64 is fine on v6e's 128 MiB.)
    B = max(1, min(block_images, pl.cdiv(N, 2))) if N >= 2 else 1
    G = pl.cdiv(N, B)
    N_pad = G * B

    # conv1 im2col in XLA: the 3-lane input never enters the kernel.
    xpad = jnp.pad(x, ((0, N_pad - N), (1, 1), (1, 1), (0, 0)))
    patches = jnp.concatenate(
        [xpad[:, kh:kh + H, kw:kw + W, :] for kh in range(3) for kw in range(3)],
        axis=-1).reshape(N_pad, H * W, 9 * Cin)
    patches = jnp.pad(
        patches, ((0, 0), (0, 0), (0, _CONV1_KPAD - 9 * Cin))).astype(jnp.bfloat16)

    flat = []
    in_specs = [pl.BlockSpec((B,) + patches.shape[1:], lambda n: (n, 0, 0))]
    for (w, s, b) in params["convs"]:
        flat += [w, s, b]
        in_specs += [pl.BlockSpec(w.shape, lambda n: (0, 0)),
                     pl.BlockSpec(s.shape, lambda n: (0, 0)),
                     pl.BlockSpec(b.shape, lambda n: (0, 0))]
    for name in ("fw1", "fb1", "fw2", "fb2"):
        a = params[name]
        flat.append(a)
        in_specs.append(pl.BlockSpec(a.shape, lambda n: (0, 0)))

    bf16 = jnp.bfloat16
    out = pl.pallas_call(
        _make_kernel(B, H, W),
        out_shape=jax.ShapeDtypeStruct((G, B, 128), jnp.float32),  # lane-dense
        grid=(G,),
        in_specs=in_specs,
        out_specs=pl.BlockSpec((1, B, 128), lambda n: (n, 0, 0)),
        scratch_shapes=[
            pltpu.VMEM((B, H + 2, W + 2, 16), bf16),               # conv2 halo
            pltpu.VMEM((B, H // 2 + 2, W // 2 + 2, 32), bf16),     # conv3 halo
            pltpu.VMEM((B, H // 2 + 2, W // 2 + 2, 64), bf16),     # conv4 halo
            pltpu.VMEM((B, H // 4 + 2, W // 4 + 2, 128), bf16),    # conv5 halo
        ],
        compiler_params=pltpu.CompilerParams(
            dimension_semantics=("parallel",),    # v7x: 2 TCs split the grid
        ),
    )(patches, *flat)
    return out.reshape(N_pad, 128)[:N, :num_classes]


# ----------------------------------------------------------------------------
# Parameter construction (deterministic, synthetic) with all folds applied
# ----------------------------------------------------------------------------
def init_params(key, num_classes=4):
    eps = 1e-5
    chans = [(3, 16), (16, 32), (32, 64), (64, 128), (128, 256)]
    convs = []
    for i, (cin, cout) in enumerate(chans):
        kw_, kcb, kg, kbt = jax.random.split(jax.random.fold_in(key, i), 4)
        fan_in = cin * 9
        w = jax.random.normal(kw_, (3, 3, cin, cout), jnp.float32) * (2.0 / fan_in) ** 0.5
        conv_b = 0.05 * jax.random.normal(kcb, (cout,), jnp.float32)
        gamma = 1.0 + 0.1 * jax.random.normal(kg, (cout,), jnp.float32)
        beta = 0.1 * jax.random.normal(kbt, (cout,), jnp.float32)
        # Eval-mode BN with module-init running stats (mean=0, var=1) + conv
        # bias folded into per-channel scale/bias.
        scale = gamma / jnp.sqrt(1.0 + eps)
        bias = scale * conv_b + beta
        # im2col layout: (kh, kw, cin) flattened row-major -> (9*Cin, Cout).
        w9 = w.reshape(9 * cin, cout)
        if i == 0:
            w9 = jnp.pad(w9, ((0, _CONV1_KPAD - 9 * cin), (0, 0)))  # K: 27 -> 32
        convs.append((w9.astype(jnp.bfloat16),
                      scale.reshape(1, cout), bias.reshape(1, cout)))

    k1, k2, k3, k4 = jax.random.split(jax.random.fold_in(key, 100), 4)
    fw1 = jax.random.normal(k1, (256, 128), jnp.float32) * (2.0 / 256) ** 0.5
    fb1 = 0.01 * jax.random.normal(k2, (1, 128), jnp.float32)
    fw2 = jax.random.normal(k3, (128, num_classes), jnp.float32) * (2.0 / 128) ** 0.5
    fb2 = 0.01 * jax.random.normal(k4, (1, num_classes), jnp.float32)
    return {
        "convs": convs,
        # GAP's 1/(4*4) folded into fw1 (kernel uses a spatial sum).
        "fw1": (fw1 / 16.0).astype(jnp.bfloat16),
        "fb1": fb1,
        # num_classes padded to 128 lanes -> unmasked (lane-dense) output store.
        "fw2": jnp.pad(fw2, ((0, 0), (0, 128 - num_classes))).astype(jnp.bfloat16),
        "fb2": jnp.pad(fb2, ((0, 0), (0, 128 - num_classes))),
        "num_classes": num_classes,
    }


# ----------------------------------------------------------------------------
# Pure-JAX reference mirroring the kernel math (bf16 matmuls, f32 epilogues)
# ----------------------------------------------------------------------------
def reference_forward(x_nchw, params):
    num_classes = params["num_classes"]
    x = jnp.transpose(x_nchw, (0, 2, 3, 1))

    def conv(act, w, s, b, kpad=0):
        n, h, ww, c = act.shape
        ap = jnp.pad(act.astype(jnp.bfloat16), ((0, 0), (1, 1), (1, 1), (0, 0)))
        pat = jnp.concatenate(
            [ap[:, kh:kh + h, kw:kw + ww, :] for kh in range(3) for kw in range(3)],
            axis=-1).reshape(n * h * ww, 9 * c)
        if kpad:
            pat = jnp.pad(pat, ((0, 0), (0, kpad)))
        y = jnp.dot(pat, w, preferred_element_type=jnp.float32)
        y = jnp.maximum(y * s + b, 0.0)
        return y.reshape(n, h, ww, -1)

    def pool(v):
        n, h, ww, c = v.shape
        return jnp.max(v.reshape(n, h // 2, 2, ww // 2, 2, c), axis=(2, 4))

    (w1, s1, b1), (w2, s2, b2), (w3, s3, b3), (w4, s4, b4), (w5, s5, b5) = params["convs"]
    y = conv(x, w1, s1, b1, kpad=_CONV1_KPAD - 27)
    y = conv(y, w2, s2, b2)
    y = pool(y)
    y = conv(y, w3, s3, b3)
    y = conv(y, w4, s4, b4)
    y = pool(y)
    y = conv(y, w5, s5, b5)
    n = y.shape[0]
    pooled = jnp.sum(y.reshape(n, -1, 256), axis=1)
    hdn = jnp.maximum(jnp.dot(pooled.astype(jnp.bfloat16), params["fw1"],
                              preferred_element_type=jnp.float32) + params["fb1"], 0.0)
    logits = jnp.dot(hdn.astype(jnp.bfloat16), params["fw2"],
                     preferred_element_type=jnp.float32) + params["fb2"]
    return logits[:, :num_classes]


if __name__ == "__main__":
    key = jax.random.PRNGKey(0)
    kx, kp = jax.random.split(key)

    N, H, W = 2, 16, 16
    num_classes = 4
    # PyTorch-style NCHW input.
    x = jax.random.normal(kx, (N, 3, H, W), jnp.float32)
    params = init_params(kp, num_classes=num_classes)

    fwd = jax.jit(lambda xx: cervical_cancer_cnn_forward(xx, params))
    logits = jax.block_until_ready(fwd(x))

    assert logits.shape == (N, num_classes)
    assert bool(jnp.all(jnp.isfinite(logits)))

    ref = jax.block_until_ready(jax.jit(lambda xx: reference_forward(xx, params))(x))
    assert bool(jnp.allclose(logits, ref, atol=1e-2, rtol=1e-2)), (logits, ref)

    print("KERNEL_OK")
</pallas_src>

<mosaic_0001>
module attributes {stable_mosaic.version = 11 : i64} {
  func.func @kernel(%arg0: i32, %arg1: memref<1x256x32xbf16, #tpu.memory_space<vmem>>, %arg2: memref<32x16xbf16, #tpu.memory_space<vmem>>, %arg3: memref<1x16xf32, #tpu.memory_space<vmem>>, %arg4: memref<1x16xf32, #tpu.memory_space<vmem>>, %arg5: memref<144x32xbf16, #tpu.memory_space<vmem>>, %arg6: memref<1x32xf32, #tpu.memory_space<vmem>>, %arg7: memref<1x32xf32, #tpu.memory_space<vmem>>, %arg8: memref<288x64xbf16, #tpu.memory_space<vmem>>, %arg9: memref<1x64xf32, #tpu.memory_space<vmem>>, %arg10: memref<1x64xf32, #tpu.memory_space<vmem>>, %arg11: memref<576x128xbf16, #tpu.memory_space<vmem>>, %arg12: memref<1x128xf32, #tpu.memory_space<vmem>>, %arg13: memref<1x128xf32, #tpu.memory_space<vmem>>, %arg14: memref<1152x256xbf16, #tpu.memory_space<vmem>>, %arg15: memref<1x256xf32, #tpu.memory_space<vmem>>, %arg16: memref<1x256xf32, #tpu.memory_space<vmem>>, %arg17: memref<256x128xbf16, #tpu.memory_space<vmem>>, %arg18: memref<1x128xf32, #tpu.memory_space<vmem>>, %arg19: memref<128x128xbf16, #tpu.memory_space<vmem>>, %arg20: memref<1x128xf32, #tpu.memory_space<vmem>>, %arg21: memref<1x1x128xf32, #tpu.memory_space<vmem>>, %arg22: memref<1x18x18x16xbf16, #tpu.memory_space<vmem>>, %arg23: memref<1x10x10x32xbf16, #tpu.memory_space<vmem>>, %arg24: memref<1x10x10x64xbf16, #tpu.memory_space<vmem>>, %arg25: memref<1x6x6x128xbf16, #tpu.memory_space<vmem>>) attributes {dimension_semantics = [#tpu.dimension_semantics<parallel>], iteration_bounds = array<i64: 2>, scalar_prefetch = 0 : i64, scratch_operands = 4 : i64, tpu.core_type = #tpu.core_type<tc>, window_params = [{transform_indices = @transform_0, window_bounds = array<i64: 1, 256, 32>}, {pipeline_mode = #tpu.pipeline_mode<synchronous>, transform_indices = @transform_1, window_bounds = array<i64: 32, 16>}, {pipeline_mode = #tpu.pipeline_mode<synchronous>, transform_indices = @transform_2, window_bounds = array<i64: 1, 16>}, {pipeline_mode = #tpu.pipeline_mode<synchronous>, transform_indices = @transform_3, window_bounds = array<i64: 1, 16>}, {pipeline_mode = #tpu.pipeline_mode<synchronous>, transform_indices = @transform_4, window_bounds = array<i64: 144, 32>}, {pipeline_mode = #tpu.pipeline_mode<synchronous>, transform_indices = @transform_5, window_bounds = array<i64: 1, 32>}, {pipeline_mode = #tpu.pipeline_mode<synchronous>, transform_indices = @transform_6, window_bounds = array<i64: 1, 32>}, {pipeline_mode = #tpu.pipeline_mode<synchronous>, transform_indices = @transform_7, window_bounds = array<i64: 288, 64>}, {pipeline_mode = #tpu.pipeline_mode<synchronous>, transform_indices = @transform_8, window_bounds = array<i64: 1, 64>}, {pipeline_mode = #tpu.pipeline_mode<synchronous>, transform_indices = @transform_9, window_bounds = array<i64: 1, 64>}, {pipeline_mode = #tpu.pipeline_mode<synchronous>, transform_indices = @transform_10, window_bounds = array<i64: 576, 128>}, {pipeline_mode = #tpu.pipeline_mode<synchronous>, transform_indices = @transform_11, window_bounds = array<i64: 1, 128>}, {pipeline_mode = #tpu.pipeline_mode<synchronous>, transform_indices = @transform_12, window_bounds = array<i64: 1, 128>}, {pipeline_mode = #tpu.pipeline_mode<synchronous>, transform_indices = @transform_13, window_bounds = array<i64: 1152, 256>}, {pipeline_mode = #tpu.pipeline_mode<synchronous>, transform_indices = @transform_14, window_bounds = array<i64: 1, 256>}, {pipeline_mode = #tpu.pipeline_mode<synchronous>, transform_indices = @transform_15, window_bounds = array<i64: 1, 256>}, {pipeline_mode = #tpu.pipeline_mode<synchronous>, transform_indices = @transform_16, window_bounds = array<i64: 256, 128>}, {pipeline_mode = #tpu.pipeline_mode<synchronous>, transform_indices = @transform_17, window_bounds = array<i64: 1, 128>}, {pipeline_mode = #tpu.pipeline_mode<synchronous>, transform_indices = @transform_18, window_bounds = array<i64: 128, 128>}, {pipeline_mode = #tpu.pipeline_mode<synchronous>, transform_indices = @transform_19, window_bounds = array<i64: 1, 128>}, {transform_indices = @transform_20, window_bounds = array<i64: 1, 1, 128>}]} {
    %c0 = arith.constant 0 : index
    %c0_0 = arith.constant 0 : index
    %c0_1 = arith.constant 0 : index
    %0 = vector.load %arg1[%c0, %c0_0, %c0_1] : memref<1x256x32xbf16, #tpu.memory_space<vmem>>, vector<1x256x32xbf16>
    %1 = vector.shape_cast %0 : vector<1x256x32xbf16> to vector<256x32xbf16>
    %c0_2 = arith.constant 0 : index
    %c0_3 = arith.constant 0 : index
    %2 = vector.load %arg2[%c0_2, %c0_3] : memref<32x16xbf16, #tpu.memory_space<vmem>>, vector<32x16xbf16>
    %cst = arith.constant dense<0.000000e+00> : vector<256x16xf32>
    %3 = tpu.matmul %1, %2, %cst {dimension_numbers = #tpu.dot_dimension_numbers<[1], [0], [0], [1], [0, 0, 1, 1], [], []>} : vector<256x32xbf16>, vector<32x16xbf16>, vector<256x16xf32> -> vector<256x16xf32>
    %c0_4 = arith.constant 0 : index
    %c0_5 = arith.constant 0 : index
    %4 = vector.load %arg3[%c0_4, %c0_5] : memref<1x16xf32, #tpu.memory_space<vmem>>, vector<1x16xf32>
    %5 = vector.broadcast %4 : vector<1x16xf32> to vector<256x16xf32>
    %6 = arith.mulf %3, %5 : vector<256x16xf32>
    %c0_6 = arith.constant 0 : index
    %c0_7 = arith.constant 0 : index
    %7 = vector.load %arg4[%c0_6, %c0_7] : memref<1x16xf32, #tpu.memory_space<vmem>>, vector<1x16xf32>
    %8 = vector.broadcast %7 : vector<1x16xf32> to vector<256x16xf32>
    %9 = arith.addf %6, %8 : vector<256x16xf32>
    %cst_8 = arith.constant 0.000000e+00 : f32
    %10 = vector.broadcast %cst_8 : f32 to vector<256x16xf32>
    %11 = arith.maximumf %9, %10 : vector<256x16xf32>
    %12 = vector.shape_cast %11 : vector<256x16xf32> to vector<1x16x16x16xf32>
    %13 = arith.truncf %12 : vector<1x16x16x16xf32> to vector<1x16x16x16xbf16>
    %cst_9 = arith.constant 0.000000e+00 : bf16
    %14 = vector.broadcast %cst_9 : bf16 to vector<1x18x18x16xbf16>
    %c0_10 = arith.constant 0 : index
    %c0_11 = arith.constant 0 : index
    %c0_12 = arith.constant 0 : index
    %c0_13 = arith.constant 0 : index
    %15 = vector.load %arg22[%c0_10, %c0_11, %c0_12, %c0_13] : memref<1x18x18x16xbf16, #tpu.memory_space<vmem>>, vector<1x18x18x16xbf16>
    tpu.vector_store %arg22[%c0_10, %c0_11, %c0_12, %c0_13], %14 {strides = array<i32>} : memref<1x18x18x16xbf16, #tpu.memory_space<vmem>>, vector<1x18x18x16xbf16>,
    %c0_14 = arith.constant 0 : index
    %c1 = arith.constant 1 : index
    %c1_15 = arith.constant 1 : index
    %c0_16 = arith.constant 0 : index
    %16 = vector.load %arg22[%c0_14, %c1, %c1_15, %c0_16] : memref<1x18x18x16xbf16, #tpu.memory_space<vmem>>, vector<1x16x16x16xbf16>
    tpu.vector_store %arg22[%c0_14, %c1, %c1_15, %c0_16], %13 {strides = array<i32>} : memref<1x18x18x16xbf16, #tpu.memory_space<vmem>>, vector<1x16x16x16xbf16>,
    %c0_17 = arith.constant 0 : index
    %c0_18 = arith.constant 0 : index
    %c0_19 = arith.constant 0 : index
    %c0_20 = arith.constant 0 : index
    %17 = vector.load %arg22[%c0_17, %c0_18, %c0_19, %c0_20] : memref<1x18x18x16xbf16, #tpu.memory_space<vmem>>, vector<1x16x16x16xbf16>
    %c0_21 = arith.constant 0 : index
    %c0_22 = arith.constant 0 : index
    %c1_23 = arith.constant 1 : index
    %c0_24 = arith.constant 0 : index
    %18 = vector.load %arg22[%c0_21, %c0_22, %c1_23, %c0_24] : memref<1x18x18x16xbf16, #tpu.memory_space<vmem>>, vector<1x16x16x16xbf16>
    %c0_25 = arith.constant 0 : index
    %c0_26 = arith.constant 0 : index
    %c2 = arith.constant 2 : index
    %c0_27 = arith.constant 0 : index
    %19 = vector.load %arg22[%c0_25, %c0_26, %c2, %c0_27] : memref<1x18x18x16xbf16, #tpu.memory_space<vmem>>, vector<1x16x16x16xbf16>
    %c0_28 = arith.constant 0 : index
    %c1_29 = arith.constant 1 : index
    %c0_30 = arith.constant 0 : index
    %c0_31 = arith.constant 0 : index
    %20 = vector.load %arg22[%c0_28, %c1_29, %c0_30, %c0_31] : memref<1x18x18x16xbf16, #tpu.memory_space<vmem>>, vector<1x16x16x16xbf16>
    %c0_32 = arith.constant 0 : index
    %c1_33 = arith.constant 1 : index
    %c1_34 = arith.constant 1 : index
    %c0_35 = arith.constant 0 : index
    %21 = vector.load %arg22[%c0_32, %c1_33, %c1_34, %c0_35] : memref<1x18x18x16xbf16, #tpu.memory_space<vmem>>, vector<1x16x16x16xbf16>
    %c0_36 = arith.constant 0 : index
    %c1_37 = arith.constant 1 : index
    %c2_38 = arith.constant 2 : index
    %c0_39 = arith.constant 0 : index
    %22 = vector.load %arg22[%c0_36, %c1_37, %c2_38, %c0_39] : memref<1x18x18x16xbf16, #tpu.memory_space<vmem>>, vector<1x16x16x16xbf16>
    %c0_40 = arith.constant 0 : index
    %c2_41 = arith.constant 2 : index
    %c0_42 = arith.constant 0 : index
    %c0_43 = arith.constant 0 : index
    %23 = vector.load %arg22[%c0_40, %c2_41, %c0_42, %c0_43] : memref<1x18x18x16xbf16, #tpu.memory_space<vmem>>, vector<1x16x16x16xbf16>
    %c0_44 = arith.constant 0 : index
    %c2_45 = arith.constant 2 : index
    %c1_46 = arith.constant 1 : index
    %c0_47 = arith.constant 0 : index
    %24 = vector.load %arg22[%c0_44, %c2_45, %c1_46, %c0_47] : memref<1x18x18x16xbf16, #tpu.memory_space<vmem>>, vector<1x16x16x16xbf16>
    %c0_48 = arith.constant 0 : index
    %c2_49 = arith.constant 2 : index
    %c2_50 = arith.constant 2 : index
    %c0_51 = arith.constant 0 : index
    %25 = vector.load %arg22[%c0_48, %c2_49, %c2_50, %c0_51] : memref<1x18x18x16xbf16, #tpu.memory_space<vmem>>, vector<1x16x16x16xbf16>
    %26 = tpu.concatenate %17, %18, %19, %20, %21, %22, %23, %24, %25 in 3 : vector<1x16x16x16xbf16>, vector<1x16x16x16xbf16>, vector<1x16x16x16xbf16>, vector<1x16x16x16xbf16>, vector<1x16x16x16xbf16>, vector<1x16x16x16xbf16>, vector<1x16x16x16xbf16>, vector<1x16x16x16xbf16>, vector<1x16x16x16xbf16> -> vector<1x16x16x144xbf16>
    %27 = vector.shape_cast %26 : vector<1x16x16x144xbf16> to vector<256x144xbf16>
    %c0_52 = arith.constant 0 : index
    %c0_53 = arith.constant 0 : index
    %28 = vector.load %arg5[%c0_52, %c0_53] : memref<144x32xbf16, #tpu.memory_space<vmem>>, vector<144x32xbf16>
    %cst_54 = arith.constant dense<0.000000e+00> : vector<256x32xf32>
    %29 = tpu.matmul %27, %28, %cst_54 {dimension_numbers = #tpu.dot_dimension_numbers<[1], [0], [0], [1], [0, 0, 1, 1], [], []>} : vector<256x144xbf16>, vector<144x32xbf16>, vector<256x32xf32> -> vector<256x32xf32>
    %c0_55 = arith.constant 0 : index
    %c0_56 = arith.constant 0 : index
    %30 = vector.load %arg6[%c0_55, %c0_56] : memref<1x32xf32, #tpu.memory_space<vmem>>, vector<1x32xf32>
    %31 = vector.broadcast %30 : vector<1x32xf32> to vector<256x32xf32>
    %32 = arith.mulf %29, %31 : vector<256x32xf32>
    %c0_57 = arith.constant 0 : index
    %c0_58 = arith.constant 0 : index
    %33 = vector.load %arg7[%c0_57, %c0_58] : memref<1x32xf32, #tpu.memory_space<vmem>>, vector<1x32xf32>
    %34 = vector.broadcast %33 : vector<1x32xf32> to vector<256x32xf32>
    %35 = arith.addf %32, %34 : vector<256x32xf32>
    %cst_59 = arith.constant 0.000000e+00 : f32
    %36 = vector.broadcast %cst_59 : f32 to vector<256x32xf32>
    %37 = arith.maximumf %35, %36 : vector<256x32xf32>
    %38 = vector.shape_cast %37 : vector<256x32xf32> to vector<1x8x2x8x2x32xf32>
    %39 = vector.extract_strided_slice %38 {offsets = [0, 0, 0, 0, 0, 0], sizes = [1, 8, 1, 8, 2, 32], strides = [1, 1, 1, 1, 1, 1]} : vector<1x8x2x8x2x32xf32> to vector<1x8x1x8x2x32xf32>
    %40 = vector.shape_cast %39 : vector<1x8x1x8x2x32xf32> to vector<1x8x8x2x32xf32>
    %41 = vector.extract_strided_slice %38 {offsets = [0, 0, 1, 0, 0, 0], sizes = [1, 8, 1, 8, 2, 32], strides = [1, 1, 1, 1, 1, 1]} : vector<1x8x2x8x2x32xf32> to vector<1x8x1x8x2x32xf32>
    %42 = vector.shape_cast %41 : vector<1x8x1x8x2x32xf32> to vector<1x8x8x2x32xf32>
    %43 = arith.maximumf %40, %42 : vector<1x8x8x2x32xf32>
    %44 = vector.extract_strided_slice %43 {offsets = [0, 0, 0, 0, 0], sizes = [1, 8, 8, 1, 32], strides = [1, 1, 1, 1, 1]} : vector<1x8x8x2x32xf32> to vector<1x8x8x1x32xf32>
    %45 = vector.shape_cast %44 : vector<1x8x8x1x32xf32> to vector<1x8x8x32xf32>
    %46 = vector.extract_strided_slice %43 {offsets = [0, 0, 0, 1, 0], sizes = [1, 8, 8, 1, 32], strides = [1, 1, 1, 1, 1]} : vector<1x8x8x2x32xf32> to vector<1x8x8x1x32xf32>
    %47 = vector.shape_cast %46 : vector<1x8x8x1x32xf32> to vector<1x8x8x32xf32>
    %48 = arith.maximumf %45, %47 : vector<1x8x8x32xf32>
    %49 = vector.shape_cast %48 : vector<1x8x8x32xf32> to vector<64x32xf32>
    %50 = vector.shape_cast %49 : vector<64x32xf32> to vector<1x8x8x32xf32>
    %51 = arith.truncf %50 : vector<1x8x8x32xf32> to vector<1x8x8x32xbf16>
    %cst_60 = arith.constant 0.000000e+00 : bf16
    %52 = vector.broadcast %cst_60 : bf16 to vector<1x10x10x32xbf16>
    %c0_61 = arith.constant 0 : index
    %c0_62 = arith.constant 0 : index
    %c0_63 = arith.constant 0 : index
    %c0_64 = arith.constant 0 : index
    %53 = vector.load %arg23[%c0_61, %c0_62, %c0_63, %c0_64] : memref<1x10x10x32xbf16, #tpu.memory_space<vmem>>, vector<1x10x10x32xbf16>
    tpu.vector_store %arg23[%c0_61, %c0_62, %c0_63, %c0_64], %52 {strides = array<i32>} : memref<1x10x10x32xbf16, #tpu.memory_space<vmem>>, vector<1x10x10x32xbf16>,
    %c0_65 = arith.constant 0 : index
    %c1_66 = arith.constant 1 : index
    %c1_67 = arith.constant 1 : index
    %c0_68 = arith.constant 0 : index
    %54 = vector.load %arg23[%c0_65, %c1_66, %c1_67, %c0_68] : memref<1x10x10x32xbf16, #tpu.memory_space<vmem>>, vector<1x8x8x32xbf16>
    tpu.vector_store %arg23[%c0_65, %c1_66, %c1_67, %c0_68], %51 {strides = array<i32>} : memref<1x10x10x32xbf16, #tpu.memory_space<vmem>>, vector<1x8x8x32xbf16>,
    %c0_69 = arith.constant 0 : index
    %c0_70 = arith.constant 0 : index
    %c0_71 = arith.constant 0 : index
    %c0_72 = arith.constant 0 : index
    %55 = vector.load %arg23[%c0_69, %c0_70, %c0_71, %c0_72] : memref<1x10x10x32xbf16, #tpu.memory_space<vmem>>, vector<1x8x8x32xbf16>
    %c0_73 = arith.constant 0 : index
    %c0_74 = arith.constant 0 : index
    %c1_75 = arith.constant 1 : index
    %c0_76 = arith.constant 0 : index
    %56 = vector.load %arg23[%c0_73, %c0_74, %c1_75, %c0_76] : memref<1x10x10x32xbf16, #tpu.memory_space<vmem>>, vector<1x8x8x32xbf16>
    %c0_77 = arith.constant 0 : index
    %c0_78 = arith.constant 0 : index
    %c2_79 = arith.constant 2 : index
    %c0_80 = arith.constant 0 : index
    %57 = vector.load %arg23[%c0_77, %c0_78, %c2_79, %c0_80] : memref<1x10x10x32xbf16, #tpu.memory_space<vmem>>, vector<1x8x8x32xbf16>
    %c0_81 = arith.constant 0 : index
    %c1_82 = arith.constant 1 : index
    %c0_83 = arith.constant 0 : index
    %c0_84 = arith.constant 0 : index
    %58 = vector.load %arg23[%c0_81, %c1_82, %c0_83, %c0_84] : memref<1x10x10x32xbf16, #tpu.memory_space<vmem>>, vector<1x8x8x32xbf16>
    %c0_85 = arith.constant 0 : index
    %c1_86 = arith.constant 1 : index
    %c1_87 = arith.constant 1 : index
    %c0_88 = arith.constant 0 : index
    %59 = vector.load %arg23[%c0_85, %c1_86, %c1_87, %c0_88] : memref<1x10x10x32xbf16, #tpu.memory_space<vmem>>, vector<1x8x8x32xbf16>
    %c0_89 = arith.constant 0 : index
    %c1_90 = arith.constant 1 : index
    %c2_91 = arith.constant 2 : index
    %c0_92 = arith.constant 0 : index
    %60 = vector.load %arg23[%c0_89, %c1_90, %c2_91, %c0_92] : memref<1x10x10x32xbf16, #tpu.memory_space<vmem>>, vector<1x8x8x32xbf16>
    %c0_93 = arith.constant 0 : index
    %c2_94 = arith.constant 2 : index
    %c0_95 = arith.constant 0 : index
    %c0_96 = arith.constant 0 : index
    %61 = vector.load %arg23[%c0_93, %c2_94, %c0_95, %c0_96] : memref<1x10x10x32xbf16, #tpu.memory_space<vmem>>, vector<1x8x8x32xbf16>
    %c0_97 = arith.constant 0 : index
    %c2_98 = arith.constant 2 : index
    %c1_99 = arith.constant 1 : index
    %c0_100 = arith.constant 0 : index
    %62 = vector.load %arg23[%c0_97, %c2_98, %c1_99, %c0_100] : memref<1x10x10x32xbf16, #tpu.memory_space<vmem>>, vector<1x8x8x32xbf16>
    %c0_101 = arith.constant 0 : index
    %c2_102 = arith.constant 2 : index
    %c2_103 = arith.constant 2 : index
    %c0_104 = arith.constant 0 : index
    %63 = vector.load %arg23[%c0_101, %c2_102, %c2_103, %c0_104] : memref<1x10x10x32xbf16, #tpu.memory_space<vmem>>, vector<1x8x8x32xbf16>
    %64 = tpu.concatenate %55, %56, %57, %58, %59, %60, %61, %62, %63 in 3 : vector<1x8x8x32xbf16>, vector<1x8x8x32xbf16>, vector<1x8x8x32xbf16>, vector<1x8x8x32xbf16>, vector<1x8x8x32xbf16>, vector<1x8x8x32xbf16>, vector<1x8x8x32xbf16>, vector<1x8x8x32xbf16>, vector<1x8x8x32xbf16> -> vector<1x8x8x288xbf16>
    %65 = vector.shape_cast %64 : vector<1x8x8x288xbf16> to vector<64x288xbf16>
    %c0_105 = arith.constant 0 : index
    %c0_106 = arith.constant 0 : index
    %66 = vector.load %arg8[%c0_105, %c0_106] : memref<288x64xbf16, #tpu.memory_space<vmem>>, vector<288x64xbf16>
    %cst_107 = arith.constant dense<0.000000e+00> : vector<64x64xf32>
    %67 = tpu.matmul %65, %66, %cst_107 {dimension_numbers = #tpu.dot_dimension_numbers<[1], [0], [0], [1], [0, 0, 1, 1], [], []>} : vector<64x288xbf16>, vector<288x64xbf16>, vector<64x64xf32> -> vector<64x64xf32>
    %c0_108 = arith.constant 0 : index
    %c0_109 = arith.constant 0 : index
    %68 = vector.load %arg9[%c0_108, %c0_109] : memref<1x64xf32, #tpu.memory_space<vmem>>, vector<1x64xf32>
    %69 = vector.broadcast %68 : vector<1x64xf32> to vector<64x64xf32>
    %70 = arith.mulf %67, %69 : vector<64x64xf32>
    %c0_110 = arith.constant 0 : index
    %c0_111 = arith.constant 0 : index
    %71 = vector.load %arg10[%c0_110, %c0_111] : memref<1x64xf32, #tpu.memory_space<vmem>>, vector<1x64xf32>
    %72 = vector.broadcast %71 : vector<1x64xf32> to vector<64x64xf32>
    %73 = arith.addf %70, %72 : vector<64x64xf32>
    %cst_112 = arith.constant 0.000000e+00 : f32
    %74 = vector.broadcast %cst_112 : f32 to vector<64x64xf32>
    %75 = arith.maximumf %73, %74 : vector<64x64xf32>
    %76 = vector.shape_cast %75 : vector<64x64xf32> to vector<1x8x8x64xf32>
    %77 = arith.truncf %76 : vector<1x8x8x64xf32> to vector<1x8x8x64xbf16>
    %cst_113 = arith.constant 0.000000e+00 : bf16
    %78 = vector.broadcast %cst_113 : bf16 to vector<1x10x10x64xbf16>
    %c0_114 = arith.constant 0 : index
    %c0_115 = arith.constant 0 : index
    %c0_116 = arith.constant 0 : index
    %c0_117 = arith.constant 0 : index
    %79 = vector.load %arg24[%c0_114, %c0_115, %c0_116, %c0_117] : memref<1x10x10x64xbf16, #tpu.memory_space<vmem>>, vector<1x10x10x64xbf16>
    tpu.vector_store %arg24[%c0_114, %c0_115, %c0_116, %c0_117], %78 {strides = array<i32>} : memref<1x10x10x64xbf16, #tpu.memory_space<vmem>>, vector<1x10x10x64xbf16>,
    %c0_118 = arith.constant 0 : index
    %c1_119 = arith.constant 1 : index
    %c1_120 = arith.constant 1 : index
    %c0_121 = arith.constant 0 : index
    %80 = vector.load %arg24[%c0_118, %c1_119, %c1_120, %c0_121] : memref<1x10x10x64xbf16, #tpu.memory_space<vmem>>, vector<1x8x8x64xbf16>
    tpu.vector_store %arg24[%c0_118, %c1_119, %c1_120, %c0_121], %77 {strides = array<i32>} : memref<1x10x10x64xbf16, #tpu.memory_space<vmem>>, vector<1x8x8x64xbf16>,
    %cst_122 = arith.constant 0.000000e+00 : f32
    %81 = vector.broadcast %cst_122 : f32 to vector<64x128xf32>
    %c0_123 = arith.constant 0 : index
    %c0_124 = arith.constant 0 : index
    %c0_125 = arith.constant 0 : index
    %c0_126 = arith.constant 0 : index
    %82 = vector.load %arg24[%c0_123, %c0_124, %c0_125, %c0_126] : memref<1x10x10x64xbf16, #tpu.memory_space<vmem>>, vector<1x8x8x64xbf16>
    %83 = vector.shape_cast %82 : vector<1x8x8x64xbf16> to vector<64x64xbf16>
    %c0_127 = arith.constant 0 : index
    %c0_128 = arith.constant 0 : index
    %84 = vector.load %arg11[%c0_127, %c0_128] : memref<576x128xbf16, #tpu.memory_space<vmem>>, vector<64x128xbf16>
    %cst_129 = arith.constant dense<0.000000e+00> : vector<64x128xf32>
    %85 = tpu.matmul %83, %84, %cst_129 {dimension_numbers = #tpu.dot_dimension_numbers<[1], [0], [0], [1], [0, 0, 1, 1], [], []>} : vector<64x64xbf16>, vector<64x128xbf16>, vector<64x128xf32> -> vector<64x128xf32>
    %86 = arith.addf %81, %85 : vector<64x128xf32>
    %c0_130 = arith.constant 0 : index
    %c0_131 = arith.constant 0 : index
    %c1_132 = arith.constant 1 : index
    %c0_133 = arith.constant 0 : index
    %87 = vector.load %arg24[%c0_130, %c0_131, %c1_132, %c0_133] : memref<1x10x10x64xbf16, #tpu.memory_space<vmem>>, vector<1x8x8x64xbf16>
    %88 = vector.shape_cast %87 : vector<1x8x8x64xbf16> to vector<64x64xbf16>
    %c64 = arith.constant 64 : index
    %c0_134 = arith.constant 0 : index
    %89 = vector.load %arg11[%c64, %c0_134] : memref<576x128xbf16, #tpu.memory_space<vmem>>, vector<64x128xbf16>
    %cst_135 = arith.constant dense<0.000000e+00> : vector<64x128xf32>
    %90 = tpu.matmul %88, %89, %cst_135 {dimension_numbers = #tpu.dot_dimension_numbers<[1], [0], [0], [1], [0, 0, 1, 1], [], []>} : vector<64x64xbf16>, vector<64x128xbf16>, vector<64x128xf32> -> vector<64x128xf32>
    %91 = arith.addf %86, %90 : vector<64x128xf32>
    %c0_136 = arith.constant 0 : index
    %c0_137 = arith.constant 0 : index
    %c2_138 = arith.constant 2 : index
    %c0_139 = arith.constant 0 : index
    %92 = vector.load %arg24[%c0_136, %c0_137, %c2_138, %c0_139] : memref<1x10x10x64xbf16, #tpu.memory_space<vmem>>, vector<1x8x8x64xbf16>
    %93 = vector.shape_cast %92 : vector<1x8x8x64xbf16> to vector<64x64xbf16>
    %c128 = arith.constant 128 : index
    %c0_140 = arith.constant 0 : index
    %94 = vector.load %arg11[%c128, %c0_140] : memref<576x128xbf16, #tpu.memory_space<vmem>>, vector<64x128xbf16>
    %cst_141 = arith.constant dense<0.000000e+00> : vector<64x128xf32>
    %95 = tpu.matmul %93, %94, %cst_141 {dimension_numbers = #tpu.dot_dimension_numbers<[1], [0], [0], [1], [0, 0, 1, 1], [], []>} : vector<64x64xbf16>, vector<64x128xbf16>, vector<64x128xf32> -> vector<64x128xf32>
    %96 = arith.addf %91, %95 : vector<64x128xf32>
    %c0_142 = arith.constant 0 : index
    %c1_143 = arith.constant 1 : index
    %c0_144 = arith.constant 0 : index
    %c0_145 = arith.constant 0 : index
    %97 = vector.load %arg24[%c0_142, %c1_143, %c0_144, %c0_145] : memref<1x10x10x64xbf16, #tpu.memory_space<vmem>>, vector<1x8x8x64xbf16>
    %98 = vector.shape_cast %97 : vector<1x8x8x64xbf16> to vector<64x64xbf16>
    %c192 = arith.constant 192 : index
    %c0_146 = arith.constant 0 : index
    %99 = vector.load %arg11[%c192, %c0_146] : memref<576x128xbf16, #tpu.memory_space<vmem>>, vector<64x128xbf16>
    %cst_147 = arith.constant dense<0.000000e+00> : vector<64x128xf32>
    %100 = tpu.matmul %98, %99, %cst_147 {dimension_numbers = #tpu.dot_dimension_numbers<[1], [0], [0], [1], [0, 0, 1, 1], [], []>} : vector<64x64xbf16>, vector<64x128xbf16>, vector<64x128xf32> -> vector<64x128xf32>
    %101 = arith.addf %96, %100 : vector<64x128xf32>
    %c0_148 = arith.constant 0 : index
    %c1_149 = arith.constant 1 : index
    %c1_150 = arith.constant 1 : index
    %c0_151 = arith.constant 0 : index
    %102 = vector.load %arg24[%c0_148, %c1_149, %c1_150, %c0_151] : memref<1x10x10x64xbf16, #tpu.memory_space<vmem>>, vector<1x8x8x64xbf16>
    %103 = vector.shape_cast %102 : vector<1x8x8x64xbf16> to vector<64x64xbf16>
    %c256 = arith.constant 256 : index
    %c0_152 = arith.constant 0 : index
    %104 = vector.load %arg11[%c256, %c0_152] : memref<576x128xbf16, #tpu.memory_space<vmem>>, vector<64x128xbf16>
    %cst_153 = arith.constant dense<0.000000e+00> : vector<64x128xf32>
    %105 = tpu.matmul %103, %104, %cst_153 {dimension_numbers = #tpu.dot_dimension_numbers<[1], [0], [0], [1], [0, 0, 1, 1], [], []>} : vector<64x64xbf16>, vector<64x128xbf16>, vector<64x128xf32> -> vector<64x128xf32>
    %106 = arith.addf %101, %105 : vector<64x128xf32>
    %c0_154 = arith.constant 0 : index
    %c1_155 = arith.constant 1 : index
    %c2_156 = arith.constant 2 : index
    %c0_157 = arith.constant 0 : index
    %107 = vector.load %arg24[%c0_154, %c1_155, %c2_156, %c0_157] : memref<1x10x10x64xbf16, #tpu.memory_space<vmem>>, vector<1x8x8x64xbf16>
    %108 = vector.shape_cast %107 : vector<1x8x8x64xbf16> to vector<64x64xbf16>
    %c320 = arith.constant 320 : index
    %c0_158 = arith.constant 0 : index
    %109 = vector.load %arg11[%c320, %c0_158] : memref<576x128xbf16, #tpu.memory_space<vmem>>, vector<64x128xbf16>
    %cst_159 = arith.constant dense<0.000000e+00> : vector<64x128xf32>
    %110 = tpu.matmul %108, %109, %cst_159 {dimension_numbers = #tpu.dot_dimension_numbers<[1], [0], [0], [1], [0, 0, 1, 1], [], []>} : vector<64x64xbf16>, vector<64x128xbf16>, vector<64x128xf32> -> vector<64x128xf32>
    %111 = arith.addf %106, %110 : vector<64x128xf32>
    %c0_160 = arith.constant 0 : index
    %c2_161 = arith.constant 2 : index
    %c0_162 = arith.constant 0 : index
    %c0_163 = arith.constant 0 : index
    %112 = vector.load %arg24[%c0_160, %c2_161, %c0_162, %c0_163] : memref<1x10x10x64xbf16, #tpu.memory_space<vmem>>, vector<1x8x8x64xbf16>
    %113 = vector.shape_cast %112 : vector<1x8x8x64xbf16> to vector<64x64xbf16>
    %c384 = arith.constant 384 : index
    %c0_164 = arith.constant 0 : index
    %114 = vector.load %arg11[%c384, %c0_164] : memref<576x128xbf16, #tpu.memory_space<vmem>>, vector<64x128xbf16>
    %cst_165 = arith.constant dense<0.000000e+00> : vector<64x128xf32>
    %115 = tpu.matmul %113, %114, %cst_165 {dimension_numbers = #tpu.dot_dimension_numbers<[1], [0], [0], [1], [0, 0, 1, 1], [], []>} : vector<64x64xbf16>, vector<64x128xbf16>, vector<64x128xf32> -> vector<64x128xf32>
    %116 = arith.addf %111, %115 : vector<64x128xf32>
    %c0_166 = arith.constant 0 : index
    %c2_167 = arith.constant 2 : index
    %c1_168 = arith.constant 1 : index
    %c0_169 = arith.constant 0 : index
    %117 = vector.load %arg24[%c0_166, %c2_167, %c1_168, %c0_169] : memref<1x10x10x64xbf16, #tpu.memory_space<vmem>>, vector<1x8x8x64xbf16>
    %118 = vector.shape_cast %117 : vector<1x8x8x64xbf16> to vector<64x64xbf16>
    %c448 = arith.constant 448 : index
    %c0_170 = arith.constant 0 : index
    %119 = vector.load %arg11[%c448, %c0_170] : memref<576x128xbf16, #tpu.memory_space<vmem>>, vector<64x128xbf16>
    %cst_171 = arith.constant dense<0.000000e+00> : vector<64x128xf32>
    %120 = tpu.matmul %118, %119, %cst_171 {dimension_numbers = #tpu.dot_dimension_numbers<[1], [0], [0], [1], [0, 0, 1, 1], [], []>} : vector<64x64xbf16>, vector<64x128xbf16>, vector<64x128xf32> -> vector<64x128xf32>
    %121 = arith.addf %116, %120 : vector<64x128xf32>
    %c0_172 = arith.constant 0 : index
    %c2_173 = arith.constant 2 : index
    %c2_174 = arith.constant 2 : index
    %c0_175 = arith.constant 0 : index
    %122 = vector.load %arg24[%c0_172, %c2_173, %c2_174, %c0_175] : memref<1x10x10x64xbf16, #tpu.memory_space<vmem>>, vector<1x8x8x64xbf16>
    %123 = vector.shape_cast %122 : vector<1x8x8x64xbf16> to vector<64x64xbf16>
    %c512 = arith.constant 512 : index
    %c0_176 = arith.constant 0 : index
    %124 = vector.load %arg11[%c512, %c0_176] : memref<576x128xbf16, #tpu.memory_space<vmem>>, vector<64x128xbf16>
    %cst_177 = arith.constant dense<0.000000e+00> : vector<64x128xf32>
    %125 = tpu.matmul %123, %124, %cst_177 {dimension_numbers = #tpu.dot_dimension_numbers<[1], [0], [0], [1], [0, 0, 1, 1], [], []>} : vector<64x64xbf16>, vector<64x128xbf16>, vector<64x128xf32> -> vector<64x128xf32>
    %126 = arith.addf %121, %125 : vector<64x128xf32>
    %c0_178 = arith.constant 0 : index
    %c0_179 = arith.constant 0 : index
    %127 = vector.load %arg12[%c0_178, %c0_179] : memref<1x128xf32, #tpu.memory_space<vmem>>, vector<1x128xf32>
    %128 = vector.broadcast %127 : vector<1x128xf32> to vector<64x128xf32>
    %129 = arith.mulf %126, %128 : vector<64x128xf32>
    %c0_180 = arith.constant 0 : index
    %c0_181 = arith.constant 0 : index
    %130 = vector.load %arg13[%c0_180, %c0_181] : memref<1x128xf32, #tpu.memory_space<vmem>>, vector<1x128xf32>
    %131 = vector.broadcast %130 : vector<1x128xf32> to vector<64x128xf32>
    %132 = arith.addf %129, %131 : vector<64x128xf32>
    %cst_182 = arith.constant 0.000000e+00 : f32
    %133 = vector.broadcast %cst_182 : f32 to vector<64x128xf32>
    %134 = arith.maximumf %132, %133 : vector<64x128xf32>
    %135 = vector.shape_cast %134 : vector<64x128xf32> to vector<1x4x2x4x2x128xf32>
    %136 = vector.extract_strided_slice %135 {offsets = [0, 0, 0, 0, 0, 0], sizes = [1, 4, 1, 4, 2, 128], strides = [1, 1, 1, 1, 1, 1]} : vector<1x4x2x4x2x128xf32> to vector<1x4x1x4x2x128xf32>
    %137 = vector.shape_cast %136 : vector<1x4x1x4x2x128xf32> to vector<1x4x4x2x128xf32>
    %138 = vector.extract_strided_slice %135 {offsets = [0, 0, 1, 0, 0, 0], sizes = [1, 4, 1, 4, 2, 128], strides = [1, 1, 1, 1, 1, 1]} : vector<1x4x2x4x2x128xf32> to vector<1x4x1x4x2x128xf32>
    %139 = vector.shape_cast %138 : vector<1x4x1x4x2x128xf32> to vector<1x4x4x2x128xf32>
    %140 = arith.maximumf %137, %139 : vector<1x4x4x2x128xf32>
    %141 = vector.extract_strided_slice %140 {offsets = [0, 0, 0, 0, 0], sizes = [1, 4, 4, 1, 128], strides = [1, 1, 1, 1, 1]} : vector<1x4x4x2x128xf32> to vector<1x4x4x1x128xf32>
    %142 = vector.shape_cast %141 : vector<1x4x4x1x128xf32> to vector<1x4x4x128xf32>
    %143 = vector.extract_strided_slice %140 {offsets = [0, 0, 0, 1, 0], sizes = [1, 4, 4, 1, 128], strides = [1, 1, 1, 1, 1]} : vector<1x4x4x2x128xf32> to vector<1x4x4x1x128xf32>
    %144 = vector.shape_cast %143 : vector<1x4x4x1x128xf32> to vector<1x4x4x128xf32>
    %145 = arith.maximumf %142, %144 : vector<1x4x4x128xf32>
    %146 = vector.shape_cast %145 : vector<1x4x4x128xf32> to vector<16x128xf32>
    %147 = vector.shape_cast %146 : vector<16x128xf32> to vector<1x4x4x128xf32>
    %148 = arith.truncf %147 : vector<1x4x4x128xf32> to vector<1x4x4x128xbf16>
    %cst_183 = arith.constant 0.000000e+00 : bf16
    %149 = vector.broadcast %cst_183 : bf16 to vector<1x6x6x128xbf16>
    %c0_184 = arith.constant 0 : index
    %c0_185 = arith.constant 0 : index
    %c0_186 = arith.constant 0 : index
    %c0_187 = arith.constant 0 : index
    %150 = vector.load %arg25[%c0_184, %c0_185, %c0_186, %c0_187] : memref<1x6x6x128xbf16, #tpu.memory_space<vmem>>, vector<1x6x6x128xbf16>
    tpu.vector_store %arg25[%c0_184, %c0_185, %c0_186, %c0_187], %149 {strides = array<i32>} : memref<1x6x6x128xbf16, #tpu.memory_space<vmem>>, vector<1x6x6x128xbf16>,
    %c0_188 = arith.constant 0 : index
    %c1_189 = arith.constant 1 : index
    %c1_190 = arith.constant 1 : index
    %c0_191 = arith.constant 0 : index
    %151 = vector.load %arg25[%c0_188, %c1_189, %c1_190, %c0_191] : memref<1x6x6x128xbf16, #tpu.memory_space<vmem>>, vector<1x4x4x128xbf16>
    tpu.vector_store %arg25[%c0_188, %c1_189, %c1_190, %c0_191], %148 {strides = array<i32>} : memref<1x6x6x128xbf16, #tpu.memory_space<vmem>>, vector<1x4x4x128xbf16>,
    %cst_192 = arith.constant 0.000000e+00 : f32
    %152 = vector.broadcast %cst_192 : f32 to vector<16x256xf32>
    %c0_193 = arith.constant 0 : index
    %c0_194 = arith.constant 0 : index
    %c0_195 = arith.constant 0 : index
    %c0_196 = arith.constant 0 : index
    %153 = vector.load %arg25[%c0_193, %c0_194, %c0_195, %c0_196] : memref<1x6x6x128xbf16, #tpu.memory_space<vmem>>, vector<1x4x4x128xbf16>
    %154 = vector.shape_cast %153 : vector<1x4x4x128xbf16> to vector<16x128xbf16>
    %c0_197 = arith.constant 0 : index
    %c0_198 = arith.constant 0 : index
    %155 = vector.load %arg14[%c0_197, %c0_198] : memref<1152x256xbf16, #tpu.memory_space<vmem>>, vector<128x256xbf16>
    %cst_199 = arith.constant dense<0.000000e+00> : vector<16x256xf32>
    %156 = tpu.matmul %154, %155, %cst_199 {dimension_numbers = #tpu.dot_dimension_numbers<[1], [0], [0], [1], [0, 0, 1, 1], [], []>} : vector<16x128xbf16>, vector<128x256xbf16>, vector<16x256xf32> -> vector<16x256xf32>
    %157 = arith.addf %152, %156 : vector<16x256xf32>
    %c0_200 = arith.constant 0 : index
    %c0_201 = arith.constant 0 : index
    %c1_202 = arith.constant 1 : index
    %c0_203 = arith.constant 0 : index
    %158 = vector.load %arg25[%c0_200, %c0_201, %c1_202, %c0_203] : memref<1x6x6x128xbf16, #tpu.memory_space<vmem>>, vector<1x4x4x128xbf16>
    %159 = vector.shape_cast %158 : vector<1x4x4x128xbf16> to vector<16x128xbf16>
    %c128_204 = arith.constant 128 : index
    %c0_205 = arith.constant 0 : index
    %160 = vector.load %arg14[%c128_204, %c0_205] : memref<1152x256xbf16, #tpu.memory_space<vmem>>, vector<128x256xbf16>
    %cst_206 = arith.constant dense<0.000000e+00> : vector<16x256xf32>
    %161 = tpu.matmul %159, %160, %cst_206 {dimension_numbers = #tpu.dot_dimension_numbers<[1], [0], [0], [1], [0, 0, 1, 1], [], []>} : vector<16x128xbf16>, vector<128x256xbf16>, vector<16x256xf32> -> vector<16x256xf32>
    %162 = arith.addf %157, %161 : vector<16x256xf32>
    %c0_207 = arith.constant 0 : index
    %c0_208 = arith.constant 0 : index
    %c2_209 = arith.constant 2 : index
    %c0_210 = arith.constant 0 : index
    %163 = vector.load %arg25[%c0_207, %c0_208, %c2_209, %c0_210] : memref<1x6x6x128xbf16, #tpu.memory_space<vmem>>, vector<1x4x4x128xbf16>
    %164 = vector.shape_cast %163 : vector<1x4x4x128xbf16> to vector<16x128xbf16>
    %c256_211 = arith.constant 256 : index
    %c0_212 = arith.constant 0 : index
    %165 = vector.load %arg14[%c256_211, %c0_212] : memref<1152x256xbf16, #tpu.memory_space<vmem>>, vector<128x256xbf16>
    %cst_213 = arith.constant dense<0.000000e+00> : vector<16x256xf32>
    %166 = tpu.matmul %164, %165, %cst_213 {dimension_numbers = #tpu.dot_dimension_numbers<[1], [0], [0], [1], [0, 0, 1, 1], [], []>} : vector<16x128xbf16>, vector<128x256xbf16>, vector<16x256xf32> -> vector<16x256xf32>
    %167 = arith.addf %162, %166 : vector<16x256xf32>
    %c0_214 = arith.constant 0 : index
    %c1_215 = arith.constant 1 : index
    %c0_216 = arith.constant 0 : index
    %c0_217 = arith.constant 0 : index
    %168 = vector.load %arg25[%c0_214, %c1_215, %c0_216, %c0_217] : memref<1x6x6x128xbf16, #tpu.memory_space<vmem>>, vector<1x4x4x128xbf16>
    %169 = vector.shape_cast %168 : vector<1x4x4x128xbf16> to vector<16x128xbf16>
    %c384_218 = arith.constant 384 : index
    %c0_219 = arith.constant 0 : index
    %170 = vector.load %arg14[%c384_218, %c0_219] : memref<1152x256xbf16, #tpu.memory_space<vmem>>, vector<128x256xbf16>
    %cst_220 = arith.constant dense<0.000000e+00> : vector<16x256xf32>
    %171 = tpu.matmul %169, %170, %cst_220 {dimension_numbers = #tpu.dot_dimension_numbers<[1], [0], [0], [1], [0, 0, 1, 1], [], []>} : vector<16x128xbf16>, vector<128x256xbf16>, vector<16x256xf32> -> vector<16x256xf32>
    %172 = arith.addf %167, %171 : vector<16x256xf32>
    %c0_221 = arith.constant 0 : index
    %c1_222 = arith.constant 1 : index
    %c1_223 = arith.constant 1 : index
    %c0_224 = arith.constant 0 : index
    %173 = vector.load %arg25[%c0_221, %c1_222, %c1_223, %c0_224] : memref<1x6x6x128xbf16, #tpu.memory_space<vmem>>, vector<1x4x4x128xbf16>
    %174 = vector.shape_cast %173 : vector<1x4x4x128xbf16> to vector<16x128xbf16>
    %c512_225 = arith.constant 512 : index
    %c0_226 = arith.constant 0 : index
    %175 = vector.load %arg14[%c512_225, %c0_226] : memref<1152x256xbf16, #tpu.memory_space<vmem>>, vector<128x256xbf16>
    %cst_227 = arith.constant dense<0.000000e+00> : vector<16x256xf32>
    %176 = tpu.matmul %174, %175, %cst_227 {dimension_numbers = #tpu.dot_dimension_numbers<[1], [0], [0], [1], [0, 0, 1, 1], [], []>} : vector<16x128xbf16>, vector<128x256xbf16>, vector<16x256xf32> -> vector<16x256xf32>
    %177 = arith.addf %172, %176 : vector<16x256xf32>
    %c0_228 = arith.constant 0 : index
    %c1_229 = arith.constant 1 : index
    %c2_230 = arith.constant 2 : index
    %c0_231 = arith.constant 0 : index
    %178 = vector.load %arg25[%c0_228, %c1_229, %c2_230, %c0_231] : memref<1x6x6x128xbf16, #tpu.memory_space<vmem>>, vector<1x4x4x128xbf16>
    %179 = vector.shape_cast %178 : vector<1x4x4x128xbf16> to vector<16x128xbf16>
    %c640 = arith.constant 640 : index
    %c0_232 = arith.constant 0 : index
    %180 = vector.load %arg14[%c640, %c0_232] : memref<1152x256xbf16, #tpu.memory_space<vmem>>, vector<128x256xbf16>
    %cst_233 = arith.constant dense<0.000000e+00> : vector<16x256xf32>
    %181 = tpu.matmul %179, %180, %cst_233 {dimension_numbers = #tpu.dot_dimension_numbers<[1], [0], [0], [1], [0, 0, 1, 1], [], []>} : vector<16x128xbf16>, vector<128x256xbf16>, vector<16x256xf32> -> vector<16x256xf32>
    %182 = arith.addf %177, %181 : vector<16x256xf32>
    %c0_234 = arith.constant 0 : index
    %c2_235 = arith.constant 2 : index
    %c0_236 = arith.constant 0 : index
    %c0_237 = arith.constant 0 : index
    %183 = vector.load %arg25[%c0_234, %c2_235, %c0_236, %c0_237] : memref<1x6x6x128xbf16, #tpu.memory_space<vmem>>, vector<1x4x4x128xbf16>
    %184 = vector.shape_cast %183 : vector<1x4x4x128xbf16> to vector<16x128xbf16>
    %c768 = arith.constant 768 : index
    %c0_238 = arith.constant 0 : index
    %185 = vector.load %arg14[%c768, %c0_238] : memref<1152x256xbf16, #tpu.memory_space<vmem>>, vector<128x256xbf16>
    %cst_239 = arith.constant dense<0.000000e+00> : vector<16x256xf32>
    %186 = tpu.matmul %184, %185, %cst_239 {dimension_numbers = #tpu.dot_dimension_numbers<[1], [0], [0], [1], [0, 0, 1, 1], [], []>} : vector<16x128xbf16>, vector<128x256xbf16>, vector<16x256xf32> -> vector<16x256xf32>
    %187 = arith.addf %182, %186 : vector<16x256xf32>
    %c0_240 = arith.constant 0 : index
    %c2_241 = arith.constant 2 : index
    %c1_242 = arith.constant 1 : index
    %c0_243 = arith.constant 0 : index
    %188 = vector.load %arg25[%c0_240, %c2_241, %c1_242, %c0_243] : memref<1x6x6x128xbf16, #tpu.memory_space<vmem>>, vector<1x4x4x128xbf16>
    %189 = vector.shape_cast %188 : vector<1x4x4x128xbf16> to vector<16x128xbf16>
    %c896 = arith.constant 896 : index
    %c0_244 = arith.constant 0 : index
    %190 = vector.load %arg14[%c896, %c0_244] : memref<1152x256xbf16, #tpu.memory_space<vmem>>, vector<128x256xbf16>
    %cst_245 = arith.constant dense<0.000000e+00> : vector<16x256xf32>
    %191 = tpu.matmul %189, %190, %cst_245 {dimension_numbers = #tpu.dot_dimension_numbers<[1], [0], [0], [1], [0, 0, 1, 1], [], []>} : vector<16x128xbf16>, vector<128x256xbf16>, vector<16x256xf32> -> vector<16x256xf32>
    %192 = arith.addf %187, %191 : vector<16x256xf32>
    %c0_246 = arith.constant 0 : index
    %c2_247 = arith.constant 2 : index
    %c2_248 = arith.constant 2 : index
    %c0_249 = arith.constant 0 : index
    %193 = vector.load %arg25[%c0_246, %c2_247, %c2_248, %c0_249] : memref<1x6x6x128xbf16, #tpu.memory_space<vmem>>, vector<1x4x4x128xbf16>
    %194 = vector.shape_cast %193 : vector<1x4x4x128xbf16> to vector<16x128xbf16>
    %c1024 = arith.constant 1024 : index
    %c0_250 = arith.constant 0 : index
    %195 = vector.load %arg14[%c1024, %c0_250] : memref<1152x256xbf16, #tpu.memory_space<vmem>>, vector<128x256xbf16>
    %cst_251 = arith.constant dense<0.000000e+00> : vector<16x256xf32>
    %196 = tpu.matmul %194, %195, %cst_251 {dimension_numbers = #tpu.dot_dimension_numbers<[1], [0], [0], [1], [0, 0, 1, 1], [], []>} : vector<16x128xbf16>, vector<128x256xbf16>, vector<16x256xf32> -> vector<16x256xf32>
    %197 = arith.addf %192, %196 : vector<16x256xf32>
    %c0_252 = arith.constant 0 : index
    %c0_253 = arith.constant 0 : index
    %198 = vector.load %arg15[%c0_252, %c0_253] : memref<1x256xf32, #tpu.memory_space<vmem>>, vector<1x256xf32>
    %199 = vector.broadcast %198 : vector<1x256xf32> to vector<16x256xf32>
    %200 = arith.mulf %197, %199 : vector<16x256xf32>
    %c0_254 = arith.constant 0 : index
    %c0_255 = arith.constant 0 : index
    %201 = vector.load %arg16[%c0_254, %c0_255] : memref<1x256xf32, #tpu.memory_space<vmem>>, vector<1x256xf32>
    %202 = vector.broadcast %201 : vector<1x256xf32> to vector<16x256xf32>
    %203 = arith.addf %200, %202 : vector<16x256xf32>
    %cst_256 = arith.constant 0.000000e+00 : f32
    %204 = vector.broadcast %cst_256 : f32 to vector<16x256xf32>
    %205 = arith.maximumf %203, %204 : vector<16x256xf32>
    %206 = vector.shape_cast %205 : vector<16x256xf32> to vector<1x16x256xf32>
    %cst_257 = arith.constant dense<0.000000e+00> : vector<1x256xf32>
    %207 = vector.multi_reduction <add>, %206, %cst_257 [1] : vector<1x16x256xf32> to vector<1x256xf32>
    %208 = arith.truncf %207 : vector<1x256xf32> to vector<1x256xbf16>
    %c0_258 = arith.constant 0 : index
    %c0_259 = arith.constant 0 : index
    %209 = vector.load %arg17[%c0_258, %c0_259] : memref<256x128xbf16, #tpu.memory_space<vmem>>, vector<256x128xbf16>
    %cst_260 = arith.constant dense<0.000000e+00> : vector<1x128xf32>
    %210 = tpu.matmul %208, %209, %cst_260 {dimension_numbers = #tpu.dot_dimension_numbers<[1], [0], [0], [1], [0, 0, 1, 1], [], []>} : vector<1x256xbf16>, vector<256x128xbf16>, vector<1x128xf32> -> vector<1x128xf32>
    %c0_261 = arith.constant 0 : index
    %c0_262 = arith.constant 0 : index
    %211 = vector.load %arg18[%c0_261, %c0_262] : memref<1x128xf32, #tpu.memory_space<vmem>>, vector<1x128xf32>
    %212 = arith.addf %210, %211 : vector<1x128xf32>
    %cst_263 = arith.constant 0.000000e+00 : f32
    %213 = vector.broadcast %cst_263 : f32 to vector<1x128xf32>
    %214 = arith.maximumf %212, %213 : vector<1x128xf32>
    %215 = arith.truncf %214 : vector<1x128xf32> to vector<1x128xbf16>
    %c0_264 = arith.constant 0 : index
    %c0_265 = arith.constant 0 : index
    %216 = vector.load %arg19[%c0_264, %c0_265] : memref<128x128xbf16, #tpu.memory_space<vmem>>, vector<128x128xbf16>
    %cst_266 = arith.constant dense<0.000000e+00> : vector<1x128xf32>
    %217 = tpu.matmul %215, %216, %cst_266 {dimension_numbers = #tpu.dot_dimension_numbers<[1], [0], [0], [1], [0, 0, 1, 1], [], []>} : vector<1x128xbf16>, vector<128x128xbf16>, vector<1x128xf32> -> vector<1x128xf32>
    %c0_267 = arith.constant 0 : index
    %c0_268 = arith.constant 0 : index
    %218 = vector.load %arg20[%c0_267, %c0_268] : memref<1x128xf32, #tpu.memory_space<vmem>>, vector<1x128xf32>
    %219 = arith.addf %217, %218 : vector<1x128xf32>
    %c0_269 = arith.constant 0 : index
    %c0_270 = arith.constant 0 : index
    %c0_271 = arith.constant 0 : index
    %220 = vector.load %arg21[%c0_269, %c0_270, %c0_271] : memref<1x1x128xf32, #tpu.memory_space<vmem>>, vector<1x1x128xf32>
    %221 = vector.shape_cast %220 : vector<1x1x128xf32> to vector<1x128xf32>
    %222 = vector.shape_cast %219 : vector<1x128xf32> to vector<1x1x128xf32>
    tpu.vector_store %arg21[%c0_269, %c0_270, %c0_271], %222 {strides = array<i32>} : memref<1x1x128xf32, #tpu.memory_space<vmem>>, vector<1x1x128xf32>,
    return
  }
  func.func @transform_0(%arg0: i32) -> (i32, i32, i32) {
    %c0_i32 = arith.constant 0 : i32
    %c0_i32_0 = arith.constant 0 : i32
    %c0_i32_1 = arith.constant 0 : i32
    return %arg0, %c0_i32, %c0_i32_0 : i32, i32, i32
  }
  func.func @transform_1(%arg0: i32) -> (i32, i32) {
    %c0_i32 = arith.constant 0 : i32
    %c0_i32_0 = arith.constant 0 : i32
    %c0_i32_1 = arith.constant 0 : i32
    return %c0_i32, %c0_i32_0 : i32, i32
  }
  func.func @transform_2(%arg0: i32) -> (i32, i32) {
    %c0_i32 = arith.constant 0 : i32
    %c0_i32_0 = arith.constant 0 : i32
    %c0_i32_1 = arith.constant 0 : i32
    return %c0_i32, %c0_i32_0 : i32, i32
  }
  func.func @transform_3(%arg0: i32) -> (i32, i32) {
    %c0_i32 = arith.constant 0 : i32
    %c0_i32_0 = arith.constant 0 : i32
    %c0_i32_1 = arith.constant 0 : i32
    return %c0_i32, %c0_i32_0 : i32, i32
  }
  func.func @transform_4(%arg0: i32) -> (i32, i32) {
    %c0_i32 = arith.constant 0 : i32
    %c0_i32_0 = arith.constant 0 : i32
    %c0_i32_1 = arith.constant 0 : i32
    return %c0_i32, %c0_i32_0 : i32, i32
  }
  func.func @transform_5(%arg0: i32) -> (i32, i32) {
    %c0_i32 = arith.constant 0 : i32
    %c0_i32_0 = arith.constant 0 : i32
    %c0_i32_1 = arith.constant 0 : i32
    return %c0_i32, %c0_i32_0 : i32, i32
  }
  func.func @transform_6(%arg0: i32) -> (i32, i32) {
    %c0_i32 = arith.constant 0 : i32
    %c0_i32_0 = arith.constant 0 : i32
    %c0_i32_1 = arith.constant 0 : i32
    return %c0_i32, %c0_i32_0 : i32, i32
  }
  func.func @transform_7(%arg0: i32) -> (i32, i32) {
    %c0_i32 = arith.constant 0 : i32
    %c0_i32_0 = arith.constant 0 : i32
    %c0_i32_1 = arith.constant 0 : i32
    return %c0_i32, %c0_i32_0 : i32, i32
  }
  func.func @transform_8(%arg0: i32) -> (i32, i32) {
    %c0_i32 = arith.constant 0 : i32
    %c0_i32_0 = arith.constant 0 : i32
    %c0_i32_1 = arith.constant 0 : i32
    return %c0_i32, %c0_i32_0 : i32, i32
  }
  func.func @transform_9(%arg0: i32) -> (i32, i32) {
    %c0_i32 = arith.constant 0 : i32
    %c0_i32_0 = arith.constant 0 : i32
    %c0_i32_1 = arith.constant 0 : i32
    return %c0_i32, %c0_i32_0 : i32, i32
  }
  func.func @transform_10(%arg0: i32) -> (i32, i32) {
    %c0_i32 = arith.constant 0 : i32
    %c0_i32_0 = arith.constant 0 : i32
    %c0_i32_1 = arith.constant 0 : i32
    return %c0_i32, %c0_i32_0 : i32, i32
  }
  func.func @transform_11(%arg0: i32) -> (i32, i32) {
    %c0_i32 = arith.constant 0 : i32
    %c0_i32_0 = arith.constant 0 : i32
    %c0_i32_1 = arith.constant 0 : i32
    return %c0_i32, %c0_i32_0 : i32, i32
  }
  func.func @transform_12(%arg0: i32) -> (i32, i32) {
    %c0_i32 = arith.constant 0 : i32
    %c0_i32_0 = arith.constant 0 : i32
    %c0_i32_1 = arith.constant 0 : i32
    return %c0_i32, %c0_i32_0 : i32, i32
  }
  func.func @transform_13(%arg0: i32) -> (i32, i32) {
    %c0_i32 = arith.constant 0 : i32
    %c0_i32_0 = arith.constant 0 : i32
    %c0_i32_1 = arith.constant 0 : i32
    return %c0_i32, %c0_i32_0 : i32, i32
  }
  func.func @transform_14(%arg0: i32) -> (i32, i32) {
    %c0_i32 = arith.constant 0 : i32
    %c0_i32_0 = arith.constant 0 : i32
    %c0_i32_1 = arith.constant 0 : i32
    return %c0_i32, %c0_i32_0 : i32, i32
  }
  func.func @transform_15(%arg0: i32) -> (i32, i32) {
    %c0_i32 = arith.constant 0 : i32
    %c0_i32_0 = arith.constant 0 : i32
    %c0_i32_1 = arith.constant 0 : i32
    return %c0_i32, %c0_i32_0 : i32, i32
  }
  func.func @transform_16(%arg0: i32) -> (i32, i32) {
    %c0_i32 = arith.constant 0 : i32
    %c0_i32_0 = arith.constant 0 : i32
    %c0_i32_1 = arith.constant 0 : i32
    return %c0_i32, %c0_i32_0 : i32, i32
  }
  func.func @transform_17(%arg0: i32) -> (i32, i32) {
    %c0_i32 = arith.constant 0 : i32
    %c0_i32_0 = arith.constant 0 : i32
    %c0_i32_1 = arith.constant 0 : i32
    return %c0_i32, %c0_i32_0 : i32, i32
  }
  func.func @transform_18(%arg0: i32) -> (i32, i32) {
    %c0_i32 = arith.constant 0 : i32
    %c0_i32_0 = arith.constant 0 : i32
    %c0_i32_1 = arith.constant 0 : i32
    return %c0_i32, %c0_i32_0 : i32, i32
  }
  func.func @transform_19(%arg0: i32) -> (i32, i32) {
    %c0_i32 = arith.constant 0 : i32
    %c0_i32_0 = arith.constant 0 : i32
    %c0_i32_1 = arith.constant 0 : i32
    return %c0_i32, %c0_i32_0 : i32, i32
  }
  func.func @transform_20(%arg0: i32) -> (i32, i32, i32) {
    %c0_i32 = arith.constant 0 : i32
    %c0_i32_0 = arith.constant 0 : i32
    %c0_i32_1 = arith.constant 0 : i32
    return %arg0, %c0_i32, %c0_i32_0 : i32, i32, i32
  }
}

</mosaic_0001>

<llo_original>
// kernel: _lambda_.1
$region0: #{_lambda_.1}
  #allocation0 [shape = 'u32[]', space=smem, size = 0x4, offset = 0x4, fixed_abs, tag = 'smem constant byte address 0x4 - core index']
  #allocation1 [shape = 'u32[144,128]{1,0:T(1,128)}', space=vmem, size = 0x12000, scoped, tag = 'internal scratch']
  #allocation2 [shape = 'bf16[1,18,18,16]{3,2,1,0:T(8,128)(2,1)}', space=vmem, size = 0x1b000, scoped, tag = 'scratch operand']
  #allocation3 [shape = 'bf16[1,10,10,32]{3,2,1,0:T(8,128)(2,1)}', space=vmem, size = 0xa000, scoped, tag = 'scratch operand']
  #allocation4 [shape = 'bf16[1,10,10,64]{3,2,1,0:T(8,128)(2,1)}', space=vmem, size = 0xa000, scoped, tag = 'scratch operand']
  #allocation5 [shape = 'bf16[1,6,6,128]{3,2,1,0:T(8,128)(2,1)}', space=vmem, size = 0x3000, scoped, tag = 'scratch operand']
  %s0 = inlined_call_operand.vmem [shape: bf16[2,256,32], index: 0, kind: input, shape index: {}]
  %s1 = inlined_call_operand.vmem [shape: bf16[32,16], index: 1, kind: input, shape index: {}]
  %s2 = inlined_call_operand.vmem [shape: f32[1,16], index: 2, kind: input, shape index: {}]
  %s3 = inlined_call_operand.vmem [shape: f32[1,16], index: 3, kind: input, shape index: {}]
  %s4 = inlined_call_operand.vmem [shape: bf16[144,32], index: 4, kind: input, shape index: {}]
  %s5 = inlined_call_operand.vmem [shape: f32[1,32], index: 5, kind: input, shape index: {}]
  %s6 = inlined_call_operand.vmem [shape: f32[1,32], index: 6, kind: input, shape index: {}]
  %s7 = inlined_call_operand.vmem [shape: bf16[288,64], index: 7, kind: input, shape index: {}]
  %s8 = inlined_call_operand.vmem [shape: f32[1,64], index: 8, kind: input, shape index: {}]
  %s9 = inlined_call_operand.vmem [shape: f32[1,64], index: 9, kind: input, shape index: {}]
  %s10 = inlined_call_operand.vmem [shape: bf16[576,128], index: 10, kind: input, shape index: {}]
  %s11 = inlined_call_operand.vmem [shape: f32[1,128], index: 11, kind: input, shape index: {}]
  %s12 = inlined_call_operand.vmem [shape: f32[1,128], index: 12, kind: input, shape index: {}]
  %s13 = inlined_call_operand.vmem [shape: bf16[1152,256], index: 13, kind: input, shape index: {}]
  %s14 = inlined_call_operand.vmem [shape: f32[1,256], index: 14, kind: input, shape index: {}]
  %s15 = inlined_call_operand.vmem [shape: f32[1,256], index: 15, kind: input, shape index: {}]
  %s16 = inlined_call_operand.vmem [shape: bf16[256,128], index: 16, kind: input, shape index: {}]
  %s17 = inlined_call_operand.vmem [shape: f32[1,128], index: 17, kind: input, shape index: {}]
  %s18 = inlined_call_operand.vmem [shape: bf16[128,128], index: 18, kind: input, shape index: {}]
  %s19 = inlined_call_operand.vmem [shape: f32[1,128], index: 19, kind: input, shape index: {}]
  %s20 = inlined_call_operand.hbm [shape: f32[2,1,128], index: 20, kind: output, shape index: {}]
  %s21 = sld [smem:[#allocation0]]
  $region113: #{_lambda_.1} parent=0
    _
  %s23 = ssub.s32 1, %s21
  %s24 = scalar_select 0, %s23, %s21
  $region1: #{_lambda_.1} parent=0
    #allocation6 [shape = 'u8[1024]{0}', space=vmem, size = 0x400, scoped, tag = 'output window, operand 0']
    #allocation7 [shape = 's32[2]{0}', space=sflag, size = 0x8, scoped, tag = 'scoped memory for _lambda_.1']
    %25 = vsyncpa [#allocation7], 0
    %s26 = scalar_lea.sflag [#allocation7], 1
    %27 = vsyncpa %s26, 0
    loop: start=0, step=1, limit=4
    $region2: #{_lambda_.1} parent=1 // loop_pre_header
      _
    $region3: #{_lambda_.1} parent=1 // loop_header
      %s29 = sphi 0, %s33
      %p30 = scmp.ge.s32.totalorder %s29, 4
      %s39 = sphi 0, %s41
      %s42 = sphi 0, %s39
      %s43 = sphi 0, %s42
      %s59 = sphi 0, %s43
      %s63 = sphi 0, %s63
      %s65 = sphi 0, %s63
      %s66 = sphi 0, %s65
      %s80 = sphi 0, %s66
      %s84 = sphi 0, %s84
      %s86 = sphi 0, %s84
      %s87 = sphi 0, %s86
      %s101 = sphi 0, %s87
      %s105 = sphi 0, %s105
      %s107 = sphi 0, %s105
      %s108 = sphi 0, %s107
      %s122 = sphi 0, %s108
      %s126 = sphi 0, %s126
      %s128 = sphi 0, %s126
      %s129 = sphi 0, %s128
      %s143 = sphi 0, %s129
      %s147 = sphi 0, %s147
      %s149 = sphi 0, %s147
      %s150 = sphi 0, %s149
      %s164 = sphi 0, %s150
      %s168 = sphi 0, %s168
      %s170 = sphi 0, %s168
      %s171 = sphi 0, %s170
      %s185 = sphi 0, %s171
      %s189 = sphi 0, %s189
      %s191 = sphi 0, %s189
      %s192 = sphi 0, %s191
      %s206 = sphi 0, %s192
      %s210 = sphi 0, %s210
      %s212 = sphi 0, %s210
      %s213 = sphi 0, %s212
      %s227 = sphi 0, %s213
      %s231 = sphi 0, %s231
      %s233 = sphi 0, %s231
      %s234 = sphi 0, %s233
      %s248 = sphi 0, %s234
      %s252 = sphi 0, %s252
      %s254 = sphi 0, %s252
      %s255 = sphi 0, %s254
      %s269 = sphi 0, %s255
      %s273 = sphi 0, %s273
      %s275 = sphi 0, %s273
      %s276 = sphi 0, %s275
      %s290 = sphi 0, %s276
      %s294 = sphi 0, %s294
      %s296 = sphi 0, %s294
      %s297 = sphi 0, %s296
      %s311 = sphi 0, %s297
      %s315 = sphi 0, %s315
      %s317 = sphi 0, %s315
      %s318 = sphi 0, %s317
      %s332 = sphi 0, %s318
      %s336 = sphi 0, %s336
      %s338 = sphi 0, %s336
      %s339 = sphi 0, %s338
      %s353 = sphi 0, %s339
      %s357 = sphi 0, %s357
      %s359 = sphi 0, %s357
      %s360 = sphi 0, %s359
      %s374 = sphi 0, %s360
      %s378 = sphi 0, %s378
      %s380 = sphi 0, %s378
      %s381 = sphi 0, %s380
      %s395 = sphi 0, %s381
      %s399 = sphi 0, %s399
      %s401 = sphi 0, %s399
      %s402 = sphi 0, %s401
      %s416 = sphi 0, %s402
      %s420 = sphi 0, %s420
      %s422 = sphi 0, %s420
      %s423 = sphi 0, %s422
      %s437 = sphi 0, %s423
      %s441 = sphi 0, %s441
      %s443 = sphi 0, %s441
      %s444 = sphi 0, %s443
      %s458 = sphi 0, %s444
      %s464 = sphi 0, %s466
      %s467 = sphi 0, %s464
      %s468 = sphi 0, %s467
      %s484 = sphi 0, %s468
    $region4: #{_lambda_.1} parent=1 // loop_header_branch
      %32 = sbr.rel (%p30) target = $region8
    $region5: #{_lambda_.1} parent=1 // loop_body
      %s34 = ssub.s32 %s29, 1
      %s35 = ssub.s32 %s29, 2
      %s36 = sadd.s32 %s29, 1
      %s37 = ssub.s32 %s29, %s36
      %p38 = scmp.eq.s32.totalorder %s37, 0
      %s40 = sadd.s32 %s39, 1
      %s41 = scalar_select %p38, %s39, %s40
      %p44 = pneg %p38
      %p45 = scmp.eq.s32.totalorder %s29, 1
      %p46 = por %p44, %p45
      %p47 = scmp.ne.s32.totalorder %s39, %s42
      %p48 = scmp.eq.s32.totalorder %s29, 0
      %p49 = por %p47, %p48
      %p50 = scmp.ne.s32.totalorder %s39, %s42
      %p51 = scmp.eq.s32.totalorder %s34, 1
      %p52 = por %p50, %p51
      %p53 = scmp.ne.s32.totalorder %s42, %s43
      %p54 = scmp.eq.s32.totalorder %s34, 0
      %p55 = por %p53, %p54
      %p56 = scmp.ne.s32.totalorder %s42, %s43
      %p57 = scmp.eq.s32.totalorder %s35, 1
      %p58 = por %p56, %p57
      %p60 = scmp.ne.s32.totalorder %s43, %s59
      %p61 = scmp.eq.s32.totalorder %s35, 0
      %p62 = por %p60, %p61
      %s64 = sadd.s32 %s63, 1
      %p67 = scmp.eq.s32.totalorder %s29, 1
      %p68 = scmp.ne.s32.totalorder %s63, %s65
      %p69 = scmp.eq.s32.totalorder %s29, 0
      %p70 = por %p68, %p69
      %p71 = scmp.ne.s32.totalorder %s63, %s65
      %p72 = scmp.eq.s32.totalorder %s34, 1
      %p73 = por %p71, %p72
      %p74 = scmp.ne.s32.totalorder %s65, %s66
      %p75 = scmp.eq.s32.totalorder %s34, 0
      %p76 = por %p74, %p75
      %p77 = scmp.ne.s32.totalorder %s65, %s66
      %p78 = scmp.eq.s32.totalorder %s35, 1
      %p79 = por %p77, %p78
      %p81 = scmp.ne.s32.totalorder %s66, %s80
      %p82 = scmp.eq.s32.totalorder %s35, 0
      %p83 = por %p81, %p82
      %s85 = sadd.s32 %s84, 1
      %p88 = scmp.eq.s32.totalorder %s29, 1
      %p89 = scmp.ne.s32.totalorder %s84, %s86
      %p90 = scmp.eq.s32.totalorder %s29, 0
      %p91 = por %p89, %p90
      %p92 = scmp.ne.s32.totalorder %s84, %s86
      %p93 = scmp.eq.s32.totalorder %s34, 1
      %p94 = por %p92, %p93
      %p95 = scmp.ne.s32.totalorder %s86, %s87
      %p96 = scmp.eq.s32.totalorder %s34, 0
      %p97 = por %p95, %p96
      %p98 = scmp.ne.s32.totalorder %s86, %s87
      %p99 = scmp.eq.s32.totalorder %s35, 1
      %p100 = por %p98, %p99
      %p102 = scmp.ne.s32.totalorder %s87, %s101
      %p103 = scmp.eq.s32.totalorder %s35, 0
      %p104 = por %p102, %p103
      %s106 = sadd.s32 %s105, 1
      %p109 = scmp.eq.s32.totalorder %s29, 1
      %p110 = scmp.ne.s32.totalorder %s105, %s107
      %p111 = scmp.eq.s32.totalorder %s29, 0
      %p112 = por %p110, %p111
      %p113 = scmp.ne.s32.totalorder %s105, %s107
      %p114 = scmp.eq.s32.totalorder %s34, 1
      %p115 = por %p113, %p114
      %p116 = scmp.ne.s32.totalorder %s107, %s108
      %p117 = scmp.eq.s32.totalorder %s34, 0
      %p118 = por %p116, %p117
      %p119 = scmp.ne.s32.totalorder %s107, %s108
      %p120 = scmp.eq.s32.totalorder %s35, 1
      %p121 = por %p119, %p120
      %p123 = scmp.ne.s32.totalorder %s108, %s122
      %p124 = scmp.eq.s32.totalorder %s35, 0
      %p125 = por %p123, %p124
      %s127 = sadd.s32 %s126, 1
      %p130 = scmp.eq.s32.totalorder %s29, 1
      %p131 = scmp.ne.s32.totalorder %s126, %s128
      %p132 = scmp.eq.s32.totalorder %s29, 0
      %p133 = por %p131, %p132
      %p134 = scmp.ne.s32.totalorder %s126, %s128
      %p135 = scmp.eq.s32.totalorder %s34, 1
      %p136 = por %p134, %p135
      %p137 = scmp.ne.s32.totalorder %s128, %s129
      %p138 = scmp.eq.s32.totalorder %s34, 0
      %p139 = por %p137, %p138
      %p140 = scmp.ne.s32.totalorder %s128, %s129
      %p141 = scmp.eq.s32.totalorder %s35, 1
      %p142 = por %p140, %p141
      %p144 = scmp.ne.s32.totalorder %s129, %s143
      %p145 = scmp.eq.s32.totalorder %s35, 0
      %p146 = por %p144, %p145
      %s148 = sadd.s32 %s147, 1
      %p151 = scmp.eq.s32.totalorder %s29, 1
      %p152 = scmp.ne.s32.totalorder %s147, %s149
      %p153 = scmp.eq.s32.totalorder %s29, 0
      %p154 = por %p152, %p153
      %p155 = scmp.ne.s32.totalorder %s147, %s149
      %p156 = scmp.eq.s32.totalorder %s34, 1
      %p157 = por %p155, %p156
      %p158 = scmp.ne.s32.totalorder %s149, %s150
      %p159 = scmp.eq.s32.totalorder %s34, 0
      %p160 = por %p158, %p159
      %p161 = scmp.ne.s32.totalorder %s149, %s150
      %p162 = scmp.eq.s32.totalorder %s35, 1
      %p163 = por %p161, %p162
      %p165 = scmp.ne.s32.totalorder %s150, %s164
      %p166 = scmp.eq.s32.totalorder %s35, 0
      %p167 = por %p165, %p166
      %s169 = sadd.s32 %s168, 1
      %p172 = scmp.eq.s32.totalorder %s29, 1
      %p173 = scmp.ne.s32.totalorder %s168, %s170
      %p174 = scmp.eq.s32.totalorder %s29, 0
      %p175 = por %p173, %p174
      %p176 = scmp.ne.s32.totalorder %s168, %s170
      %p177 = scmp.eq.s32.totalorder %s34, 1
      %p178 = por %p176, %p177
      %p179 = scmp.ne.s32.totalorder %s170, %s171
      %p180 = scmp.eq.s32.totalorder %s34, 0
      %p181 = por %p179, %p180
      %p182 = scmp.ne.s32.totalorder %s170, %s171
      %p183 = scmp.eq.s32.totalorder %s35, 1
      %p184 = por %p182, %p183
      %p186 = scmp.ne.s32.totalorder %s171, %s185
      %p187 = scmp.eq.s32.totalorder %s35, 0
      %p188 = por %p186, %p187
      %s190 = sadd.s32 %s189, 1
      %p193 = scmp.eq.s32.totalorder %s29, 1
      %p194 = scmp.ne.s32.totalorder %s189, %s191
      %p195 = scmp.eq.s32.totalorder %s29, 0
      %p196 = por %p194, %p195
      %p197 = scmp.ne.s32.totalorder %s189, %s191
      %p198 = scmp.eq.s32.totalorder %s34, 1
      %p199 = por %p197, %p198
      %p200 = scmp.ne.s32.totalorder %s191, %s192
      %p201 = scmp.eq.s32.totalorder %s34, 0
      %p202 = por %p200, %p201
      %p203 = scmp.ne.s32.totalorder %s191, %s192
      %p204 = scmp.eq.s32.totalorder %s35, 1
      %p205 = por %p203, %p204
      %p207 = scmp.ne.s32.totalorder %s192, %s206
      %p208 = scmp.eq.s32.totalorder %s35, 0
      %p209 = por %p207, %p208
      %s211 = sadd.s32 %s210, 1
      %p214 = scmp.eq.s32.totalorder %s29, 1
      %p215 = scmp.ne.s32.totalorder %s210, %s212
      %p216 = scmp.eq.s32.totalorder %s29, 0
      %p217 = por %p215, %p216
      %p218 = scmp.ne.s32.totalorder %s210, %s212
      %p219 = scmp.eq.s32.totalorder %s34, 1
      %p220 = por %p218, %p219
      %p221 = scmp.ne.s32.totalorder %s212, %s213
      %p222 = scmp.eq.s32.totalorder %s34, 0
      %p223 = por %p221, %p222
      %p224 = scmp.ne.s32.totalorder %s212, %s213
      %p225 = scmp.eq.s32.totalorder %s35, 1
      %p226 = por %p224, %p225
      %p228 = scmp.ne.s32.totalorder %s213, %s227
      %p229 = scmp.eq.s32.totalorder %s35, 0
      %p230 = por %p228, %p229
      %s232 = sadd.s32 %s231, 1
      %p235 = scmp.eq.s32.totalorder %s29, 1
      %p236 = scmp.ne.s32.totalorder %s231, %s233
      %p237 = scmp.eq.s32.totalorder %s29, 0
      %p238 = por %p236, %p237
      %p239 = scmp.ne.s32.totalorder %s231, %s233
      %p240 = scmp.eq.s32.totalorder %s34, 1
      %p241 = por %p239, %p240
      %p242 = scmp.ne.s32.totalorder %s233, %s234
      %p243 = scmp.eq.s32.totalorder %s34, 0
      %p244 = por %p242, %p243
      %p245 = scmp.ne.s32.totalorder %s233, %s234
      %p246 = scmp.eq.s32.totalorder %s35, 1
      %p247 = por %p245, %p246
      %p249 = scmp.ne.s32.totalorder %s234, %s248
      %p250 = scmp.eq.s32.totalorder %s35, 0
      %p251 = por %p249, %p250
      %s253 = sadd.s32 %s252, 1
      %p256 = scmp.eq.s32.totalorder %s29, 1
      %p257 = scmp.ne.s32.totalorder %s252, %s254
      %p258 = scmp.eq.s32.totalorder %s29, 0
      %p259 = por %p257, %p258
      %p260 = scmp.ne.s32.totalorder %s252, %s254
      %p261 = scmp.eq.s32.totalorder %s34, 1
      %p262 = por %p260, %p261
      %p263 = scmp.ne.s32.totalorder %s254, %s255
      %p264 = scmp.eq.s32.totalorder %s34, 0
      %p265 = por %p263, %p264
      %p266 = scmp.ne.s32.totalorder %s254, %s255
      %p267 = scmp.eq.s32.totalorder %s35, 1
      %p268 = por %p266, %p267
      %p270 = scmp.ne.s32.totalorder %s255, %s269
      %p271 = scmp.eq.s32.totalorder %s35, 0
      %p272 = por %p270, %p271
      %s274 = sadd.s32 %s273, 1
      %p277 = scmp.eq.s32.totalorder %s29, 1
      %p278 = scmp.ne.s32.totalorder %s273, %s275
      %p279 = scmp.eq.s32.totalorder %s29, 0
      %p280 = por %p278, %p279
      %p281 = scmp.ne.s32.totalorder %s273, %s275
      %p282 = scmp.eq.s32.totalorder %s34, 1
      %p283 = por %p281, %p282
      %p284 = scmp.ne.s32.totalorder %s275, %s276
      %p285 = scmp.eq.s32.totalorder %s34, 0
      %p286 = por %p284, %p285
      %p287 = scmp.ne.s32.totalorder %s275, %s276
      %p288 = scmp.eq.s32.totalorder %s35, 1
      %p289 = por %p287, %p288
      %p291 = scmp.ne.s32.totalorder %s276, %s290
      %p292 = scmp.eq.s32.totalorder %s35, 0
      %p293 = por %p291, %p292
      %s295 = sadd.s32 %s294, 1
      %p298 = scmp.eq.s32.totalorder %s29, 1
      %p299 = scmp.ne.s32.totalorder %s294, %s296
      %p300 = scmp.eq.s32.totalorder %s29, 0
      %p301 = por %p299, %p300
      %p302 = scmp.ne.s32.totalorder %s294, %s296
      %p303 = scmp.eq.s32.totalorder %s34, 1
      %p304 = por %p302, %p303
      %p305 = scmp.ne.s32.totalorder %s296, %s297
      %p306 = scmp.eq.s32.totalorder %s34, 0
      %p307 = por %p305, %p306
      %p308 = scmp.ne.s32.totalorder %s296, %s297
      %p309 = scmp.eq.s32.totalorder %s35, 1
      %p310 = por %p308, %p309
      %p312 = scmp.ne.s32.totalorder %s297, %s311
      %p313 = scmp.eq.s32.totalorder %s35, 0
      %p314 = por %p312, %p313
      %s316 = sadd.s32 %s315, 1
      %p319 = scmp.eq.s32.totalorder %s29, 1
      %p320 = scmp.ne.s32.totalorder %s315, %s317
      %p321 = scmp.eq.s32.totalorder %s29, 0
      %p322 = por %p320, %p321
      %p323 = scmp.ne.s32.totalorder %s315, %s317
      %p324 = scmp.eq.s32.totalorder %s34, 1
      %p325 = por %p323, %p324
      %p326 = scmp.ne.s32.totalorder %s317, %s318
      %p327 = scmp.eq.s32.totalorder %s34, 0
      %p328 = por %p326, %p327
      %p329 = scmp.ne.s32.totalorder %s317, %s318
      %p330 = scmp.eq.s32.totalorder %s35, 1
      %p331 = por %p329, %p330
      %p333 = scmp.ne.s32.totalorder %s318, %s332
      %p334 = scmp.eq.s32.totalorder %s35, 0
      %p335 = por %p333, %p334
      %s337 = sadd.s32 %s336, 1
      %p340 = scmp.eq.s32.totalorder %s29, 1
      %p341 = scmp.ne.s32.totalorder %s336, %s338
      %p342 = scmp.eq.s32.totalorder %s29, 0
      %p343 = por %p341, %p342
      %p344 = scmp.ne.s32.totalorder %s336, %s338
      %p345 = scmp.eq.s32.totalorder %s34, 1
      %p346 = por %p344, %p345
      %p347 = scmp.ne.s32.totalorder %s338, %s339
      %p348 = scmp.eq.s32.totalorder %s34, 0
      %p349 = por %p347, %p348
      %p350 = scmp.ne.s32.totalorder %s338, %s339
      %p351 = scmp.eq.s32.totalorder %s35, 1
      %p352 = por %p350, %p351
      %p354 = scmp.ne.s32.totalorder %s339, %s353
      %p355 = scmp.eq.s32.totalorder %s35, 0
      %p356 = por %p354, %p355
      %s358 = sadd.s32 %s357, 1
      %p361 = scmp.eq.s32.totalorder %s29, 1
      %p362 = scmp.ne.s32.totalorder %s357, %s359
      %p363 = scmp.eq.s32.totalorder %s29, 0
      %p364 = por %p362, %p363
      %p365 = scmp.ne.s32.totalorder %s357, %s359
      %p366 = scmp.eq.s32.totalorder %s34, 1
      %p367 = por %p365, %p366
      %p368 = scmp.ne.s32.totalorder %s359, %s360
      %p369 = scmp.eq.s32.totalorder %s34, 0
      %p370 = por %p368, %p369
      %p371 = scmp.ne.s32.totalorder %s359, %s360
      %p372 = scmp.eq.s32.totalorder %s35, 1
      %p373 = por %p371, %p372
      %p375 = scmp.ne.s32.totalorder %s360, %s374
      %p376 = scmp.eq.s32.totalorder %s35, 0
      %p377 = por %p375, %p376
      %s379 = sadd.s32 %s378, 1
      %p382 = scmp.eq.s32.totalorder %s29, 1
      %p383 = scmp.ne.s32.totalorder %s378, %s380
      %p384 = scmp.eq.s32.totalorder %s29, 0
      %p385 = por %p383, %p384
      %p386 = scmp.ne.s32.totalorder %s378, %s380
      %p387 = scmp.eq.s32.totalorder %s34, 1
      %p388 = por %p386, %p387
      %p389 = scmp.ne.s32.totalorder %s380, %s381
      %p390 = scmp.eq.s32.totalorder %s34, 0
      %p391 = por %p389, %p390
      %p392 = scmp.ne.s32.totalorder %s380, %s381
      %p393 = scmp.eq.s32.totalorder %s35, 1
      %p394 = por %p392, %p393
      %p396 = scmp.ne.s32.totalorder %s381, %s395
      %p397 = scmp.eq.s32.totalorder %s35, 0
      %p398 = por %p396, %p397
      %s400 = sadd.s32 %s399, 1
      %p403 = scmp.eq.s32.totalorder %s29, 1
      %p404 = scmp.ne.s32.totalorder %s399, %s401
      %p405 = scmp.eq.s32.totalorder %s29, 0
      %p406 = por %p404, %p405
      %p407 = scmp.ne.s32.totalorder %s399, %s401
      %p408 = scmp.eq.s32.totalorder %s34, 1
      %p409 = por %p407, %p408
      %p410 = scmp.ne.s32.totalorder %s401, %s402
      %p411 = scmp.eq.s32.totalorder %s34, 0
      %p412 = por %p410, %p411
      %p413 = scmp.ne.s32.totalorder %s401, %s402
      %p414 = scmp.eq.s32.totalorder %s35, 1
      %p415 = por %p413, %p414
      %p417 = scmp.ne.s32.totalorder %s402, %s416
      %p418 = scmp.eq.s32.totalorder %s35, 0
      %p419 = por %p417, %p418
      %s421 = sadd.s32 %s420, 1
      %p424 = scmp.eq.s32.totalorder %s29, 1
      %p425 = scmp.ne.s32.totalorder %s420, %s422
      %p426 = scmp.eq.s32.totalorder %s29, 0
      %p427 = por %p425, %p426
      %p428 = scmp.ne.s32.totalorder %s420, %s422
      %p429 = scmp.eq.s32.totalorder %s34, 1
      %p430 = por %p428, %p429
      %p431 = scmp.ne.s32.totalorder %s422, %s423
      %p432 = scmp.eq.s32.totalorder %s34, 0
      %p433 = por %p431, %p432
      %p434 = scmp.ne.s32.totalorder %s422, %s423
      %p435 = scmp.eq.s32.totalorder %s35, 1
      %p436 = por %p434, %p435
      %p438 = scmp.ne.s32.totalorder %s423, %s437
      %p439 = scmp.eq.s32.totalorder %s35, 0
      %p440 = por %p438, %p439
      %s442 = sadd.s32 %s441, 1
      %p445 = scmp.eq.s32.totalorder %s29, 1
      %p446 = scmp.ne.s32.totalorder %s441, %s443
      %p447 = scmp.eq.s32.totalorder %s29, 0
      %p448 = por %p446, %p447
      %p449 = scmp.ne.s32.totalorder %s441, %s443
      %p450 = scmp.eq.s32.totalorder %s34, 1
      %p451 = por %p449, %p450
      %p452 = scmp.ne.s32.totalorder %s443, %s444
      %p453 = scmp.eq.s32.totalorder %s34, 0
      %p454 = por %p452, %p453
      %p455 = scmp.ne.s32.totalorder %s443, %s444
      %p456 = scmp.eq.s32.totalorder %s35, 1
      %p457 = por %p455, %p456
      %p459 = scmp.ne.s32.totalorder %s444, %s458
      %p460 = scmp.eq.s32.totalorder %s35, 0
      %p461 = por %p459, %p460
      %s462 = ssub.s32 %s29, %s36
      %p463 = scmp.eq.s32.totalorder %s462, 0
      %s465 = sadd.s32 %s464, 1
      %s466 = scalar_select %p463, %s464, %s465
      %p469 = pneg %p463
      %p470 = scmp.eq.s32.totalorder %s29, 1
      %p471 = por %p469, %p470
      %p472 = scmp.ne.s32.totalorder %s464, %s467
      %p473 = scmp.eq.s32.totalorder %s29, 0
      %p474 = por %p472, %p473
      %p475 = scmp.ne.s32.totalorder %s464, %s467
      %p476 = scmp.eq.s32.totalorder %s34, 1
      %p477 = por %p475, %p476
      %p478 = scmp.ne.s32.totalorder %s467, %s468
      %p479 = scmp.eq.s32.totalorder %s34, 0
      %p480 = por %p478, %p479
      %p481 = scmp.ne.s32.totalorder %s467, %s468
      %p482 = scmp.eq.s32.totalorder %s35, 1
      %p483 = por %p481, %p482
      %p485 = scmp.ne.s32.totalorder %s468, %s484
      %p486 = scmp.eq.s32.totalorder %s35, 0
      %p487 = por %p485, %p486
      %p488 = scmp.le.s32.totalorder 1, %s29
      %p489 = scmp.lt.s32.totalorder %s29, 3
      %p490 = pnand %p488, %p489
      %p491 = pneg %p490
      // Predicated region
      $region9: #{_lambda_.1} parent=5 // pred_check
        _
      $region10: #{_lambda_.1} parent=5 // pred_check_branch
        %493 = sbr.rel (%p490) target = $region12
      $region11: #{_lambda_.1} parent=5 // pred_region
        %s494 = ssub.s32 %s29, 1
        // Predicated region
        $region13: #{_lambda_.1} parent=11 // pred_check
          %p495 = pneg %p76
        $region14: #{_lambda_.1} parent=11 // pred_check_branch
          %497 = sbr.rel (%p495) target = $region16
        $region15: #{_lambda_.1} parent=11 // pred_region
          _
        $region16: #{_lambda_.1} parent=11 // pred_fallthru
          _
        // Predicated region
        $region17: #{_lambda_.1} parent=11 // pred_check
          %p498 = pneg %p97
        $region18: #{_lambda_.1} parent=11 // pred_check_branch
          %500 = sbr.rel (%p498) target = $region20
        $region19: #{_lambda_.1} parent=11 // pred_region
          _
        $region20: #{_lambda_.1} parent=11 // pred_fallthru
          _
        // Predicated region
        $region21: #{_lambda_.1} parent=11 // pred_check
          %p501 = pneg %p118
        $region22: #{_lambda_.1} parent=11 // pred_check_branch
          %503 = sbr.rel (%p501) target = $region24
        $region23: #{_lambda_.1} parent=11 // pred_region
          _
        $region24: #{_lambda_.1} parent=11 // pred_fallthru
          _
        // Predicated region
        $region25: #{_lambda_.1} parent=11 // pred_check
          %p504 = pneg %p139
        $region26: #{_lambda_.1} parent=11 // pred_check_branch
          %506 = sbr.rel (%p504) target = $region28
        $region27: #{_lambda_.1} parent=11 // pred_region
          _
        $region28: #{_lambda_.1} parent=11 // pred_fallthru
          _
        // Predicated region
        $region29: #{_lambda_.1} parent=11 // pred_check
          %p507 = pneg %p160
        $region30: #{_lambda_.1} parent=11 // pred_check_branch
          %509 = sbr.rel (%p507) target = $region32
        $region31: #{_lambda_.1} parent=11 // pred_region
          _
        $region32: #{_lambda_.1} parent=11 // pred_fallthru
          _
        // Predicated region
        $region33: #{_lambda_.1} parent=11 // pred_check
          %p510 = pneg %p181
        $region34: #{_lambda_.1} parent=11 // pred_check_branch
          %512 = sbr.rel (%p510) target = $region36
        $region35: #{_lambda_.1} parent=11 // pred_region
          _
        $region36: #{_lambda_.1} parent=11 // pred_fallthru
          _
        // Predicated region
        $region37: #{_lambda_.1} parent=11 // pred_check
          %p513 = pneg %p202
        $region38: #{_lambda_.1} parent=11 // pred_check_branch
          %515 = sbr.rel (%p513) target = $region40
        $region39: #{_lambda_.1} parent=11 // pred_region
          _
        $region40: #{_lambda_.1} parent=11 // pred_fallthru
          _
        // Predicated region
        $region41: #{_lambda_.1} parent=11 // pred_check
          %p516 = pneg %p223
        $region42: #{_lambda_.1} parent=11 // pred_check_branch
          %518 = sbr.rel (%p516) target = $region44
        $region43: #{_lambda_.1} parent=11 // pred_region
          _
        $region44: #{_lambda_.1} parent=11 // pred_fallthru
          _
        // Predicated region
        $region45: #{_lambda_.1} parent=11 // pred_check
          %p519 = pneg %p244
        $region46: #{_lambda_.1} parent=11 // pred_check_branch
          %521 = sbr.rel (%p519) target = $region48
        $region47: #{_lambda_.1} parent=11 // pred_region
          _
        $region48: #{_lambda_.1} parent=11 // pred_fallthru
          _
        // Predicated region
        $region49: #{_lambda_.1} parent=11 // pred_check
          %p522 = pneg %p265
        $region50: #{_lambda_.1} parent=11 // pred_check_branch
          %524 = sbr.rel (%p522) target = $region52
        $region51: #{_lambda_.1} parent=11 // pred_region
          _
        $region52: #{_lambda_.1} parent=11 // pred_fallthru
          _
        // Predicated region
        $region53: #{_lambda_.1} parent=11 // pred_check
          %p525 = pneg %p286
        $region54: #{_lambda_.1} parent=11 // pred_check_branch
          %527 = sbr.rel (%p525) target = $region56
        $region55: #{_lambda_.1} parent=11 // pred_region
          _
        $region56: #{_lambda_.1} parent=11 // pred_fallthru
          _
        // Predicated region
        $region57: #{_lambda_.1} parent=11 // pred_check
          %p528 = pneg %p307
        $region58: #{_lambda_.1} parent=11 // pred_check_branch
          %530 = sbr.rel (%p528) target = $region60
        $region59: #{_lambda_.1} parent=11 // pred_region
          _
        $region60: #{_lambda_.1} parent=11 // pred_fallthru
          _
        // Predicated region
        $region61: #{_lambda_.1} parent=11 // pred_check
          %p531 = pneg %p328
        $region62: #{_lambda_.1} parent=11 // pred_check_branch
          %533 = sbr.rel (%p531) target = $region64
        $region63: #{_lambda_.1} parent=11 // pred_region
          _
        $region64: #{_lambda_.1} parent=11 // pred_fallthru
          _
        // Predicated region
        $region65: #{_lambda_.1} parent=11 // pred_check
          %p534 = pneg %p349
        $region66: #{_lambda_.1} parent=11 // pred_check_branch
          %536 = sbr.rel (%p534) target = $region68
        $region67: #{_lambda_.1} parent=11 // pred_region
          _
        $region68: #{_lambda_.1} parent=11 // pred_fallthru
          _
        // Predicated region
        $region69: #{_lambda_.1} parent=11 // pred_check
          %p537 = pneg %p370
        $region70: #{_lambda_.1} parent=11 // pred_check_branch
          %539 = sbr.rel (%p537) target = $region72
        $region71: #{_lambda_.1} parent=11 // pred_region
          _
        $region72: #{_lambda_.1} parent=11 // pred_fallthru
          _
        // Predicated region
        $region73: #{_lambda_.1} parent=11 // pred_check
          %p540 = pneg %p391
        $region74: #{_lambda_.1} parent=11 // pred_check_branch
          %542 = sbr.rel (%p540) target = $region76
        $region75: #{_lambda_.1} parent=11 // pred_region
          _
        $region76: #{_lambda_.1} parent=11 // pred_fallthru
          _
        // Predicated region
        $region77: #{_lambda_.1} parent=11 // pred_check
          %p543 = pneg %p412
        $region78: #{_lambda_.1} parent=11 // pred_check_branch
          %545 = sbr.rel (%p543) target = $region80
        $region79: #{_lambda_.1} parent=11 // pred_region
          _
        $region80: #{_lambda_.1} parent=11 // pred_fallthru
          _
        // Predicated region
        $region81: #{_lambda_.1} parent=11 // pred_check
          %p546 = pneg %p433
        $region82: #{_lambda_.1} parent=11 // pred_check_branch
          %548 = sbr.rel (%p546) target = $region84
        $region83: #{_lambda_.1} parent=11 // pred_region
          _
        $region84: #{_lambda_.1} parent=11 // pred_fallthru
          _
        // Predicated region
        $region85: #{_lambda_.1} parent=11 // pred_check
          %p549 = pneg %p454
        $region86: #{_lambda_.1} parent=11 // pred_check_branch
          %551 = sbr.rel (%p549) target = $region88
        $region87: #{_lambda_.1} parent=11 // pred_region
          _
        $region88: #{_lambda_.1} parent=11 // pred_fallthru
          _
      $region12: #{_lambda_.1} parent=5 // pred_fallthru
        _
      %p552 = scmp.lt.s32.totalorder %s29, 2
      // Predicated region
      $region89: #{_lambda_.1} parent=5 // pred_check
        %p553 = pneg %p552
      $region90: #{_lambda_.1} parent=5 // pred_check_branch
        %555 = sbr.rel (%p553) target = $region92
      $region91: #{_lambda_.1} parent=5 // pred_region
        // Predicated region
        $region93: #{_lambda_.1} parent=91 // pred_check
          %p556 = pneg %p49
        $region94: #{_lambda_.1} parent=91 // pred_check_branch
          %558 = sbr.rel (%p556) target = $region96
        $region95: #{_lambda_.1} parent=91 // pred_region
          %p559 = scmp.lt.s32.totalorder %s29, 1
          %s560 = scalar_select %p559, %s29, 1
          %s561 = smul.addr %s560, 32
          %s562 = smul.addr %s561, 4
          %s563 = scalar_lea.vmem %s0, %s562
        $region96: #{_lambda_.1} parent=91 // pred_fallthru
          _
      $region92: #{_lambda_.1} parent=5 // pred_fallthru
        _
      %p564 = scmp.le.s32.totalorder 1, %s29
      %p565 = scmp.lt.s32.totalorder %s29, 3
      %p566 = pnand %p564, %p565
      %p567 = pneg %p566
      // Predicated region
      $region97: #{_lambda_.1} parent=5 // pred_check
        _
      $region98: #{_lambda_.1} parent=5 // pred_check_branch
        %569 = sbr.rel (%p566) target = $region100
      $region99: #{_lambda_.1} parent=5 // pred_region
        %s570 = ssub.s32 %s29, 1
        %p571 = scmp.lt.s32.totalorder %s34, 1
        %s572 = scalar_select %p571, %s34, 1
        %s573 = smul.addr %s572, 32
        %s574 = smul.addr %s573, 4
        %s575 = scalar_lea.vmem %s0, %s574
        %p576 = pneg %p55
        %p577 = pneg %p52
        %p578 = pneg %p76
        %p579 = pneg %p73
        %p580 = pneg %p97
        %p581 = pneg %p94
        %p582 = pneg %p118
        %p583 = pneg %p115
        %p584 = pneg %p139
        %p585 = pneg %p136
        %p586 = pneg %p160
        %p587 = pneg %p157
        %p588 = pneg %p181
        %p589 = pneg %p178
        %p590 = pneg %p202
        %p591 = pneg %p199
        %p592 = pneg %p223
        %p593 = pneg %p220
        %p594 = pneg %p244
        %p595 = pneg %p241
        %p596 = pneg %p265
        %p597 = pneg %p262
        %p598 = pneg %p286
        %p599 = pneg %p283
        %p600 = pneg %p307
        %p601 = pneg %p304
        %p602 = pneg %p328
        %p603 = pneg %p325
        %p604 = pneg %p349
        %p605 = pneg %p346
        %p606 = pneg %p370
        %p607 = pneg %p367
        %p608 = pneg %p391
        %p609 = pneg %p388
        %p610 = pneg %p412
        %p611 = pneg %p409
        %p612 = pneg %p433
        %p613 = pneg %p430
        %p614 = pneg %p454
        %p615 = pneg %p451
        %p616 = pneg %p480
        %p617 = pneg %p477
        %s618 = sand.u32 %s467, 1
        %s619 = scalar_lea.sflag [#allocation7], %s618
        %s620 = sand.u32 %s467, 1
        %s621 = scalar_lea.vmem [#allocation6], %s620
        %p622 = scmp.lt.s32.totalorder %s34, 1
        %s623 = scalar_select %p622, %s34, 1
        %s624 = smul.addr %s623, 32
        %s625 = smul.addr %s624, 4
        %s626 = scalar_lea.vmem %s0, %s625
        %v628 = vld [vmem:[%s626] sm:$0xf]
        %v629 = vld [vmem:[%s626 + $0x4] sm:$0xf]
        %v630 = vld [vmem:[%s626 + $0x8] sm:$0xf]
        %v631 = vld [vmem:[%s626 + $0xc] sm:$0xf]
        %v632 = vld [vmem:[%s626 + $0x10] sm:$0xf]
        %v633 = vld [vmem:[%s626 + $0x14] sm:$0xf]
        %v634 = vld [vmem:[%s626 + $0x18] sm:$0xf]
        %v635 = vld [vmem:[%s626 + $0x1c] sm:$0xf]
        %v636 = vld [vmem:[%s626 + $0x20] sm:$0xf]
        %v637 = vld [vmem:[%s626 + $0x24] sm:$0xf]
        %v638 = vld [vmem:[%s626 + $0x28] sm:$0xf]
        %v639 = vld [vmem:[%s626 + $0x2c] sm:$0xf]
        %v640 = vld [vmem:[%s626 + $0x30] sm:$0xf]
        %v641 = vld [vmem:[%s626 + $0x34] sm:$0xf]
        %v642 = vld [vmem:[%s626 + $0x38] sm:$0xf]
        %v643 = vld [vmem:[%s626 + $0x3c] sm:$0xf]
        %v644 = vld [vmem:[%s626 + $0x40] sm:$0xf]
        %v645 = vld [vmem:[%s626 + $0x44] sm:$0xf]
        %v646 = vld [vmem:[%s626 + $0x48] sm:$0xf]
        %v647 = vld [vmem:[%s626 + $0x4c] sm:$0xf]
        %v648 = vld [vmem:[%s626 + $0x50] sm:$0xf]
        %v649 = vld [vmem:[%s626 + $0x54] sm:$0xf]
        %v650 = vld [vmem:[%s626 + $0x58] sm:$0xf]
        %v651 = vld [vmem:[%s626 + $0x5c] sm:$0xf]
        %v652 = vld [vmem:[%s626 + $0x60] sm:$0xf]
        %v653 = vld [vmem:[%s626 + $0x64] sm:$0xf]
        %v654 = vld [vmem:[%s626 + $0x68] sm:$0xf]
        %v655 = vld [vmem:[%s626 + $0x6c] sm:$0xf]
        %v656 = vld [vmem:[%s626 + $0x70] sm:$0xf]
        %v657 = vld [vmem:[%s626 + $0x74] sm:$0xf]
        %v658 = vld [vmem:[%s626 + $0x78] sm:$0xf]
        %v659 = vld [vmem:[%s626 + $0x7c] sm:$0xf]
        %v660 = vld [vmem:[%s1] sm:$0xf]
        %v661 = vld [vmem:[%s1 + $0x4] sm:$0xf]
        %v662 = vld [vmem:[%s1 + $0x8] sm:$0xf]
        %v663 = vld [vmem:[%s1 + $0xc] sm:$0xf]
        %v696 = vunpack.c.l.b16 %v628
        %v697 = vunpack.c.l.b16 %v629
        %v698 = vunpack.c.l.b16 %v630
        %v699 = vunpack.c.l.b16 %v631
        %v700 = vunpack.c.l.b16 %v632
        %v701 = vunpack.c.l.b16 %v633
        %v702 = vunpack.c.l.b16 %v634
        %v703 = vunpack.c.l.b16 %v635
        %v704 = vunpack.c.l.b16 %v636
        %v705 = vunpack.c.l.b16 %v637
        %v706 = vunpack.c.l.b16 %v638
        %v707 = vunpack.c.l.b16 %v639
        %v708 = vunpack.c.l.b16 %v640
        %v709 = vunpack.c.l.b16 %v641
        %v710 = vunpack.c.l.b16 %v642
        %v711 = vunpack.c.l.b16 %v643
        %v712 = vunpack.c.l.b16 %v644
        %v713 = vunpack.c.l.b16 %v645
        %v714 = vunpack.c.l.b16 %v646
        %v715 = vunpack.c.l.b16 %v647
        %v716 = vunpack.c.l.b16 %v648
        %v717 = vunpack.c.l.b16 %v649
        %v718 = vunpack.c.l.b16 %v650
        %v719 = vunpack.c.l.b16 %v651
        %v720 = vunpack.c.l.b16 %v652
        %v721 = vunpack.c.l.b16 %v653
        %v722 = vunpack.c.l.b16 %v654
        %v723 = vunpack.c.l.b16 %v655
        %v724 = vunpack.c.l.b16 %v656
        %v725 = vunpack.c.l.b16 %v657
        %v726 = vunpack.c.l.b16 %v658
        %v727 = vunpack.c.l.b16 %v659
        %v728 = vpack.c.b16 %v697, %v696
        %v729 = vpack.c.b16 %v699, %v698
        %v730 = vpack.c.b16 %v701, %v700
        %v731 = vpack.c.b16 %v703, %v702
        %v732 = vpack.c.b16 %v705, %v704
        %v733 = vpack.c.b16 %v707, %v706
        %v734 = vpack.c.b16 %v709, %v708
        %v735 = vpack.c.b16 %v711, %v710
        %v736 = vpack.c.b16 %v713, %v712
        %v737 = vpack.c.b16 %v715, %v714
        %v738 = vpack.c.b16 %v717, %v716
        %v739 = vpack.c.b16 %v719, %v718
        %v740 = vpack.c.b16 %v721, %v720
        %v741 = vpack.c.b16 %v723, %v722
        %v742 = vpack.c.b16 %v725, %v724
        %v743 = vpack.c.b16 %v727, %v726
        %v748 = vunpack.c.l.b16 %v660
        %v749 = vunpack.c.l.b16 %v661
        %v750 = vunpack.c.l.b16 %v662
        %v751 = vunpack.c.l.b16 %v663
        %v752 = vpack.c.b16 %v749, %v748
        %v753 = vpack.c.b16 %v751, %v750
        %vm756 = vcmask 261120
        %v758 = vsel %vm756, %v728, 0
        %v761 = vsel %vm756, %v729, 0
        %v764 = vsel %vm756, %v730, 0
        %v767 = vsel %vm756, %v731, 0
        %v770 = vsel %vm756, %v732, 0
        %v773 = vsel %vm756, %v733, 0
        %v776 = vsel %vm756, %v734, 0
        %v779 = vsel %vm756, %v735, 0
        %v782 = vsel %vm756, %v736, 0
        %v785 = vsel %vm756, %v737, 0
        %v788 = vsel %vm756, %v738, 0
        %v791 = vsel %vm756, %v739, 0
        %v794 = vsel %vm756, %v740, 0
        %v797 = vsel %vm756, %v741, 0
        %v800 = vsel %vm756, %v742, 0
        %v803 = vsel %vm756, %v743, 0
        %805 = vmatprep.subr.bf16.mxu0 0
        %806 = vmatpush1.bf16.msra.mxu0 %v752
        %807 = vmatprep.subr.bf16.mxu0 0
        %808 = vmatpush1.bf16.msra.mxu0 %v753
        %809 = vmatprep.subr.bf16.mxu0 0
        %810 = vmatpush1.bf16.msra.mxu0 0
        %811 = vmatprep.subr.bf16.mxu0 0
        %812 = vmatpush1.bf16.msra.mxu0 0
        %813 = vmatprep.subr.bf16.mxu0 0
        %814 = vmatpush1.bf16.msra.mxu0 0
        %815 = vmatprep.subr.bf16.mxu0 0
        %816 = vmatpush1.bf16.msra.mxu0 0
        %817 = vmatprep.subr.bf16.mxu0 0
        %818 = vmatpush1.bf16.msra.mxu0 0
        %819 = vmatprep.subr.bf16.mxu0 0
        %820 = vmatpush1.bf16.msra.mxu0 0
        %821 = vmatprep.subr.bf16.mxu0 0
        %822 = vmatpush1.bf16.msra.mxu0 0
        %823 = vmatprep.subr.bf16.mxu0 0
        %824 = vmatpush1.bf16.msra.mxu0 0
        %825 = vmatprep.subr.bf16.mxu0 0
        %826 = vmatpush1.bf16.msra.mxu0 0
        %827 = vmatprep.subr.bf16.mxu0 0
        %828 = vmatpush1.bf16.msra.mxu0 0
        %829 = vmatprep.subr.bf16.mxu0 0
        %830 = vmatpush1.bf16.msra.mxu0 0
        %831 = vmatprep.subr.bf16.mxu0 0
        %832 = vmatpush1.bf16.msra.mxu0 0
        %833 = vmatprep.subr.bf16.mxu0 0
        %834 = vmatpush1.bf16.msra.mxu0 0
        %835 = vmatprep.subr.bf16.mxu0 0
        %836 = vmatpush1.bf16.msra.mxu0 0
        %837 = vmatprep.mubr.bf16.mxu0 0
        %838 = vmatmul.mubr.bf16.gmra.mrb[0].mxu0 %v758
        %v839 = vpop.f32.mrb[0].mxu0
        %v840 = vadd.f32 0.0, %v839
        %v841 = vpop.f32.mrb[0].mxu0
        %v842 = vpop.f32.mrb[0].mxu0
        %v843 = vadd.f32 0.0, %v842
        %v844 = vpop.f32.mrb[0].mxu0
        %845 = vmatprep.mubr.bf16.mxu0 0
        %846 = vmatmul.mubr.bf16.gmra.mrb[0].mxu0 %v761
        %v847 = vpop.f32.mrb[0].mxu0
        %v848 = vadd.f32 0.0, %v847
        %v849 = vpop.f32.mrb[0].mxu0
        %v850 = vpop.f32.mrb[0].mxu0
        %v851 = vadd.f32 0.0, %v850
        %v852 = vpop.f32.mrb[0].mxu0
        %853 = vmatprep.mubr.bf16.mxu0 0
        %854 = vmatmul.mubr.bf16.gmra.mrb[0].mxu0 %v764
        %v855 = vpop.f32.mrb[0].mxu0
        %v856 = vadd.f32 0.0, %v855
        %v857 = vpop.f32.mrb[0].mxu0
        %v858 = vpop.f32.mrb[0].mxu0
        %v859 = vadd.f32 0.0, %v858
        %v860 = vpop.f32.mrb[0].mxu0
        %861 = vmatprep.mubr.bf16.mxu0 0
        %862 = vmatmul.mubr.bf16.gmra.mrb[0].mxu0 %v767
        %v863 = vpop.f32.mrb[0].mxu0
        %v864 = vadd.f32 0.0, %v863
        %v865 = vpop.f32.mrb[0].mxu0
        %v866 = vpop.f32.mrb[0].mxu0
        %v867 = vadd.f32 0.0, %v866
        %v868 = vpop.f32.mrb[0].mxu0
        %869 = vmatprep.mubr.bf16.mxu0 0
        %870 = vmatmul.mubr.bf16.gmra.mrb[0].mxu0 %v770
        %v871 = vpop.f32.mrb[0].mxu0
        %v872 = vadd.f32 0.0, %v871
        %v873 = vpop.f32.mrb[0].mxu0
        %v874 = vpop.f32.mrb[0].mxu0
        %v875 = vadd.f32 0.0, %v874
        %v876 = vpop.f32.mrb[0].mxu0
        %877 = vmatprep.mubr.bf16.mxu0 0
        %878 = vmatmul.mubr.bf16.gmra.mrb[0].mxu0 %v773
        %v879 = vpop.f32.mrb[0].mxu0
        %v880 = vadd.f32 0.0, %v879
        %v881 = vpop.f32.mrb[0].mxu0
        %v882 = vpop.f32.mrb[0].mxu0
        %v883 = vadd.f32 0.0, %v882
        %v884 = vpop.f32.mrb[0].mxu0
        %885 = vmatprep.mubr.bf16.mxu0 0
        %886 = vmatmul.mubr.bf16.gmra.mrb[0].mxu0 %v776
        %v887 = vpop.f32.mrb[0].mxu0
        %v888 = vadd.f32 0.0, %v887
        %v889 = vpop.f32.mrb[0].mxu0
        %v890 = vpop.f32.mrb[0].mxu0
        %v891 = vadd.f32 0.0, %v890
        %v892 = vpop.f32.mrb[0].mxu0
        %893 = vmatprep.mubr.bf16.mxu0 0
        %894 = vmatmul.mubr.bf16.gmra.mrb[0].mxu0 %v779
        %v895 = vpop.f32.mrb[0].mxu0
        %v896 = vadd.f32 0.0, %v895
        %v897 = vpop.f32.mrb[0].mxu0
        %v898 = vpop.f32.mrb[0].mxu0
        %v899 = vadd.f32 0.0, %v898
        %v900 = vpop.f32.mrb[0].mxu0
        %901 = vmatprep.mubr.bf16.mxu0 0
        %902 = vmatmul.mubr.bf16.gmra.mrb[0].mxu0 %v782
        %v903 = vpop.f32.mrb[0].mxu0
        %v904 = vadd.f32 0.0, %v903
        %v905 = vpop.f32.mrb[0].mxu0
        %v906 = vpop.f32.mrb[0].mxu0
        %v907 = vadd.f32 0.0, %v906
        %v908 = vpop.f32.mrb[0].mxu0
        %909 = vmatprep.mubr.bf16.mxu0 0
        %910 = vmatmul.mubr.bf16.gmra.mrb[0].mxu0 %v785
        %v911 = vpop.f32.mrb[0].mxu0
        %v912 = vadd.f32 0.0, %v911
        %v913 = vpop.f32.mrb[0].mxu0
        %v914 = vpop.f32.mrb[0].mxu0
        %v915 = vadd.f32 0.0, %v914
        %v916 = vpop.f32.mrb[0].mxu0
        %917 = vmatprep.mubr.bf16.mxu0 0
        %918 = vmatmul.mubr.bf16.gmra.mrb[0].mxu0 %v788
        %v919 = vpop.f32.mrb[0].mxu0
        %v920 = vadd.f32 0.0, %v919
        %v921 = vpop.f32.mrb[0].mxu0
        %v922 = vpop.f32.mrb[0].mxu0
        %v923 = vadd.f32 0.0, %v922
        %v924 = vpop.f32.mrb[0].mxu0
        %925 = vmatprep.mubr.bf16.mxu0 0
        %926 = vmatmul.mubr.bf16.gmra.mrb[0].mxu0 %v791
        %v927 = vpop.f32.mrb[0].mxu0
        %v928 = vadd.f32 0.0, %v927
        %v929 = vpop.f32.mrb[0].mxu0
        %v930 = vpop.f32.mrb[0].mxu0
        %v931 = vadd.f32 0.0, %v930
        %v932 = vpop.f32.mrb[0].mxu0
        %933 = vmatprep.mubr.bf16.mxu0 0
        %934 = vmatmul.mubr.bf16.gmra.mrb[0].mxu0 %v794
        %v935 = vpop.f32.mrb[0].mxu0
        %v936 = vadd.f32 0.0, %v935
        %v937 = vpop.f32.mrb[0].mxu0
        %v938 = vpop.f32.mrb[0].mxu0
        %v939 = vadd.f32 0.0, %v938
        %v940 = vpop.f32.mrb[0].mxu0
        %941 = vmatprep.mubr.bf16.mxu0 0
        %942 = vmatmul.mubr.bf16.gmra.mrb[0].mxu0 %v797
        %v943 = vpop.f32.mrb[0].mxu0
        %v944 = vadd.f32 0.0, %v943
        %v945 = vpop.f32.mrb[0].mxu0
        %v946 = vpop.f32.mrb[0].mxu0
        %v947 = vadd.f32 0.0, %v946
        %v948 = vpop.f32.mrb[0].mxu0
        %949 = vmatprep.mubr.bf16.mxu0 0
        %950 = vmatmul.mubr.bf16.gmra.mrb[0].mxu0 %v800
        %v951 = vpop.f32.mrb[0].mxu0
        %v952 = vadd.f32 0.0, %v951
        %v953 = vpop.f32.mrb[0].mxu0
        %v954 = vpop.f32.mrb[0].mxu0
        %v955 = vadd.f32 0.0, %v954
        %v956 = vpop.f32.mrb[0].mxu0
        %957 = vmatprep.mubr.bf16.mxu0 0
        %958 = vmatmul.mubr.bf16.gmra.mrb[0].mxu0 %v803
        %v959 = vpop.f32.mrb[0].mxu0
        %v960 = vadd.f32 0.0, %v959
        %v961 = vpop.f32.mrb[0].mxu0
        %v962 = vpop.f32.mrb[0].mxu0
        %v963 = vadd.f32 0.0, %v962
        %v964 = vpop.f32.mrb[0].mxu0
        %965 = vdwg.mxu0
        %v966 = vld [vmem:[%s2] sm:$0x1]
        %v968 = vlaneseq
        %v969 = vshrl.u32 %v968, 7
        %v970 = vsub.s32 0, %v969
        %v971 = vrot.slane %v966, %v970
        %v973 = vmul.f32 %v840, %v971
        %v974 = vmul.f32 %v843, %v971
        %v975 = vmul.f32 %v848, %v971
        %v976 = vmul.f32 %v851, %v971
        %v977 = vmul.f32 %v856, %v971
        %v978 = vmul.f32 %v859, %v971
        %v979 = vmul.f32 %v864, %v971
        %v980 = vmul.f32 %v867, %v971
        %v981 = vmul.f32 %v872, %v971
        %v982 = vmul.f32 %v875, %v971
        %v983 = vmul.f32 %v880, %v971
        %v984 = vmul.f32 %v883, %v971
        %v985 = vmul.f32 %v888, %v971
        %v986 = vmul.f32 %v891, %v971
        %v987 = vmul.f32 %v896, %v971
        %v988 = vmul.f32 %v899, %v971
        %v989 = vmul.f32 %v904, %v971
        %v990 = vmul.f32 %v907, %v971
        %v991 = vmul.f32 %v912, %v971
        %v992 = vmul.f32 %v915, %v971
        %v993 = vmul.f32 %v920, %v971
        %v994 = vmul.f32 %v923, %v971
        %v995 = vmul.f32 %v928, %v971
        %v996 = vmul.f32 %v931, %v971
        %v997 = vmul.f32 %v936, %v971
        %v998 = vmul.f32 %v939, %v971
        %v999 = vmul.f32 %v944, %v971
        %v1000 = vmul.f32 %v947, %v971
        %v1001 = vmul.f32 %v952, %v971
        %v1002 = vmul.f32 %v955, %v971
        %v1003 = vmul.f32 %v960, %v971
        %v1004 = vmul.f32 %v963, %v971
        %v1005 = vld [vmem:[%s3] sm:$0x1]
        %v1007 = vlaneseq
        %v1008 = vshrl.u32 %v1007, 7
        %v1009 = vsub.s32 0, %v1008
        %v1010 = vrot.slane %v1005, %v1009
        %v1012 = vadd.f32 %v973, %v1010
        %v1013 = vadd.f32 %v974, %v1010
        %v1014 = vadd.f32 %v975, %v1010
        %v1015 = vadd.f32 %v976, %v1010
        %v1016 = vadd.f32 %v977, %v1010
        %v1017 = vadd.f32 %v978, %v1010
        %v1018 = vadd.f32 %v979, %v1010
        %v1019 = vadd.f32 %v980, %v1010
        %v1020 = vadd.f32 %v981, %v1010
        %v1021 = vadd.f32 %v982, %v1010
        %v1022 = vadd.f32 %v983, %v1010
        %v1023 = vadd.f32 %v984, %v1010
        %v1024 = vadd.f32 %v985, %v1010
        %v1025 = vadd.f32 %v986, %v1010
        %v1026 = vadd.f32 %v987, %v1010
        %v1027 = vadd.f32 %v988, %v1010
        %v1028 = vadd.f32 %v989, %v1010
        %v1029 = vadd.f32 %v990, %v1010
        %v1030 = vadd.f32 %v991, %v1010
        %v1031 = vadd.f32 %v992, %v1010
        %v1032 = vadd.f32 %v993, %v1010
        %v1033 = vadd.f32 %v994, %v1010
        %v1034 = vadd.f32 %v995, %v1010
        %v1035 = vadd.f32 %v996, %v1010
        %v1036 = vadd.f32 %v997, %v1010
        %v1037 = vadd.f32 %v998, %v1010
        %v1038 = vadd.f32 %v999, %v1010
        %v1039 = vadd.f32 %v1000, %v1010
        %v1040 = vadd.f32 %v1001, %v1010
        %v1041 = vadd.f32 %v1002, %v1010
        %v1042 = vadd.f32 %v1003, %v1010
        %v1043 = vadd.f32 %v1004, %v1010
        %v1044 = vmax.f32 %v1012, 0.0
        %v1045 = vmax.f32 %v1013, 0.0
        %v1046 = vmax.f32 %v1014, 0.0
        %v1047 = vmax.f32 %v1015, 0.0
        %v1048 = vmax.f32 %v1016, 0.0
        %v1049 = vmax.f32 %v1017, 0.0
        %v1050 = vmax.f32 %v1018, 0.0
        %v1051 = vmax.f32 %v1019, 0.0
        %v1052 = vmax.f32 %v1020, 0.0
        %v1053 = vmax.f32 %v1021, 0.0
        %v1054 = vmax.f32 %v1022, 0.0
        %v1055 = vmax.f32 %v1023, 0.0
        %v1056 = vmax.f32 %v1024, 0.0
        %v1057 = vmax.f32 %v1025, 0.0
        %v1058 = vmax.f32 %v1026, 0.0
        %v1059 = vmax.f32 %v1027, 0.0
        %v1060 = vmax.f32 %v1028, 0.0
        %v1061 = vmax.f32 %v1029, 0.0
        %v1062 = vmax.f32 %v1030, 0.0
        %v1063 = vmax.f32 %v1031, 0.0
        %v1064 = vmax.f32 %v1032, 0.0
        %v1065 = vmax.f32 %v1033, 0.0
        %v1066 = vmax.f32 %v1034, 0.0
        %v1067 = vmax.f32 %v1035, 0.0
        %v1068 = vmax.f32 %v1036, 0.0
        %v1069 = vmax.f32 %v1037, 0.0
        %v1070 = vmax.f32 %v1038, 0.0
        %v1071 = vmax.f32 %v1039, 0.0
        %v1072 = vmax.f32 %v1040, 0.0
        %v1073 = vmax.f32 %v1041, 0.0
        %v1074 = vmax.f32 %v1042, 0.0
        %v1075 = vmax.f32 %v1043, 0.0
        %v1076 = vpack.c.bf16 %v1045, %v1044
        %v1077 = vpack.c.bf16 %v1047, %v1046
        %v1078 = vpack.c.bf16 %v1049, %v1048
        %v1079 = vpack.c.bf16 %v1051, %v1050
        %v1080 = vpack.c.bf16 %v1053, %v1052
        %v1081 = vpack.c.bf16 %v1055, %v1054
        %v1082 = vpack.c.bf16 %v1057, %v1056
        %v1083 = vpack.c.bf16 %v1059, %v1058
        %v1084 = vpack.c.bf16 %v1061, %v1060
        %v1085 = vpack.c.bf16 %v1063, %v1062
        %v1086 = vpack.c.bf16 %v1065, %v1064
        %v1087 = vpack.c.bf16 %v1067, %v1066
        %v1088 = vpack.c.bf16 %v1069, %v1068
        %v1089 = vpack.c.bf16 %v1071, %v1070
        %v1090 = vpack.c.bf16 %v1073, %v1072
        %v1091 = vpack.c.bf16 %v1075, %v1074
        %vm1092 = vcmask 125952
        %1093 = vst.msk [vmem:[#allocation2] sm:$0xf] %vm1092, 0
        %1094 = vst.msk [vmem:[#allocation2 + $0x4] sm:$0xf] %vm1092, 0
        %vm1095 = vcmask 122880
        %1096 = vst.msk [vmem:[#allocation2 + $0x8] sm:$0x1] %vm1095, 0
        %1097 = vst.msk [vmem:[#allocation2 + $0xc] sm:$0xf] %vm1092, 0
        %1098 = vst.msk [vmem:[#allocation2 + $0x10] sm:$0xf] %vm1092, 0
        %1099 = vst.msk [vmem:[#allocation2 + $0x14] sm:$0x1] %vm1095, 0
        %1100 = vst.msk [vmem:[#allocation2 + $0x18] sm:$0xf] %vm1092, 0
        %1101 = vst.msk [vmem:[#allocation2 + $0x1c] sm:$0xf] %vm1092, 0
        %1102 = vst.msk [vmem:[#allocation2 + $0x20] sm:$0x1] %vm1095, 0
        %1103 = vst.msk [vmem:[#allocation2 + $0x24] sm:$0xf] %vm1092, 0
        %1104 = vst.msk [vmem:[#allocation2 + $0x28] sm:$0xf] %vm1092, 0
        %1105 = vst.msk [vmem:[#allocation2 + $0x2c] sm:$0x1] %vm1095, 0
        %1106 = vst.msk [vmem:[#allocation2 + $0x30] sm:$0xf] %vm1092, 0
        %1107 = vst.msk [vmem:[#allocation2 + $0x34] sm:$0xf] %vm1092, 0
        %1108 = vst.msk [vmem:[#allocation2 + $0x38] sm:$0x1] %vm1095, 0
        %1109 = vst.msk [vmem:[#allocation2 + $0x3c] sm:$0xf] %vm1092, 0
        %1110 = vst.msk [vmem:[#allocation2 + $0x40] sm:$0xf] %vm1092, 0
        %1111 = vst.msk [vmem:[#allocation2 + $0x44] sm:$0x1] %vm1095, 0
        %1112 = vst.msk [vmem:[#allocation2 + $0x48] sm:$0xf] %vm1092, 0
        %1113 = vst.msk [vmem:[#allocation2 + $0x4c] sm:$0xf] %vm1092, 0
        %1114 = vst.msk [vmem:[#allocation2 + $0x50] sm:$0x1] %vm1095, 0
        %1115 = vst.msk [vmem:[#allocation2 + $0x54] sm:$0xf] %vm1092, 0
        %1116 = vst.msk [vmem:[#allocation2 + $0x58] sm:$0xf] %vm1092, 0
        %1117 = vst.msk [vmem:[#allocation2 + $0x5c] sm:$0x1] %vm1095, 0
        %1118 = vst.msk [vmem:[#allocation2 + $0x60] sm:$0xf] %vm1092, 0
        %1119 = vst.msk [vmem:[#allocation2 + $0x64] sm:$0xf] %vm1092, 0
        %1120 = vst.msk [vmem:[#allocation2 + $0x68] sm:$0x1] %vm1095, 0
        %1121 = vst.msk [vmem:[#allocation2 + $0x6c] sm:$0xf] %vm1092, 0
        %1122 = vst.msk [vmem:[#allocation2 + $0x70] sm:$0xf] %vm1092, 0
        %1123 = vst.msk [vmem:[#allocation2 + $0x74] sm:$0x1] %vm1095, 0
        %1124 = vst.msk [vmem:[#allocation2 + $0x78] sm:$0xf] %vm1092, 0
        %1125 = vst.msk [vmem:[#allocation2 + $0x7c] sm:$0xf] %vm1092, 0
        %1126 = vst.msk [vmem:[#allocation2 + $0x80] sm:$0x1] %vm1095, 0
        %1127 = vst.msk [vmem:[#allocation2 + $0x84] sm:$0xf] %vm1092, 0
        %1128 = vst.msk [vmem:[#allocation2 + $0x88] sm:$0xf] %vm1092, 0
        %1129 = vst.msk [vmem:[#allocation2 + $0x8c] sm:$0x1] %vm1095, 0
        %1130 = vst.msk [vmem:[#allocation2 + $0x90] sm:$0xf] %vm1092, 0
        %1131 = vst.msk [vmem:[#allocation2 + $0x94] sm:$0xf] %vm1092, 0
        %1132 = vst.msk [vmem:[#allocation2 + $0x98] sm:$0x1] %vm1095, 0
        %1133 = vst.msk [vmem:[#allocation2 + $0x9c] sm:$0xf] %vm1092, 0
        %1134 = vst.msk [vmem:[#allocation2 + $0xa0] sm:$0xf] %vm1092, 0
        %1135 = vst.msk [vmem:[#allocation2 + $0xa4] sm:$0x1] %vm1095, 0
        %1136 = vst.msk [vmem:[#allocation2 + $0xa8] sm:$0xf] %vm1092, 0
        %1137 = vst.msk [vmem:[#allocation2 + $0xac] sm:$0xf] %vm1092, 0
        %1138 = vst.msk [vmem:[#allocation2 + $0xb0] sm:$0x1] %vm1095, 0
        %1139 = vst.msk [vmem:[#allocation2 + $0xb4] sm:$0xf] %vm1092, 0
        %1140 = vst.msk [vmem:[#allocation2 + $0xb8] sm:$0xf] %vm1092, 0
        %1141 = vst.msk [vmem:[#allocation2 + $0xbc] sm:$0x1] %vm1095, 0
        %1142 = vst.msk [vmem:[#allocation2 + $0xc0] sm:$0xf] %vm1092, 0
        %1143 = vst.msk [vmem:[#allocation2 + $0xc4] sm:$0xf] %vm1092, 0
        %1144 = vst.msk [vmem:[#allocation2 + $0xc8] sm:$0x1] %vm1095, 0
        %1145 = vst.msk [vmem:[#allocation2 + $0xcc] sm:$0xf] %vm1092, 0
        %1146 = vst.msk [vmem:[#allocation2 + $0xd0] sm:$0xf] %vm1092, 0
        %1147 = vst.msk [vmem:[#allocation2 + $0xd4] sm:$0x1] %vm1095, 0
        %v1164 = vunpack.c.l.b16 %v1076
        %v1165 = vunpack.c.h.b16 %v1076
        %v1166 = vunpack.c.l.b16 %v1077
        %v1167 = vunpack.c.h.b16 %v1077
        %v1168 = vunpack.c.l.b16 %v1078
        %v1169 = vunpack.c.h.b16 %v1078
        %v1170 = vunpack.c.l.b16 %v1079
        %v1171 = vunpack.c.h.b16 %v1079
        %v1172 = vunpack.c.l.b16 %v1080
        %v1173 = vunpack.c.h.b16 %v1080
        %v1174 = vunpack.c.l.b16 %v1081
        %v1175 = vunpack.c.h.b16 %v1081
        %v1176 = vunpack.c.l.b16 %v1082
        %v1177 = vunpack.c.h.b16 %v1082
        %v1178 = vunpack.c.l.b16 %v1083
        %v1179 = vunpack.c.h.b16 %v1083
        %v1180 = vunpack.c.l.b16 %v1084
        %v1181 = vunpack.c.h.b16 %v1084
        %v1182 = vunpack.c.l.b16 %v1085
        %v1183 = vunpack.c.h.b16 %v1085
        %v1184 = vunpack.c.l.b16 %v1086
        %v1185 = vunpack.c.h.b16 %v1086
        %v1186 = vunpack.c.l.b16 %v1087
        %v1187 = vunpack.c.h.b16 %v1087
        %v1188 = vunpack.c.l.b16 %v1088
        %v1189 = vunpack.c.h.b16 %v1088
        %v1190 = vunpack.c.l.b16 %v1089
        %v1191 = vunpack.c.h.b16 %v1089
        %v1192 = vunpack.c.l.b16 %v1090
        %v1193 = vunpack.c.h.b16 %v1090
        %v1194 = vunpack.c.l.b16 %v1091
        %v1195 = vunpack.c.h.b16 %v1091
        %v1196 = vpack.c.b16 %v1164, %v1164
        %v1197 = vpack.c.b16 %v1165, %v1165
        %v1198 = vpack.c.b16 %v1166, %v1166
        %v1199 = vpack.c.b16 %v1167, %v1167
        %v1200 = vpack.c.b16 %v1168, %v1168
        %v1201 = vpack.c.b16 %v1169, %v1169
        %v1202 = vpack.c.b16 %v1170, %v1170
        %v1203 = vpack.c.b16 %v1171, %v1171
        %v1204 = vpack.c.b16 %v1172, %v1172
        %v1205 = vpack.c.b16 %v1173, %v1173
        %v1206 = vpack.c.b16 %v1174, %v1174
        %v1207 = vpack.c.b16 %v1175, %v1175
        %v1208 = vpack.c.b16 %v1176, %v1176
        %v1209 = vpack.c.b16 %v1177, %v1177
        %v1210 = vpack.c.b16 %v1178, %v1178
        %v1211 = vpack.c.b16 %v1179, %v1179
        %v1212 = vpack.c.b16 %v1180, %v1180
        %v1213 = vpack.c.b16 %v1181, %v1181
        %v1214 = vpack.c.b16 %v1182, %v1182
        %v1215 = vpack.c.b16 %v1183, %v1183
        %v1216 = vpack.c.b16 %v1184, %v1184
        %v1217 = vpack.c.b16 %v1185, %v1185
        %v1218 = vpack.c.b16 %v1186, %v1186
        %v1219 = vpack.c.b16 %v1187, %v1187
        %v1220 = vpack.c.b16 %v1188, %v1188
        %v1221 = vpack.c.b16 %v1189, %v1189
        %v1222 = vpack.c.b16 %v1190, %v1190
        %v1223 = vpack.c.b16 %v1191, %v1191
        %v1224 = vpack.c.b16 %v1192, %v1192
        %v1225 = vpack.c.b16 %v1193, %v1193
        %v1226 = vpack.c.b16 %v1194, %v1194
        %v1227 = vpack.c.b16 %v1195, %v1195
        %vm1228 = vsmask.f32 256
        %vm1229 = vsmask.f32 4368
        %vm1230 = vmor %vm1228, %vm1229
        %v1232 = vshrl.u32 %v1196, 16
        %v1234 = vrot.slane %v1232, 7
        %v1235 = vshll.u32 %v1196, 16
        %v1237 = vor.u32 %v1234, %v1235
        %v1238 = vrot.slane %v1234, 4
        %v1240 = vshrl.u32 %v1197, 16
        %v1242 = vrot.slane %v1240, 7
        %v1243 = vshll.u32 %v1197, 16
        %v1245 = vor.u32 %v1242, %v1243
        %v1246 = vsel %vm1230, %v1238, %v1245
        %v1247 = vrot.slane %v1242, 4
        %v1249 = vshrl.u32 %v1198, 16
        %v1251 = vrot.slane %v1249, 7
        %v1252 = vshll.u32 %v1198, 16
        %v1254 = vor.u32 %v1251, %v1252
        %v1255 = vrot.slane %v1251, 4
        %v1257 = vshrl.u32 %v1199, 16
        %v1259 = vrot.slane %v1257, 7
        %v1260 = vshll.u32 %v1199, 16
        %v1262 = vor.u32 %v1259, %v1260
        %v1263 = vsel %vm1230, %v1255, %v1262
        %v1264 = vrot.slane %v1259, 4
        %v1266 = vshrl.u32 %v1200, 16
        %v1268 = vrot.slane %v1266, 7
        %v1269 = vshll.u32 %v1200, 16
        %v1271 = vor.u32 %v1268, %v1269
        %v1272 = vrot.slane %v1268, 4
        %v1274 = vshrl.u32 %v1201, 16
        %v1276 = vrot.slane %v1274, 7
        %v1277 = vshll.u32 %v1201, 16
        %v1279 = vor.u32 %v1276, %v1277
        %v1280 = vsel %vm1230, %v1272, %v1279
        %v1281 = vrot.slane %v1276, 4
        %v1283 = vshrl.u32 %v1202, 16
        %v1285 = vrot.slane %v1283, 7
        %v1286 = vshll.u32 %v1202, 16
        %v1288 = vor.u32 %v1285, %v1286
        %v1289 = vrot.slane %v1285, 4
        %v1291 = vshrl.u32 %v1203, 16
        %v1293 = vrot.slane %v1291, 7
        %v1294 = vshll.u32 %v1203, 16
        %v1296 = vor.u32 %v1293, %v1294
        %v1297 = vsel %vm1230, %v1289, %v1296
        %v1298 = vrot.slane %v1293, 4
        %v1300 = vshrl.u32 %v1204, 16
        %v1302 = vrot.slane %v1300, 7
        %v1303 = vshll.u32 %v1204, 16
        %v1305 = vor.u32 %v1302, %v1303
        %v1306 = vrot.slane %v1302, 4
        %v1308 = vshrl.u32 %v1205, 16
        %v1310 = vrot.slane %v1308, 7
        %v1311 = vshll.u32 %v1205, 16
        %v1313 = vor.u32 %v1310, %v1311
        %v1314 = vsel %vm1230, %v1306, %v1313
        %v1315 = vrot.slane %v1310, 4
        %v1317 = vshrl.u32 %v1206, 16
        %v1319 = vrot.slane %v1317, 7
        %v1320 = vshll.u32 %v1206, 16
        %v1322 = vor.u32 %v1319, %v1320
        %v1323 = vrot.slane %v1319, 4
        %v1325 = vshrl.u32 %v1207, 16
        %v1327 = vrot.slane %v1325, 7
        %v1328 = vshll.u32 %v1207, 16
        %v1330 = vor.u32 %v1327, %v1328
        %v1331 = vsel %vm1230, %v1323, %v1330
        %v1332 = vrot.slane %v1327, 4
        %v1334 = vshrl.u32 %v1208, 16
        %v1336 = vrot.slane %v1334, 7
        %v1337 = vshll.u32 %v1208, 16
        %v1339 = vor.u32 %v1336, %v1337
        %v1340 = vrot.slane %v1336, 4
        %v1342 = vshrl.u32 %v1209, 16
        %v1344 = vrot.slane %v1342, 7
        %v1345 = vshll.u32 %v1209, 16
        %v1347 = vor.u32 %v1344, %v1345
        %v1348 = vsel %vm1230, %v1340, %v1347
        %v1349 = vrot.slane %v1344, 4
        %v1351 = vshrl.u32 %v1210, 16
        %v1353 = vrot.slane %v1351, 7
        %v1354 = vshll.u32 %v1210, 16
        %v1356 = vor.u32 %v1353, %v1354
        %v1357 = vrot.slane %v1353, 4
        %v1359 = vshrl.u32 %v1211, 16
        %v1361 = vrot.slane %v1359, 7
        %v1362 = vshll.u32 %v1211, 16
        %v1364 = vor.u32 %v1361, %v1362
        %v1365 = vsel %vm1230, %v1357, %v1364
        %v1366 = vrot.slane %v1361, 4
        %v1368 = vshrl.u32 %v1212, 16
        %v1370 = vrot.slane %v1368, 7
        %v1371 = vshll.u32 %v1212, 16
        %v1373 = vor.u32 %v1370, %v1371
        %v1374 = vrot.slane %v1370, 4
        %v1376 = vshrl.u32 %v1213, 16
        %v1378 = vrot.slane %v1376, 7
        %v1379 = vshll.u32 %v1213, 16
        %v1381 = vor.u32 %v1378, %v1379
        %v1382 = vsel %vm1230, %v1374, %v1381
        %v1383 = vrot.slane %v1378, 4
        %v1385 = vshrl.u32 %v1214, 16
        %v1387 = vrot.slane %v1385, 7
        %v1388 = vshll.u32 %v1214, 16
        %v1390 = vor.u32 %v1387, %v1388
        %v1391 = vrot.slane %v1387, 4
        %v1393 = vshrl.u32 %v1215, 16
        %v1395 = vrot.slane %v1393, 7
        %v1396 = vshll.u32 %v1215, 16
        %v1398 = vor.u32 %v1395, %v1396
        %v1399 = vsel %vm1230, %v1391, %v1398
        %v1400 = vrot.slane %v1395, 4
        %v1402 = vshrl.u32 %v1216, 16
        %v1404 = vrot.slane %v1402, 7
        %v1405 = vshll.u32 %v1216, 16
        %v1407 = vor.u32 %v1404, %v1405
        %v1408 = vrot.slane %v1404, 4
        %v1410 = vshrl.u32 %v1217, 16
        %v1412 = vrot.slane %v1410, 7
        %v1413 = vshll.u32 %v1217, 16
        %v1415 = vor.u32 %v1412, %v1413
        %v1416 = vsel %vm1230, %v1408, %v1415
        %v1417 = vrot.slane %v1412, 4
        %v1419 = vshrl.u32 %v1218, 16
        %v1421 = vrot.slane %v1419, 7
        %v1422 = vshll.u32 %v1218, 16
        %v1424 = vor.u32 %v1421, %v1422
        %v1425 = vrot.slane %v1421, 4
        %v1427 = vshrl.u32 %v1219, 16
        %v1429 = vrot.slane %v1427, 7
        %v1430 = vshll.u32 %v1219, 16
        %v1432 = vor.u32 %v1429, %v1430
        %v1433 = vsel %vm1230, %v1425, %v1432
        %v1434 = vrot.slane %v1429, 4
        %v1436 = vshrl.u32 %v1220, 16
        %v1438 = vrot.slane %v1436, 7
        %v1439 = vshll.u32 %v1220, 16
        %v1441 = vor.u32 %v1438, %v1439
        %v1442 = vrot.slane %v1438, 4
        %v1444 = vshrl.u32 %v1221, 16
        %v1446 = vrot.slane %v1444, 7
        %v1447 = vshll.u32 %v1221, 16
        %v1449 = vor.u32 %v1446, %v1447
        %v1450 = vsel %vm1230, %v1442, %v1449
        %v1451 = vrot.slane %v1446, 4
        %v1453 = vshrl.u32 %v1222, 16
        %v1455 = vrot.slane %v1453, 7
        %v1456 = vshll.u32 %v1222, 16
        %v1458 = vor.u32 %v1455, %v1456
        %v1459 = vrot.slane %v1455, 4
        %v1461 = vshrl.u32 %v1223, 16
        %v1463 = vrot.slane %v1461, 7
        %v1464 = vshll.u32 %v1223, 16
        %v1466 = vor.u32 %v1463, %v1464
        %v1467 = vsel %vm1230, %v1459, %v1466
        %v1468 = vrot.slane %v1463, 4
        %v1470 = vshrl.u32 %v1224, 16
        %v1472 = vrot.slane %v1470, 7
        %v1473 = vshll.u32 %v1224, 16
        %v1475 = vor.u32 %v1472, %v1473
        %v1476 = vrot.slane %v1472, 4
        %v1478 = vshrl.u32 %v1225, 16
        %v1480 = vrot.slane %v1478, 7
        %v1481 = vshll.u32 %v1225, 16
        %v1483 = vor.u32 %v1480, %v1481
        %v1484 = vsel %vm1230, %v1476, %v1483
        %v1485 = vrot.slane %v1480, 4
        %v1487 = vshrl.u32 %v1226, 16
        %v1489 = vrot.slane %v1487, 7
        %v1490 = vshll.u32 %v1226, 16
        %v1492 = vor.u32 %v1489, %v1490
        %v1493 = vrot.slane %v1489, 4
        %v1495 = vshrl.u32 %v1227, 16
        %v1497 = vrot.slane %v1495, 7
        %v1498 = vshll.u32 %v1227, 16
        %v1500 = vor.u32 %v1497, %v1498
        %v1501 = vsel %vm1230, %v1493, %v1500
        %v1502 = vrot.slane %v1497, 4
        %s1551 = scalar_lea.vmem [#allocation2], 12
        %vm1552 = vcmask 125952
        %vm1553 = vsmask.f32 7938
        %vm1554 = vmand %vm1552, %vm1553
        %v1555 = vld [vmem:[%s1551] sm:$0xf]
        %v1556 = vsel %vm1554, %v1237, %v1555
        %1557 = vst [vmem:[%s1551] sm:$0xf] %v1556
        %1558 = vst.msk [vmem:[%s1551 + $0x4] sm:$0xf] %vm1092, %v1246
        %vm1559 = vcmask 122880
        %vm1560 = vmand %vm1559, %vm1228
        %v1561 = vld [vmem:[%s1551 + $0x8] sm:$0x1]
        %v1562 = vsel %vm1560, %v1247, %v1561
        %1563 = vst [vmem:[%s1551 + $0x8] sm:$0x1] %v1562
        %v1564 = vld [vmem:[%s1551 + $0xc] sm:$0xf]
        %v1565 = vsel %vm1554, %v1254, %v1564
        %1566 = vst [vmem:[%s1551 + $0xc] sm:$0xf] %v1565
        %1567 = vst.msk [vmem:[%s1551 + $0x10] sm:$0xf] %vm1092, %v1263
        %v1568 = vld [vmem:[%s1551 + $0x14] sm:$0x1]
        %v1569 = vsel %vm1560, %v1264, %v1568
        %1570 = vst [vmem:[%s1551 + $0x14] sm:$0x1] %v1569
        %v1571 = vld [vmem:[%s1551 + $0x18] sm:$0xf]
        %v1572 = vsel %vm1554, %v1271, %v1571
        %1573 = vst [vmem:[%s1551 + $0x18] sm:$0xf] %v1572
        %1574 = vst.msk [vmem:[%s1551 + $0x1c] sm:$0xf] %vm1092, %v1280
        %v1575 = vld [vmem:[%s1551 + $0x20] sm:$0x1]
        %v1576 = vsel %vm1560, %v1281, %v1575
        %1577 = vst [vmem:[%s1551 + $0x20] sm:$0x1] %v1576
        %v1578 = vld [vmem:[%s1551 + $0x24] sm:$0xf]
        %v1579 = vsel %vm1554, %v1288, %v1578
        %1580 = vst [vmem:[%s1551 + $0x24] sm:$0xf] %v1579
        %1581 = vst.msk [vmem:[%s1551 + $0x28] sm:$0xf] %vm1092, %v1297
        %v1582 = vld [vmem:[%s1551 + $0x2c] sm:$0x1]
        %v1583 = vsel %vm1560, %v1298, %v1582
        %1584 = vst [vmem:[%s1551 + $0x2c] sm:$0x1] %v1583
        %v1585 = vld [vmem:[%s1551 + $0x30] sm:$0xf]
        %v1586 = vsel %vm1554, %v1305, %v1585
        %1587 = vst [vmem:[%s1551 + $0x30] sm:$0xf] %v1586
        %1588 = vst.msk [vmem:[%s1551 + $0x34] sm:$0xf] %vm1092, %v1314
        %v1589 = vld [vmem:[%s1551 + $0x38] sm:$0x1]
        %v1590 = vsel %vm1560, %v1315, %v1589
        %1591 = vst [vmem:[%s1551 + $0x38] sm:$0x1] %v1590
        %v1592 = vld [vmem:[%s1551 + $0x3c] sm:$0xf]
        %v1593 = vsel %vm1554, %v1322, %v1592
        %1594 = vst [vmem:[%s1551 + $0x3c] sm:$0xf] %v1593
        %1595 = vst.msk [vmem:[%s1551 + $0x40] sm:$0xf] %vm1092, %v1331
        %v1596 = vld [vmem:[%s1551 + $0x44] sm:$0x1]
        %v1597 = vsel %vm1560, %v1332, %v1596
        %1598 = vst [vmem:[%s1551 + $0x44] sm:$0x1] %v1597
        %v1599 = vld [vmem:[%s1551 + $0x48] sm:$0xf]
        %v1600 = vsel %vm1554, %v1339, %v1599
        %1601 = vst [vmem:[%s1551 + $0x48] sm:$0xf] %v1600
        %1602 = vst.msk [vmem:[%s1551 + $0x4c] sm:$0xf] %vm1092, %v1348
        %v1603 = vld [vmem:[%s1551 + $0x50] sm:$0x1]
        %v1604 = vsel %vm1560, %v1349, %v1603
        %1605 = vst [vmem:[%s1551 + $0x50] sm:$0x1] %v1604
        %v1606 = vld [vmem:[%s1551 + $0x54] sm:$0xf]
        %v1607 = vsel %vm1554, %v1356, %v1606
        %1608 = vst [vmem:[%s1551 + $0x54] sm:$0xf] %v1607
        %1609 = vst.msk [vmem:[%s1551 + $0x58] sm:$0xf] %vm1092, %v1365
        %v1610 = vld [vmem:[%s1551 + $0x5c] sm:$0x1]
        %v1611 = vsel %vm1560, %v1366, %v1610
        %1612 = vst [vmem:[%s1551 + $0x5c] sm:$0x1] %v1611
        %v1613 = vld [vmem:[%s1551 + $0x60] sm:$0xf]
        %v1614 = vsel %vm1554, %v1373, %v1613
        %1615 = vst [vmem:[%s1551 + $0x60] sm:$0xf] %v1614
        %1616 = vst.msk [vmem:[%s1551 + $0x64] sm:$0xf] %vm1092, %v1382
        %v1617 = vld [vmem:[%s1551 + $0x68] sm:$0x1]
        %v1618 = vsel %vm1560, %v1383, %v1617
        %1619 = vst [vmem:[%s1551 + $0x68] sm:$0x1] %v1618
        %v1620 = vld [vmem:[%s1551 + $0x6c] sm:$0xf]
        %v1621 = vsel %vm1554, %v1390, %v1620
        %1622 = vst [vmem:[%s1551 + $0x6c] sm:$0xf] %v1621
        %1623 = vst.msk [vmem:[%s1551 + $0x70] sm:$0xf] %vm1092, %v1399
        %v1624 = vld [vmem:[%s1551 + $0x74] sm:$0x1]
        %v1625 = vsel %vm1560, %v1400, %v1624
        %1626 = vst [vmem:[%s1551 + $0x74] sm:$0x1] %v1625
        %v1627 = vld [vmem:[%s1551 + $0x78] sm:$0xf]
        %v1628 = vsel %vm1554, %v1407, %v1627
        %1629 = vst [vmem:[%s1551 + $0x78] sm:$0xf] %v1628
        %1630 = vst.msk [vmem:[%s1551 + $0x7c] sm:$0xf] %vm1092, %v1416
        %v1631 = vld [vmem:[%s1551 + $0x80] sm:$0x1]
        %v1632 = vsel %vm1560, %v1417, %v1631
        %1633 = vst [vmem:[%s1551 + $0x80] sm:$0x1] %v1632
        %v1634 = vld [vmem:[%s1551 + $0x84] sm:$0xf]
        %v1635 = vsel %vm1554, %v1424, %v1634
        %1636 = vst [vmem:[%s1551 + $0x84] sm:$0xf] %v1635
        %1637 = vst.msk [vmem:[%s1551 + $0x88] sm:$0xf] %vm1092, %v1433
        %v1638 = vld [vmem:[%s1551 + $0x8c] sm:$0x1]
        %v1639 = vsel %vm1560, %v1434, %v1638
        %1640 = vst [vmem:[%s1551 + $0x8c] sm:$0x1] %v1639
        %v1641 = vld [vmem:[%s1551 + $0x90] sm:$0xf]
        %v1642 = vsel %vm1554, %v1441, %v1641
        %1643 = vst [vmem:[%s1551 + $0x90] sm:$0xf] %v1642
        %1644 = vst.msk [vmem:[%s1551 + $0x94] sm:$0xf] %vm1092, %v1450
        %v1645 = vld [vmem:[%s1551 + $0x98] sm:$0x1]
        %v1646 = vsel %vm1560, %v1451, %v1645
        %1647 = vst [vmem:[%s1551 + $0x98] sm:$0x1] %v1646
        %v1648 = vld [vmem:[%s1551 + $0x9c] sm:$0xf]
        %v1649 = vsel %vm1554, %v1458, %v1648
        %1650 = vst [vmem:[%s1551 + $0x9c] sm:$0xf] %v1649
        %1651 = vst.msk [vmem:[%s1551 + $0xa0] sm:$0xf] %vm1092, %v1467
        %v1652 = vld [vmem:[%s1551 + $0xa4] sm:$0x1]
        %v1653 = vsel %vm1560, %v1468, %v1652
        %1654 = vst [vmem:[%s1551 + $0xa4] sm:$0x1] %v1653
        %v1655 = vld [vmem:[%s1551 + $0xa8] sm:$0xf]
        %v1656 = vsel %vm1554, %v1475, %v1655
        %1657 = vst [vmem:[%s1551 + $0xa8] sm:$0xf] %v1656
        %1658 = vst.msk [vmem:[%s1551 + $0xac] sm:$0xf] %vm1092, %v1484
        %v1659 = vld [vmem:[%s1551 + $0xb0] sm:$0x1]
        %v1660 = vsel %vm1560, %v1485, %v1659
        %1661 = vst [vmem:[%s1551 + $0xb0] sm:$0x1] %v1660
        %v1662 = vld [vmem:[%s1551 + $0xb4] sm:$0xf]
        %v1663 = vsel %vm1554, %v1492, %v1662
        %1664 = vst [vmem:[%s1551 + $0xb4] sm:$0xf] %v1663
        %1665 = vst.msk [vmem:[%s1551 + $0xb8] sm:$0xf] %vm1092, %v1501
        %v1666 = vld [vmem:[%s1551 + $0xbc] sm:$0x1]
        %v1667 = vsel %vm1560, %v1502, %v1666
        %1668 = vst [vmem:[%s1551 + $0xbc] sm:$0x1] %v1667
        %v1669 = vld [vmem:[#allocation2] sm:$0xf]
        %v1670 = vld [vmem:[#allocation2 + $0x4] sm:$0xf]
        %v1671 = vld [vmem:[#allocation2 + $0xc] sm:$0xf]
        %v1672 = vld [vmem:[#allocation2 + $0x10] sm:$0xf]
        %v1673 = vld [vmem:[#allocation2 + $0x18] sm:$0xf]
        %v1674 = vld [vmem:[#allocation2 + $0x1c] sm:$0xf]
        %v1675 = vld [vmem:[#allocation2 + $0x24] sm:$0xf]
        %v1676 = vld [vmem:[#allocation2 + $0x28] sm:$0xf]
        %v1677 = vld [vmem:[#allocation2 + $0x30] sm:$0xf]
        %v1678 = vld [vmem:[#allocation2 + $0x34] sm:$0xf]
        %v1679 = vld [vmem:[#allocation2 + $0x3c] sm:$0xf]
        %v1680 = vld [vmem:[#allocation2 + $0x40] sm:$0xf]
        %v1681 = vld [vmem:[#allocation2 + $0x48] sm:$0xf]
        %v1682 = vld [vmem:[#allocation2 + $0x4c] sm:$0xf]
        %v1683 = vld [vmem:[#allocation2 + $0x54] sm:$0xf]
        %v1684 = vld [vmem:[#allocation2 + $0x58] sm:$0xf]
        %v1685 = vld [vmem:[#allocation2 + $0x60] sm:$0xf]
        %v1686 = vld [vmem:[#allocation2 + $0x64] sm:$0xf]
        %v1687 = vld [vmem:[#allocation2 + $0x6c] sm:$0xf]
        %v1688 = vld [vmem:[#allocation2 + $0x70] sm:$0xf]
        %v1689 = vld [vmem:[#allocation2 + $0x78] sm:$0xf]
        %v1690 = vld [vmem:[#allocation2 + $0x7c] sm:$0xf]
        %v1691 = vld [vmem:[#allocation2 + $0x84] sm:$0xf]
        %v1692 = vld [vmem:[#allocation2 + $0x88] sm:$0xf]
        %v1693 = vld [vmem:[#allocation2 + $0x90] sm:$0xf]
        %v1694 = vld [vmem:[#allocation2 + $0x94] sm:$0xf]
        %v1695 = vld [vmem:[#allocation2 + $0x9c] sm:$0xf]
        %v1696 = vld [vmem:[#allocation2 + $0xa0] sm:$0xf]
        %v1697 = vld [vmem:[#allocation2 + $0xa8] sm:$0xf]
        %v1698 = vld [vmem:[#allocation2 + $0xac] sm:$0xf]
        %v1699 = vld [vmem:[#allocation2 + $0xb4] sm:$0xf]
        %v1700 = vld [vmem:[#allocation2 + $0xb8] sm:$0xf]
        %v1701 = vld [vmem:[#allocation2 + $0x8] sm:$0x1]
        %v1702 = vld [vmem:[#allocation2 + $0x14] sm:$0x1]
        %v1703 = vld [vmem:[#allocation2 + $0x20] sm:$0x1]
        %v1704 = vld [vmem:[#allocation2 + $0x2c] sm:$0x1]
        %v1705 = vld [vmem:[#allocation2 + $0x38] sm:$0x1]
        %v1706 = vld [vmem:[#allocation2 + $0x44] sm:$0x1]
        %v1707 = vld [vmem:[#allocation2 + $0x50] sm:$0x1]
        %v1708 = vld [vmem:[#allocation2 + $0x5c] sm:$0x1]
        %v1709 = vld [vmem:[#allocation2 + $0x68] sm:$0x1]
        %v1710 = vld [vmem:[#allocation2 + $0x74] sm:$0x1]
        %v1711 = vld [vmem:[#allocation2 + $0x80] sm:$0x1]
        %v1712 = vld [vmem:[#allocation2 + $0x8c] sm:$0x1]
        %v1713 = vld [vmem:[#allocation2 + $0x98] sm:$0x1]
        %v1714 = vld [vmem:[#allocation2 + $0xa4] sm:$0x1]
        %v1715 = vld [vmem:[#allocation2 + $0xb0] sm:$0x1]
        %v1716 = vld [vmem:[#allocation2 + $0xbc] sm:$0x1]
        %v1717 = vld [vmem:[#allocation2] sm:$0xe]
        %v1718 = vld [vmem:[#allocation2 + $0xc] sm:$0xe]
        %v1719 = vld [vmem:[#allocation2 + $0x18] sm:$0xe]
        %v1720 = vld [vmem:[#allocation2 + $0x24] sm:$0xe]
        %v1721 = vld [vmem:[#allocation2 + $0x30] sm:$0xe]
        %v1722 = vld [vmem:[#allocation2 + $0x3c] sm:$0xe]
        %v1723 = vld [vmem:[#allocation2 + $0x48] sm:$0xe]
        %v1724 = vld [vmem:[#allocation2 + $0x54] sm:$0xe]
        %v1725 = vld [vmem:[#allocation2 + $0x60] sm:$0xe]
        %v1726 = vld [vmem:[#allocation2 + $0x6c] sm:$0xe]
        %v1727 = vld [vmem:[#allocation2 + $0x78] sm:$0xe]
        %v1728 = vld [vmem:[#allocation2 + $0x84] sm:$0xe]
        %v1729 = vld [vmem:[#allocation2 + $0x90] sm:$0xe]
        %v1730 = vld [vmem:[#allocation2 + $0x9c] sm:$0xe]
        %v1731 = vld [vmem:[#allocation2 + $0xa8] sm:$0xe]
        %v1732 = vld [vmem:[#allocation2 + $0xb4] sm:$0xe]
        %v1733 = vld [vmem:[%s1551] sm:$0xf]
        %v1734 = vld [vmem:[%s1551 + $0x4] sm:$0xf]
        %v1735 = vld [vmem:[%s1551 + $0xc] sm:$0xf]
        %v1736 = vld [vmem:[%s1551 + $0x10] sm:$0xf]
        %v1737 = vld [vmem:[%s1551 + $0x18] sm:$0xf]
        %v1738 = vld [vmem:[%s1551 + $0x1c] sm:$0xf]
        %v1739 = vld [vmem:[%s1551 + $0x24] sm:$0xf]
        %v1740 = vld [vmem:[%s1551 + $0x28] sm:$0xf]
        %v1741 = vld [vmem:[%s1551 + $0x30] sm:$0xf]
        %v1742 = vld [vmem:[%s1551 + $0x34] sm:$0xf]
        %v1743 = vld [vmem:[%s1551 + $0x3c] sm:$0xf]
        %v1744 = vld [vmem:[%s1551 + $0x40] sm:$0xf]
        %v1745 = vld [vmem:[%s1551 + $0x48] sm:$0xf]
        %v1746 = vld [vmem:[%s1551 + $0x4c] sm:$0xf]
        %v1747 = vld [vmem:[%s1551 + $0x54] sm:$0xf]
        %v1748 = vld [vmem:[%s1551 + $0x58] sm:$0xf]
        %v1749 = vld [vmem:[%s1551 + $0x60] sm:$0xf]
        %v1750 = vld [vmem:[%s1551 + $0x64] sm:$0xf]
        %v1751 = vld [vmem:[%s1551 + $0x6c] sm:$0xf]
        %v1752 = vld [vmem:[%s1551 + $0x70] sm:$0xf]
        %v1753 = vld [vmem:[%s1551 + $0x78] sm:$0xf]
        %v1754 = vld [vmem:[%s1551 + $0x7c] sm:$0xf]
        %v1755 = vld [vmem:[%s1551 + $0x84] sm:$0xf]
        %v1756 = vld [vmem:[%s1551 + $0x88] sm:$0xf]
        %v1757 = vld [vmem:[%s1551 + $0x90] sm:$0xf]
        %v1758 = vld [vmem:[%s1551 + $0x94] sm:$0xf]
        %v1759 = vld [vmem:[%s1551 + $0x9c] sm:$0xf]
        %v1760 = vld [vmem:[%s1551 + $0xa0] sm:$0xf]
        %v1761 = vld [vmem:[%s1551 + $0xa8] sm:$0xf]
        %v1762 = vld [vmem:[%s1551 + $0xac] sm:$0xf]
        %v1763 = vld [vmem:[%s1551 + $0xb4] sm:$0xf]
        %v1764 = vld [vmem:[%s1551 + $0xb8] sm:$0xf]
        %v1765 = vld [vmem:[%s1551 + $0x8] sm:$0x1]
        %v1766 = vld [vmem:[%s1551 + $0x14] sm:$0x1]
        %v1767 = vld [vmem:[%s1551 + $0x20] sm:$0x1]
        %v1768 = vld [vmem:[%s1551 + $0x2c] sm:$0x1]
        %v1769 = vld [vmem:[%s1551 + $0x38] sm:$0x1]
        %v1770 = vld [vmem:[%s1551 + $0x44] sm:$0x1]
        %v1771 = vld [vmem:[%s1551 + $0x50] sm:$0x1]
        %v1772 = vld [vmem:[%s1551 + $0x5c] sm:$0x1]
        %v1773 = vld [vmem:[%s1551 + $0x68] sm:$0x1]
        %v1774 = vld [vmem:[%s1551 + $0x74] sm:$0x1]
        %v1775 = vld [vmem:[%s1551 + $0x80] sm:$0x1]
        %v1776 = vld [vmem:[%s1551 + $0x8c] sm:$0x1]
        %v1777 = vld [vmem:[%s1551 + $0x98] sm:$0x1]
        %v1778 = vld [vmem:[%s1551 + $0xa4] sm:$0x1]
        %v1779 = vld [vmem:[%s1551 + $0xb0] sm:$0x1]
        %v1780 = vld [vmem:[%s1551 + $0xbc] sm:$0x1]
        %v1781 = vld [vmem:[%s1551] sm:$0xe]
        %v1782 = vld [vmem:[%s1551 + $0xc] sm:$0xe]
        %v1783 = vld [vmem:[%s1551 + $0x18] sm:$0xe]
        %v1784 = vld [vmem:[%s1551 + $0x24] sm:$0xe]
        %v1785 = vld [vmem:[%s1551 + $0x30] sm:$0xe]
        %v1786 = vld [vmem:[%s1551 + $0x3c] sm:$0xe]
        %v1787 = vld [vmem:[%s1551 + $0x48] sm:$0xe]
        %v1788 = vld [vmem:[%s1551 + $0x54] sm:$0xe]
        %v1789 = vld [vmem:[%s1551 + $0x60] sm:$0xe]
        %v1790 = vld [vmem:[%s1551 + $0x6c] sm:$0xe]
        %v1791 = vld [vmem:[%s1551 + $0x78] sm:$0xe]
        %v1792 = vld [vmem:[%s1551 + $0x84] sm:$0xe]
        %v1793 = vld [vmem:[%s1551 + $0x90] sm:$0xe]
        %v1794 = vld [vmem:[%s1551 + $0x9c] sm:$0xe]
        %v1795 = vld [vmem:[%s1551 + $0xa8] sm:$0xe]
        %v1796 = vld [vmem:[%s1551 + $0xb4] sm:$0xe]
        %s1797 = scalar_lea.vmem [#allocation2], 24
        %v1798 = vld [vmem:[%s1797] sm:$0xf]
        %v1799 = vld [vmem:[%s1797 + $0x4] sm:$0xf]
        %v1800 = vld [vmem:[%s1797 + $0xc] sm:$0xf]
        %v1801 = vld [vmem:[%s1797 + $0x10] sm:$0xf]
        %v1802 = vld [vmem:[%s1797 + $0x18] sm:$0xf]
        %v1803 = vld [vmem:[%s1797 + $0x1c] sm:$0xf]
        %v1804 = vld [vmem:[%s1797 + $0x24] sm:$0xf]
        %v1805 = vld [vmem:[%s1797 + $0x28] sm:$0xf]
        %v1806 = vld [vmem:[%s1797 + $0x30] sm:$0xf]
        %v1807 = vld [vmem:[%s1797 + $0x34] sm:$0xf]
        %v1808 = vld [vmem:[%s1797 + $0x3c] sm:$0xf]
        %v1809 = vld [vmem:[%s1797 + $0x40] sm:$0xf]
        %v1810 = vld [vmem:[%s1797 + $0x48] sm:$0xf]
        %v1811 = vld [vmem:[%s1797 + $0x4c] sm:$0xf]
        %v1812 = vld [vmem:[%s1797 + $0x54] sm:$0xf]
        %v1813 = vld [vmem:[%s1797 + $0x58] sm:$0xf]
        %v1814 = vld [vmem:[%s1797 + $0x60] sm:$0xf]
        %v1815 = vld [vmem:[%s1797 + $0x64] sm:$0xf]
        %v1816 = vld [vmem:[%s1797 + $0x6c] sm:$0xf]
        %v1817 = vld [vmem:[%s1797 + $0x70] sm:$0xf]
        %v1818 = vld [vmem:[%s1797 + $0x78] sm:$0xf]
        %v1819 = vld [vmem:[%s1797 + $0x7c] sm:$0xf]
        %v1820 = vld [vmem:[%s1797 + $0x84] sm:$0xf]
        %v1821 = vld [vmem:[%s1797 + $0x88] sm:$0xf]
        %v1822 = vld [vmem:[%s1797 + $0x90] sm:$0xf]
        %v1823 = vld [vmem:[%s1797 + $0x94] sm:$0xf]
        %v1824 = vld [vmem:[%s1797 + $0x9c] sm:$0xf]
        %v1825 = vld [vmem:[%s1797 + $0xa0] sm:$0xf]
        %v1826 = vld [vmem:[%s1797 + $0xa8] sm:$0xf]
        %v1827 = vld [vmem:[%s1797 + $0xac] sm:$0xf]
        %v1828 = vld [vmem:[%s1797 + $0xb4] sm:$0xf]
        %v1829 = vld [vmem:[%s1797 + $0xb8] sm:$0xf]
        %v1830 = vld [vmem:[%s1797 + $0x8] sm:$0x1]
        %v1831 = vld [vmem:[%s1797 + $0x14] sm:$0x1]
        %v1832 = vld [vmem:[%s1797 + $0x20] sm:$0x1]
        %v1833 = vld [vmem:[%s1797 + $0x2c] sm:$0x1]
        %v1834 = vld [vmem:[%s1797 + $0x38] sm:$0x1]
        %v1835 = vld [vmem:[%s1797 + $0x44] sm:$0x1]
        %v1836 = vld [vmem:[%s1797 + $0x50] sm:$0x1]
        %v1837 = vld [vmem:[%s1797 + $0x5c] sm:$0x1]
        %v1838 = vld [vmem:[%s1797 + $0x68] sm:$0x1]
        %v1839 = vld [vmem:[%s1797 + $0x74] sm:$0x1]
        %v1840 = vld [vmem:[%s1797 + $0x80] sm:$0x1]
        %v1841 = vld [vmem:[%s1797 + $0x8c] sm:$0x1]
        %v1842 = vld [vmem:[%s1797 + $0x98] sm:$0x1]
        %v1843 = vld [vmem:[%s1797 + $0xa4] sm:$0x1]
        %v1844 = vld [vmem:[%s1797 + $0xb0] sm:$0x1]
        %v1845 = vld [vmem:[%s1797 + $0xbc] sm:$0x1]
        %v1846 = vld [vmem:[%s1797] sm:$0xe]
        %v1847 = vld [vmem:[%s1797 + $0xc] sm:$0xe]
        %v1848 = vld [vmem:[%s1797 + $0x18] sm:$0xe]
        %v1849 = vld [vmem:[%s1797 + $0x24] sm:$0xe]
        %v1850 = vld [vmem:[%s1797 + $0x30] sm:$0xe]
        %v1851 = vld [vmem:[%s1797 + $0x3c] sm:$0xe]
        %v1852 = vld [vmem:[%s1797 + $0x48] sm:$0xe]
        %v1853 = vld [vmem:[%s1797 + $0x54] sm:$0xe]
        %v1854 = vld [vmem:[%s1797 + $0x60] sm:$0xe]
        %v1855 = vld [vmem:[%s1797 + $0x6c] sm:$0xe]
        %v1856 = vld [vmem:[%s1797 + $0x78] sm:$0xe]
        %v1857 = vld [vmem:[%s1797 + $0x84] sm:$0xe]
        %v1858 = vld [vmem:[%s1797 + $0x90] sm:$0xe]
        %v1859 = vld [vmem:[%s1797 + $0x9c] sm:$0xe]
        %v1860 = vld [vmem:[%s1797 + $0xa8] sm:$0xe]
        %v1861 = vld [vmem:[%s1797 + $0xb4] sm:$0xe]
        %v1894 = vunpack.c.l.b16 %v1669
        %v1895 = vunpack.c.l.b16 %v1670
        %v1896 = vunpack.c.l.b16 %v1671
        %v1897 = vunpack.c.l.b16 %v1672
        %v1898 = vunpack.c.l.b16 %v1673
        %v1899 = vunpack.c.l.b16 %v1674
        %v1900 = vunpack.c.l.b16 %v1675
        %v1901 = vunpack.c.l.b16 %v1676
        %v1902 = vunpack.c.l.b16 %v1677
        %v1903 = vunpack.c.l.b16 %v1678
        %v1904 = vunpack.c.l.b16 %v1679
        %v1905 = vunpack.c.l.b16 %v1680
        %v1906 = vunpack.c.l.b16 %v1681
        %v1907 = vunpack.c.l.b16 %v1682
        %v1908 = vunpack.c.l.b16 %v1683
        %v1909 = vunpack.c.l.b16 %v1684
        %v1910 = vunpack.c.l.b16 %v1685
        %v1911 = vunpack.c.l.b16 %v1686
        %v1912 = vunpack.c.l.b16 %v1687
        %v1913 = vunpack.c.l.b16 %v1688
        %v1914 = vunpack.c.l.b16 %v1689
        %v1915 = vunpack.c.l.b16 %v1690
        %v1916 = vunpack.c.l.b16 %v1691
        %v1917 = vunpack.c.l.b16 %v1692
        %v1918 = vunpack.c.l.b16 %v1693
        %v1919 = vunpack.c.l.b16 %v1694
        %v1920 = vunpack.c.l.b16 %v1695
        %v1921 = vunpack.c.l.b16 %v1696
        %v1922 = vunpack.c.l.b16 %v1697
        %v1923 = vunpack.c.l.b16 %v1698
        %v1924 = vunpack.c.l.b16 %v1699
        %v1925 = vunpack.c.l.b16 %v1700
        %v1926 = vpack.c.b16 %v1895, %v1894
        %v1927 = vpack.c.b16 %v1897, %v1896
        %v1928 = vpack.c.b16 %v1899, %v1898
        %v1929 = vpack.c.b16 %v1901, %v1900
        %v1930 = vpack.c.b16 %v1903, %v1902
        %v1931 = vpack.c.b16 %v1905, %v1904
        %v1932 = vpack.c.b16 %v1907, %v1906
        %v1933 = vpack.c.b16 %v1909, %v1908
        %v1934 = vpack.c.b16 %v1911, %v1910
        %v1935 = vpack.c.b16 %v1913, %v1912
        %v1936 = vpack.c.b16 %v1915, %v1914
        %v1937 = vpack.c.b16 %v1917, %v1916
        %v1938 = vpack.c.b16 %v1919, %v1918
        %v1939 = vpack.c.b16 %v1921, %v1920
        %v1940 = vpack.c.b16 %v1923, %v1922
        %v1941 = vpack.c.b16 %v1925, %v1924
        %v1958 = vunpack.c.l.b16 %v1701
        %v1959 = vunpack.c.l.b16 %v1702
        %v1960 = vunpack.c.l.b16 %v1703
        %v1961 = vunpack.c.l.b16 %v1704
        %v1962 = vunpack.c.l.b16 %v1705
        %v1963 = vunpack.c.l.b16 %v1706
        %v1964 = vunpack.c.l.b16 %v1707
        %v1965 = vunpack.c.l.b16 %v1708
        %v1966 = vunpack.c.l.b16 %v1709
        %v1967 = vunpack.c.l.b16 %v1710
        %v1968 = vunpack.c.l.b16 %v1711
        %v1969 = vunpack.c.l.b16 %v1712
        %v1970 = vunpack.c.l.b16 %v1713
        %v1971 = vunpack.c.l.b16 %v1714
        %v1972 = vunpack.c.l.b16 %v1715
        %v1973 = vunpack.c.l.b16 %v1716
        %v1974 = vpack.c.b16 %v1958, %v1958
        %v1975 = vpack.c.b16 %v1959, %v1959
        %v1976 = vpack.c.b16 %v1960, %v1960
        %v1977 = vpack.c.b16 %v1961, %v1961
        %v1978 = vpack.c.b16 %v1962, %v1962
        %v1979 = vpack.c.b16 %v1963, %v1963
        %v1980 = vpack.c.b16 %v1964, %v1964
        %v1981 = vpack.c.b16 %v1965, %v1965
        %v1982 = vpack.c.b16 %v1966, %v1966
        %v1983 = vpack.c.b16 %v1967, %v1967
        %v1984 = vpack.c.b16 %v1968, %v1968
        %v1985 = vpack.c.b16 %v1969, %v1969
        %v1986 = vpack.c.b16 %v1970, %v1970
        %v1987 = vpack.c.b16 %v1971, %v1971
        %v1988 = vpack.c.b16 %v1972, %v1972
        %v1989 = vpack.c.b16 %v1973, %v1973
        %vm1990 = vsmask.f32 7424
        %v1992 = vshrl.u32 %v1926, 16
        %v1994 = vshll.u32 %v1926, 16
        %v1996 = vrot.slane %v1994, 1
        %v1997 = vor.u32 %v1992, %v1996
        %v1999 = vshll.u32 %v1974, 16
        %v2001 = vrot.slane %v1999, 1
        %v2002 = vsel %vm1990, %v1997, %v2001
        %v2004 = vshrl.u32 %v1927, 16
        %v2006 = vshll.u32 %v1927, 16
        %v2008 = vrot.slane %v2006, 1
        %v2009 = vor.u32 %v2004, %v2008
        %v2011 = vshll.u32 %v1975, 16
        %v2013 = vrot.slane %v2011, 1
        %v2014 = vsel %vm1990, %v2009, %v2013
        %v2016 = vshrl.u32 %v1928, 16
        %v2018 = vshll.u32 %v1928, 16
        %v2020 = vrot.slane %v2018, 1
        %v2021 = vor.u32 %v2016, %v2020
        %v2023 = vshll.u32 %v1976, 16
        %v2025 = vrot.slane %v2023, 1
        %v2026 = vsel %vm1990, %v2021, %v2025
        %v2028 = vshrl.u32 %v1929, 16
        %v2030 = vshll.u32 %v1929, 16
        %v2032 = vrot.slane %v2030, 1
        %v2033 = vor.u32 %v2028, %v2032
        %v2035 = vshll.u32 %v1977, 16
        %v2037 = vrot.slane %v2035, 1
        %v2038 = vsel %vm1990, %v2033, %v2037
        %v2040 = vshrl.u32 %v1930, 16
        %v2042 = vshll.u32 %v1930, 16
        %v2044 = vrot.slane %v2042, 1
        %v2045 = vor.u32 %v2040, %v2044
        %v2047 = vshll.u32 %v1978, 16
        %v2049 = vrot.slane %v2047, 1
        %v2050 = vsel %vm1990, %v2045, %v2049
        %v2052 = vshrl.u32 %v1931, 16
        %v2054 = vshll.u32 %v1931, 16
        %v2056 = vrot.slane %v2054, 1
        %v2057 = vor.u32 %v2052, %v2056
        %v2059 = vshll.u32 %v1979, 16
        %v2061 = vrot.slane %v2059, 1
        %v2062 = vsel %vm1990, %v2057, %v2061
        %v2064 = vshrl.u32 %v1932, 16
        %v2066 = vshll.u32 %v1932, 16
        %v2068 = vrot.slane %v2066, 1
        %v2069 = vor.u32 %v2064, %v2068
        %v2071 = vshll.u32 %v1980, 16
        %v2073 = vrot.slane %v2071, 1
        %v2074 = vsel %vm1990, %v2069, %v2073
        %v2076 = vshrl.u32 %v1933, 16
        %v2078 = vshll.u32 %v1933, 16
        %v2080 = vrot.slane %v2078, 1
        %v2081 = vor.u32 %v2076, %v2080
        %v2083 = vshll.u32 %v1981, 16
        %v2085 = vrot.slane %v2083, 1
        %v2086 = vsel %vm1990, %v2081, %v2085
        %v2088 = vshrl.u32 %v1934, 16
        %v2090 = vshll.u32 %v1934, 16
        %v2092 = vrot.slane %v2090, 1
        %v2093 = vor.u32 %v2088, %v2092
        %v2095 = vshll.u32 %v1982, 16
        %v2097 = vrot.slane %v2095, 1
        %v2098 = vsel %vm1990, %v2093, %v2097
        %v2100 = vshrl.u32 %v1935, 16
        %v2102 = vshll.u32 %v1935, 16
        %v2104 = vrot.slane %v2102, 1
        %v2105 = vor.u32 %v2100, %v2104
        %v2107 = vshll.u32 %v1983, 16
        %v2109 = vrot.slane %v2107, 1
        %v2110 = vsel %vm1990, %v2105, %v2109
        %v2112 = vshrl.u32 %v1936, 16
        %v2114 = vshll.u32 %v1936, 16
        %v2116 = vrot.slane %v2114, 1
        %v2117 = vor.u32 %v2112, %v2116
        %v2119 = vshll.u32 %v1984, 16
        %v2121 = vrot.slane %v2119, 1
        %v2122 = vsel %vm1990, %v2117, %v2121
        %v2124 = vshrl.u32 %v1937, 16
        %v2126 = vshll.u32 %v1937, 16
        %v2128 = vrot.slane %v2126, 1
        %v2129 = vor.u32 %v2124, %v2128
        %v2131 = vshll.u32 %v1985, 16
        %v2133 = vrot.slane %v2131, 1
        %v2134 = vsel %vm1990, %v2129, %v2133
        %v2136 = vshrl.u32 %v1938, 16
        %v2138 = vshll.u32 %v1938, 16
        %v2140 = vrot.slane %v2138, 1
        %v2141 = vor.u32 %v2136, %v2140
        %v2143 = vshll.u32 %v1986, 16
        %v2145 = vrot.slane %v2143, 1
        %v2146 = vsel %vm1990, %v2141, %v2145
        %v2148 = vshrl.u32 %v1939, 16
        %v2150 = vshll.u32 %v1939, 16
        %v2152 = vrot.slane %v2150, 1
        %v2153 = vor.u32 %v2148, %v2152
        %v2155 = vshll.u32 %v1987, 16
        %v2157 = vrot.slane %v2155, 1
        %v2158 = vsel %vm1990, %v2153, %v2157
        %v2160 = vshrl.u32 %v1940, 16
        %v2162 = vshll.u32 %v1940, 16
        %v2164 = vrot.slane %v2162, 1
        %v2165 = vor.u32 %v2160, %v2164
        %v2167 = vshll.u32 %v1988, 16
        %v2169 = vrot.slane %v2167, 1
        %v2170 = vsel %vm1990, %v2165, %v2169
        %v2172 = vshrl.u32 %v1941, 16
        %v2174 = vshll.u32 %v1941, 16
        %v2176 = vrot.slane %v2174, 1
        %v2177 = vor.u32 %v2172, %v2176
        %v2179 = vshll.u32 %v1989, 16
        %v2181 = vrot.slane %v2179, 1
        %v2182 = vsel %vm1990, %v2177, %v2181
        %2183 = vrot.lane.b32.xlu0 %v2002, 16
        %v2184 = vpop.permute.xlu0 %2183
        %2185 = vrot.lane.b32.xlu0 %v2014, 16
        %v2186 = vpop.permute.xlu0 %2185
        %2187 = vrot.lane.b32.xlu0 %v2026, 16
        %v2188 = vpop.permute.xlu0 %2187
        %2189 = vrot.lane.b32.xlu0 %v2038, 16
        %v2190 = vpop.permute.xlu0 %2189
        %2191 = vrot.lane.b32.xlu0 %v2050, 16
        %v2192 = vpop.permute.xlu0 %2191
        %2193 = vrot.lane.b32.xlu0 %v2062, 16
        %v2194 = vpop.permute.xlu0 %2193
        %2195 = vrot.lane.b32.xlu0 %v2074, 16
        %v2196 = vpop.permute.xlu0 %2195
        %2197 = vrot.lane.b32.xlu0 %v2086, 16
        %v2198 = vpop.permute.xlu0 %2197
        %2199 = vrot.lane.b32.xlu0 %v2098, 16
        %v2200 = vpop.permute.xlu0 %2199
        %2201 = vrot.lane.b32.xlu0 %v2110, 16
        %v2202 = vpop.permute.xlu0 %2201
        %2203 = vrot.lane.b32.xlu0 %v2122, 16
        %v2204 = vpop.permute.xlu0 %2203
        %2205 = vrot.lane.b32.xlu0 %v2134, 16
        %v2206 = vpop.permute.xlu0 %2205
        %2207 = vrot.lane.b32.xlu0 %v2146, 16
        %v2208 = vpop.permute.xlu0 %2207
        %2209 = vrot.lane.b32.xlu0 %v2158, 16
        %v2210 = vpop.permute.xlu0 %2209
        %2211 = vrot.lane.b32.xlu0 %v2170, 16
        %v2212 = vpop.permute.xlu0 %2211
        %2213 = vrot.lane.b32.xlu0 %v2182, 16
        %v2214 = vpop.permute.xlu0 %2213
        %v2231 = vunpack.c.l.b16 %v1717
        %v2232 = vunpack.c.l.b16 %v1718
        %v2233 = vunpack.c.l.b16 %v1719
        %v2234 = vunpack.c.l.b16 %v1720
        %v2235 = vunpack.c.l.b16 %v1721
        %v2236 = vunpack.c.l.b16 %v1722
        %v2237 = vunpack.c.l.b16 %v1723
        %v2238 = vunpack.c.l.b16 %v1724
        %v2239 = vunpack.c.l.b16 %v1725
        %v2240 = vunpack.c.l.b16 %v1726
        %v2241 = vunpack.c.l.b16 %v1727
        %v2242 = vunpack.c.l.b16 %v1728
        %v2243 = vunpack.c.l.b16 %v1729
        %v2244 = vunpack.c.l.b16 %v1730
        %v2245 = vunpack.c.l.b16 %v1731
        %v2246 = vunpack.c.l.b16 %v1732
        %v2247 = vpack.c.b16 %v1895, %v2231
        %v2248 = vpack.c.b16 %v1897, %v2232
        %v2249 = vpack.c.b16 %v1899, %v2233
        %v2250 = vpack.c.b16 %v1901, %v2234
        %v2251 = vpack.c.b16 %v1903, %v2235
        %v2252 = vpack.c.b16 %v1905, %v2236
        %v2253 = vpack.c.b16 %v1907, %v2237
        %v2254 = vpack.c.b16 %v1909, %v2238
        %v2255 = vpack.c.b16 %v1911, %v2239
        %v2256 = vpack.c.b16 %v1913, %v2240
        %v2257 = vpack.c.b16 %v1915, %v2241
        %v2258 = vpack.c.b16 %v1917, %v2242
        %v2259 = vpack.c.b16 %v1919, %v2243
        %v2260 = vpack.c.b16 %v1921, %v2244
        %v2261 = vpack.c.b16 %v1923, %v2245
        %v2262 = vpack.c.b16 %v1925, %v2246
        %vm2263 = vcmask 1046528
        %v2264 = vrot.slane %v2247, 1
        %v2265 = vrot.slane %v1974, 1
        %v2266 = vsel %vm2263, %v2264, %v2265
        %v2267 = vrot.slane %v2248, 1
        %v2268 = vrot.slane %v1975, 1
        %v2269 = vsel %vm2263, %v2267, %v2268
        %v2270 = vrot.slane %v2249, 1
        %v2271 = vrot.slane %v1976, 1
        %v2272 = vsel %vm2263, %v2270, %v2271
        %v2273 = vrot.slane %v2250, 1
        %v2274 = vrot.slane %v1977, 1
        %v2275 = vsel %vm2263, %v2273, %v2274
        %v2276 = vrot.slane %v2251, 1
        %v2277 = vrot.slane %v1978, 1
        %v2278 = vsel %vm2263, %v2276, %v2277
        %v2279 = vrot.slane %v2252, 1
        %v2280 = vrot.slane %v1979, 1
        %v2281 = vsel %vm2263, %v2279, %v2280
        %v2282 = vrot.slane %v2253, 1
        %v2283 = vrot.slane %v1980, 1
        %v2284 = vsel %vm2263, %v2282, %v2283
        %v2285 = vrot.slane %v2254, 1
        %v2286 = vrot.slane %v1981, 1
        %v2287 = vsel %vm2263, %v2285, %v2286
        %v2288 = vrot.slane %v2255, 1
        %v2289 = vrot.slane %v1982, 1
        %v2290 = vsel %vm2263, %v2288, %v2289
        %v2291 = vrot.slane %v2256, 1
        %v2292 = vrot.slane %v1983, 1
        %v2293 = vsel %vm2263, %v2291, %v2292
        %v2294 = vrot.slane %v2257, 1
        %v2295 = vrot.slane %v1984, 1
        %v2296 = vsel %vm2263, %v2294, %v2295
        %v2297 = vrot.slane %v2258, 1
        %v2298 = vrot.slane %v1985, 1
        %v2299 = vsel %vm2263, %v2297, %v2298
        %v2300 = vrot.slane %v2259, 1
        %v2301 = vrot.slane %v1986, 1
        %v2302 = vsel %vm2263, %v2300, %v2301
        %v2303 = vrot.slane %v2260, 1
        %v2304 = vrot.slane %v1987, 1
        %v2305 = vsel %vm2263, %v2303, %v2304
        %v2306 = vrot.slane %v2261, 1
        %v2307 = vrot.slane %v1988, 1
        %v2308 = vsel %vm2263, %v2306, %v2307
        %v2309 = vrot.slane %v2262, 1
        %v2310 = vrot.slane %v1989, 1
        %v2311 = vsel %vm2263, %v2309, %v2310
        %2312 = vrot.lane.b32.xlu0 %v2266, 32
        %v2313 = vpop.permute.xlu0 %2312
        %2314 = vrot.lane.b32.xlu0 %v2269, 32
        %v2315 = vpop.permute.xlu0 %2314
        %2316 = vrot.lane.b32.xlu0 %v2272, 32
        %v2317 = vpop.permute.xlu0 %2316
        %2318 = vrot.lane.b32.xlu0 %v2275, 32
        %v2319 = vpop.permute.xlu0 %2318
        %2320 = vrot.lane.b32.xlu0 %v2278, 32
        %v2321 = vpop.permute.xlu0 %2320
        %2322 = vrot.lane.b32.xlu0 %v2281, 32
        %v2323 = vpop.permute.xlu0 %2322
        %2324 = vrot.lane.b32.xlu0 %v2284, 32
        %v2325 = vpop.permute.xlu0 %2324
        %2326 = vrot.lane.b32.xlu0 %v2287, 32
        %v2327 = vpop.permute.xlu0 %2326
        %2328 = vrot.lane.b32.xlu0 %v2290, 32
        %v2329 = vpop.permute.xlu0 %2328
        %2330 = vrot.lane.b32.xlu0 %v2293, 32
        %v2331 = vpop.permute.xlu0 %2330
        %2332 = vrot.lane.b32.xlu0 %v2296, 32
        %v2333 = vpop.permute.xlu0 %2332
        %2334 = vrot.lane.b32.xlu0 %v2299, 32
        %v2335 = vpop.permute.xlu0 %2334
        %2336 = vrot.lane.b32.xlu0 %v2302, 32
        %v2337 = vpop.permute.xlu0 %2336
        %2338 = vrot.lane.b32.xlu0 %v2305, 32
        %v2339 = vpop.permute.xlu0 %2338
        %2340 = vrot.lane.b32.xlu0 %v2308, 32
        %v2341 = vpop.permute.xlu0 %2340
        %2342 = vrot.lane.b32.xlu0 %v2311, 32
        %v2343 = vpop.permute.xlu0 %2342
        %v2376 = vunpack.c.l.b16 %v1733
        %v2377 = vunpack.c.l.b16 %v1734
        %v2378 = vunpack.c.l.b16 %v1735
        %v2379 = vunpack.c.l.b16 %v1736
        %v2380 = vunpack.c.l.b16 %v1737
        %v2381 = vunpack.c.l.b16 %v1738
        %v2382 = vunpack.c.l.b16 %v1739
        %v2383 = vunpack.c.l.b16 %v1740
        %v2384 = vunpack.c.l.b16 %v1741
        %v2385 = vunpack.c.l.b16 %v1742
        %v2386 = vunpack.c.l.b16 %v1743
        %v2387 = vunpack.c.l.b16 %v1744
        %v2388 = vunpack.c.l.b16 %v1745
        %v2389 = vunpack.c.l.b16 %v1746
        %v2390 = vunpack.c.l.b16 %v1747
        %v2391 = vunpack.c.l.b16 %v1748
        %v2392 = vunpack.c.l.b16 %v1749
        %v2393 = vunpack.c.l.b16 %v1750
        %v2394 = vunpack.c.l.b16 %v1751
        %v2395 = vunpack.c.l.b16 %v1752
        %v2396 = vunpack.c.l.b16 %v1753
        %v2397 = vunpack.c.l.b16 %v1754
        %v2398 = vunpack.c.l.b16 %v1755
        %v2399 = vunpack.c.l.b16 %v1756
        %v2400 = vunpack.c.l.b16 %v1757
        %v2401 = vunpack.c.l.b16 %v1758
        %v2402 = vunpack.c.l.b16 %v1759
        %v2403 = vunpack.c.l.b16 %v1760
        %v2404 = vunpack.c.l.b16 %v1761
        %v2405 = vunpack.c.l.b16 %v1762
        %v2406 = vunpack.c.l.b16 %v1763
        %v2407 = vunpack.c.l.b16 %v1764
        %v2408 = vpack.c.b16 %v2377, %v2376
        %v2409 = vpack.c.b16 %v2379, %v2378
        %v2410 = vpack.c.b16 %v2381, %v2380
        %v2411 = vpack.c.b16 %v2383, %v2382
        %v2412 = vpack.c.b16 %v2385, %v2384
        %v2413 = vpack.c.b16 %v2387, %v2386
        %v2414 = vpack.c.b16 %v2389, %v2388
        %v2415 = vpack.c.b16 %v2391, %v2390
        %v2416 = vpack.c.b16 %v2393, %v2392
        %v2417 = vpack.c.b16 %v2395, %v2394
        %v2418 = vpack.c.b16 %v2397, %v2396
        %v2419 = vpack.c.b16 %v2399, %v2398
        %v2420 = vpack.c.b16 %v2401, %v2400
        %v2421 = vpack.c.b16 %v2403, %v2402
        %v2422 = vpack.c.b16 %v2405, %v2404
        %v2423 = vpack.c.b16 %v2407, %v2406
        %2424 = vrot.lane.b32.xlu0 %v2408, 48
        %v2425 = vpop.permute.xlu0 %2424
        %2426 = vrot.lane.b32.xlu0 %v2409, 48
        %v2427 = vpop.permute.xlu0 %2426
        %2428 = vrot.lane.b32.xlu0 %v2410, 48
        %v2429 = vpop.permute.xlu0 %2428
        %2430 = vrot.lane.b32.xlu0 %v2411, 48
        %v2431 = vpop.permute.xlu0 %2430
        %2432 = vrot.lane.b32.xlu0 %v2412, 48
        %v2433 = vpop.permute.xlu0 %2432
        %2434 = vrot.lane.b32.xlu0 %v2413, 48
        %v2435 = vpop.permute.xlu0 %2434
        %2436 = vrot.lane.b32.xlu0 %v2414, 48
        %v2437 = vpop.permute.xlu0 %2436
        %2438 = vrot.lane.b32.xlu0 %v2415, 48
        %v2439 = vpop.permute.xlu0 %2438
        %2440 = vrot.lane.b32.xlu0 %v2416, 48
        %v2441 = vpop.permute.xlu0 %2440
        %2442 = vrot.lane.b32.xlu0 %v2417, 48
        %v2443 = vpop.permute.xlu0 %2442
        %2444 = vrot.lane.b32.xlu0 %v2418, 48
        %v2445 = vpop.permute.xlu0 %2444
        %2446 = vrot.lane.b32.xlu0 %v2419, 48
        %v2447 = vpop.permute.xlu0 %2446
        %2448 = vrot.lane.b32.xlu0 %v2420, 48
        %v2449 = vpop.permute.xlu0 %2448
        %2450 = vrot.lane.b32.xlu0 %v2421, 48
        %v2451 = vpop.permute.xlu0 %2450
        %2452 = vrot.lane.b32.xlu0 %v2422, 48
        %v2453 = vpop.permute.xlu0 %2452
        %2454 = vrot.lane.b32.xlu0 %v2423, 48
        %v2455 = vpop.permute.xlu0 %2454
        %v2472 = vunpack.c.l.b16 %v1765
        %v2473 = vunpack.c.l.b16 %v1766
        %v2474 = vunpack.c.l.b16 %v1767
        %v2475 = vunpack.c.l.b16 %v1768
        %v2476 = vunpack.c.l.b16 %v1769
        %v2477 = vunpack.c.l.b16 %v1770
        %v2478 = vunpack.c.l.b16 %v1771
        %v2479 = vunpack.c.l.b16 %v1772
        %v2480 = vunpack.c.l.b16 %v1773
        %v2481 = vunpack.c.l.b16 %v1774
        %v2482 = vunpack.c.l.b16 %v1775
        %v2483 = vunpack.c.l.b16 %v1776
        %v2484 = vunpack.c.l.b16 %v1777
        %v2485 = vunpack.c.l.b16 %v1778
        %v2486 = vunpack.c.l.b16 %v1779
        %v2487 = vunpack.c.l.b16 %v1780
        %v2488 = vpack.c.b16 %v2472, %v2472
        %v2489 = vpack.c.b16 %v2473, %v2473
        %v2490 = vpack.c.b16 %v2474, %v2474
        %v2491 = vpack.c.b16 %v2475, %v2475
        %v2492 = vpack.c.b16 %v2476, %v2476
        %v2493 = vpack.c.b16 %v2477, %v2477
        %v2494 = vpack.c.b16 %v2478, %v2478
        %v2495 = vpack.c.b16 %v2479, %v2479
        %v2496 = vpack.c.b16 %v2480, %v2480
        %v2497 = vpack.c.b16 %v2481, %v2481
        %v2498 = vpack.c.b16 %v2482, %v2482
        %v2499 = vpack.c.b16 %v2483, %v2483
        %v2500 = vpack.c.b16 %v2484, %v2484
        %v2501 = vpack.c.b16 %v2485, %v2485
        %v2502 = vpack.c.b16 %v2486, %v2486
        %v2503 = vpack.c.b16 %v2487, %v2487
        %v2505 = vshrl.u32 %v2408, 16
        %v2507 = vshll.u32 %v2408, 16
        %v2509 = vrot.slane %v2507, 1
        %v2510 = vor.u32 %v2505, %v2509
        %v2512 = vshll.u32 %v2488, 16
        %v2514 = vrot.slane %v2512, 1
        %v2515 = vsel %vm1990, %v2510, %v2514
        %v2517 = vshrl.u32 %v2409, 16
        %v2519 = vshll.u32 %v2409, 16
        %v2521 = vrot.slane %v2519, 1
        %v2522 = vor.u32 %v2517, %v2521
        %v2524 = vshll.u32 %v2489, 16
        %v2526 = vrot.slane %v2524, 1
        %v2527 = vsel %vm1990, %v2522, %v2526
        %v2529 = vshrl.u32 %v2410, 16
        %v2531 = vshll.u32 %v2410, 16
        %v2533 = vrot.slane %v2531, 1
        %v2534 = vor.u32 %v2529, %v2533
        %v2536 = vshll.u32 %v2490, 16
        %v2538 = vrot.slane %v2536, 1
        %v2539 = vsel %vm1990, %v2534, %v2538
        %v2541 = vshrl.u32 %v2411, 16
        %v2543 = vshll.u32 %v2411, 16
        %v2545 = vrot.slane %v2543, 1
        %v2546 = vor.u32 %v2541, %v2545
        %v2548 = vshll.u32 %v2491, 16
        %v2550 = vrot.slane %v2548, 1
        %v2551 = vsel %vm1990, %v2546, %v2550
        %v2553 = vshrl.u32 %v2412, 16
        %v2555 = vshll.u32 %v2412, 16
        %v2557 = vrot.slane %v2555, 1
        %v2558 = vor.u32 %v2553, %v2557
        %v2560 = vshll.u32 %v2492, 16
        %v2562 = vrot.slane %v2560, 1
        %v2563 = vsel %vm1990, %v2558, %v2562
        %v2565 = vshrl.u32 %v2413, 16
        %v2567 = vshll.u32 %v2413, 16
        %v2569 = vrot.slane %v2567, 1
        %v2570 = vor.u32 %v2565, %v2569
        %v2572 = vshll.u32 %v2493, 16
        %v2574 = vrot.slane %v2572, 1
        %v2575 = vsel %vm1990, %v2570, %v2574
        %v2577 = vshrl.u32 %v2414, 16
        %v2579 = vshll.u32 %v2414, 16
        %v2581 = vrot.slane %v2579, 1
        %v2582 = vor.u32 %v2577, %v2581
        %v2584 = vshll.u32 %v2494, 16
        %v2586 = vrot.slane %v2584, 1
        %v2587 = vsel %vm1990, %v2582, %v2586
        %v2589 = vshrl.u32 %v2415, 16
        %v2591 = vshll.u32 %v2415, 16
        %v2593 = vrot.slane %v2591, 1
        %v2594 = vor.u32 %v2589, %v2593
        %v2596 = vshll.u32 %v2495, 16
        %v2598 = vrot.slane %v2596, 1
        %v2599 = vsel %vm1990, %v2594, %v2598
        %v2601 = vshrl.u32 %v2416, 16
        %v2603 = vshll.u32 %v2416, 16
        %v2605 = vrot.slane %v2603, 1
        %v2606 = vor.u32 %v2601, %v2605
        %v2608 = vshll.u32 %v2496, 16
        %v2610 = vrot.slane %v2608, 1
        %v2611 = vsel %vm1990, %v2606, %v2610
        %v2613 = vshrl.u32 %v2417, 16
        %v2615 = vshll.u32 %v2417, 16
        %v2617 = vrot.slane %v2615, 1
        %v2618 = vor.u32 %v2613, %v2617
        %v2620 = vshll.u32 %v2497, 16
        %v2622 = vrot.slane %v2620, 1
        %v2623 = vsel %vm1990, %v2618, %v2622
        %v2625 = vshrl.u32 %v2418, 16
        %v2627 = vshll.u32 %v2418, 16
        %v2629 = vrot.slane %v2627, 1
        %v2630 = vor.u32 %v2625, %v2629
        %v2632 = vshll.u32 %v2498, 16
        %v2634 = vrot.slane %v2632, 1
        %v2635 = vsel %vm1990, %v2630, %v2634
        %v2637 = vshrl.u32 %v2419, 16
        %v2639 = vshll.u32 %v2419, 16
        %v2641 = vrot.slane %v2639, 1
        %v2642 = vor.u32 %v2637, %v2641
        %v2644 = vshll.u32 %v2499, 16
        %v2646 = vrot.slane %v2644, 1
        %v2647 = vsel %vm1990, %v2642, %v2646
        %v2649 = vshrl.u32 %v2420, 16
        %v2651 = vshll.u32 %v2420, 16
        %v2653 = vrot.slane %v2651, 1
        %v2654 = vor.u32 %v2649, %v2653
        %v2656 = vshll.u32 %v2500, 16
        %v2658 = vrot.slane %v2656, 1
        %v2659 = vsel %vm1990, %v2654, %v2658
        %v2661 = vshrl.u32 %v2421, 16
        %v2663 = vshll.u32 %v2421, 16
        %v2665 = vrot.slane %v2663, 1
        %v2666 = vor.u32 %v2661, %v2665
        %v2668 = vshll.u32 %v2501, 16
        %v2670 = vrot.slane %v2668, 1
        %v2671 = vsel %vm1990, %v2666, %v2670
        %v2673 = vshrl.u32 %v2422, 16
        %v2675 = vshll.u32 %v2422, 16
        %v2677 = vrot.slane %v2675, 1
        %v2678 = vor.u32 %v2673, %v2677
        %v2680 = vshll.u32 %v2502, 16
        %v2682 = vrot.slane %v2680, 1
        %v2683 = vsel %vm1990, %v2678, %v2682
        %v2685 = vshrl.u32 %v2423, 16
        %v2687 = vshll.u32 %v2423, 16
        %v2689 = vrot.slane %v2687, 1
        %v2690 = vor.u32 %v2685, %v2689
        %v2692 = vshll.u32 %v2503, 16
        %v2694 = vrot.slane %v2692, 1
        %v2695 = vsel %vm1990, %v2690, %v2694
        %2696 = vrot.lane.b32.xlu0 %v2515, 64
        %v2697 = vpop.permute.xlu0 %2696
        %2698 = vrot.lane.b32.xlu0 %v2527, 64
        %v2699 = vpop.permute.xlu0 %2698
        %2700 = vrot.lane.b32.xlu0 %v2539, 64
        %v2701 = vpop.permute.xlu0 %2700
        %2702 = vrot.lane.b32.xlu0 %v2551, 64
        %v2703 = vpop.permute.xlu0 %2702
        %2704 = vrot.lane.b32.xlu0 %v2563, 64
        %v2705 = vpop.permute.xlu0 %2704
        %2706 = vrot.lane.b32.xlu0 %v2575, 64
        %v2707 = vpop.permute.xlu0 %2706
        %2708 = vrot.lane.b32.xlu0 %v2587, 64
        %v2709 = vpop.permute.xlu0 %2708
        %2710 = vrot.lane.b32.xlu0 %v2599, 64
        %v2711 = vpop.permute.xlu0 %2710
        %2712 = vrot.lane.b32.xlu0 %v2611, 64
        %v2713 = vpop.permute.xlu0 %2712
        %2714 = vrot.lane.b32.xlu0 %v2623, 64
        %v2715 = vpop.permute.xlu0 %2714
        %2716 = vrot.lane.b32.xlu0 %v2635, 64
        %v2717 = vpop.permute.xlu0 %2716
        %2718 = vrot.lane.b32.xlu0 %v2647, 64
        %v2719 = vpop.permute.xlu0 %2718
        %2720 = vrot.lane.b32.xlu0 %v2659, 64
        %v2721 = vpop.permute.xlu0 %2720
        %2722 = vrot.lane.b32.xlu0 %v2671, 64
        %v2723 = vpop.permute.xlu0 %2722
        %2724 = vrot.lane.b32.xlu0 %v2683, 64
        %v2725 = vpop.permute.xlu0 %2724
        %2726 = vrot.lane.b32.xlu0 %v2695, 64
        %v2727 = vpop.permute.xlu0 %2726
        %v2744 = vunpack.c.l.b16 %v1781
        %v2745 = vunpack.c.l.b16 %v1782
        %v2746 = vunpack.c.l.b16 %v1783
        %v2747 = vunpack.c.l.b16 %v1784
        %v2748 = vunpack.c.l.b16 %v1785
        %v2749 = vunpack.c.l.b16 %v1786
        %v2750 = vunpack.c.l.b16 %v1787
        %v2751 = vunpack.c.l.b16 %v1788
        %v2752 = vunpack.c.l.b16 %v1789
        %v2753 = vunpack.c.l.b16 %v1790
        %v2754 = vunpack.c.l.b16 %v1791
        %v2755 = vunpack.c.l.b16 %v1792
        %v2756 = vunpack.c.l.b16 %v1793
        %v2757 = vunpack.c.l.b16 %v1794
        %v2758 = vunpack.c.l.b16 %v1795
        %v2759 = vunpack.c.l.b16 %v1796
        %v2760 = vpack.c.b16 %v2377, %v2744
        %v2761 = vpack.c.b16 %v2379, %v2745
        %v2762 = vpack.c.b16 %v2381, %v2746
        %v2763 = vpack.c.b16 %v2383, %v2747
        %v2764 = vpack.c.b16 %v2385, %v2748
        %v2765 = vpack.c.b16 %v2387, %v2749
        %v2766 = vpack.c.b16 %v2389, %v2750
        %v2767 = vpack.c.b16 %v2391, %v2751
        %v2768 = vpack.c.b16 %v2393, %v2752
        %v2769 = vpack.c.b16 %v2395, %v2753
        %v2770 = vpack.c.b16 %v2397, %v2754
        %v2771 = vpack.c.b16 %v2399, %v2755
        %v2772 = vpack.c.b16 %v2401, %v2756
        %v2773 = vpack.c.b16 %v2403, %v2757
        %v2774 = vpack.c.b16 %v2405, %v2758
        %v2775 = vpack.c.b16 %v2407, %v2759
        %v2776 = vrot.slane %v2760, 1
        %v2777 = vrot.slane %v2488, 1
        %v2778 = vsel %vm2263, %v2776, %v2777
        %v2779 = vrot.slane %v2761, 1
        %v2780 = vrot.slane %v2489, 1
        %v2781 = vsel %vm2263, %v2779, %v2780
        %v2782 = vrot.slane %v2762, 1
        %v2783 = vrot.slane %v2490, 1
        %v2784 = vsel %vm2263, %v2782, %v2783
        %v2785 = vrot.slane %v2763, 1
        %v2786 = vrot.slane %v2491, 1
        %v2787 = vsel %vm2263, %v2785, %v2786
        %v2788 = vrot.slane %v2764, 1
        %v2789 = vrot.slane %v2492, 1
        %v2790 = vsel %vm2263, %v2788, %v2789
        %v2791 = vrot.slane %v2765, 1
        %v2792 = vrot.slane %v2493, 1
        %v2793 = vsel %vm2263, %v2791, %v2792
        %v2794 = vrot.slane %v2766, 1
        %v2795 = vrot.slane %v2494, 1
        %v2796 = vsel %vm2263, %v2794, %v2795
        %v2797 = vrot.slane %v2767, 1
        %v2798 = vrot.slane %v2495, 1
        %v2799 = vsel %vm2263, %v2797, %v2798
        %v2800 = vrot.slane %v2768, 1
        %v2801 = vrot.slane %v2496, 1
        %v2802 = vsel %vm2263, %v2800, %v2801
        %v2803 = vrot.slane %v2769, 1
        %v2804 = vrot.slane %v2497, 1
        %v2805 = vsel %vm2263, %v2803, %v2804
        %v2806 = vrot.slane %v2770, 1
        %v2807 = vrot.slane %v2498, 1
        %v2808 = vsel %vm2263, %v2806, %v2807
        %v2809 = vrot.slane %v2771, 1
        %v2810 = vrot.slane %v2499, 1
        %v2811 = vsel %vm2263, %v2809, %v2810
        %v2812 = vrot.slane %v2772, 1
        %v2813 = vrot.slane %v2500, 1
        %v2814 = vsel %vm2263, %v2812, %v2813
        %v2815 = vrot.slane %v2773, 1
        %v2816 = vrot.slane %v2501, 1
        %v2817 = vsel %vm2263, %v2815, %v2816
        %v2818 = vrot.slane %v2774, 1
        %v2819 = vrot.slane %v2502, 1
        %v2820 = vsel %vm2263, %v2818, %v2819
        %v2821 = vrot.slane %v2775, 1
        %v2822 = vrot.slane %v2503, 1
        %v2823 = vsel %vm2263, %v2821, %v2822
        %2824 = vrot.lane.b32.xlu0 %v2778, 80
        %v2825 = vpop.permute.xlu0 %2824
        %2826 = vrot.lane.b32.xlu0 %v2781, 80
        %v2827 = vpop.permute.xlu0 %2826
        %2828 = vrot.lane.b32.xlu0 %v2784, 80
        %v2829 = vpop.permute.xlu0 %2828
        %2830 = vrot.lane.b32.xlu0 %v2787, 80
        %v2831 = vpop.permute.xlu0 %2830
        %2832 = vrot.lane.b32.xlu0 %v2790, 80
        %v2833 = vpop.permute.xlu0 %2832
        %2834 = vrot.lane.b32.xlu0 %v2793, 80
        %v2835 = vpop.permute.xlu0 %2834
        %2836 = vrot.lane.b32.xlu0 %v2796, 80
        %v2837 = vpop.permute.xlu0 %2836
        %2838 = vrot.lane.b32.xlu0 %v2799, 80
        %v2839 = vpop.permute.xlu0 %2838
        %2840 = vrot.lane.b32.xlu0 %v2802, 80
        %v2841 = vpop.permute.xlu0 %2840
        %2842 = vrot.lane.b32.xlu0 %v2805, 80
        %v2843 = vpop.permute.xlu0 %2842
        %2844 = vrot.lane.b32.xlu0 %v2808, 80
        %v2845 = vpop.permute.xlu0 %2844
        %2846 = vrot.lane.b32.xlu0 %v2811, 80
        %v2847 = vpop.permute.xlu0 %2846
        %2848 = vrot.lane.b32.xlu0 %v2814, 80
        %v2849 = vpop.permute.xlu0 %2848
        %2850 = vrot.lane.b32.xlu0 %v2817, 80
        %v2851 = vpop.permute.xlu0 %2850
        %2852 = vrot.lane.b32.xlu0 %v2820, 80
        %v2853 = vpop.permute.xlu0 %2852
        %2854 = vrot.lane.b32.xlu0 %v2823, 80
        %v2855 = vpop.permute.xlu0 %2854
        %v2888 = vunpack.c.l.b16 %v1798
        %v2889 = vunpack.c.l.b16 %v1799
        %v2890 = vunpack.c.l.b16 %v1800
        %v2891 = vunpack.c.l.b16 %v1801
        %v2892 = vunpack.c.l.b16 %v1802
        %v2893 = vunpack.c.l.b16 %v1803
        %v2894 = vunpack.c.l.b16 %v1804
        %v2895 = vunpack.c.l.b16 %v1805
        %v2896 = vunpack.c.l.b16 %v1806
        %v2897 = vunpack.c.l.b16 %v1807
        %v2898 = vunpack.c.l.b16 %v1808
        %v2899 = vunpack.c.l.b16 %v1809
        %v2900 = vunpack.c.l.b16 %v1810
        %v2901 = vunpack.c.l.b16 %v1811
        %v2902 = vunpack.c.l.b16 %v1812
        %v2903 = vunpack.c.l.b16 %v1813
        %v2904 = vunpack.c.l.b16 %v1814
        %v2905 = vunpack.c.l.b16 %v1815
        %v2906 = vunpack.c.l.b16 %v1816
        %v2907 = vunpack.c.l.b16 %v1817
        %v2908 = vunpack.c.l.b16 %v1818
        %v2909 = vunpack.c.l.b16 %v1819
        %v2910 = vunpack.c.l.b16 %v1820
        %v2911 = vunpack.c.l.b16 %v1821
        %v2912 = vunpack.c.l.b16 %v1822
        %v2913 = vunpack.c.l.b16 %v1823
        %v2914 = vunpack.c.l.b16 %v1824
        %v2915 = vunpack.c.l.b16 %v1825
        %v2916 = vunpack.c.l.b16 %v1826
        %v2917 = vunpack.c.l.b16 %v1827
        %v2918 = vunpack.c.l.b16 %v1828
        %v2919 = vunpack.c.l.b16 %v1829
        %v2920 = vpack.c.b16 %v2889, %v2888
        %v2921 = vpack.c.b16 %v2891, %v2890
        %v2922 = vpack.c.b16 %v2893, %v2892
        %v2923 = vpack.c.b16 %v2895, %v2894
        %v2924 = vpack.c.b16 %v2897, %v2896
        %v2925 = vpack.c.b16 %v2899, %v2898
        %v2926 = vpack.c.b16 %v2901, %v2900
        %v2927 = vpack.c.b16 %v2903, %v2902
        %v2928 = vpack.c.b16 %v2905, %v2904
        %v2929 = vpack.c.b16 %v2907, %v2906
        %v2930 = vpack.c.b16 %v2909, %v2908
        %v2931 = vpack.c.b16 %v2911, %v2910
        %v2932 = vpack.c.b16 %v2913, %v2912
        %v2933 = vpack.c.b16 %v2915, %v2914
        %v2934 = vpack.c.b16 %v2917, %v2916
        %v2935 = vpack.c.b16 %v2919, %v2918
        %2936 = vrot.lane.b32.xlu0 %v2920, 96
        %v2937 = vpop.permute.xlu0 %2936
        %2938 = vrot.lane.b32.xlu0 %v2921, 96
        %v2939 = vpop.permute.xlu0 %2938
        %2940 = vrot.lane.b32.xlu0 %v2922, 96
        %v2941 = vpop.permute.xlu0 %2940
        %2942 = vrot.lane.b32.xlu0 %v2923, 96
        %v2943 = vpop.permute.xlu0 %2942
        %2944 = vrot.lane.b32.xlu0 %v2924, 96
        %v2945 = vpop.permute.xlu0 %2944
        %2946 = vrot.lane.b32.xlu0 %v2925, 96
        %v2947 = vpop.permute.xlu0 %2946
        %2948 = vrot.lane.b32.xlu0 %v2926, 96
        %v2949 = vpop.permute.xlu0 %2948
        %2950 = vrot.lane.b32.xlu0 %v2927, 96
        %v2951 = vpop.permute.xlu0 %2950
        %2952 = vrot.lane.b32.xlu0 %v2928, 96
        %v2953 = vpop.permute.xlu0 %2952
        %2954 = vrot.lane.b32.xlu0 %v2929, 96
        %v2955 = vpop.permute.xlu0 %2954
        %2956 = vrot.lane.b32.xlu0 %v2930, 96
        %v2957 = vpop.permute.xlu0 %2956
        %2958 = vrot.lane.b32.xlu0 %v2931, 96
        %v2959 = vpop.permute.xlu0 %2958
        %2960 = vrot.lane.b32.xlu0 %v2932, 96
        %v2961 = vpop.permute.xlu0 %2960
        %2962 = vrot.lane.b32.xlu0 %v2933, 96
        %v2963 = vpop.permute.xlu0 %2962
        %2964 = vrot.lane.b32.xlu0 %v2934, 96
        %v2965 = vpop.permute.xlu0 %2964
        %2966 = vrot.lane.b32.xlu0 %v2935, 96
        %v2967 = vpop.permute.xlu0 %2966
        %v2984 = vunpack.c.l.b16 %v1830
        %v2985 = vunpack.c.l.b16 %v1831
        %v2986 = vunpack.c.l.b16 %v1832
        %v2987 = vunpack.c.l.b16 %v1833
        %v2988 = vunpack.c.l.b16 %v1834
        %v2989 = vunpack.c.l.b16 %v1835
        %v2990 = vunpack.c.l.b16 %v1836
        %v2991 = vunpack.c.l.b16 %v1837
        %v2992 = vunpack.c.l.b16 %v1838
        %v2993 = vunpack.c.l.b16 %v1839
        %v2994 = vunpack.c.l.b16 %v1840
        %v2995 = vunpack.c.l.b16 %v1841
        %v2996 = vunpack.c.l.b16 %v1842
        %v2997 = vunpack.c.l.b16 %v1843
        %v2998 = vunpack.c.l.b16 %v1844
        %v2999 = vunpack.c.l.b16 %v1845
        %v3000 = vpack.c.b16 %v2984, %v2984
        %v3001 = vpack.c.b16 %v2985, %v2985
        %v3002 = vpack.c.b16 %v2986, %v2986
        %v3003 = vpack.c.b16 %v2987, %v2987
        %v3004 = vpack.c.b16 %v2988, %v2988
        %v3005 = vpack.c.b16 %v2989, %v2989
        %v3006 = vpack.c.b16 %v2990, %v2990
        %v3007 = vpack.c.b16 %v2991, %v2991
        %v3008 = vpack.c.b16 %v2992, %v2992
        %v3009 = vpack.c.b16 %v2993, %v2993
        %v3010 = vpack.c.b16 %v2994, %v2994
        %v3011 = vpack.c.b16 %v2995, %v2995
        %v3012 = vpack.c.b16 %v2996, %v2996
        %v3013 = vpack.c.b16 %v2997, %v2997
        %v3014 = vpack.c.b16 %v2998, %v2998
        %v3015 = vpack.c.b16 %v2999, %v2999
        %v3017 = vshrl.u32 %v2920, 16
        %v3019 = vshll.u32 %v2920, 16
        %v3021 = vrot.slane %v3019, 1
        %v3022 = vor.u32 %v3017, %v3021
        %v3024 = vshll.u32 %v3000, 16
        %v3026 = vrot.slane %v3024, 1
        %v3027 = vsel %vm1990, %v3022, %v3026
        %v3029 = vshrl.u32 %v2921, 16
        %v3031 = vshll.u32 %v2921, 16
        %v3033 = vrot.slane %v3031, 1
        %v3034 = vor.u32 %v3029, %v3033
        %v3036 = vshll.u32 %v3001, 16
        %v3038 = vrot.slane %v3036, 1
        %v3039 = vsel %vm1990, %v3034, %v3038
        %v3041 = vshrl.u32 %v2922, 16
        %v3043 = vshll.u32 %v2922, 16
        %v3045 = vrot.slane %v3043, 1
        %v3046 = vor.u32 %v3041, %v3045
        %v3048 = vshll.u32 %v3002, 16
        %v3050 = vrot.slane %v3048, 1
        %v3051 = vsel %vm1990, %v3046, %v3050
        %v3053 = vshrl.u32 %v2923, 16
        %v3055 = vshll.u32 %v2923, 16
        %v3057 = vrot.slane %v3055, 1
        %v3058 = vor.u32 %v3053, %v3057
        %v3060 = vshll.u32 %v3003, 16
        %v3062 = vrot.slane %v3060, 1
        %v3063 = vsel %vm1990, %v3058, %v3062
        %v3065 = vshrl.u32 %v2924, 16
        %v3067 = vshll.u32 %v2924, 16
        %v3069 = vrot.slane %v3067, 1
        %v3070 = vor.u32 %v3065, %v3069
        %v3072 = vshll.u32 %v3004, 16
        %v3074 = vrot.slane %v3072, 1
        %v3075 = vsel %vm1990, %v3070, %v3074
        %v3077 = vshrl.u32 %v2925, 16
        %v3079 = vshll.u32 %v2925, 16
        %v3081 = vrot.slane %v3079, 1
        %v3082 = vor.u32 %v3077, %v3081
        %v3084 = vshll.u32 %v3005, 16
        %v3086 = vrot.slane %v3084, 1
        %v3087 = vsel %vm1990, %v3082, %v3086
        %v3089 = vshrl.u32 %v2926, 16
        %v3091 = vshll.u32 %v2926, 16
        %v3093 = vrot.slane %v3091, 1
        %v3094 = vor.u32 %v3089, %v3093
        %v3096 = vshll.u32 %v3006, 16
        %v3098 = vrot.slane %v3096, 1
        %v3099 = vsel %vm1990, %v3094, %v3098
        %v3101 = vshrl.u32 %v2927, 16
        %v3103 = vshll.u32 %v2927, 16
        %v3105 = vrot.slane %v3103, 1
        %v3106 = vor.u32 %v3101, %v3105
        %v3108 = vshll.u32 %v3007, 16
        %v3110 = vrot.slane %v3108, 1
        %v3111 = vsel %vm1990, %v3106, %v3110
        %v3113 = vshrl.u32 %v2928, 16
        %v3115 = vshll.u32 %v2928, 16
        %v3117 = vrot.slane %v3115, 1
        %v3118 = vor.u32 %v3113, %v3117
        %v3120 = vshll.u32 %v3008, 16
        %v3122 = vrot.slane %v3120, 1
        %v3123 = vsel %vm1990, %v3118, %v3122
        %v3125 = vshrl.u32 %v2929, 16
        %v3127 = vshll.u32 %v2929, 16
        %v3129 = vrot.slane %v3127, 1
        %v3130 = vor.u32 %v3125, %v3129
        %v3132 = vshll.u32 %v3009, 16
        %v3134 = vrot.slane %v3132, 1
        %v3135 = vsel %vm1990, %v3130, %v3134
        %v3137 = vshrl.u32 %v2930, 16
        %v3139 = vshll.u32 %v2930, 16
        %v3141 = vrot.slane %v3139, 1
        %v3142 = vor.u32 %v3137, %v3141
        %v3144 = vshll.u32 %v3010, 16
        %v3146 = vrot.slane %v3144, 1
        %v3147 = vsel %vm1990, %v3142, %v3146
        %v3149 = vshrl.u32 %v2931, 16
        %v3151 = vshll.u32 %v2931, 16
        %v3153 = vrot.slane %v3151, 1
        %v3154 = vor.u32 %v3149, %v3153
        %v3156 = vshll.u32 %v3011, 16
        %v3158 = vrot.slane %v3156, 1
        %v3159 = vsel %vm1990, %v3154, %v3158
        %v3161 = vshrl.u32 %v2932, 16
        %v3163 = vshll.u32 %v2932, 16
        %v3165 = vrot.slane %v3163, 1
        %v3166 = vor.u32 %v3161, %v3165
        %v3168 = vshll.u32 %v3012, 16
        %v3170 = vrot.slane %v3168, 1
        %v3171 = vsel %vm1990, %v3166, %v3170
        %v3173 = vshrl.u32 %v2933, 16
        %v3175 = vshll.u32 %v2933, 16
        %v3177 = vrot.slane %v3175, 1
        %v3178 = vor.u32 %v3173, %v3177
        %v3180 = vshll.u32 %v3013, 16
        %v3182 = vrot.slane %v3180, 1
        %v3183 = vsel %vm1990, %v3178, %v3182
        %v3185 = vshrl.u32 %v2934, 16
        %v3187 = vshll.u32 %v2934, 16
        %v3189 = vrot.slane %v3187, 1
        %v3190 = vor.u32 %v3185, %v3189
        %v3192 = vshll.u32 %v3014, 16
        %v3194 = vrot.slane %v3192, 1
        %v3195 = vsel %vm1990, %v3190, %v3194
        %v3197 = vshrl.u32 %v2935, 16
        %v3199 = vshll.u32 %v2935, 16
        %v3201 = vrot.slane %v3199, 1
        %v3202 = vor.u32 %v3197, %v3201
        %v3204 = vshll.u32 %v3015, 16
        %v3206 = vrot.slane %v3204, 1
        %v3207 = vsel %vm1990, %v3202, %v3206
        %3208 = vrot.lane.b32.xlu0 %v3027, 112
        %v3209 = vpop.permute.xlu0 %3208
        %3210 = vrot.lane.b32.xlu0 %v3039, 112
        %v3211 = vpop.permute.xlu0 %3210
        %3212 = vrot.lane.b32.xlu0 %v3051, 112
        %v3213 = vpop.permute.xlu0 %3212
        %3214 = vrot.lane.b32.xlu0 %v3063, 112
        %v3215 = vpop.permute.xlu0 %3214
        %3216 = vrot.lane.b32.xlu0 %v3075, 112
        %v3217 = vpop.permute.xlu0 %3216
        %3218 = vrot.lane.b32.xlu0 %v3087, 112
        %v3219 = vpop.permute.xlu0 %3218
        %3220 = vrot.lane.b32.xlu0 %v3099, 112
        %v3221 = vpop.permute.xlu0 %3220
        %3222 = vrot.lane.b32.xlu0 %v3111, 112
        %v3223 = vpop.permute.xlu0 %3222
        %3224 = vrot.lane.b32.xlu0 %v3123, 112
        %v3225 = vpop.permute.xlu0 %3224
        %3226 = vrot.lane.b32.xlu0 %v3135, 112
        %v3227 = vpop.permute.xlu0 %3226
        %3228 = vrot.lane.b32.xlu0 %v3147, 112
        %v3229 = vpop.permute.xlu0 %3228
        %3230 = vrot.lane.b32.xlu0 %v3159, 112
        %v3231 = vpop.permute.xlu0 %3230
        %3232 = vrot.lane.b32.xlu0 %v3171, 112
        %v3233 = vpop.permute.xlu0 %3232
        %3234 = vrot.lane.b32.xlu0 %v3183, 112
        %v3235 = vpop.permute.xlu0 %3234
        %3236 = vrot.lane.b32.xlu0 %v3195, 112
        %v3237 = vpop.permute.xlu0 %3236
        %3238 = vrot.lane.b32.xlu0 %v3207, 112
        %v3239 = vpop.permute.xlu0 %3238
        %v3256 = vunpack.c.l.b16 %v1846
        %v3257 = vunpack.c.l.b16 %v1847
        %v3258 = vunpack.c.l.b16 %v1848
        %v3259 = vunpack.c.l.b16 %v1849
        %v3260 = vunpack.c.l.b16 %v1850
        %v3261 = vunpack.c.l.b16 %v1851
        %v3262 = vunpack.c.l.b16 %v1852
        %v3263 = vunpack.c.l.b16 %v1853
        %v3264 = vunpack.c.l.b16 %v1854
        %v3265 = vunpack.c.l.b16 %v1855
        %v3266 = vunpack.c.l.b16 %v1856
        %v3267 = vunpack.c.l.b16 %v1857
        %v3268 = vunpack.c.l.b16 %v1858
        %v3269 = vunpack.c.l.b16 %v1859
        %v3270 = vunpack.c.l.b16 %v1860
        %v3271 = vunpack.c.l.b16 %v1861
        %v3272 = vpack.c.b16 %v2889, %v3256
        %v3273 = vpack.c.b16 %v2891, %v3257
        %v3274 = vpack.c.b16 %v2893, %v3258
        %v3275 = vpack.c.b16 %v2895, %v3259
        %v3276 = vpack.c.b16 %v2897, %v3260
        %v3277 = vpack.c.b16 %v2899, %v3261
        %v3278 = vpack.c.b16 %v2901, %v3262
        %v3279 = vpack.c.b16 %v2903, %v3263
        %v3280 = vpack.c.b16 %v2905, %v3264
        %v3281 = vpack.c.b16 %v2907, %v3265
        %v3282 = vpack.c.b16 %v2909, %v3266
        %v3283 = vpack.c.b16 %v2911, %v3267
        %v3284 = vpack.c.b16 %v2913, %v3268
        %v3285 = vpack.c.b16 %v2915, %v3269
        %v3286 = vpack.c.b16 %v2917, %v3270
        %v3287 = vpack.c.b16 %v2919, %v3271
        %v3288 = vrot.slane %v3272, 1
        %v3289 = vrot.slane %v3000, 1
        %v3290 = vsel %vm2263, %v3288, %v3289
        %v3291 = vrot.slane %v3273, 1
        %v3292 = vrot.slane %v3001, 1
        %v3293 = vsel %vm2263, %v3291, %v3292
        %v3294 = vrot.slane %v3274, 1
        %v3295 = vrot.slane %v3002, 1
        %v3296 = vsel %vm2263, %v3294, %v3295
        %v3297 = vrot.slane %v3275, 1
        %v3298 = vrot.slane %v3003, 1
        %v3299 = vsel %vm2263, %v3297, %v3298
        %v3300 = vrot.slane %v3276, 1
        %v3301 = vrot.slane %v3004, 1
        %v3302 = vsel %vm2263, %v3300, %v3301
        %v3303 = vrot.slane %v3277, 1
        %v3304 = vrot.slane %v3005, 1
        %v3305 = vsel %vm2263, %v3303, %v3304
        %v3306 = vrot.slane %v3278, 1
        %v3307 = vrot.slane %v3006, 1
        %v3308 = vsel %vm2263, %v3306, %v3307
        %v3309 = vrot.slane %v3279, 1
        %v3310 = vrot.slane %v3007, 1
        %v3311 = vsel %vm2263, %v3309, %v3310
        %v3312 = vrot.slane %v3280, 1
        %v3313 = vrot.slane %v3008, 1
        %v3314 = vsel %vm2263, %v3312, %v3313
        %v3315 = vrot.slane %v3281, 1
        %v3316 = vrot.slane %v3009, 1
        %v3317 = vsel %vm2263, %v3315, %v3316
        %v3318 = vrot.slane %v3282, 1
        %v3319 = vrot.slane %v3010, 1
        %v3320 = vsel %vm2263, %v3318, %v3319
        %v3321 = vrot.slane %v3283, 1
        %v3322 = vrot.slane %v3011, 1
        %v3323 = vsel %vm2263, %v3321, %v3322
        %v3324 = vrot.slane %v3284, 1
        %v3325 = vrot.slane %v3012, 1
        %v3326 = vsel %vm2263, %v3324, %v3325
        %v3327 = vrot.slane %v3285, 1
        %v3328 = vrot.slane %v3013, 1
        %v3329 = vsel %vm2263, %v3327, %v3328
        %v3330 = vrot.slane %v3286, 1
        %v3331 = vrot.slane %v3014, 1
        %v3332 = vsel %vm2263, %v3330, %v3331
        %v3333 = vrot.slane %v3287, 1
        %v3334 = vrot.slane %v3015, 1
        %v3335 = vsel %vm2263, %v3333, %v3334
        %vm3336 = vcmask 130048
        %v3338 = vsel %vm3336, %v1926, %v2184
        %v3340 = vsel %vm3336, %v1927, %v2186
        %v3342 = vsel %vm3336, %v1928, %v2188
        %v3344 = vsel %vm3336, %v1929, %v2190
        %v3346 = vsel %vm3336, %v1930, %v2192
        %v3348 = vsel %vm3336, %v1931, %v2194
        %v3350 = vsel %vm3336, %v1932, %v2196
        %v3352 = vsel %vm3336, %v1933, %v2198
        %v3354 = vsel %vm3336, %v1934, %v2200
        %v3356 = vsel %vm3336, %v1935, %v2202
        %v3358 = vsel %vm3336, %v1936, %v2204
        %v3360 = vsel %vm3336, %v1937, %v2206
        %v3362 = vsel %vm3336, %v1938, %v2208
        %v3364 = vsel %vm3336, %v1939, %v2210
        %v3366 = vsel %vm3336, %v1940, %v2212
        %v3368 = vsel %vm3336, %v1941, %v2214
        %v3370 = vsel %vm756, %v3338, %v2313
        %v3372 = vsel %vm756, %v3340, %v2315
        %v3374 = vsel %vm756, %v3342, %v2317
        %v3376 = vsel %vm756, %v3344, %v2319
        %v3378 = vsel %vm756, %v3346, %v2321
        %v3380 = vsel %vm756, %v3348, %v2323
        %v3382 = vsel %vm756, %v3350, %v2325
        %v3384 = vsel %vm756, %v3352, %v2327
        %v3386 = vsel %vm756, %v3354, %v2329
        %v3388 = vsel %vm756, %v3356, %v2331
        %v3390 = vsel %vm756, %v3358, %v2333
        %v3392 = vsel %vm756, %v3360, %v2335
        %v3394 = vsel %vm756, %v3362, %v2337
        %v3396 = vsel %vm756, %v3364, %v2339
        %v3398 = vsel %vm756, %v3366, %v2341
        %v3400 = vsel %vm756, %v3368, %v2343
        %vm3401 = vcmask 392192
        %v3403 = vsel %vm3401, %v3370, %v2425
        %v3405 = vsel %vm3401, %v3372, %v2427
        %v3407 = vsel %vm3401, %v3374, %v2429
        %v3409 = vsel %vm3401, %v3376, %v2431
        %v3411 = vsel %vm3401, %v3378, %v2433
        %v3413 = vsel %vm3401, %v3380, %v2435
        %v3415 = vsel %vm3401, %v3382, %v2437
        %v3417 = vsel %vm3401, %v3384, %v2439
        %v3419 = vsel %vm3401, %v3386, %v2441
        %v3421 = vsel %vm3401, %v3388, %v2443
        %v3423 = vsel %vm3401, %v3390, %v2445
        %v3425 = vsel %vm3401, %v3392, %v2447
        %v3427 = vsel %vm3401, %v3394, %v2449
        %v3429 = vsel %vm3401, %v3396, %v2451
        %v3431 = vsel %vm3401, %v3398, %v2453
        %v3433 = vsel %vm3401, %v3400, %v2455
        %vm3434 = vcmask 523264
        %v3436 = vsel %vm3434, %v3403, %v2697
        %v3438 = vsel %vm3434, %v3405, %v2699
        %v3440 = vsel %vm3434, %v3407, %v2701
        %v3442 = vsel %vm3434, %v3409, %v2703
        %v3444 = vsel %vm3434, %v3411, %v2705
        %v3446 = vsel %vm3434, %v3413, %v2707
        %v3448 = vsel %vm3434, %v3415, %v2709
        %v3450 = vsel %vm3434, %v3417, %v2711
        %v3452 = vsel %vm3434, %v3419, %v2713
        %v3454 = vsel %vm3434, %v3421, %v2715
        %v3456 = vsel %vm3434, %v3423, %v2717
        %v3458 = vsel %vm3434, %v3425, %v2719
        %v3460 = vsel %vm3434, %v3427, %v2721
        %v3462 = vsel %vm3434, %v3429, %v2723
        %v3464 = vsel %vm3434, %v3431, %v2725
        %v3466 = vsel %vm3434, %v3433, %v2727
        %vm3467 = vcmask 654336
        %v3469 = vsel %vm3467, %v3436, %v2825
        %v3471 = vsel %vm3467, %v3438, %v2827
        %v3473 = vsel %vm3467, %v3440, %v2829
        %v3475 = vsel %vm3467, %v3442, %v2831
        %v3477 = vsel %vm3467, %v3444, %v2833
        %v3479 = vsel %vm3467, %v3446, %v2835
        %v3481 = vsel %vm3467, %v3448, %v2837
        %v3483 = vsel %vm3467, %v3450, %v2839
        %v3485 = vsel %vm3467, %v3452, %v2841
        %v3487 = vsel %vm3467, %v3454, %v2843
        %v3489 = vsel %vm3467, %v3456, %v2845
        %v3491 = vsel %vm3467, %v3458, %v2847
        %v3493 = vsel %vm3467, %v3460, %v2849
        %v3495 = vsel %vm3467, %v3462, %v2851
        %v3497 = vsel %vm3467, %v3464, %v2853
        %v3499 = vsel %vm3467, %v3466, %v2855
        %vm3500 = vcmask 785408
        %v3502 = vsel %vm3500, %v3469, %v2937
        %v3504 = vsel %vm3500, %v3471, %v2939
        %v3506 = vsel %vm3500, %v3473, %v2941
        %v3508 = vsel %vm3500, %v3475, %v2943
        %v3510 = vsel %vm3500, %v3477, %v2945
        %v3512 = vsel %vm3500, %v3479, %v2947
        %v3514 = vsel %vm3500, %v3481, %v2949
        %v3516 = vsel %vm3500, %v3483, %v2951
        %v3518 = vsel %vm3500, %v3485, %v2953
        %v3520 = vsel %vm3500, %v3487, %v2955
        %v3522 = vsel %vm3500, %v3489, %v2957
        %v3524 = vsel %vm3500, %v3491, %v2959
        %v3526 = vsel %vm3500, %v3493, %v2961
        %v3528 = vsel %vm3500, %v3495, %v2963
        %v3530 = vsel %vm3500, %v3497, %v2965
        %v3532 = vsel %vm3500, %v3499, %v2967
        %vm3533 = vcmask 916480
        %v3535 = vsel %vm3533, %v3502, %v3209
        %v3538 = vsel %vm3533, %v3504, %v3211
        %v3541 = vsel %vm3533, %v3506, %v3213
        %v3544 = vsel %vm3533, %v3508, %v3215
        %v3547 = vsel %vm3533, %v3510, %v3217
        %v3550 = vsel %vm3533, %v3512, %v3219
        %v3553 = vsel %vm3533, %v3514, %v3221
        %v3556 = vsel %vm3533, %v3516, %v3223
        %v3559 = vsel %vm3533, %v3518, %v3225
        %v3562 = vsel %vm3533, %v3520, %v3227
        %v3565 = vsel %vm3533, %v3522, %v3229
        %v3568 = vsel %vm3533, %v3524, %v3231
        %v3571 = vsel %vm3533, %v3526, %v3233
        %v3574 = vsel %vm3533, %v3528, %v3235
        %v3577 = vsel %vm3533, %v3530, %v3237
        %v3580 = vsel %vm3533, %v3532, %v3239
        %v3582 = vld [vmem:[%s4] sm:$0xf]
        %v3583 = vld [vmem:[%s4 + $0x4] sm:$0xf]
        %v3584 = vld [vmem:[%s4 + $0x8] sm:$0xf]
        %v3585 = vld [vmem:[%s4 + $0xc] sm:$0xf]
        %v3586 = vld [vmem:[%s4 + $0x10] sm:$0xf]
        %v3587 = vld [vmem:[%s4 + $0x14] sm:$0xf]
        %v3588 = vld [vmem:[%s4 + $0x18] sm:$0xf]
        %v3589 = vld [vmem:[%s4 + $0x1c] sm:$0xf]
        %v3590 = vld [vmem:[%s4 + $0x20] sm:$0xf]
        %v3591 = vld [vmem:[%s4 + $0x24] sm:$0xf]
        %v3592 = vld [vmem:[%s4 + $0x28] sm:$0xf]
        %v3593 = vld [vmem:[%s4 + $0x2c] sm:$0xf]
        %v3594 = vld [vmem:[%s4 + $0x30] sm:$0xf]
        %v3595 = vld [vmem:[%s4 + $0x34] sm:$0xf]
        %v3596 = vld [vmem:[%s4 + $0x38] sm:$0xf]
        %v3597 = vld [vmem:[%s4 + $0x3c] sm:$0xf]
        %v3598 = vld [vmem:[%s4 + $0x40] sm:$0xf]
        %v3599 = vld [vmem:[%s4 + $0x44] sm:$0xf]
        %v3618 = vunpack.c.l.b16 %v3582
        %v3619 = vunpack.c.l.b16 %v3583
        %v3620 = vunpack.c.l.b16 %v3584
        %v3621 = vunpack.c.l.b16 %v3585
        %v3622 = vunpack.c.l.b16 %v3586
        %v3623 = vunpack.c.l.b16 %v3587
        %v3624 = vunpack.c.l.b16 %v3588
        %v3625 = vunpack.c.l.b16 %v3589
        %v3626 = vunpack.c.l.b16 %v3590
        %v3627 = vunpack.c.l.b16 %v3591
        %v3628 = vunpack.c.l.b16 %v3592
        %v3629 = vunpack.c.l.b16 %v3593
        %v3630 = vunpack.c.l.b16 %v3594
        %v3631 = vunpack.c.l.b16 %v3595
        %v3632 = vunpack.c.l.b16 %v3596
        %v3633 = vunpack.c.l.b16 %v3597
        %v3634 = vunpack.c.l.b16 %v3598
        %v3635 = vunpack.c.l.b16 %v3599
        %v3636 = vpack.c.b16 %v3619, %v3618
        %v3637 = vpack.c.b16 %v3621, %v3620
        %v3638 = vpack.c.b16 %v3623, %v3622
        %v3639 = vpack.c.b16 %v3625, %v3624
        %v3640 = vpack.c.b16 %v3627, %v3626
        %v3641 = vpack.c.b16 %v3629, %v3628
        %v3642 = vpack.c.b16 %v3631, %v3630
        %v3643 = vpack.c.b16 %v3633, %v3632
        %v3644 = vpack.c.b16 %v3635, %v3634
        %v3655 = vsel %vm3336, %v3290, 0
        %v3658 = vsel %vm3336, %v3293, 0
        %v3661 = vsel %vm3336, %v3296, 0
        %v3664 = vsel %vm3336, %v3299, 0
        %v3667 = vsel %vm3336, %v3302, 0
        %v3670 = vsel %vm3336, %v3305, 0
        %v3673 = vsel %vm3336, %v3308, 0
        %v3676 = vsel %vm3336, %v3311, 0
        %v3679 = vsel %vm3336, %v3314, 0
        %v3682 = vsel %vm3336, %v3317, 0
        %v3685 = vsel %vm3336, %v3320, 0
        %v3688 = vsel %vm3336, %v3323, 0
        %v3691 = vsel %vm3336, %v3326, 0
        %v3694 = vsel %vm3336, %v3329, 0
        %v3697 = vsel %vm3336, %v3332, 0
        %v3700 = vsel %vm3336, %v3335, 0
        %3702 = vmatprep.subr.bf16.mxu0 0
        %3703 = vmatpush1.bf16.msra.mxu0 %v3636
        %3704 = vmatprep.subr.bf16.mxu0 0
        %3705 = vmatpush1.bf16.msra.mxu0 %v3637
        %3706 = vmatprep.subr.bf16.mxu0 0
        %3707 = vmatpush1.bf16.msra.mxu0 %v3638
        %3708 = vmatprep.subr.bf16.mxu0 0
        %3709 = vmatpush1.bf16.msra.mxu0 %v3639
        %3710 = vmatprep.subr.bf16.mxu0 0
        %3711 = vmatpush1.bf16.msra.mxu0 %v3640
        %3712 = vmatprep.subr.bf16.mxu0 0
        %3713 = vmatpush1.bf16.msra.mxu0 %v3641
        %3714 = vmatprep.subr.bf16.mxu0 0
        %3715 = vmatpush1.bf16.msra.mxu0 %v3642
        %3716 = vmatprep.subr.bf16.mxu0 0
        %3717 = vmatpush1.bf16.msra.mxu0 %v3643
        %3718 = vmatprep.subr.bf16.mxu0 0
        %3719 = vmatpush1.bf16.msra.mxu0 %v3644
        %3720 = vmatprep.subr.bf16.mxu0 0
        %3721 = vmatpush1.bf16.msra.mxu0 0
        %3722 = vmatprep.subr.bf16.mxu0 0
        %3723 = vmatpush1.bf16.msra.mxu0 0
        %3724 = vmatprep.subr.bf16.mxu0 0
        %3725 = vmatpush1.bf16.msra.mxu0 0
        %3726 = vmatprep.subr.bf16.mxu0 0
        %3727 = vmatpush1.bf16.msra.mxu0 0
        %3728 = vmatprep.subr.bf16.mxu0 0
        %3729 = vmatpush1.bf16.msra.mxu0 0
        %3730 = vmatprep.subr.bf16.mxu0 0
        %3731 = vmatpush1.bf16.msra.mxu0 0
        %3732 = vmatprep.subr.bf16.mxu0 0
        %3733 = vmatpush1.bf16.msra.mxu0 0
        %3734 = vmatprep.mubr.bf16.mxu0 %v3655
        %3735 = vmatmul.mubr.bf16.gmra.mrb[0].mxu0 %v3535
        %v3736 = vpop.f32.mrb[0].mxu0
        %v3737 = vadd.f32 0.0, %v3736
        %v3738 = vpop.f32.mrb[0].mxu0
        %v3739 = vpop.f32.mrb[0].mxu0
        %v3740 = vadd.f32 0.0, %v3739
        %v3741 = vpop.f32.mrb[0].mxu0
        %3742 = vmatprep.mubr.bf16.mxu0 %v3658
        %3743 = vmatmul.mubr.bf16.gmra.mrb[0].mxu0 %v3538
        %v3744 = vpop.f32.mrb[0].mxu0
        %v3745 = vadd.f32 0.0, %v3744
        %v3746 = vpop.f32.mrb[0].mxu0
        %v3747 = vpop.f32.mrb[0].mxu0
        %v3748 = vadd.f32 0.0, %v3747
        %v3749 = vpop.f32.mrb[0].mxu0
        %3750 = vmatprep.mubr.bf16.mxu0 %v3661
        %3751 = vmatmul.mubr.bf16.gmra.mrb[0].mxu0 %v3541
        %v3752 = vpop.f32.mrb[0].mxu0
        %v3753 = vadd.f32 0.0, %v3752
        %v3754 = vpop.f32.mrb[0].mxu0
        %v3755 = vpop.f32.mrb[0].mxu0
        %v3756 = vadd.f32 0.0, %v3755
        %v3757 = vpop.f32.mrb[0].mxu0
        %3758 = vmatprep.mubr.bf16.mxu0 %v3664
        %3759 = vmatmul.mubr.bf16.gmra.mrb[0].mxu0 %v3544
        %v3760 = vpop.f32.mrb[0].mxu0
        %v3761 = vadd.f32 0.0, %v3760
        %v3762 = vpop.f32.mrb[0].mxu0
        %v3763 = vpop.f32.mrb[0].mxu0
        %v3764 = vadd.f32 0.0, %v3763
        %v3765 = vpop.f32.mrb[0].mxu0
        %3766 = vmatprep.mubr.bf16.mxu0 %v3667
        %3767 = vmatmul.mubr.bf16.gmra.mrb[0].mxu0 %v3547
        %v3768 = vpop.f32.mrb[0].mxu0
        %v3769 = vadd.f32 0.0, %v3768
        %v3770 = vpop.f32.mrb[0].mxu0
        %v3771 = vpop.f32.mrb[0].mxu0
        %v3772 = vadd.f32 0.0, %v3771
        %v3773 = vpop.f32.mrb[0].mxu0
        %3774 = vmatprep.mubr.bf16.mxu0 %v3670
        %3775 = vmatmul.mubr.bf16.gmra.mrb[0].mxu0 %v3550
        %v3776 = vpop.f32.mrb[0].mxu0
        %v3777 = vadd.f32 0.0, %v3776
        %v3778 = vpop.f32.mrb[0].mxu0
        %v3779 = vpop.f32.mrb[0].mxu0
        %v3780 = vadd.f32 0.0, %v3779
        %v3781 = vpop.f32.mrb[0].mxu0
        %3782 = vmatprep.mubr.bf16.mxu0 %v3673
        %3783 = vmatmul.mubr.bf16.gmra.mrb[0].mxu0 %v3553
        %v3784 = vpop.f32.mrb[0].mxu0
        %v3785 = vadd.f32 0.0, %v3784
        %v3786 = vpop.f32.mrb[0].mxu0
        %v3787 = vpop.f32.mrb[0].mxu0
        %v3788 = vadd.f32 0.0, %v3787
        %v3789 = vpop.f32.mrb[0].mxu0
        %3790 = vmatprep.mubr.bf16.mxu0 %v3676
        %3791 = vmatmul.mubr.bf16.gmra.mrb[0].mxu0 %v3556
        %v3792 = vpop.f32.mrb[0].mxu0
        %v3793 = vadd.f32 0.0, %v3792
        %v3794 = vpop.f32.mrb[0].mxu0
        %v3795 = vpop.f32.mrb[0].mxu0
        %v3796 = vadd.f32 0.0, %v3795
        %v3797 = vpop.f32.mrb[0].mxu0
        %3798 = vmatprep.mubr.bf16.mxu0 %v3679
        %3799 = vmatmul.mubr.bf16.gmra.mrb[0].mxu0 %v3559
        %v3800 = vpop.f32.mrb[0].mxu0
        %v3801 = vadd.f32 0.0, %v3800
        %v3802 = vpop.f32.mrb[0].mxu0
        %v3803 = vpop.f32.mrb[0].mxu0
        %v3804 = vadd.f32 0.0, %v3803
        %v3805 = vpop.f32.mrb[0].mxu0
        %3806 = vmatprep.mubr.bf16.mxu0 %v3682
        %3807 = vmatmul.mubr.bf16.gmra.mrb[0].mxu0 %v3562
        %v3808 = vpop.f32.mrb[0].mxu0
        %v3809 = vadd.f32 0.0, %v3808
        %v3810 = vpop.f32.mrb[0].mxu0
        %v3811 = vpop.f32.mrb[0].mxu0
        %v3812 = vadd.f32 0.0, %v3811
        %v3813 = vpop.f32.mrb[0].mxu0
        %3814 = vmatprep.mubr.bf16.mxu0 %v3685
        %3815 = vmatmul.mubr.bf16.gmra.mrb[0].mxu0 %v3565
        %v3816 = vpop.f32.mrb[0].mxu0
        %v3817 = vadd.f32 0.0, %v3816
        %v3818 = vpop.f32.mrb[0].mxu0
        %v3819 = vpop.f32.mrb[0].mxu0
        %v3820 = vadd.f32 0.0, %v3819
        %v3821 = vpop.f32.mrb[0].mxu0
        %3822 = vmatprep.mubr.bf16.mxu0 %v3688
        %3823 = vmatmul.mubr.bf16.gmra.mrb[0].mxu0 %v3568
        %v3824 = vpop.f32.mrb[0].mxu0
        %v3825 = vadd.f32 0.0, %v3824
        %v3826 = vpop.f32.mrb[0].mxu0
        %v3827 = vpop.f32.mrb[0].mxu0
        %v3828 = vadd.f32 0.0, %v3827
        %v3829 = vpop.f32.mrb[0].mxu0
        %3830 = vmatprep.mubr.bf16.mxu0 %v3691
        %3831 = vmatmul.mubr.bf16.gmra.mrb[0].mxu0 %v3571
        %v3832 = vpop.f32.mrb[0].mxu0
        %v3833 = vadd.f32 0.0, %v3832
        %v3834 = vpop.f32.mrb[0].mxu0
        %v3835 = vpop.f32.mrb[0].mxu0
        %v3836 = vadd.f32 0.0, %v3835
        %v3837 = vpop.f32.mrb[0].mxu0
        %3838 = vmatprep.mubr.bf16.mxu0 %v3694
        %3839 = vmatmul.mubr.bf16.gmra.mrb[0].mxu0 %v3574
        %v3840 = vpop.f32.mrb[0].mxu0
        %v3841 = vadd.f32 0.0, %v3840
        %v3842 = vpop.f32.mrb[0].mxu0
        %v3843 = vpop.f32.mrb[0].mxu0
        %v3844 = vadd.f32 0.0, %v3843
        %v3845 = vpop.f32.mrb[0].mxu0
        %3846 = vmatprep.mubr.bf16.mxu0 %v3697
        %3847 = vmatmul.mubr.bf16.gmra.mrb[0].mxu0 %v3577
        %v3848 = vpop.f32.mrb[0].mxu0
        %v3849 = vadd.f32 0.0, %v3848
        %v3850 = vpop.f32.mrb[0].mxu0
        %v3851 = vpop.f32.mrb[0].mxu0
        %v3852 = vadd.f32 0.0, %v3851
        %v3853 = vpop.f32.mrb[0].mxu0
        %3854 = vmatprep.mubr.bf16.mxu0 %v3700
        %3855 = vmatmul.mubr.bf16.gmra.mrb[0].mxu0 %v3580
        %v3856 = vpop.f32.mrb[0].mxu0
        %v3857 = vadd.f32 0.0, %v3856
        %v3858 = vpop.f32.mrb[0].mxu0
        %v3859 = vpop.f32.mrb[0].mxu0
        %v3860 = vadd.f32 0.0, %v3859
        %v3861 = vpop.f32.mrb[0].mxu0
        %3862 = vdwg.mxu0
        %v3863 = vld [vmem:[%s5] sm:$0x1]
        %v3865 = vlaneseq
        %v3866 = vshrl.u32 %v3865, 7
        %v3867 = vsub.s32 0, %v3866
        %v3868 = vrot.slane %v3863, %v3867
        %v3870 = vmul.f32 %v3737, %v3868
        %v3871 = vmul.f32 %v3740, %v3868
        %v3872 = vmul.f32 %v3745, %v3868
        %v3873 = vmul.f32 %v3748, %v3868
        %v3874 = vmul.f32 %v3753, %v3868
        %v3875 = vmul.f32 %v3756, %v3868
        %v3876 = vmul.f32 %v3761, %v3868
        %v3877 = vmul.f32 %v3764, %v3868
        %v3878 = vmul.f32 %v3769, %v3868
        %v3879 = vmul.f32 %v3772, %v3868
        %v3880 = vmul.f32 %v3777, %v3868
        %v3881 = vmul.f32 %v3780, %v3868
        %v3882 = vmul.f32 %v3785, %v3868
        %v3883 = vmul.f32 %v3788, %v3868
        %v3884 = vmul.f32 %v3793, %v3868
        %v3885 = vmul.f32 %v3796, %v3868
        %v3886 = vmul.f32 %v3801, %v3868
        %v3887 = vmul.f32 %v3804, %v3868
        %v3888 = vmul.f32 %v3809, %v3868
        %v3889 = vmul.f32 %v3812, %v3868
        %v3890 = vmul.f32 %v3817, %v3868
        %v3891 = vmul.f32 %v3820, %v3868
        %v3892 = vmul.f32 %v3825, %v3868
        %v3893 = vmul.f32 %v3828, %v3868
        %v3894 = vmul.f32 %v3833, %v3868
        %v3895 = vmul.f32 %v3836, %v3868
        %v3896 = vmul.f32 %v3841, %v3868
        %v3897 = vmul.f32 %v3844, %v3868
        %v3898 = vmul.f32 %v3849, %v3868
        %v3899 = vmul.f32 %v3852, %v3868
        %v3900 = vmul.f32 %v3857, %v3868
        %v3901 = vmul.f32 %v3860, %v3868
        %v3902 = vld [vmem:[%s6] sm:$0x1]
        %v3904 = vlaneseq
        %v3905 = vshrl.u32 %v3904, 7
        %v3906 = vsub.s32 0, %v3905
        %v3907 = vrot.slane %v3902, %v3906
        %v3909 = vadd.f32 %v3870, %v3907
        %v3910 = vadd.f32 %v3871, %v3907
        %v3911 = vadd.f32 %v3872, %v3907
        %v3912 = vadd.f32 %v3873, %v3907
        %v3913 = vadd.f32 %v3874, %v3907
        %v3914 = vadd.f32 %v3875, %v3907
        %v3915 = vadd.f32 %v3876, %v3907
        %v3916 = vadd.f32 %v3877, %v3907
        %v3917 = vadd.f32 %v3878, %v3907
        %v3918 = vadd.f32 %v3879, %v3907
        %v3919 = vadd.f32 %v3880, %v3907
        %v3920 = vadd.f32 %v3881, %v3907
        %v3921 = vadd.f32 %v3882, %v3907
        %v3922 = vadd.f32 %v3883, %v3907
        %v3923 = vadd.f32 %v3884, %v3907
        %v3924 = vadd.f32 %v3885, %v3907
        %v3925 = vadd.f32 %v3886, %v3907
        %v3926 = vadd.f32 %v3887, %v3907
        %v3927 = vadd.f32 %v3888, %v3907
        %v3928 = vadd.f32 %v3889, %v3907
        %v3929 = vadd.f32 %v3890, %v3907
        %v3930 = vadd.f32 %v3891, %v3907
        %v3931 = vadd.f32 %v3892, %v3907
        %v3932 = vadd.f32 %v3893, %v3907
        %v3933 = vadd.f32 %v3894, %v3907
        %v3934 = vadd.f32 %v3895, %v3907
        %v3935 = vadd.f32 %v3896, %v3907
        %v3936 = vadd.f32 %v3897, %v3907
        %v3937 = vadd.f32 %v3898, %v3907
        %v3938 = vadd.f32 %v3899, %v3907
        %v3939 = vadd.f32 %v3900, %v3907
        %v3940 = vadd.f32 %v3901, %v3907
        %v3941 = vmax.f32 %v3909, 0.0
        %v3942 = vmax.f32 %v3910, 0.0
        %v3943 = vmax.f32 %v3911, 0.0
        %v3944 = vmax.f32 %v3912, 0.0
        %v3945 = vmax.f32 %v3913, 0.0
        %v3946 = vmax.f32 %v3914, 0.0
        %v3947 = vmax.f32 %v3915, 0.0
        %v3948 = vmax.f32 %v3916, 0.0
        %v3949 = vmax.f32 %v3917, 0.0
        %v3950 = vmax.f32 %v3918, 0.0
        %v3951 = vmax.f32 %v3919, 0.0
        %v3952 = vmax.f32 %v3920, 0.0
        %v3953 = vmax.f32 %v3921, 0.0
        %v3954 = vmax.f32 %v3922, 0.0
        %v3955 = vmax.f32 %v3923, 0.0
        %v3956 = vmax.f32 %v3924, 0.0
        %v3957 = vmax.f32 %v3925, 0.0
        %v3958 = vmax.f32 %v3926, 0.0
        %v3959 = vmax.f32 %v3927, 0.0
        %v3960 = vmax.f32 %v3928, 0.0
        %v3961 = vmax.f32 %v3929, 0.0
        %v3962 = vmax.f32 %v3930, 0.0
        %v3963 = vmax.f32 %v3931, 0.0
        %v3964 = vmax.f32 %v3932, 0.0
        %v3965 = vmax.f32 %v3933, 0.0
        %v3966 = vmax.f32 %v3934, 0.0
        %v3967 = vmax.f32 %v3935, 0.0
        %v3968 = vmax.f32 %v3936, 0.0
        %v3969 = vmax.f32 %v3937, 0.0
        %v3970 = vmax.f32 %v3938, 0.0
        %v3971 = vmax.f32 %v3939, 0.0
        %v3972 = vmax.f32 %v3940, 0.0
        %v4005 = vcombine.high %v3941, %v3941
        %v4007 = vunpack.c.l.s4 1983009808
        %v4008 = vunpack.c.0.s8 %v4007
        %v4009 = vlaneseq
        %v4010 = vshrl.u32 %v4009, 7
        %v4011 = vsub.s32 %v4008, %v4010
        %v4012 = vrot.slane %v3941, %v4011
        %v4014 = vunpack.c.l.s4 1983009808
        %v4015 = vunpack.c.0.s8 %v4014
        %v4016 = vlaneseq
        %v4017 = vshrl.u32 %v4016, 7
        %v4018 = vsub.s32 %v4015, %v4017
        %v4019 = vrot.slane %v4005, %v4018
        %v4020 = vcombine.high %v4012, %v4012
        %v4021 = vcombine.high %v4019, %v4019
        %v4022 = vcombine.high %v3942, %v3942
        %v4024 = vunpack.c.l.s4 1983009808
        %v4025 = vunpack.c.0.s8 %v4024
        %v4026 = vlaneseq
        %v4027 = vshrl.u32 %v4026, 7
        %v4028 = vsub.s32 %v4025, %v4027
        %v4029 = vrot.slane %v3942, %v4028
        %v4031 = vunpack.c.l.s4 1983009808
        %v4032 = vunpack.c.0.s8 %v4031
        %v4033 = vlaneseq
        %v4034 = vshrl.u32 %v4033, 7
        %v4035 = vsub.s32 %v4032, %v4034
        %v4036 = vrot.slane %v4022, %v4035
        %v4037 = vcombine.high %v4029, %v4029
        %v4038 = vcombine.high %v4036, %v4036
        %v4039 = vcombine.high %v3943, %v3943
        %v4041 = vunpack.c.l.s4 1983009808
        %v4042 = vunpack.c.0.s8 %v4041
        %v4043 = vlaneseq
        %v4044 = vshrl.u32 %v4043, 7
        %v4045 = vsub.s32 %v4042, %v4044
        %v4046 = vrot.slane %v3943, %v4045
        %v4048 = vunpack.c.l.s4 1983009808
        %v4049 = vunpack.c.0.s8 %v4048
        %v4050 = vlaneseq
        %v4051 = vshrl.u32 %v4050, 7
        %v4052 = vsub.s32 %v4049, %v4051
        %v4053 = vrot.slane %v4039, %v4052
        %v4054 = vcombine.high %v4046, %v4046
        %v4055 = vcombine.high %v4053, %v4053
        %v4056 = vcombine.high %v3944, %v3944
        %v4058 = vunpack.c.l.s4 1983009808
        %v4059 = vunpack.c.0.s8 %v4058
        %v4060 = vlaneseq
        %v4061 = vshrl.u32 %v4060, 7
        %v4062 = vsub.s32 %v4059, %v4061
        %v4063 = vrot.slane %v3944, %v4062
        %v4065 = vunpack.c.l.s4 1983009808
        %v4066 = vunpack.c.0.s8 %v4065
        %v4067 = vlaneseq
        %v4068 = vshrl.u32 %v4067, 7
        %v4069 = vsub.s32 %v4066, %v4068
        %v4070 = vrot.slane %v4056, %v4069
        %v4071 = vcombine.high %v4063, %v4063
        %v4072 = vcombine.high %v4070, %v4070
        %v4073 = vcombine.high %v3945, %v3945
        %v4075 = vunpack.c.l.s4 1983009808
        %v4076 = vunpack.c.0.s8 %v4075
        %v4077 = vlaneseq
        %v4078 = vshrl.u32 %v4077, 7
        %v4079 = vsub.s32 %v4076, %v4078
        %v4080 = vrot.slane %v3945, %v4079
        %v4082 = vunpack.c.l.s4 1983009808
        %v4083 = vunpack.c.0.s8 %v4082
        %v4084 = vlaneseq
        %v4085 = vshrl.u32 %v4084, 7
        %v4086 = vsub.s32 %v4083, %v4085
        %v4087 = vrot.slane %v4073, %v4086
        %v4088 = vcombine.high %v4080, %v4080
        %v4089 = vcombine.high %v4087, %v4087
        %v4090 = vcombine.high %v3946, %v3946
        %v4092 = vunpack.c.l.s4 1983009808
        %v4093 = vunpack.c.0.s8 %v4092
        %v4094 = vlaneseq
        %v4095 = vshrl.u32 %v4094, 7
        %v4096 = vsub.s32 %v4093, %v4095
        %v4097 = vrot.slane %v3946, %v4096
        %v4099 = vunpack.c.l.s4 1983009808
        %v4100 = vunpack.c.0.s8 %v4099
        %v4101 = vlaneseq
        %v4102 = vshrl.u32 %v4101, 7
        %v4103 = vsub.s32 %v4100, %v4102
        %v4104 = vrot.slane %v4090, %v4103
        %v4105 = vcombine.high %v4097, %v4097
        %v4106 = vcombine.high %v4104, %v4104
        %v4107 = vcombine.high %v3947, %v3947
        %v4109 = vunpack.c.l.s4 1983009808
        %v4110 = vunpack.c.0.s8 %v4109
        %v4111 = vlaneseq
        %v4112 = vshrl.u32 %v4111, 7
        %v4113 = vsub.s32 %v4110, %v4112
        %v4114 = vrot.slane %v3947, %v4113
        %v4116 = vunpack.c.l.s4 1983009808
        %v4117 = vunpack.c.0.s8 %v4116
        %v4118 = vlaneseq
        %v4119 = vshrl.u32 %v4118, 7
        %v4120 = vsub.s32 %v4117, %v4119
        %v4121 = vrot.slane %v4107, %v4120
        %v4122 = vcombine.high %v4114, %v4114
        %v4123 = vcombine.high %v4121, %v4121
        %v4124 = vcombine.high %v3948, %v3948
        %v4126 = vunpack.c.l.s4 1983009808
        %v4127 = vunpack.c.0.s8 %v4126
        %v4128 = vlaneseq
        %v4129 = vshrl.u32 %v4128, 7
        %v4130 = vsub.s32 %v4127, %v4129
        %v4131 = vrot.slane %v3948, %v4130
        %v4133 = vunpack.c.l.s4 1983009808
        %v4134 = vunpack.c.0.s8 %v4133
        %v4135 = vlaneseq
        %v4136 = vshrl.u32 %v4135, 7
        %v4137 = vsub.s32 %v4134, %v4136
        %v4138 = vrot.slane %v4124, %v4137
        %v4139 = vcombine.high %v4131, %v4131
        %v4140 = vcombine.high %v4138, %v4138
        %v4141 = vcombine.high %v3949, %v3949
        %v4143 = vunpack.c.l.s4 1983009808
        %v4144 = vunpack.c.0.s8 %v4143
        %v4145 = vlaneseq
        %v4146 = vshrl.u32 %v4145, 7
        %v4147 = vsub.s32 %v4144, %v4146
        %v4148 = vrot.slane %v3949, %v4147
        %v4150 = vunpack.c.l.s4 1983009808
        %v4151 = vunpack.c.0.s8 %v4150
        %v4152 = vlaneseq
        %v4153 = vshrl.u32 %v4152, 7
        %v4154 = vsub.s32 %v4151, %v4153
        %v4155 = vrot.slane %v4141, %v4154
        %v4156 = vcombine.high %v4148, %v4148
        %v4157 = vcombine.high %v4155, %v4155
        %v4158 = vcombine.high %v3950, %v3950
        %v4160 = vunpack.c.l.s4 1983009808
        %v4161 = vunpack.c.0.s8 %v4160
        %v4162 = vlaneseq
        %v4163 = vshrl.u32 %v4162, 7
        %v4164 = vsub.s32 %v4161, %v4163
        %v4165 = vrot.slane %v3950, %v4164
        %v4167 = vunpack.c.l.s4 1983009808
        %v4168 = vunpack.c.0.s8 %v4167
        %v4169 = vlaneseq
        %v4170 = vshrl.u32 %v4169, 7
        %v4171 = vsub.s32 %v4168, %v4170
        %v4172 = vrot.slane %v4158, %v4171
        %v4173 = vcombine.high %v4165, %v4165
        %v4174 = vcombine.high %v4172, %v4172
        %v4175 = vcombine.high %v3951, %v3951
        %v4177 = vunpack.c.l.s4 1983009808
        %v4178 = vunpack.c.0.s8 %v4177
        %v4179 = vlaneseq
        %v4180 = vshrl.u32 %v4179, 7
        %v4181 = vsub.s32 %v4178, %v4180
        %v4182 = vrot.slane %v3951, %v4181
        %v4184 = vunpack.c.l.s4 1983009808
        %v4185 = vunpack.c.0.s8 %v4184
        %v4186 = vlaneseq
        %v4187 = vshrl.u32 %v4186, 7
        %v4188 = vsub.s32 %v4185, %v4187
        %v4189 = vrot.slane %v4175, %v4188
        %v4190 = vcombine.high %v4182, %v4182
        %v4191 = vcombine.high %v4189, %v4189
        %v4192 = vcombine.high %v3952, %v3952
        %v4194 = vunpack.c.l.s4 1983009808
        %v4195 = vunpack.c.0.s8 %v4194
        %v4196 = vlaneseq
        %v4197 = vshrl.u32 %v4196, 7
        %v4198 = vsub.s32 %v4195, %v4197
        %v4199 = vrot.slane %v3952, %v4198
        %v4201 = vunpack.c.l.s4 1983009808
        %v4202 = vunpack.c.0.s8 %v4201
        %v4203 = vlaneseq
        %v4204 = vshrl.u32 %v4203, 7
        %v4205 = vsub.s32 %v4202, %v4204
        %v4206 = vrot.slane %v4192, %v4205
        %v4207 = vcombine.high %v4199, %v4199
        %v4208 = vcombine.high %v4206, %v4206
        %v4209 = vcombine.high %v3953, %v3953
        %v4211 = vunpack.c.l.s4 1983009808
        %v4212 = vunpack.c.0.s8 %v4211
        %v4213 = vlaneseq
        %v4214 = vshrl.u32 %v4213, 7
        %v4215 = vsub.s32 %v4212, %v4214
        %v4216 = vrot.slane %v3953, %v4215
        %v4218 = vunpack.c.l.s4 1983009808
        %v4219 = vunpack.c.0.s8 %v4218
        %v4220 = vlaneseq
        %v4221 = vshrl.u32 %v4220, 7
        %v4222 = vsub.s32 %v4219, %v4221
        %v4223 = vrot.slane %v4209, %v4222
        %v4224 = vcombine.high %v4216, %v4216
        %v4225 = vcombine.high %v4223, %v4223
        %v4226 = vcombine.high %v3954, %v3954
        %v4228 = vunpack.c.l.s4 1983009808
        %v4229 = vunpack.c.0.s8 %v4228
        %v4230 = vlaneseq
        %v4231 = vshrl.u32 %v4230, 7
        %v4232 = vsub.s32 %v4229, %v4231
        %v4233 = vrot.slane %v3954, %v4232
        %v4235 = vunpack.c.l.s4 1983009808
        %v4236 = vunpack.c.0.s8 %v4235
        %v4237 = vlaneseq
        %v4238 = vshrl.u32 %v4237, 7
        %v4239 = vsub.s32 %v4236, %v4238
        %v4240 = vrot.slane %v4226, %v4239
        %v4241 = vcombine.high %v4233, %v4233
        %v4242 = vcombine.high %v4240, %v4240
        %v4243 = vcombine.high %v3955, %v3955
        %v4245 = vunpack.c.l.s4 1983009808
        %v4246 = vunpack.c.0.s8 %v4245
        %v4247 = vlaneseq
        %v4248 = vshrl.u32 %v4247, 7
        %v4249 = vsub.s32 %v4246, %v4248
        %v4250 = vrot.slane %v3955, %v4249
        %v4252 = vunpack.c.l.s4 1983009808
        %v4253 = vunpack.c.0.s8 %v4252
        %v4254 = vlaneseq
        %v4255 = vshrl.u32 %v4254, 7
        %v4256 = vsub.s32 %v4253, %v4255
        %v4257 = vrot.slane %v4243, %v4256
        %v4258 = vcombine.high %v4250, %v4250
        %v4259 = vcombine.high %v4257, %v4257
        %v4260 = vcombine.high %v3956, %v3956
        %v4262 = vunpack.c.l.s4 1983009808
        %v4263 = vunpack.c.0.s8 %v4262
        %v4264 = vlaneseq
        %v4265 = vshrl.u32 %v4264, 7
        %v4266 = vsub.s32 %v4263, %v4265
        %v4267 = vrot.slane %v3956, %v4266
        %v4269 = vunpack.c.l.s4 1983009808
        %v4270 = vunpack.c.0.s8 %v4269
        %v4271 = vlaneseq
        %v4272 = vshrl.u32 %v4271, 7
        %v4273 = vsub.s32 %v4270, %v4272
        %v4274 = vrot.slane %v4260, %v4273
        %v4275 = vcombine.high %v4267, %v4267
        %v4276 = vcombine.high %v4274, %v4274
        %v4277 = vcombine.high %v3957, %v3957
        %v4279 = vunpack.c.l.s4 1983009808
        %v4280 = vunpack.c.0.s8 %v4279
        %v4281 = vlaneseq
        %v4282 = vshrl.u32 %v4281, 7
        %v4283 = vsub.s32 %v4280, %v4282
        %v4284 = vrot.slane %v3957, %v4283
        %v4286 = vunpack.c.l.s4 1983009808
        %v4287 = vunpack.c.0.s8 %v4286
        %v4288 = vlaneseq
        %v4289 = vshrl.u32 %v4288, 7
        %v4290 = vsub.s32 %v4287, %v4289
        %v4291 = vrot.slane %v4277, %v4290
        %v4292 = vcombine.high %v4284, %v4284
        %v4293 = vcombine.high %v4291, %v4291
        %v4294 = vcombine.high %v3958, %v3958
        %v4296 = vunpack.c.l.s4 1983009808
        %v4297 = vunpack.c.0.s8 %v4296
        %v4298 = vlaneseq
        %v4299 = vshrl.u32 %v4298, 7
        %v4300 = vsub.s32 %v4297, %v4299
        %v4301 = vrot.slane %v3958, %v4300
        %v4303 = vunpack.c.l.s4 1983009808
        %v4304 = vunpack.c.0.s8 %v4303
        %v4305 = vlaneseq
        %v4306 = vshrl.u32 %v4305, 7
        %v4307 = vsub.s32 %v4304, %v4306
        %v4308 = vrot.slane %v4294, %v4307
        %v4309 = vcombine.high %v4301, %v4301
        %v4310 = vcombine.high %v4308, %v4308
        %v4311 = vcombine.high %v3959, %v3959
        %v4313 = vunpack.c.l.s4 1983009808
        %v4314 = vunpack.c.0.s8 %v4313
        %v4315 = vlaneseq
        %v4316 = vshrl.u32 %v4315, 7
        %v4317 = vsub.s32 %v4314, %v4316
        %v4318 = vrot.slane %v3959, %v4317
        %v4320 = vunpack.c.l.s4 1983009808
        %v4321 = vunpack.c.0.s8 %v4320
        %v4322 = vlaneseq
        %v4323 = vshrl.u32 %v4322, 7
        %v4324 = vsub.s32 %v4321, %v4323
        %v4325 = vrot.slane %v4311, %v4324
        %v4326 = vcombine.high %v4318, %v4318
        %v4327 = vcombine.high %v4325, %v4325
        %v4328 = vcombine.high %v3960, %v3960
        %v4330 = vunpack.c.l.s4 1983009808
        %v4331 = vunpack.c.0.s8 %v4330
        %v4332 = vlaneseq
        %v4333 = vshrl.u32 %v4332, 7
        %v4334 = vsub.s32 %v4331, %v4333
        %v4335 = vrot.slane %v3960, %v4334
        %v4337 = vunpack.c.l.s4 1983009808
        %v4338 = vunpack.c.0.s8 %v4337
        %v4339 = vlaneseq
        %v4340 = vshrl.u32 %v4339, 7
        %v4341 = vsub.s32 %v4338, %v4340
        %v4342 = vrot.slane %v4328, %v4341
        %v4343 = vcombine.high %v4335, %v4335
        %v4344 = vcombine.high %v4342, %v4342
        %v4345 = vcombine.high %v3961, %v3961
        %v4347 = vunpack.c.l.s4 1983009808
        %v4348 = vunpack.c.0.s8 %v4347
        %v4349 = vlaneseq
        %v4350 = vshrl.u32 %v4349, 7
        %v4351 = vsub.s32 %v4348, %v4350
        %v4352 = vrot.slane %v3961, %v4351
        %v4354 = vunpack.c.l.s4 1983009808
        %v4355 = vunpack.c.0.s8 %v4354
        %v4356 = vlaneseq
        %v4357 = vshrl.u32 %v4356, 7
        %v4358 = vsub.s32 %v4355, %v4357
        %v4359 = vrot.slane %v4345, %v4358
        %v4360 = vcombine.high %v4352, %v4352
        %v4361 = vcombine.high %v4359, %v4359
        %v4362 = vcombine.high %v3962, %v3962
        %v4364 = vunpack.c.l.s4 1983009808
        %v4365 = vunpack.c.0.s8 %v4364
        %v4366 = vlaneseq
        %v4367 = vshrl.u32 %v4366, 7
        %v4368 = vsub.s32 %v4365, %v4367
        %v4369 = vrot.slane %v3962, %v4368
        %v4371 = vunpack.c.l.s4 1983009808
        %v4372 = vunpack.c.0.s8 %v4371
        %v4373 = vlaneseq
        %v4374 = vshrl.u32 %v4373, 7
        %v4375 = vsub.s32 %v4372, %v4374
        %v4376 = vrot.slane %v4362, %v4375
        %v4377 = vcombine.high %v4369, %v4369
        %v4378 = vcombine.high %v4376, %v4376
        %v4379 = vcombine.high %v3963, %v3963
        %v4381 = vunpack.c.l.s4 1983009808
        %v4382 = vunpack.c.0.s8 %v4381
        %v4383 = vlaneseq
        %v4384 = vshrl.u32 %v4383, 7
        %v4385 = vsub.s32 %v4382, %v4384
        %v4386 = vrot.slane %v3963, %v4385
        %v4388 = vunpack.c.l.s4 1983009808
        %v4389 = vunpack.c.0.s8 %v4388
        %v4390 = vlaneseq
        %v4391 = vshrl.u32 %v4390, 7
        %v4392 = vsub.s32 %v4389, %v4391
        %v4393 = vrot.slane %v4379, %v4392
        %v4394 = vcombine.high %v4386, %v4386
        %v4395 = vcombine.high %v4393, %v4393
        %v4396 = vcombine.high %v3964, %v3964
        %v4398 = vunpack.c.l.s4 1983009808
        %v4399 = vunpack.c.0.s8 %v4398
        %v4400 = vlaneseq
        %v4401 = vshrl.u32 %v4400, 7
        %v4402 = vsub.s32 %v4399, %v4401
        %v4403 = vrot.slane %v3964, %v4402
        %v4405 = vunpack.c.l.s4 1983009808
        %v4406 = vunpack.c.0.s8 %v4405
        %v4407 = vlaneseq
        %v4408 = vshrl.u32 %v4407, 7
        %v4409 = vsub.s32 %v4406, %v4408
        %v4410 = vrot.slane %v4396, %v4409
        %v4411 = vcombine.high %v4403, %v4403
        %v4412 = vcombine.high %v4410, %v4410
        %v4413 = vcombine.high %v3965, %v3965
        %v4415 = vunpack.c.l.s4 1983009808
        %v4416 = vunpack.c.0.s8 %v4415
        %v4417 = vlaneseq
        %v4418 = vshrl.u32 %v4417, 7
        %v4419 = vsub.s32 %v4416, %v4418
        %v4420 = vrot.slane %v3965, %v4419
        %v4422 = vunpack.c.l.s4 1983009808
        %v4423 = vunpack.c.0.s8 %v4422
        %v4424 = vlaneseq
        %v4425 = vshrl.u32 %v4424, 7
        %v4426 = vsub.s32 %v4423, %v4425
        %v4427 = vrot.slane %v4413, %v4426
        %v4428 = vcombine.high %v4420, %v4420
        %v4429 = vcombine.high %v4427, %v4427
        %v4430 = vcombine.high %v3966, %v3966
        %v4432 = vunpack.c.l.s4 1983009808
        %v4433 = vunpack.c.0.s8 %v4432
        %v4434 = vlaneseq
        %v4435 = vshrl.u32 %v4434, 7
        %v4436 = vsub.s32 %v4433, %v4435
        %v4437 = vrot.slane %v3966, %v4436
        %v4439 = vunpack.c.l.s4 1983009808
        %v4440 = vunpack.c.0.s8 %v4439
        %v4441 = vlaneseq
        %v4442 = vshrl.u32 %v4441, 7
        %v4443 = vsub.s32 %v4440, %v4442
        %v4444 = vrot.slane %v4430, %v4443
        %v4445 = vcombine.high %v4437, %v4437
        %v4446 = vcombine.high %v4444, %v4444
        %v4447 = vcombine.high %v3967, %v3967
        %v4449 = vunpack.c.l.s4 1983009808
        %v4450 = vunpack.c.0.s8 %v4449
        %v4451 = vlaneseq
        %v4452 = vshrl.u32 %v4451, 7
        %v4453 = vsub.s32 %v4450, %v4452
        %v4454 = vrot.slane %v3967, %v4453
        %v4456 = vunpack.c.l.s4 1983009808
        %v4457 = vunpack.c.0.s8 %v4456
        %v4458 = vlaneseq
        %v4459 = vshrl.u32 %v4458, 7
        %v4460 = vsub.s32 %v4457, %v4459
        %v4461 = vrot.slane %v4447, %v4460
        %v4462 = vcombine.high %v4454, %v4454
        %v4463 = vcombine.high %v4461, %v4461
        %v4464 = vcombine.high %v3968, %v3968
        %v4466 = vunpack.c.l.s4 1983009808
        %v4467 = vunpack.c.0.s8 %v4466
        %v4468 = vlaneseq
        %v4469 = vshrl.u32 %v4468, 7
        %v4470 = vsub.s32 %v4467, %v4469
        %v4471 = vrot.slane %v3968, %v4470
        %v4473 = vunpack.c.l.s4 1983009808
        %v4474 = vunpack.c.0.s8 %v4473
        %v4475 = vlaneseq
        %v4476 = vshrl.u32 %v4475, 7
        %v4477 = vsub.s32 %v4474, %v4476
        %v4478 = vrot.slane %v4464, %v4477
        %v4479 = vcombine.high %v4471, %v4471
        %v4480 = vcombine.high %v4478, %v4478
        %v4481 = vcombine.high %v3969, %v3969
        %v4483 = vunpack.c.l.s4 1983009808
        %v4484 = vunpack.c.0.s8 %v4483
        %v4485 = vlaneseq
        %v4486 = vshrl.u32 %v4485, 7
        %v4487 = vsub.s32 %v4484, %v4486
        %v4488 = vrot.slane %v3969, %v4487
        %v4490 = vunpack.c.l.s4 1983009808
        %v4491 = vunpack.c.0.s8 %v4490
        %v4492 = vlaneseq
        %v4493 = vshrl.u32 %v4492, 7
        %v4494 = vsub.s32 %v4491, %v4493
        %v4495 = vrot.slane %v4481, %v4494
        %v4496 = vcombine.high %v4488, %v4488
        %v4497 = vcombine.high %v4495, %v4495
        %v4498 = vcombine.high %v3970, %v3970
        %v4500 = vunpack.c.l.s4 1983009808
        %v4501 = vunpack.c.0.s8 %v4500
        %v4502 = vlaneseq
        %v4503 = vshrl.u32 %v4502, 7
        %v4504 = vsub.s32 %v4501, %v4503
        %v4505 = vrot.slane %v3970, %v4504
        %v4507 = vunpack.c.l.s4 1983009808
        %v4508 = vunpack.c.0.s8 %v4507
        %v4509 = vlaneseq
        %v4510 = vshrl.u32 %v4509, 7
        %v4511 = vsub.s32 %v4508, %v4510
        %v4512 = vrot.slane %v4498, %v4511
        %v4513 = vcombine.high %v4505, %v4505
        %v4514 = vcombine.high %v4512, %v4512
        %v4515 = vcombine.high %v3971, %v3971
        %v4517 = vunpack.c.l.s4 1983009808
        %v4518 = vunpack.c.0.s8 %v4517
        %v4519 = vlaneseq
        %v4520 = vshrl.u32 %v4519, 7
        %v4521 = vsub.s32 %v4518, %v4520
        %v4522 = vrot.slane %v3971, %v4521
        %v4524 = vunpack.c.l.s4 1983009808
        %v4525 = vunpack.c.0.s8 %v4524
        %v4526 = vlaneseq
        %v4527 = vshrl.u32 %v4526, 7
        %v4528 = vsub.s32 %v4525, %v4527
        %v4529 = vrot.slane %v4515, %v4528
        %v4530 = vcombine.high %v4522, %v4522
        %v4531 = vcombine.high %v4529, %v4529
        %v4532 = vcombine.high %v3972, %v3972
        %v4534 = vunpack.c.l.s4 1983009808
        %v4535 = vunpack.c.0.s8 %v4534
        %v4536 = vlaneseq
        %v4537 = vshrl.u32 %v4536, 7
        %v4538 = vsub.s32 %v4535, %v4537
        %v4539 = vrot.slane %v3972, %v4538
        %v4541 = vunpack.c.l.s4 1983009808
        %v4542 = vunpack.c.0.s8 %v4541
        %v4543 = vlaneseq
        %v4544 = vshrl.u32 %v4543, 7
        %v4545 = vsub.s32 %v4542, %v4544
        %v4546 = vrot.slane %v4532, %v4545
        %v4547 = vcombine.high %v4539, %v4539
        %v4548 = vcombine.high %v4546, %v4546
        %v4677 = vmax.f32 %v4012, %v4046
        %v4678 = vmax.f32 %v4020, %v4054
        %v4679 = vmax.f32 %v4019, %v4053
        %v4680 = vmax.f32 %v4021, %v4055
        %v4681 = vmax.f32 %v4029, %v4063
        %v4682 = vmax.f32 %v4037, %v4071
        %v4683 = vmax.f32 %v4036, %v4070
        %v4684 = vmax.f32 %v4038, %v4072
        %v4685 = vmax.f32 %v4080, %v4114
        %v4686 = vmax.f32 %v4088, %v4122
        %v4687 = vmax.f32 %v4087, %v4121
        %v4688 = vmax.f32 %v4089, %v4123
        %v4689 = vmax.f32 %v4097, %v4131
        %v4690 = vmax.f32 %v4105, %v4139
        %v4691 = vmax.f32 %v4104, %v4138
        %v4692 = vmax.f32 %v4106, %v4140
        %v4693 = vmax.f32 %v4148, %v4182
        %v4694 = vmax.f32 %v4156, %v4190
        %v4695 = vmax.f32 %v4155, %v4189
        %v4696 = vmax.f32 %v4157, %v4191
        %v4697 = vmax.f32 %v4165, %v4199
        %v4698 = vmax.f32 %v4173, %v4207
        %v4699 = vmax.f32 %v4172, %v4206
        %v4700 = vmax.f32 %v4174, %v4208
        %v4701 = vmax.f32 %v4216, %v4250
        %v4702 = vmax.f32 %v4224, %v4258
        %v4703 = vmax.f32 %v4223, %v4257
        %v4704 = vmax.f32 %v4225, %v4259
        %v4705 = vmax.f32 %v4233, %v4267
        %v4706 = vmax.f32 %v4241, %v4275
        %v4707 = vmax.f32 %v4240, %v4274
        %v4708 = vmax.f32 %v4242, %v4276
        %v4709 = vmax.f32 %v4284, %v4318
        %v4710 = vmax.f32 %v4292, %v4326
        %v4711 = vmax.f32 %v4291, %v4325
        %v4712 = vmax.f32 %v4293, %v4327
        %v4713 = vmax.f32 %v4301, %v4335
        %v4714 = vmax.f32 %v4309, %v4343
        %v4715 = vmax.f32 %v4308, %v4342
        %v4716 = vmax.f32 %v4310, %v4344
        %v4717 = vmax.f32 %v4352, %v4386
        %v4718 = vmax.f32 %v4360, %v4394
        %v4719 = vmax.f32 %v4359, %v4393
        %v4720 = vmax.f32 %v4361, %v4395
        %v4721 = vmax.f32 %v4369, %v4403
        %v4722 = vmax.f32 %v4377, %v4411
        %v4723 = vmax.f32 %v4376, %v4410
        %v4724 = vmax.f32 %v4378, %v4412
        %v4725 = vmax.f32 %v4420, %v4454
        %v4726 = vmax.f32 %v4428, %v4462
        %v4727 = vmax.f32 %v4427, %v4461
        %v4728 = vmax.f32 %v4429, %v4463
        %v4729 = vmax.f32 %v4437, %v4471
        %v4730 = vmax.f32 %v4445, %v4479
        %v4731 = vmax.f32 %v4444, %v4478
        %v4732 = vmax.f32 %v4446, %v4480
        %v4733 = vmax.f32 %v4488, %v4522
        %v4734 = vmax.f32 %v4496, %v4530
        %v4735 = vmax.f32 %v4495, %v4529
        %v4736 = vmax.f32 %v4497, %v4531
        %v4737 = vmax.f32 %v4505, %v4539
        %v4738 = vmax.f32 %v4513, %v4547
        %v4739 = vmax.f32 %v4512, %v4546
        %v4740 = vmax.f32 %v4514, %v4548
        %v4805 = vrot.slane %v4677, 7
        %v4806 = vrot.slane %v4805, 2
        %v4807 = vrot.slane %v4678, 7
        %v4808 = vrot.slane %v4807, 2
        %v4809 = vrot.slane %v4679, 7
        %v4810 = vrot.slane %v4809, 2
        %v4811 = vrot.slane %v4680, 7
        %v4812 = vrot.slane %v4811, 2
        %v4813 = vrot.slane %v4681, 7
        %v4814 = vrot.slane %v4813, 2
        %v4815 = vrot.slane %v4682, 7
        %v4816 = vrot.slane %v4815, 2
        %v4817 = vrot.slane %v4683, 7
        %v4818 = vrot.slane %v4817, 2
        %v4819 = vrot.slane %v4684, 7
        %v4820 = vrot.slane %v4819, 2
        %v4821 = vrot.slane %v4685, 7
        %v4822 = vrot.slane %v4821, 2
        %v4823 = vrot.slane %v4686, 7
        %v4824 = vrot.slane %v4823, 2
        %v4825 = vrot.slane %v4687, 7
        %v4826 = vrot.slane %v4825, 2
        %v4827 = vrot.slane %v4688, 7
        %v4828 = vrot.slane %v4827, 2
        %v4829 = vrot.slane %v4689, 7
        %v4830 = vrot.slane %v4829, 2
        %v4831 = vrot.slane %v4690, 7
        %v4832 = vrot.slane %v4831, 2
        %v4833 = vrot.slane %v4691, 7
        %v4834 = vrot.slane %v4833, 2
        %v4835 = vrot.slane %v4692, 7
        %v4836 = vrot.slane %v4835, 2
        %v4837 = vrot.slane %v4693, 7
        %v4838 = vrot.slane %v4837, 2
        %v4839 = vrot.slane %v4694, 7
        %v4840 = vrot.slane %v4839, 2
        %v4841 = vrot.slane %v4695, 7
        %v4842 = vrot.slane %v4841, 2
        %v4843 = vrot.slane %v4696, 7
        %v4844 = vrot.slane %v4843, 2
        %v4845 = vrot.slane %v4697, 7
        %v4846 = vrot.slane %v4845, 2
        %v4847 = vrot.slane %v4698, 7
        %v4848 = vrot.slane %v4847, 2
        %v4849 = vrot.slane %v4699, 7
        %v4850 = vrot.slane %v4849, 2
        %v4851 = vrot.slane %v4700, 7
        %v4852 = vrot.slane %v4851, 2
        %v4853 = vrot.slane %v4701, 7
        %v4854 = vrot.slane %v4853, 2
        %v4855 = vrot.slane %v4702, 7
        %v4856 = vrot.slane %v4855, 2
        %v4857 = vrot.slane %v4703, 7
        %v4858 = vrot.slane %v4857, 2
        %v4859 = vrot.slane %v4704, 7
        %v4860 = vrot.slane %v4859, 2
        %v4861 = vrot.slane %v4705, 7
        %v4862 = vrot.slane %v4861, 2
        %v4863 = vrot.slane %v4706, 7
        %v4864 = vrot.slane %v4863, 2
        %v4865 = vrot.slane %v4707, 7
        %v4866 = vrot.slane %v4865, 2
        %v4867 = vrot.slane %v4708, 7
        %v4868 = vrot.slane %v4867, 2
        %v4869 = vrot.slane %v4709, 7
        %v4870 = vrot.slane %v4869, 2
        %v4871 = vrot.slane %v4710, 7
        %v4872 = vrot.slane %v4871, 2
        %v4873 = vrot.slane %v4711, 7
        %v4874 = vrot.slane %v4873, 2
        %v4875 = vrot.slane %v4712, 7
        %v4876 = vrot.slane %v4875, 2
        %v4877 = vrot.slane %v4713, 7
        %v4878 = vrot.slane %v4877, 2
        %v4879 = vrot.slane %v4714, 7
        %v4880 = vrot.slane %v4879, 2
        %v4881 = vrot.slane %v4715, 7
        %v4882 = vrot.slane %v4881, 2
        %v4883 = vrot.slane %v4716, 7
        %v4884 = vrot.slane %v4883, 2
        %v4885 = vrot.slane %v4717, 7
        %v4886 = vrot.slane %v4885, 2
        %v4887 = vrot.slane %v4718, 7
        %v4888 = vrot.slane %v4887, 2
        %v4889 = vrot.slane %v4719, 7
        %v4890 = vrot.slane %v4889, 2
        %v4891 = vrot.slane %v4720, 7
        %v4892 = vrot.slane %v4891, 2
        %v4893 = vrot.slane %v4721, 7
        %v4894 = vrot.slane %v4893, 2
        %v4895 = vrot.slane %v4722, 7
        %v4896 = vrot.slane %v4895, 2
        %v4897 = vrot.slane %v4723, 7
        %v4898 = vrot.slane %v4897, 2
        %v4899 = vrot.slane %v4724, 7
        %v4900 = vrot.slane %v4899, 2
        %v4901 = vrot.slane %v4725, 7
        %v4902 = vrot.slane %v4901, 2
        %v4903 = vrot.slane %v4726, 7
        %v4904 = vrot.slane %v4903, 2
        %v4905 = vrot.slane %v4727, 7
        %v4906 = vrot.slane %v4905, 2
        %v4907 = vrot.slane %v4728, 7
        %v4908 = vrot.slane %v4907, 2
        %v4909 = vrot.slane %v4729, 7
        %v4910 = vrot.slane %v4909, 2
        %v4911 = vrot.slane %v4730, 7
        %v4912 = vrot.slane %v4911, 2
        %v4913 = vrot.slane %v4731, 7
        %v4914 = vrot.slane %v4913, 2
        %v4915 = vrot.slane %v4732, 7
        %v4916 = vrot.slane %v4915, 2
        %v4917 = vrot.slane %v4733, 7
        %v4918 = vrot.slane %v4917, 2
        %v4919 = vrot.slane %v4734, 7
        %v4920 = vrot.slane %v4919, 2
        %v4921 = vrot.slane %v4735, 7
        %v4922 = vrot.slane %v4921, 2
        %v4923 = vrot.slane %v4736, 7
        %v4924 = vrot.slane %v4923, 2
        %v4925 = vrot.slane %v4737, 7
        %v4926 = vrot.slane %v4925, 2
        %v4927 = vrot.slane %v4738, 7
        %v4928 = vrot.slane %v4927, 2
        %v4929 = vrot.slane %v4739, 7
        %v4930 = vrot.slane %v4929, 2
        %v4931 = vrot.slane %v4740, 7
        %v4932 = vrot.slane %v4931, 2
        %v4997 = vmax.f32 %v4677, %v4806
        %v4998 = vmax.f32 %v4678, %v4808
        %v4999 = vmax.f32 %v4679, %v4810
        %v5000 = vmax.f32 %v4680, %v4812
        %v5001 = vmax.f32 %v4681, %v4814
        %v5002 = vmax.f32 %v4682, %v4816
        %v5003 = vmax.f32 %v4683, %v4818
        %v5004 = vmax.f32 %v4684, %v4820
        %v5005 = vmax.f32 %v4685, %v4822
        %v5006 = vmax.f32 %v4686, %v4824
        %v5007 = vmax.f32 %v4687, %v4826
        %v5008 = vmax.f32 %v4688, %v4828
        %v5009 = vmax.f32 %v4689, %v4830
        %v5010 = vmax.f32 %v4690, %v4832
        %v5011 = vmax.f32 %v4691, %v4834
        %v5012 = vmax.f32 %v4692, %v4836
        %v5013 = vmax.f32 %v4693, %v4838
        %v5014 = vmax.f32 %v4694, %v4840
        %v5015 = vmax.f32 %v4695, %v4842
        %v5016 = vmax.f32 %v4696, %v4844
        %v5017 = vmax.f32 %v4697, %v4846
        %v5018 = vmax.f32 %v4698, %v4848
        %v5019 = vmax.f32 %v4699, %v4850
        %v5020 = vmax.f32 %v4700, %v4852
        %v5021 = vmax.f32 %v4701, %v4854
        %v5022 = vmax.f32 %v4702, %v4856
        %v5023 = vmax.f32 %v4703, %v4858
        %v5024 = vmax.f32 %v4704, %v4860
        %v5025 = vmax.f32 %v4705, %v4862
        %v5026 = vmax.f32 %v4706, %v4864
        %v5027 = vmax.f32 %v4707, %v4866
        %v5028 = vmax.f32 %v4708, %v4868
        %v5029 = vmax.f32 %v4709, %v4870
        %v5030 = vmax.f32 %v4710, %v4872
        %v5031 = vmax.f32 %v4711, %v4874
        %v5032 = vmax.f32 %v4712, %v4876
        %v5033 = vmax.f32 %v4713, %v4878
        %v5034 = vmax.f32 %v4714, %v4880
        %v5035 = vmax.f32 %v4715, %v4882
        %v5036 = vmax.f32 %v4716, %v4884
        %v5037 = vmax.f32 %v4717, %v4886
        %v5038 = vmax.f32 %v4718, %v4888
        %v5039 = vmax.f32 %v4719, %v4890
        %v5040 = vmax.f32 %v4720, %v4892
        %v5041 = vmax.f32 %v4721, %v4894
        %v5042 = vmax.f32 %v4722, %v4896
        %v5043 = vmax.f32 %v4723, %v4898
        %v5044 = vmax.f32 %v4724, %v4900
        %v5045 = vmax.f32 %v4725, %v4902
        %v5046 = vmax.f32 %v4726, %v4904
        %v5047 = vmax.f32 %v4727, %v4906
        %v5048 = vmax.f32 %v4728, %v4908
        %v5049 = vmax.f32 %v4729, %v4910
        %v5050 = vmax.f32 %v4730, %v4912
        %v5051 = vmax.f32 %v4731, %v4914
        %v5052 = vmax.f32 %v4732, %v4916
        %v5053 = vmax.f32 %v4733, %v4918
        %v5054 = vmax.f32 %v4734, %v4920
        %v5055 = vmax.f32 %v4735, %v4922
        %v5056 = vmax.f32 %v4736, %v4924
        %v5057 = vmax.f32 %v4737, %v4926
        %v5058 = vmax.f32 %v4738, %v4928
        %v5059 = vmax.f32 %v4739, %v4930
        %v5060 = vmax.f32 %v4740, %v4932
        %v5061 = vpack.c.bf16 %v4997, %v4997
        %v5062 = vpack.c.bf16 %v4998, %v4998
        %v5063 = vpack.c.bf16 %v4999, %v4999
        %v5064 = vpack.c.bf16 %v5000, %v5000
        %v5065 = vpack.c.bf16 %v5001, %v5001
        %v5066 = vpack.c.bf16 %v5002, %v5002
        %v5067 = vpack.c.bf16 %v5003, %v5003
        %v5068 = vpack.c.bf16 %v5004, %v5004
        %v5069 = vpack.c.bf16 %v5005, %v5005
        %v5070 = vpack.c.bf16 %v5006, %v5006
        %v5071 = vpack.c.bf16 %v5007, %v5007
        %v5072 = vpack.c.bf16 %v5008, %v5008
        %v5073 = vpack.c.bf16 %v5009, %v5009
        %v5074 = vpack.c.bf16 %v5010, %v5010
        %v5075 = vpack.c.bf16 %v5011, %v5011
        %v5076 = vpack.c.bf16 %v5012, %v5012
        %v5077 = vpack.c.bf16 %v5013, %v5013
        %v5078 = vpack.c.bf16 %v5014, %v5014
        %v5079 = vpack.c.bf16 %v5015, %v5015
        %v5080 = vpack.c.bf16 %v5016, %v5016
        %v5081 = vpack.c.bf16 %v5017, %v5017
        %v5082 = vpack.c.bf16 %v5018, %v5018
        %v5083 = vpack.c.bf16 %v5019, %v5019
        %v5084 = vpack.c.bf16 %v5020, %v5020
        %v5085 = vpack.c.bf16 %v5021, %v5021
        %v5086 = vpack.c.bf16 %v5022, %v5022
        %v5087 = vpack.c.bf16 %v5023, %v5023
        %v5088 = vpack.c.bf16 %v5024, %v5024
        %v5089 = vpack.c.bf16 %v5025, %v5025
        %v5090 = vpack.c.bf16 %v5026, %v5026
        %v5091 = vpack.c.bf16 %v5027, %v5027
        %v5092 = vpack.c.bf16 %v5028, %v5028
        %v5093 = vpack.c.bf16 %v5029, %v5029
        %v5094 = vpack.c.bf16 %v5030, %v5030
        %v5095 = vpack.c.bf16 %v5031, %v5031
        %v5096 = vpack.c.bf16 %v5032, %v5032
        %v5097 = vpack.c.bf16 %v5033, %v5033
        %v5098 = vpack.c.bf16 %v5034, %v5034
        %v5099 = vpack.c.bf16 %v5035, %v5035
        %v5100 = vpack.c.bf16 %v5036, %v5036
        %v5101 = vpack.c.bf16 %v5037, %v5037
        %v5102 = vpack.c.bf16 %v5038, %v5038
        %v5103 = vpack.c.bf16 %v5039, %v5039
        %v5104 = vpack.c.bf16 %v5040, %v5040
        %v5105 = vpack.c.bf16 %v5041, %v5041
        %v5106 = vpack.c.bf16 %v5042, %v5042
        %v5107 = vpack.c.bf16 %v5043, %v5043
        %v5108 = vpack.c.bf16 %v5044, %v5044
        %v5109 = vpack.c.bf16 %v5045, %v5045
        %v5110 = vpack.c.bf16 %v5046, %v5046
        %v5111 = vpack.c.bf16 %v5047, %v5047
        %v5112 = vpack.c.bf16 %v5048, %v5048
        %v5113 = vpack.c.bf16 %v5049, %v5049
        %v5114 = vpack.c.bf16 %v5050, %v5050
        %v5115 = vpack.c.bf16 %v5051, %v5051
        %v5116 = vpack.c.bf16 %v5052, %v5052
        %v5117 = vpack.c.bf16 %v5053, %v5053
        %v5118 = vpack.c.bf16 %v5054, %v5054
        %v5119 = vpack.c.bf16 %v5055, %v5055
        %v5120 = vpack.c.bf16 %v5056, %v5056
        %v5121 = vpack.c.bf16 %v5057, %v5057
        %v5122 = vpack.c.bf16 %v5058, %v5058
        %v5123 = vpack.c.bf16 %v5059, %v5059
        %v5124 = vpack.c.bf16 %v5060, %v5060
        %vm5125 = vcmask 257024
        %5126 = vst.msk [vmem:[#allocation3] sm:$0xf] %vm5125, 0
        %vm5127 = vcmask 253952
        %5128 = vst.msk [vmem:[#allocation3 + $0x4] sm:$0x1] %vm5127, 0
        %5129 = vst.msk [vmem:[#allocation3 + $0x8] sm:$0xf] %vm5125, 0
        %5130 = vst.msk [vmem:[#allocation3 + $0xc] sm:$0x1] %vm5127, 0
        %5131 = vst.msk [vmem:[#allocation3 + $0x10] sm:$0xf] %vm5125, 0
        %5132 = vst.msk [vmem:[#allocation3 + $0x14] sm:$0x1] %vm5127, 0
        %5133 = vst.msk [vmem:[#allocation3 + $0x18] sm:$0xf] %vm5125, 0
        %5134 = vst.msk [vmem:[#allocation3 + $0x1c] sm:$0x1] %vm5127, 0
        %5135 = vst.msk [vmem:[#allocation3 + $0x20] sm:$0xf] %vm5125, 0
        %5136 = vst.msk [vmem:[#allocation3 + $0x24] sm:$0x1] %vm5127, 0
        %5137 = vst.msk [vmem:[#allocation3 + $0x28] sm:$0xf] %vm5125, 0
        %5138 = vst.msk [vmem:[#allocation3 + $0x2c] sm:$0x1] %vm5127, 0
        %5139 = vst.msk [vmem:[#allocation3 + $0x30] sm:$0xf] %vm5125, 0
        %5140 = vst.msk [vmem:[#allocation3 + $0x34] sm:$0x1] %vm5127, 0
        %5141 = vst.msk [vmem:[#allocation3 + $0x38] sm:$0xf] %vm5125, 0
        %5142 = vst.msk [vmem:[#allocation3 + $0x3c] sm:$0x1] %vm5127, 0
        %5143 = vst.msk [vmem:[#allocation3 + $0x40] sm:$0xf] %vm5125, 0
        %5144 = vst.msk [vmem:[#allocation3 + $0x44] sm:$0x1] %vm5127, 0
        %5145 = vst.msk [vmem:[#allocation3 + $0x48] sm:$0xf] %vm5125, 0
        %5146 = vst.msk [vmem:[#allocation3 + $0x4c] sm:$0x1] %vm5127, 0
        %v5211 = vunpack.c.l.b16 %v5061
        %v5212 = vunpack.c.l.b16 %v5062
        %v5213 = vunpack.c.l.b16 %v5063
        %v5214 = vunpack.c.l.b16 %v5064
        %v5215 = vunpack.c.l.b16 %v5065
        %v5216 = vunpack.c.l.b16 %v5066
        %v5217 = vunpack.c.l.b16 %v5067
        %v5218 = vunpack.c.l.b16 %v5068
        %v5219 = vunpack.c.l.b16 %v5069
        %v5220 = vunpack.c.l.b16 %v5070
        %v5221 = vunpack.c.l.b16 %v5071
        %v5222 = vunpack.c.l.b16 %v5072
        %v5223 = vunpack.c.l.b16 %v5073
        %v5224 = vunpack.c.l.b16 %v5074
        %v5225 = vunpack.c.l.b16 %v5075
        %v5226 = vunpack.c.l.b16 %v5076
        %v5227 = vunpack.c.l.b16 %v5077
        %v5228 = vunpack.c.l.b16 %v5078
        %v5229 = vunpack.c.l.b16 %v5079
        %v5230 = vunpack.c.l.b16 %v5080
        %v5231 = vunpack.c.l.b16 %v5081
        %v5232 = vunpack.c.l.b16 %v5082
        %v5233 = vunpack.c.l.b16 %v5083
        %v5234 = vunpack.c.l.b16 %v5084
        %v5235 = vunpack.c.l.b16 %v5085
        %v5236 = vunpack.c.l.b16 %v5086
        %v5237 = vunpack.c.l.b16 %v5087
        %v5238 = vunpack.c.l.b16 %v5088
        %v5239 = vunpack.c.l.b16 %v5089
        %v5240 = vunpack.c.l.b16 %v5090
        %v5241 = vunpack.c.l.b16 %v5091
        %v5242 = vunpack.c.l.b16 %v5092
        %v5243 = vunpack.c.l.b16 %v5093
        %v5244 = vunpack.c.l.b16 %v5094
        %v5245 = vunpack.c.l.b16 %v5095
        %v5246 = vunpack.c.l.b16 %v5096
        %v5247 = vunpack.c.l.b16 %v5097
        %v5248 = vunpack.c.l.b16 %v5098
        %v5249 = vunpack.c.l.b16 %v5099
        %v5250 = vunpack.c.l.b16 %v5100
        %v5251 = vunpack.c.l.b16 %v5101
        %v5252 = vunpack.c.l.b16 %v5102
        %v5253 = vunpack.c.l.b16 %v5103
        %v5254 = vunpack.c.l.b16 %v5104
        %v5255 = vunpack.c.l.b16 %v5105
        %v5256 = vunpack.c.l.b16 %v5106
        %v5257 = vunpack.c.l.b16 %v5107
        %v5258 = vunpack.c.l.b16 %v5108
        %v5259 = vunpack.c.l.b16 %v5109
        %v5260 = vunpack.c.l.b16 %v5110
        %v5261 = vunpack.c.l.b16 %v5111
        %v5262 = vunpack.c.l.b16 %v5112
        %v5263 = vunpack.c.l.b16 %v5113
        %v5264 = vunpack.c.l.b16 %v5114
        %v5265 = vunpack.c.l.b16 %v5115
        %v5266 = vunpack.c.l.b16 %v5116
        %v5267 = vunpack.c.l.b16 %v5117
        %v5268 = vunpack.c.l.b16 %v5118
        %v5269 = vunpack.c.l.b16 %v5119
        %v5270 = vunpack.c.l.b16 %v5120
        %v5271 = vunpack.c.l.b16 %v5121
        %v5272 = vunpack.c.l.b16 %v5122
        %v5273 = vunpack.c.l.b16 %v5123
        %v5274 = vunpack.c.l.b16 %v5124
        %v5275 = vpack.c.b16 %v5211, %v5211
        %v5276 = vpack.c.b16 %v5212, %v5212
        %v5277 = vpack.c.b16 %v5213, %v5213
        %v5278 = vpack.c.b16 %v5214, %v5214
        %v5279 = vpack.c.b16 %v5215, %v5215
        %v5280 = vpack.c.b16 %v5216, %v5216
        %v5281 = vpack.c.b16 %v5217, %v5217
        %v5282 = vpack.c.b16 %v5218, %v5218
        %v5283 = vpack.c.b16 %v5219, %v5219
        %v5284 = vpack.c.b16 %v5220, %v5220
        %v5285 = vpack.c.b16 %v5221, %v5221
        %v5286 = vpack.c.b16 %v5222, %v5222
        %v5287 = vpack.c.b16 %v5223, %v5223
        %v5288 = vpack.c.b16 %v5224, %v5224
        %v5289 = vpack.c.b16 %v5225, %v5225
        %v5290 = vpack.c.b16 %v5226, %v5226
        %v5291 = vpack.c.b16 %v5227, %v5227
        %v5292 = vpack.c.b16 %v5228, %v5228
        %v5293 = vpack.c.b16 %v5229, %v5229
        %v5294 = vpack.c.b16 %v5230, %v5230
        %v5295 = vpack.c.b16 %v5231, %v5231
        %v5296 = vpack.c.b16 %v5232, %v5232
        %v5297 = vpack.c.b16 %v5233, %v5233
        %v5298 = vpack.c.b16 %v5234, %v5234
        %v5299 = vpack.c.b16 %v5235, %v5235
        %v5300 = vpack.c.b16 %v5236, %v5236
        %v5301 = vpack.c.b16 %v5237, %v5237
        %v5302 = vpack.c.b16 %v5238, %v5238
        %v5303 = vpack.c.b16 %v5239, %v5239
        %v5304 = vpack.c.b16 %v5240, %v5240
        %v5305 = vpack.c.b16 %v5241, %v5241
        %v5306 = vpack.c.b16 %v5242, %v5242
        %v5307 = vpack.c.b16 %v5243, %v5243
        %v5308 = vpack.c.b16 %v5244, %v5244
        %v5309 = vpack.c.b16 %v5245, %v5245
        %v5310 = vpack.c.b16 %v5246, %v5246
        %v5311 = vpack.c.b16 %v5247, %v5247
        %v5312 = vpack.c.b16 %v5248, %v5248
        %v5313 = vpack.c.b16 %v5249, %v5249
        %v5314 = vpack.c.b16 %v5250, %v5250
        %v5315 = vpack.c.b16 %v5251, %v5251
        %v5316 = vpack.c.b16 %v5252, %v5252
        %v5317 = vpack.c.b16 %v5253, %v5253
        %v5318 = vpack.c.b16 %v5254, %v5254
        %v5319 = vpack.c.b16 %v5255, %v5255
        %v5320 = vpack.c.b16 %v5256, %v5256
        %v5321 = vpack.c.b16 %v5257, %v5257
        %v5322 = vpack.c.b16 %v5258, %v5258
        %v5323 = vpack.c.b16 %v5259, %v5259
        %v5324 = vpack.c.b16 %v5260, %v5260
        %v5325 = vpack.c.b16 %v5261, %v5261
        %v5326 = vpack.c.b16 %v5262, %v5262
        %v5327 = vpack.c.b16 %v5263, %v5263
        %v5328 = vpack.c.b16 %v5264, %v5264
        %v5329 = vpack.c.b16 %v5265, %v5265
        %v5330 = vpack.c.b16 %v5266, %v5266
        %v5331 = vpack.c.b16 %v5267, %v5267
        %v5332 = vpack.c.b16 %v5268, %v5268
        %v5333 = vpack.c.b16 %v5269, %v5269
        %v5334 = vpack.c.b16 %v5270, %v5270
        %v5335 = vpack.c.b16 %v5271, %v5271
        %v5336 = vpack.c.b16 %v5272, %v5272
        %v5337 = vpack.c.b16 %v5273, %v5273
        %v5338 = vpack.c.b16 %v5274, %v5274
        %v5339 = vunpack.c.l.b16 %v5275
        %v5340 = vunpack.c.l.b16 %v5276
        %v5341 = vunpack.c.l.b16 %v5277
        %v5342 = vunpack.c.l.b16 %v5278
        %v5343 = vunpack.c.l.b16 %v5279
        %v5344 = vunpack.c.l.b16 %v5280
        %v5345 = vunpack.c.l.b16 %v5281
        %v5346 = vunpack.c.l.b16 %v5282
        %v5347 = vunpack.c.l.b16 %v5283
        %v5348 = vunpack.c.l.b16 %v5284
        %v5349 = vunpack.c.l.b16 %v5285
        %v5350 = vunpack.c.l.b16 %v5286
        %v5351 = vunpack.c.l.b16 %v5287
        %v5352 = vunpack.c.l.b16 %v5288
        %v5353 = vunpack.c.l.b16 %v5289
        %v5354 = vunpack.c.l.b16 %v5290
        %v5355 = vunpack.c.l.b16 %v5291
        %v5356 = vunpack.c.l.b16 %v5292
        %v5357 = vunpack.c.l.b16 %v5293
        %v5358 = vunpack.c.l.b16 %v5294
        %v5359 = vunpack.c.l.b16 %v5295
        %v5360 = vunpack.c.l.b16 %v5296
        %v5361 = vunpack.c.l.b16 %v5297
        %v5362 = vunpack.c.l.b16 %v5298
        %v5363 = vunpack.c.l.b16 %v5299
        %v5364 = vunpack.c.l.b16 %v5300
        %v5365 = vunpack.c.l.b16 %v5301
        %v5366 = vunpack.c.l.b16 %v5302
        %v5367 = vunpack.c.l.b16 %v5303
        %v5368 = vunpack.c.l.b16 %v5304
        %v5369 = vunpack.c.l.b16 %v5305
        %v5370 = vunpack.c.l.b16 %v5306
        %v5371 = vunpack.c.l.b16 %v5307
        %v5372 = vunpack.c.l.b16 %v5308
        %v5373 = vunpack.c.l.b16 %v5309
        %v5374 = vunpack.c.l.b16 %v5310
        %v5375 = vunpack.c.l.b16 %v5311
        %v5376 = vunpack.c.l.b16 %v5312
        %v5377 = vunpack.c.l.b16 %v5313
        %v5378 = vunpack.c.l.b16 %v5314
        %v5379 = vunpack.c.l.b16 %v5315
        %v5380 = vunpack.c.l.b16 %v5316
        %v5381 = vunpack.c.l.b16 %v5317
        %v5382 = vunpack.c.l.b16 %v5318
        %v5383 = vunpack.c.l.b16 %v5319
        %v5384 = vunpack.c.l.b16 %v5320
        %v5385 = vunpack.c.l.b16 %v5321
        %v5386 = vunpack.c.l.b16 %v5322
        %v5387 = vunpack.c.l.b16 %v5323
        %v5388 = vunpack.c.l.b16 %v5324
        %v5389 = vunpack.c.l.b16 %v5325
        %v5390 = vunpack.c.l.b16 %v5326
        %v5391 = vunpack.c.l.b16 %v5327
        %v5392 = vunpack.c.l.b16 %v5328
        %v5393 = vunpack.c.l.b16 %v5329
        %v5394 = vunpack.c.l.b16 %v5330
        %v5395 = vunpack.c.l.b16 %v5331
        %v5396 = vunpack.c.l.b16 %v5332
        %v5397 = vunpack.c.l.b16 %v5333
        %v5398 = vunpack.c.l.b16 %v5334
        %v5399 = vunpack.c.l.b16 %v5335
        %v5400 = vunpack.c.l.b16 %v5336
        %v5401 = vunpack.c.l.b16 %v5337
        %v5402 = vunpack.c.l.b16 %v5338
        %v5403 = vrot.slane %v5339, 7
        %v5404 = vrot.slane %v5340, 6
        %vm5405 = vcmask 1042434
        %v5406 = vsel %vm5405, %v5404, %v5403
        %v5407 = vrot.slane %v5341, 5
        %vm5408 = vcmask 1043459
        %v5409 = vsel %vm5408, %v5407, %v5406
        %v5410 = vrot.slane %v5342, 4
        %vm5411 = vcmask 1044484
        %v5412 = vsel %vm5411, %v5410, %v5409
        %v5413 = vrot.slane %v5343, 3
        %vm5414 = vcmask 1045509
        %v5415 = vsel %vm5414, %v5413, %v5412
        %v5416 = vrot.slane %v5344, 2
        %vm5417 = vcmask 1046534
        %v5418 = vsel %vm5417, %v5416, %v5415
        %v5419 = vrot.slane %v5345, 1
        %vm5420 = vcmask 1047559
        %v5421 = vsel %vm5420, %v5419, %v5418
        %v5422 = vrot.slane %v5347, 7
        %v5423 = vrot.slane %v5348, 6
        %v5424 = vsel %vm5405, %v5423, %v5422
        %v5425 = vrot.slane %v5349, 5
        %v5426 = vsel %vm5408, %v5425, %v5424
        %v5427 = vrot.slane %v5350, 4
        %v5428 = vsel %vm5411, %v5427, %v5426
        %v5429 = vrot.slane %v5351, 3
        %v5430 = vsel %vm5414, %v5429, %v5428
        %v5431 = vrot.slane %v5352, 2
        %v5432 = vsel %vm5417, %v5431, %v5430
        %v5433 = vrot.slane %v5353, 1
        %v5434 = vsel %vm5420, %v5433, %v5432
        %v5435 = vrot.slane %v5355, 7
        %v5436 = vrot.slane %v5356, 6
        %v5437 = vsel %vm5405, %v5436, %v5435
        %v5438 = vrot.slane %v5357, 5
        %v5439 = vsel %vm5408, %v5438, %v5437
        %v5440 = vrot.slane %v5358, 4
        %v5441 = vsel %vm5411, %v5440, %v5439
        %v5442 = vrot.slane %v5359, 3
        %v5443 = vsel %vm5414, %v5442, %v5441
        %v5444 = vrot.slane %v5360, 2
        %v5445 = vsel %vm5417, %v5444, %v5443
        %v5446 = vrot.slane %v5361, 1
        %v5447 = vsel %vm5420, %v5446, %v5445
        %v5448 = vrot.slane %v5363, 7
        %v5449 = vrot.slane %v5364, 6
        %v5450 = vsel %vm5405, %v5449, %v5448
        %v5451 = vrot.slane %v5365, 5
        %v5452 = vsel %vm5408, %v5451, %v5450
        %v5453 = vrot.slane %v5366, 4
        %v5454 = vsel %vm5411, %v5453, %v5452
        %v5455 = vrot.slane %v5367, 3
        %v5456 = vsel %vm5414, %v5455, %v5454
        %v5457 = vrot.slane %v5368, 2
        %v5458 = vsel %vm5417, %v5457, %v5456
        %v5459 = vrot.slane %v5369, 1
        %v5460 = vsel %vm5420, %v5459, %v5458
        %v5461 = vrot.slane %v5371, 7
        %v5462 = vrot.slane %v5372, 6
        %v5463 = vsel %vm5405, %v5462, %v5461
        %v5464 = vrot.slane %v5373, 5
        %v5465 = vsel %vm5408, %v5464, %v5463
        %v5466 = vrot.slane %v5374, 4
        %v5467 = vsel %vm5411, %v5466, %v5465
        %v5468 = vrot.slane %v5375, 3
        %v5469 = vsel %vm5414, %v5468, %v5467
        %v5470 = vrot.slane %v5376, 2
        %v5471 = vsel %vm5417, %v5470, %v5469
        %v5472 = vrot.slane %v5377, 1
        %v5473 = vsel %vm5420, %v5472, %v5471
        %v5474 = vrot.slane %v5379, 7
        %v5475 = vrot.slane %v5380, 6
        %v5476 = vsel %vm5405, %v5475, %v5474
        %v5477 = vrot.slane %v5381, 5
        %v5478 = vsel %vm5408, %v5477, %v5476
        %v5479 = vrot.slane %v5382, 4
        %v5480 = vsel %vm5411, %v5479, %v5478
        %v5481 = vrot.slane %v5383, 3
        %v5482 = vsel %vm5414, %v5481, %v5480
        %v5483 = vrot.slane %v5384, 2
        %v5484 = vsel %vm5417, %v5483, %v5482
        %v5485 = vrot.slane %v5385, 1
        %v5486 = vsel %vm5420, %v5485, %v5484
        %v5487 = vrot.slane %v5387, 7
        %v5488 = vrot.slane %v5388, 6
        %v5489 = vsel %vm5405, %v5488, %v5487
        %v5490 = vrot.slane %v5389, 5
        %v5491 = vsel %vm5408, %v5490, %v5489
        %v5492 = vrot.slane %v5390, 4
        %v5493 = vsel %vm5411, %v5492, %v5491
        %v5494 = vrot.slane %v5391, 3
        %v5495 = vsel %vm5414, %v5494, %v5493
        %v5496 = vrot.slane %v5392, 2
        %v5497 = vsel %vm5417, %v5496, %v5495
        %v5498 = vrot.slane %v5393, 1
        %v5499 = vsel %vm5420, %v5498, %v5497
        %v5500 = vrot.slane %v5395, 7
        %v5501 = vrot.slane %v5396, 6
        %v5502 = vsel %vm5405, %v5501, %v5500
        %v5503 = vrot.slane %v5397, 5
        %v5504 = vsel %vm5408, %v5503, %v5502
        %v5505 = vrot.slane %v5398, 4
        %v5506 = vsel %vm5411, %v5505, %v5504
        %v5507 = vrot.slane %v5399, 3
        %v5508 = vsel %vm5414, %v5507, %v5506
        %v5509 = vrot.slane %v5400, 2
        %v5510 = vsel %vm5417, %v5509, %v5508
        %v5511 = vrot.slane %v5401, 1
        %v5512 = vsel %vm5420, %v5511, %v5510
        %v5513 = vpack.c.b16 %v5421, %v5421
        %v5514 = vpack.c.b16 %v5346, %v5346
        %v5515 = vpack.c.b16 %v5434, %v5434
        %v5516 = vpack.c.b16 %v5354, %v5354
        %v5517 = vpack.c.b16 %v5447, %v5447
        %v5518 = vpack.c.b16 %v5362, %v5362
        %v5519 = vpack.c.b16 %v5460, %v5460
        %v5520 = vpack.c.b16 %v5370, %v5370
        %v5521 = vpack.c.b16 %v5473, %v5473
        %v5522 = vpack.c.b16 %v5378, %v5378
        %v5523 = vpack.c.b16 %v5486, %v5486
        %v5524 = vpack.c.b16 %v5386, %v5386
        %v5525 = vpack.c.b16 %v5499, %v5499
        %v5526 = vpack.c.b16 %v5394, %v5394
        %v5527 = vpack.c.b16 %v5512, %v5512
        %v5528 = vpack.c.b16 %v5402, %v5402
        %s5545 = scalar_lea.vmem [#allocation3], 8
        %vm5546 = vcmask 257024
        %vm5547 = vmand %vm5546, %vm1553
        %v5548 = vld [vmem:[%s5545] sm:$0xf]
        %v5549 = vsel %vm5547, %v5513, %v5548
        %5550 = vst [vmem:[%s5545] sm:$0xf] %v5549
        %vm5551 = vcmask 253952
        %vm5552 = vmand %vm5551, %vm1228
        %v5553 = vld [vmem:[%s5545 + $0x4] sm:$0x1]
        %v5554 = vsel %vm5552, %v5514, %v5553
        %5555 = vst [vmem:[%s5545 + $0x4] sm:$0x1] %v5554
        %v5556 = vld [vmem:[%s5545 + $0x8] sm:$0xf]
        %v5557 = vsel %vm5547, %v5515, %v5556
        %5558 = vst [vmem:[%s5545 + $0x8] sm:$0xf] %v5557
        %v5559 = vld [vmem:[%s5545 + $0xc] sm:$0x1]
        %v5560 = vsel %vm5552, %v5516, %v5559
        %5561 = vst [vmem:[%s5545 + $0xc] sm:$0x1] %v5560
        %v5562 = vld [vmem:[%s5545 + $0x10] sm:$0xf]
        %v5563 = vsel %vm5547, %v5517, %v5562
        %5564 = vst [vmem:[%s5545 + $0x10] sm:$0xf] %v5563
        %v5565 = vld [vmem:[%s5545 + $0x14] sm:$0x1]
        %v5566 = vsel %vm5552, %v5518, %v5565
        %5567 = vst [vmem:[%s5545 + $0x14] sm:$0x1] %v5566
        %v5568 = vld [vmem:[%s5545 + $0x18] sm:$0xf]
        %v5569 = vsel %vm5547, %v5519, %v5568
        %5570 = vst [vmem:[%s5545 + $0x18] sm:$0xf] %v5569
        %v5571 = vld [vmem:[%s5545 + $0x1c] sm:$0x1]
        %v5572 = vsel %vm5552, %v5520, %v5571
        %5573 = vst [vmem:[%s5545 + $0x1c] sm:$0x1] %v5572
        %v5574 = vld [vmem:[%s5545 + $0x20] sm:$0xf]
        %v5575 = vsel %vm5547, %v5521, %v5574
        %5576 = vst [vmem:[%s5545 + $0x20] sm:$0xf] %v5575
        %v5577 = vld [vmem:[%s5545 + $0x24] sm:$0x1]
        %v5578 = vsel %vm5552, %v5522, %v5577
        %5579 = vst [vmem:[%s5545 + $0x24] sm:$0x1] %v5578
        %v5580 = vld [vmem:[%s5545 + $0x28] sm:$0xf]
        %v5581 = vsel %vm5547, %v5523, %v5580
        %5582 = vst [vmem:[%s5545 + $0x28] sm:$0xf] %v5581
        %v5583 = vld [vmem:[%s5545 + $0x2c] sm:$0x1]
        %v5584 = vsel %vm5552, %v5524, %v5583
        %5585 = vst [vmem:[%s5545 + $0x2c] sm:$0x1] %v5584
        %v5586 = vld [vmem:[%s5545 + $0x30] sm:$0xf]
        %v5587 = vsel %vm5547, %v5525, %v5586
        %5588 = vst [vmem:[%s5545 + $0x30] sm:$0xf] %v5587
        %v5589 = vld [vmem:[%s5545 + $0x34] sm:$0x1]
        %v5590 = vsel %vm5552, %v5526, %v5589
        %5591 = vst [vmem:[%s5545 + $0x34] sm:$0x1] %v5590
        %v5592 = vld [vmem:[%s5545 + $0x38] sm:$0xf]
        %v5593 = vsel %vm5547, %v5527, %v5592
        %5594 = vst [vmem:[%s5545 + $0x38] sm:$0xf] %v5593
        %v5595 = vld [vmem:[%s5545 + $0x3c] sm:$0x1]
        %v5596 = vsel %vm5552, %v5528, %v5595
        %5597 = vst [vmem:[%s5545 + $0x3c] sm:$0x1] %v5596
        %v5598 = vld [vmem:[#allocation3] sm:$0xf]
        %v5599 = vld [vmem:[#allocation3 + $0x8] sm:$0xf]
        %v5600 = vld [vmem:[#allocation3 + $0x10] sm:$0xf]
        %v5601 = vld [vmem:[#allocation3 + $0x18] sm:$0xf]
        %v5602 = vld [vmem:[#allocation3 + $0x20] sm:$0xf]
        %v5603 = vld [vmem:[#allocation3 + $0x28] sm:$0xf]
        %v5604 = vld [vmem:[#allocation3 + $0x30] sm:$0xf]
        %v5605 = vld [vmem:[#allocation3 + $0x38] sm:$0xf]
        %v5606 = vld [vmem:[#allocation3 + $0x4] sm:$0x1]
        %v5607 = vld [vmem:[#allocation3 + $0xc] sm:$0x1]
        %v5608 = vld [vmem:[#allocation3 + $0x14] sm:$0x1]
        %v5609 = vld [vmem:[#allocation3 + $0x1c] sm:$0x1]
        %v5610 = vld [vmem:[#allocation3 + $0x24] sm:$0x1]
        %v5611 = vld [vmem:[#allocation3 + $0x2c] sm:$0x1]
        %v5612 = vld [vmem:[#allocation3 + $0x34] sm:$0x1]
        %v5613 = vld [vmem:[#allocation3 + $0x3c] sm:$0x1]
        %v5614 = vld [vmem:[#allocation3] sm:$0xe]
        %v5615 = vld [vmem:[#allocation3 + $0x8] sm:$0xe]
        %v5616 = vld [vmem:[#allocation3 + $0x10] sm:$0xe]
        %v5617 = vld [vmem:[#allocation3 + $0x18] sm:$0xe]
        %v5618 = vld [vmem:[#allocation3 + $0x20] sm:$0xe]
        %v5619 = vld [vmem:[#allocation3 + $0x28] sm:$0xe]
        %v5620 = vld [vmem:[#allocation3 + $0x30] sm:$0xe]
        %v5621 = vld [vmem:[#allocation3 + $0x38] sm:$0xe]
        %v5622 = vld [vmem:[%s5545] sm:$0xf]
        %v5623 = vld [vmem:[%s5545 + $0x8] sm:$0xf]
        %v5624 = vld [vmem:[%s5545 + $0x10] sm:$0xf]
        %v5625 = vld [vmem:[%s5545 + $0x18] sm:$0xf]
        %v5626 = vld [vmem:[%s5545 + $0x20] sm:$0xf]
        %v5627 = vld [vmem:[%s5545 + $0x28] sm:$0xf]
        %v5628 = vld [vmem:[%s5545 + $0x30] sm:$0xf]
        %v5629 = vld [vmem:[%s5545 + $0x38] sm:$0xf]
        %v5630 = vld [vmem:[%s5545 + $0x4] sm:$0x1]
        %v5631 = vld [vmem:[%s5545 + $0xc] sm:$0x1]
        %v5632 = vld [vmem:[%s5545 + $0x14] sm:$0x1]
        %v5633 = vld [vmem:[%s5545 + $0x1c] sm:$0x1]
        %v5634 = vld [vmem:[%s5545 + $0x24] sm:$0x1]
        %v5635 = vld [vmem:[%s5545 + $0x2c] sm:$0x1]
        %v5636 = vld [vmem:[%s5545 + $0x34] sm:$0x1]
        %v5637 = vld [vmem:[%s5545 + $0x3c] sm:$0x1]
        %v5638 = vld [vmem:[%s5545] sm:$0xe]
        %v5639 = vld [vmem:[%s5545 + $0x8] sm:$0xe]
        %v5640 = vld [vmem:[%s5545 + $0x10] sm:$0xe]
        %v5641 = vld [vmem:[%s5545 + $0x18] sm:$0xe]
        %v5642 = vld [vmem:[%s5545 + $0x20] sm:$0xe]
        %v5643 = vld [vmem:[%s5545 + $0x28] sm:$0xe]
        %v5644 = vld [vmem:[%s5545 + $0x30] sm:$0xe]
        %v5645 = vld [vmem:[%s5545 + $0x38] sm:$0xe]
        %s5646 = scalar_lea.vmem [#allocation3], 16
        %v5647 = vld [vmem:[%s5646] sm:$0xf]
        %v5648 = vld [vmem:[%s5646 + $0x8] sm:$0xf]
        %v5649 = vld [vmem:[%s5646 + $0x10] sm:$0xf]
        %v5650 = vld [vmem:[%s5646 + $0x18] sm:$0xf]
        %v5651 = vld [vmem:[%s5646 + $0x20] sm:$0xf]
        %v5652 = vld [vmem:[%s5646 + $0x28] sm:$0xf]
        %v5653 = vld [vmem:[%s5646 + $0x30] sm:$0xf]
        %v5654 = vld [vmem:[%s5646 + $0x38] sm:$0xf]
        %v5655 = vld [vmem:[%s5646 + $0x4] sm:$0x1]
        %v5656 = vld [vmem:[%s5646 + $0xc] sm:$0x1]
        %v5657 = vld [vmem:[%s5646 + $0x14] sm:$0x1]
        %v5658 = vld [vmem:[%s5646 + $0x1c] sm:$0x1]
        %v5659 = vld [vmem:[%s5646 + $0x24] sm:$0x1]
        %v5660 = vld [vmem:[%s5646 + $0x2c] sm:$0x1]
        %v5661 = vld [vmem:[%s5646 + $0x34] sm:$0x1]
        %v5662 = vld [vmem:[%s5646 + $0x3c] sm:$0x1]
        %v5663 = vld [vmem:[%s5646] sm:$0xe]
        %v5664 = vld [vmem:[%s5646 + $0x8] sm:$0xe]
        %v5665 = vld [vmem:[%s5646 + $0x10] sm:$0xe]
        %v5666 = vld [vmem:[%s5646 + $0x18] sm:$0xe]
        %v5667 = vld [vmem:[%s5646 + $0x20] sm:$0xe]
        %v5668 = vld [vmem:[%s5646 + $0x28] sm:$0xe]
        %v5669 = vld [vmem:[%s5646 + $0x30] sm:$0xe]
        %v5670 = vld [vmem:[%s5646 + $0x38] sm:$0xe]
        %v5687 = vunpack.c.l.b16 %v5598
        %v5688 = vunpack.c.l.b16 %v5606
        %v5689 = vunpack.c.l.b16 %v5599
        %v5690 = vunpack.c.l.b16 %v5607
        %v5691 = vunpack.c.l.b16 %v5600
        %v5692 = vunpack.c.l.b16 %v5608
        %v5693 = vunpack.c.l.b16 %v5601
        %v5694 = vunpack.c.l.b16 %v5609
        %v5695 = vunpack.c.l.b16 %v5602
        %v5696 = vunpack.c.l.b16 %v5610
        %v5697 = vunpack.c.l.b16 %v5603
        %v5698 = vunpack.c.l.b16 %v5611
        %v5699 = vunpack.c.l.b16 %v5604
        %v5700 = vunpack.c.l.b16 %v5612
        %v5701 = vunpack.c.l.b16 %v5605
        %v5702 = vunpack.c.l.b16 %v5613
        %v5703 = vpack.c.b16 %v5688, %v5687
        %v5704 = vpack.c.b16 %v5690, %v5689
        %v5705 = vpack.c.b16 %v5692, %v5691
        %v5706 = vpack.c.b16 %v5694, %v5693
        %v5707 = vpack.c.b16 %v5696, %v5695
        %v5708 = vpack.c.b16 %v5698, %v5697
        %v5709 = vpack.c.b16 %v5700, %v5699
        %v5710 = vpack.c.b16 %v5702, %v5701
        %v5712 = vshrl.u32 %v5703, 16
        %v5714 = vshll.u32 %v5703, 16
        %v5716 = vrot.slane %v5714, 1
        %v5717 = vor.u32 %v5712, %v5716
        %v5719 = vshrl.u32 %v5704, 16
        %v5721 = vshll.u32 %v5704, 16
        %v5723 = vrot.slane %v5721, 1
        %v5724 = vor.u32 %v5719, %v5723
        %v5726 = vshrl.u32 %v5705, 16
        %v5728 = vshll.u32 %v5705, 16
        %v5730 = vrot.slane %v5728, 1
        %v5731 = vor.u32 %v5726, %v5730
        %v5733 = vshrl.u32 %v5706, 16
        %v5735 = vshll.u32 %v5706, 16
        %v5737 = vrot.slane %v5735, 1
        %v5738 = vor.u32 %v5733, %v5737
        %v5740 = vshrl.u32 %v5707, 16
        %v5742 = vshll.u32 %v5707, 16
        %v5744 = vrot.slane %v5742, 1
        %v5745 = vor.u32 %v5740, %v5744
        %v5747 = vshrl.u32 %v5708, 16
        %v5749 = vshll.u32 %v5708, 16
        %v5751 = vrot.slane %v5749, 1
        %v5752 = vor.u32 %v5747, %v5751
        %v5754 = vshrl.u32 %v5709, 16
        %v5756 = vshll.u32 %v5709, 16
        %v5758 = vrot.slane %v5756, 1
        %v5759 = vor.u32 %v5754, %v5758
        %v5761 = vshrl.u32 %v5710, 16
        %v5763 = vshll.u32 %v5710, 16
        %v5765 = vrot.slane %v5763, 1
        %v5766 = vor.u32 %v5761, %v5765
        %5767 = vrot.lane.b32.xlu0 %v5717, 32
        %v5768 = vpop.permute.xlu0 %5767
        %5769 = vrot.lane.b32.xlu0 %v5724, 32
        %v5770 = vpop.permute.xlu0 %5769
        %5771 = vrot.lane.b32.xlu0 %v5731, 32
        %v5772 = vpop.permute.xlu0 %5771
        %5773 = vrot.lane.b32.xlu0 %v5738, 32
        %v5774 = vpop.permute.xlu0 %5773
        %5775 = vrot.lane.b32.xlu0 %v5745, 32
        %v5776 = vpop.permute.xlu0 %5775
        %5777 = vrot.lane.b32.xlu0 %v5752, 32
        %v5778 = vpop.permute.xlu0 %5777
        %5779 = vrot.lane.b32.xlu0 %v5759, 32
        %v5780 = vpop.permute.xlu0 %5779
        %5781 = vrot.lane.b32.xlu0 %v5766, 32
        %v5782 = vpop.permute.xlu0 %5781
        %v5791 = vunpack.c.l.b16 %v5614
        %v5792 = vunpack.c.l.b16 %v5615
        %v5793 = vunpack.c.l.b16 %v5616
        %v5794 = vunpack.c.l.b16 %v5617
        %v5795 = vunpack.c.l.b16 %v5618
        %v5796 = vunpack.c.l.b16 %v5619
        %v5797 = vunpack.c.l.b16 %v5620
        %v5798 = vunpack.c.l.b16 %v5621
        %v5799 = vpack.c.b16 %v5688, %v5791
        %v5800 = vpack.c.b16 %v5690, %v5792
        %v5801 = vpack.c.b16 %v5692, %v5793
        %v5802 = vpack.c.b16 %v5694, %v5794
        %v5803 = vpack.c.b16 %v5696, %v5795
        %v5804 = vpack.c.b16 %v5698, %v5796
        %v5805 = vpack.c.b16 %v5700, %v5797
        %v5806 = vpack.c.b16 %v5702, %v5798
        %v5807 = vrot.slane %v5799, 1
        %v5808 = vrot.slane %v5800, 1
        %v5809 = vrot.slane %v5801, 1
        %v5810 = vrot.slane %v5802, 1
        %v5811 = vrot.slane %v5803, 1
        %v5812 = vrot.slane %v5804, 1
        %v5813 = vrot.slane %v5805, 1
        %v5814 = vrot.slane %v5806, 1
        %5815 = vrot.lane.b32.xlu0 %v5807, 64
        %v5816 = vpop.permute.xlu0 %5815
        %5817 = vrot.lane.b32.xlu0 %v5808, 64
        %v5818 = vpop.permute.xlu0 %5817
        %5819 = vrot.lane.b32.xlu0 %v5809, 64
        %v5820 = vpop.permute.xlu0 %5819
        %5821 = vrot.lane.b32.xlu0 %v5810, 64
        %v5822 = vpop.permute.xlu0 %5821
        %5823 = vrot.lane.b32.xlu0 %v5811, 64
        %v5824 = vpop.permute.xlu0 %5823
        %5825 = vrot.lane.b32.xlu0 %v5812, 64
        %v5826 = vpop.permute.xlu0 %5825
        %5827 = vrot.lane.b32.xlu0 %v5813, 64
        %v5828 = vpop.permute.xlu0 %5827
        %5829 = vrot.lane.b32.xlu0 %v5814, 64
        %v5830 = vpop.permute.xlu0 %5829
        %v5839 = vunpack.c.l.b16 %v5622
        %v5840 = vunpack.c.l.b16 %v5623
        %v5841 = vunpack.c.l.b16 %v5624
        %v5842 = vunpack.c.l.b16 %v5625
        %v5843 = vunpack.c.l.b16 %v5626
        %v5844 = vunpack.c.l.b16 %v5627
        %v5845 = vunpack.c.l.b16 %v5628
        %v5846 = vunpack.c.l.b16 %v5629
        %v5847 = vpack.c.b16 %v5839, %v5839
        %v5848 = vpack.c.b16 %v5840, %v5840
        %v5849 = vpack.c.b16 %v5841, %v5841
        %v5850 = vpack.c.b16 %v5842, %v5842
        %v5851 = vpack.c.b16 %v5843, %v5843
        %v5852 = vpack.c.b16 %v5844, %v5844
        %v5853 = vpack.c.b16 %v5845, %v5845
        %v5854 = vpack.c.b16 %v5846, %v5846
        %5855 = vrot.lane.b32.xlu0 %v5847, 96
        %v5856 = vpop.permute.xlu0 %5855
        %5857 = vrot.lane.b32.xlu0 %v5848, 96
        %v5858 = vpop.permute.xlu0 %5857
        %5859 = vrot.lane.b32.xlu0 %v5849, 96
        %v5860 = vpop.permute.xlu0 %5859
        %5861 = vrot.lane.b32.xlu0 %v5850, 96
        %v5862 = vpop.permute.xlu0 %5861
        %5863 = vrot.lane.b32.xlu0 %v5851, 96
        %v5864 = vpop.permute.xlu0 %5863
        %5865 = vrot.lane.b32.xlu0 %v5852, 96
        %v5866 = vpop.permute.xlu0 %5865
        %5867 = vrot.lane.b32.xlu0 %v5853, 96
        %v5868 = vpop.permute.xlu0 %5867
        %5869 = vrot.lane.b32.xlu0 %v5854, 96
        %v5870 = vpop.permute.xlu0 %5869
        %v5879 = vunpack.c.l.b16 %v5630
        %v5880 = vunpack.c.l.b16 %v5631
        %v5881 = vunpack.c.l.b16 %v5632
        %v5882 = vunpack.c.l.b16 %v5633
        %v5883 = vunpack.c.l.b16 %v5634
        %v5884 = vunpack.c.l.b16 %v5635
        %v5885 = vunpack.c.l.b16 %v5636
        %v5886 = vunpack.c.l.b16 %v5637
        %v5887 = vpack.c.b16 %v5879, %v5839
        %v5888 = vpack.c.b16 %v5880, %v5840
        %v5889 = vpack.c.b16 %v5881, %v5841
        %v5890 = vpack.c.b16 %v5882, %v5842
        %v5891 = vpack.c.b16 %v5883, %v5843
        %v5892 = vpack.c.b16 %v5884, %v5844
        %v5893 = vpack.c.b16 %v5885, %v5845
        %v5894 = vpack.c.b16 %v5886, %v5846
        %v5896 = vshrl.u32 %v5887, 16
        %v5898 = vshll.u32 %v5887, 16
        %v5900 = vrot.slane %v5898, 1
        %v5901 = vor.u32 %v5896, %v5900
        %v5903 = vshrl.u32 %v5888, 16
        %v5905 = vshll.u32 %v5888, 16
        %v5907 = vrot.slane %v5905, 1
        %v5908 = vor.u32 %v5903, %v5907
        %v5910 = vshrl.u32 %v5889, 16
        %v5912 = vshll.u32 %v5889, 16
        %v5914 = vrot.slane %v5912, 1
        %v5915 = vor.u32 %v5910, %v5914
        %v5917 = vshrl.u32 %v5890, 16
        %v5919 = vshll.u32 %v5890, 16
        %v5921 = vrot.slane %v5919, 1
        %v5922 = vor.u32 %v5917, %v5921
        %v5924 = vshrl.u32 %v5891, 16
        %v5926 = vshll.u32 %v5891, 16
        %v5928 = vrot.slane %v5926, 1
        %v5929 = vor.u32 %v5924, %v5928
        %v5931 = vshrl.u32 %v5892, 16
        %v5933 = vshll.u32 %v5892, 16
        %v5935 = vrot.slane %v5933, 1
        %v5936 = vor.u32 %v5931, %v5935
        %v5938 = vshrl.u32 %v5893, 16
        %v5940 = vshll.u32 %v5893, 16
        %v5942 = vrot.slane %v5940, 1
        %v5943 = vor.u32 %v5938, %v5942
        %v5945 = vshrl.u32 %v5894, 16
        %v5947 = vshll.u32 %v5894, 16
        %v5949 = vrot.slane %v5947, 1
        %v5950 = vor.u32 %v5945, %v5949
        %v5959 = vunpack.c.l.b16 %v5638
        %v5960 = vunpack.c.l.b16 %v5639
        %v5961 = vunpack.c.l.b16 %v5640
        %v5962 = vunpack.c.l.b16 %v5641
        %v5963 = vunpack.c.l.b16 %v5642
        %v5964 = vunpack.c.l.b16 %v5643
        %v5965 = vunpack.c.l.b16 %v5644
        %v5966 = vunpack.c.l.b16 %v5645
        %v5967 = vpack.c.b16 %v5879, %v5959
        %v5968 = vpack.c.b16 %v5880, %v5960
        %v5969 = vpack.c.b16 %v5881, %v5961
        %v5970 = vpack.c.b16 %v5882, %v5962
        %v5971 = vpack.c.b16 %v5883, %v5963
        %v5972 = vpack.c.b16 %v5884, %v5964
        %v5973 = vpack.c.b16 %v5885, %v5965
        %v5974 = vpack.c.b16 %v5886, %v5966
        %v5975 = vrot.slane %v5967, 1
        %v5976 = vrot.slane %v5968, 1
        %v5977 = vrot.slane %v5969, 1
        %v5978 = vrot.slane %v5970, 1
        %v5979 = vrot.slane %v5971, 1
        %v5980 = vrot.slane %v5972, 1
        %v5981 = vrot.slane %v5973, 1
        %v5982 = vrot.slane %v5974, 1
        %5983 = vrot.lane.b32.xlu0 %v5975, 32
        %v5984 = vpop.permute.xlu0 %5983
        %5985 = vrot.lane.b32.xlu0 %v5976, 32
        %v5986 = vpop.permute.xlu0 %5985
        %5987 = vrot.lane.b32.xlu0 %v5977, 32
        %v5988 = vpop.permute.xlu0 %5987
        %5989 = vrot.lane.b32.xlu0 %v5978, 32
        %v5990 = vpop.permute.xlu0 %5989
        %5991 = vrot.lane.b32.xlu0 %v5979, 32
        %v5992 = vpop.permute.xlu0 %5991
        %5993 = vrot.lane.b32.xlu0 %v5980, 32
        %v5994 = vpop.permute.xlu0 %5993
        %5995 = vrot.lane.b32.xlu0 %v5981, 32
        %v5996 = vpop.permute.xlu0 %5995
        %5997 = vrot.lane.b32.xlu0 %v5982, 32
        %v5998 = vpop.permute.xlu0 %5997
        %v6007 = vunpack.c.l.b16 %v5647
        %v6008 = vunpack.c.l.b16 %v5648
        %v6009 = vunpack.c.l.b16 %v5649
        %v6010 = vunpack.c.l.b16 %v5650
        %v6011 = vunpack.c.l.b16 %v5651
        %v6012 = vunpack.c.l.b16 %v5652
        %v6013 = vunpack.c.l.b16 %v5653
        %v6014 = vunpack.c.l.b16 %v5654
        %v6015 = vpack.c.b16 %v6007, %v6007
        %v6016 = vpack.c.b16 %v6008, %v6008
        %v6017 = vpack.c.b16 %v6009, %v6009
        %v6018 = vpack.c.b16 %v6010, %v6010
        %v6019 = vpack.c.b16 %v6011, %v6011
        %v6020 = vpack.c.b16 %v6012, %v6012
        %v6021 = vpack.c.b16 %v6013, %v6013
        %v6022 = vpack.c.b16 %v6014, %v6014
        %6023 = vrot.lane.b32.xlu0 %v6015, 64
        %v6024 = vpop.permute.xlu0 %6023
        %6025 = vrot.lane.b32.xlu0 %v6016, 64
        %v6026 = vpop.permute.xlu0 %6025
        %6027 = vrot.lane.b32.xlu0 %v6017, 64
        %v6028 = vpop.permute.xlu0 %6027
        %6029 = vrot.lane.b32.xlu0 %v6018, 64
        %v6030 = vpop.permute.xlu0 %6029
        %6031 = vrot.lane.b32.xlu0 %v6019, 64
        %v6032 = vpop.permute.xlu0 %6031
        %6033 = vrot.lane.b32.xlu0 %v6020, 64
        %v6034 = vpop.permute.xlu0 %6033
        %6035 = vrot.lane.b32.xlu0 %v6021, 64
        %v6036 = vpop.permute.xlu0 %6035
        %6037 = vrot.lane.b32.xlu0 %v6022, 64
        %v6038 = vpop.permute.xlu0 %6037
        %v6047 = vunpack.c.l.b16 %v5655
        %v6048 = vunpack.c.l.b16 %v5656
        %v6049 = vunpack.c.l.b16 %v5657
        %v6050 = vunpack.c.l.b16 %v5658
        %v6051 = vunpack.c.l.b16 %v5659
        %v6052 = vunpack.c.l.b16 %v5660
        %v6053 = vunpack.c.l.b16 %v5661
        %v6054 = vunpack.c.l.b16 %v5662
        %v6055 = vpack.c.b16 %v6047, %v6007
        %v6056 = vpack.c.b16 %v6048, %v6008
        %v6057 = vpack.c.b16 %v6049, %v6009
        %v6058 = vpack.c.b16 %v6050, %v6010
        %v6059 = vpack.c.b16 %v6051, %v6011
        %v6060 = vpack.c.b16 %v6052, %v6012
        %v6061 = vpack.c.b16 %v6053, %v6013
        %v6062 = vpack.c.b16 %v6054, %v6014
        %v6064 = vshrl.u32 %v6055, 16
        %v6066 = vshll.u32 %v6055, 16
        %v6068 = vrot.slane %v6066, 1
        %v6069 = vor.u32 %v6064, %v6068
        %v6071 = vshrl.u32 %v6056, 16
        %v6073 = vshll.u32 %v6056, 16
        %v6075 = vrot.slane %v6073, 1
        %v6076 = vor.u32 %v6071, %v6075
        %v6078 = vshrl.u32 %v6057, 16
        %v6080 = vshll.u32 %v6057, 16
        %v6082 = vrot.slane %v6080, 1
        %v6083 = vor.u32 %v6078, %v6082
        %v6085 = vshrl.u32 %v6058, 16
        %v6087 = vshll.u32 %v6058, 16
        %v6089 = vrot.slane %v6087, 1
        %v6090 = vor.u32 %v6085, %v6089
        %v6092 = vshrl.u32 %v6059, 16
        %v6094 = vshll.u32 %v6059, 16
        %v6096 = vrot.slane %v6094, 1
        %v6097 = vor.u32 %v6092, %v6096
        %v6099 = vshrl.u32 %v6060, 16
        %v6101 = vshll.u32 %v6060, 16
        %v6103 = vrot.slane %v6101, 1
        %v6104 = vor.u32 %v6099, %v6103
        %v6106 = vshrl.u32 %v6061, 16
        %v6108 = vshll.u32 %v6061, 16
        %v6110 = vrot.slane %v6108, 1
        %v6111 = vor.u32 %v6106, %v6110
        %v6113 = vshrl.u32 %v6062, 16
        %v6115 = vshll.u32 %v6062, 16
        %v6117 = vrot.slane %v6115, 1
        %v6118 = vor.u32 %v6113, %v6117
        %6119 = vrot.lane.b32.xlu0 %v6069, 96
        %v6120 = vpop.permute.xlu0 %6119
        %6121 = vrot.lane.b32.xlu0 %v6076, 96
        %v6122 = vpop.permute.xlu0 %6121
        %6123 = vrot.lane.b32.xlu0 %v6083, 96
        %v6124 = vpop.permute.xlu0 %6123
        %6125 = vrot.lane.b32.xlu0 %v6090, 96
        %v6126 = vpop.permute.xlu0 %6125
        %6127 = vrot.lane.b32.xlu0 %v6097, 96
        %v6128 = vpop.permute.xlu0 %6127
        %6129 = vrot.lane.b32.xlu0 %v6104, 96
        %v6130 = vpop.permute.xlu0 %6129
        %6131 = vrot.lane.b32.xlu0 %v6111, 96
        %v6132 = vpop.permute.xlu0 %6131
        %6133 = vrot.lane.b32.xlu0 %v6118, 96
        %v6134 = vpop.permute.xlu0 %6133
        %v6143 = vunpack.c.l.b16 %v5663
        %v6144 = vunpack.c.l.b16 %v5664
        %v6145 = vunpack.c.l.b16 %v5665
        %v6146 = vunpack.c.l.b16 %v5666
        %v6147 = vunpack.c.l.b16 %v5667
        %v6148 = vunpack.c.l.b16 %v5668
        %v6149 = vunpack.c.l.b16 %v5669
        %v6150 = vunpack.c.l.b16 %v5670
        %v6151 = vpack.c.b16 %v6047, %v6143
        %v6152 = vpack.c.b16 %v6048, %v6144
        %v6153 = vpack.c.b16 %v6049, %v6145
        %v6154 = vpack.c.b16 %v6050, %v6146
        %v6155 = vpack.c.b16 %v6051, %v6147
        %v6156 = vpack.c.b16 %v6052, %v6148
        %v6157 = vpack.c.b16 %v6053, %v6149
        %v6158 = vpack.c.b16 %v6054, %v6150
        %v6159 = vrot.slane %v6151, 1
        %v6160 = vrot.slane %v6152, 1
        %v6161 = vrot.slane %v6153, 1
        %v6162 = vrot.slane %v6154, 1
        %v6163 = vrot.slane %v6155, 1
        %v6164 = vrot.slane %v6156, 1
        %v6165 = vrot.slane %v6157, 1
        %v6166 = vrot.slane %v6158, 1
        %v6169 = vsel %vm756, %v5598, %v5768
        %v6172 = vsel %vm756, %v5599, %v5770
        %v6175 = vsel %vm756, %v5600, %v5772
        %v6178 = vsel %vm756, %v5601, %v5774
        %v6181 = vsel %vm756, %v5602, %v5776
        %v6184 = vsel %vm756, %v5603, %v5778
        %v6187 = vsel %vm756, %v5604, %v5780
        %v6190 = vsel %vm756, %v5605, %v5782
        %v6192 = vsel %vm3434, %v6169, %v5816
        %v6194 = vsel %vm3434, %v6172, %v5818
        %v6196 = vsel %vm3434, %v6175, %v5820
        %v6198 = vsel %vm3434, %v6178, %v5822
        %v6200 = vsel %vm3434, %v6181, %v5824
        %v6202 = vsel %vm3434, %v6184, %v5826
        %v6204 = vsel %vm3434, %v6187, %v5828
        %v6206 = vsel %vm3434, %v6190, %v5830
        %v6208 = vsel %vm3500, %v6192, %v5856
        %v6210 = vsel %vm3500, %v6194, %v5858
        %v6212 = vsel %vm3500, %v6196, %v5860
        %v6214 = vsel %vm3500, %v6198, %v5862
        %v6216 = vsel %vm3500, %v6200, %v5864
        %v6218 = vsel %vm3500, %v6202, %v5866
        %v6220 = vsel %vm3500, %v6204, %v5868
        %v6222 = vsel %vm3500, %v6206, %v5870
        %v6225 = vsel %vm756, %v5901, %v5984
        %v6228 = vsel %vm756, %v5908, %v5986
        %v6231 = vsel %vm756, %v5915, %v5988
        %v6234 = vsel %vm756, %v5922, %v5990
        %v6237 = vsel %vm756, %v5929, %v5992
        %v6240 = vsel %vm756, %v5936, %v5994
        %v6243 = vsel %vm756, %v5943, %v5996
        %v6246 = vsel %vm756, %v5950, %v5998
        %v6248 = vsel %vm3434, %v6225, %v6024
        %v6250 = vsel %vm3434, %v6228, %v6026
        %v6252 = vsel %vm3434, %v6231, %v6028
        %v6254 = vsel %vm3434, %v6234, %v6030
        %v6256 = vsel %vm3434, %v6237, %v6032
        %v6258 = vsel %vm3434, %v6240, %v6034
        %v6260 = vsel %vm3434, %v6243, %v6036
        %v6262 = vsel %vm3434, %v6246, %v6038
        %v6264 = vsel %vm3500, %v6248, %v6120
        %v6266 = vsel %vm3500, %v6250, %v6122
        %v6268 = vsel %vm3500, %v6252, %v6124
        %v6270 = vsel %vm3500, %v6254, %v6126
        %v6272 = vsel %vm3500, %v6256, %v6128
        %v6274 = vsel %vm3500, %v6258, %v6130
        %v6276 = vsel %vm3500, %v6260, %v6132
        %v6278 = vsel %vm3500, %v6262, %v6134
        %v6295 = vunpack.c.l.b16 %v6208
        %v6296 = vunpack.c.l.b16 %v6264
        %v6297 = vunpack.c.l.b16 %v6159
        %v6298 = vunpack.c.l.b16 %v6210
        %v6299 = vunpack.c.l.b16 %v6266
        %v6300 = vunpack.c.l.b16 %v6160
        %v6301 = vunpack.c.l.b16 %v6212
        %v6302 = vunpack.c.l.b16 %v6268
        %v6303 = vunpack.c.l.b16 %v6161
        %v6304 = vunpack.c.l.b16 %v6214
        %v6305 = vunpack.c.l.b16 %v6270
        %v6306 = vunpack.c.l.b16 %v6162
        %v6307 = vunpack.c.l.b16 %v6216
        %v6308 = vunpack.c.l.b16 %v6272
        %v6309 = vunpack.c.l.b16 %v6163
        %v6310 = vunpack.c.l.b16 %v6218
        %v6311 = vunpack.c.l.b16 %v6274
        %v6312 = vunpack.c.l.b16 %v6164
        %v6313 = vunpack.c.l.b16 %v6220
        %v6314 = vunpack.c.l.b16 %v6276
        %v6315 = vunpack.c.l.b16 %v6165
        %v6316 = vunpack.c.l.b16 %v6222
        %v6317 = vunpack.c.l.b16 %v6278
        %v6318 = vunpack.c.l.b16 %v6166
        %v6319 = vld [vmem:[%s7] sm:$0xf]
        %v6320 = vld [vmem:[%s7 + $0x4] sm:$0xf]
        %v6321 = vld [vmem:[%s7 + $0x8] sm:$0xf]
        %v6322 = vld [vmem:[%s7 + $0xc] sm:$0xf]
        %v6323 = vld [vmem:[%s7 + $0x10] sm:$0xf]
        %v6324 = vld [vmem:[%s7 + $0x14] sm:$0xf]
        %v6325 = vld [vmem:[%s7 + $0x18] sm:$0xf]
        %v6326 = vld [vmem:[%s7 + $0x1c] sm:$0xf]
        %v6327 = vld [vmem:[%s7 + $0x20] sm:$0xf]
        %v6328 = vld [vmem:[%s7 + $0x24] sm:$0xf]
        %v6329 = vld [vmem:[%s7 + $0x28] sm:$0xf]
        %v6330 = vld [vmem:[%s7 + $0x2c] sm:$0xf]
        %v6331 = vld [vmem:[%s7 + $0x30] sm:$0xf]
        %v6332 = vld [vmem:[%s7 + $0x34] sm:$0xf]
        %v6333 = vld [vmem:[%s7 + $0x38] sm:$0xf]
        %v6334 = vld [vmem:[%s7 + $0x3c] sm:$0xf]
        %v6335 = vld [vmem:[%s7 + $0x40] sm:$0xf]
        %v6336 = vld [vmem:[%s7 + $0x44] sm:$0xf]
        %v6337 = vld [vmem:[%s7 + $0x48] sm:$0xf]
        %v6338 = vld [vmem:[%s7 + $0x4c] sm:$0xf]
        %v6339 = vld [vmem:[%s7 + $0x50] sm:$0xf]
        %v6340 = vld [vmem:[%s7 + $0x54] sm:$0xf]
        %v6341 = vld [vmem:[%s7 + $0x58] sm:$0xf]
        %v6342 = vld [vmem:[%s7 + $0x5c] sm:$0xf]
        %v6343 = vld [vmem:[%s7 + $0x60] sm:$0xf]
        %v6344 = vld [vmem:[%s7 + $0x64] sm:$0xf]
        %v6345 = vld [vmem:[%s7 + $0x68] sm:$0xf]
        %v6346 = vld [vmem:[%s7 + $0x6c] sm:$0xf]
        %v6347 = vld [vmem:[%s7 + $0x70] sm:$0xf]
        %v6348 = vld [vmem:[%s7 + $0x74] sm:$0xf]
        %v6349 = vld [vmem:[%s7 + $0x78] sm:$0xf]
        %v6350 = vld [vmem:[%s7 + $0x7c] sm:$0xf]
        %v6351 = vld [vmem:[%s7 + $0x80] sm:$0xf]
        %v6352 = vld [vmem:[%s7 + $0x84] sm:$0xf]
        %v6353 = vld [vmem:[%s7 + $0x88] sm:$0xf]
        %v6354 = vld [vmem:[%s7 + $0x8c] sm:$0xf]
        %v6355 = vpack.c.b16 %v6298, %v6295
        %v6356 = vpack.c.b16 %v6299, %v6296
        %v6357 = vpack.c.b16 %v6300, %v6297
        %v6358 = vpack.c.b16 %v6304, %v6301
        %v6359 = vpack.c.b16 %v6305, %v6302
        %v6360 = vpack.c.b16 %v6306, %v6303
        %v6361 = vpack.c.b16 %v6310, %v6307
        %v6362 = vpack.c.b16 %v6311, %v6308
        %v6363 = vpack.c.b16 %v6312, %v6309
        %v6364 = vpack.c.b16 %v6316, %v6313
        %v6365 = vpack.c.b16 %v6317, %v6314
        %v6366 = vpack.c.b16 %v6318, %v6315
        %v6411 = vunpack.c.l.b16 %v6319
        %v6412 = vunpack.c.l.b16 %v6320
        %v6413 = vunpack.c.l.b16 %v6321
        %v6414 = vunpack.c.l.b16 %v6322
        %v6415 = vunpack.c.l.b16 %v6323
        %v6416 = vunpack.c.l.b16 %v6324
        %v6417 = vunpack.c.l.b16 %v6325
        %v6418 = vunpack.c.l.b16 %v6326
        %v6419 = vunpack.c.l.b16 %v6327
        %v6420 = vunpack.c.l.b16 %v6328
        %v6421 = vunpack.c.l.b16 %v6329
        %v6422 = vunpack.c.l.b16 %v6330
        %v6423 = vunpack.c.l.b16 %v6331
        %v6424 = vunpack.c.l.b16 %v6332
        %v6425 = vunpack.c.l.b16 %v6333
        %v6426 = vunpack.c.l.b16 %v6334
        %v6427 = vunpack.c.l.b16 %v6335
        %v6428 = vunpack.c.l.b16 %v6336
        %v6429 = vunpack.c.l.b16 %v6337
        %v6430 = vunpack.c.l.b16 %v6338
        %v6431 = vunpack.c.l.b16 %v6339
        %v6432 = vunpack.c.l.b16 %v6340
        %v6433 = vunpack.c.l.b16 %v6341
        %v6434 = vunpack.c.l.b16 %v6342
        %v6435 = vunpack.c.l.b16 %v6343
        %v6436 = vunpack.c.l.b16 %v6344
        %v6437 = vunpack.c.l.b16 %v6345
        %v6438 = vunpack.c.l.b16 %v6346
        %v6439 = vunpack.c.l.b16 %v6347
        %v6440 = vunpack.c.l.b16 %v6348
        %v6441 = vunpack.c.l.b16 %v6349
        %v6442 = vunpack.c.l.b16 %v6350
        %v6443 = vunpack.c.l.b16 %v6351
        %v6444 = vunpack.c.l.b16 %v6352
        %v6445 = vunpack.c.l.b16 %v6353
        %v6446 = vunpack.c.l.b16 %v6354
        %v6447 = vpack.c.b16 %v6412, %v6411
        %v6448 = vpack.c.b16 %v6414, %v6413
        %v6449 = vpack.c.b16 %v6416, %v6415
        %v6450 = vpack.c.b16 %v6418, %v6417
        %v6451 = vpack.c.b16 %v6420, %v6419
        %v6452 = vpack.c.b16 %v6422, %v6421
        %v6453 = vpack.c.b16 %v6424, %v6423
        %v6454 = vpack.c.b16 %v6426, %v6425
        %v6455 = vpack.c.b16 %v6428, %v6427
        %v6456 = vpack.c.b16 %v6430, %v6429
        %v6457 = vpack.c.b16 %v6432, %v6431
        %v6458 = vpack.c.b16 %v6434, %v6433
        %v6459 = vpack.c.b16 %v6436, %v6435
        %v6460 = vpack.c.b16 %v6438, %v6437
        %v6461 = vpack.c.b16 %v6440, %v6439
        %v6462 = vpack.c.b16 %v6442, %v6441
        %v6463 = vpack.c.b16 %v6444, %v6443
        %v6464 = vpack.c.b16 %v6446, %v6445
        %v6484 = vsel %vm756, %v6357, 0
        %v6487 = vsel %vm756, %v6360, 0
        %v6490 = vsel %vm756, %v6363, 0
        %v6493 = vsel %vm756, %v6366, 0
        %6495 = vmatprep.subr.bf16.mxu0 0
        %6496 = vmatpush1.bf16.msra.mxu0 %v6447
        %6497 = vmatprep.subr.bf16.mxu0 0
        %6498 = vmatpush1.bf16.msra.mxu0 %v6448
        %6499 = vmatprep.subr.bf16.mxu0 0
        %6500 = vmatpush1.bf16.msra.mxu0 %v6449
        %6501 = vmatprep.subr.bf16.mxu0 0
        %6502 = vmatpush1.bf16.msra.mxu0 %v6450
        %6503 = vmatprep.subr.bf16.mxu0 0
        %6504 = vmatpush1.bf16.msra.mxu0 %v6451
        %6505 = vmatprep.subr.bf16.mxu0 0
        %6506 = vmatpush1.bf16.msra.mxu0 %v6452
        %6507 = vmatprep.subr.bf16.mxu0 0
        %6508 = vmatpush1.bf16.msra.mxu0 %v6453
        %6509 = vmatprep.subr.bf16.mxu0 0
        %6510 = vmatpush1.bf16.msra.mxu0 %v6454
        %6511 = vmatprep.subr.bf16.mxu0 0
        %6512 = vmatpush1.bf16.msra.mxu0 %v6455
        %6513 = vmatprep.subr.bf16.mxu0 0
        %6514 = vmatpush1.bf16.msra.mxu0 %v6456
        %6515 = vmatprep.subr.bf16.mxu0 0
        %6516 = vmatpush1.bf16.msra.mxu0 %v6457
        %6517 = vmatprep.subr.bf16.mxu0 0
        %6518 = vmatpush1.bf16.msra.mxu0 %v6458
        %6519 = vmatprep.subr.bf16.mxu0 0
        %6520 = vmatpush1.bf16.msra.mxu0 %v6459
        %6521 = vmatprep.subr.bf16.mxu0 0
        %6522 = vmatpush1.bf16.msra.mxu0 %v6460
        %6523 = vmatprep.subr.bf16.mxu0 0
        %6524 = vmatpush1.bf16.msra.mxu0 %v6461
        %6525 = vmatprep.subr.bf16.mxu0 0
        %6526 = vmatpush1.bf16.msra.mxu0 %v6462
        %6527 = vmatprep.mubr.bf16.mxu0 %v6356
        %6528 = vmatmul.mubr.bf16.gmra.mrb[0].mxu0 %v6355
        %v6529 = vpop.f32.mrb[0].mxu0
        %v6530 = vadd.f32 0.0, %v6529
        %v6531 = vpop.f32.mrb[0].mxu0
        %v6532 = vpop.f32.mrb[0].mxu0
        %v6533 = vadd.f32 0.0, %v6532
        %v6534 = vpop.f32.mrb[0].mxu0
        %6535 = vmatprep.mubr.bf16.mxu0 %v6359
        %6536 = vmatmul.mubr.bf16.gmra.mrb[0].mxu0 %v6358
        %v6537 = vpop.f32.mrb[0].mxu0
        %v6538 = vadd.f32 0.0, %v6537
        %v6539 = vpop.f32.mrb[0].mxu0
        %v6540 = vpop.f32.mrb[0].mxu0
        %v6541 = vadd.f32 0.0, %v6540
        %v6542 = vpop.f32.mrb[0].mxu0
        %6543 = vmatprep.mubr.bf16.mxu0 %v6362
        %6544 = vmatmul.mubr.bf16.gmra.mrb[0].mxu0 %v6361
        %v6545 = vpop.f32.mrb[0].mxu0
        %v6546 = vadd.f32 0.0, %v6545
        %v6547 = vpop.f32.mrb[0].mxu0
        %v6548 = vpop.f32.mrb[0].mxu0
        %v6549 = vadd.f32 0.0, %v6548
        %v6550 = vpop.f32.mrb[0].mxu0
        %6551 = vmatprep.mubr.bf16.mxu0 %v6365
        %6552 = vmatmul.mubr.bf16.gmra.mrb[0].mxu0 %v6364
        %v6553 = vpop.f32.mrb[0].mxu0
        %v6554 = vadd.f32 0.0, %v6553
        %v6555 = vpop.f32.mrb[0].mxu0
        %v6556 = vpop.f32.mrb[0].mxu0
        %v6557 = vadd.f32 0.0, %v6556
        %v6558 = vpop.f32.mrb[0].mxu0
        %6559 = vdwg.mxu0
        %6560 = vmatprep.subr.bf16.mxu0 0
        %6561 = vmatpush1.bf16.msra.mxu0 %v6463
        %6562 = vmatprep.subr.bf16.mxu0 0
        %6563 = vmatpush1.bf16.msra.mxu0 %v6464
        %6564 = vmatprep.subr.bf16.mxu0 0
        %6565 = vmatpush1.bf16.msra.mxu0 0
        %6566 = vmatprep.subr.bf16.mxu0 0
        %6567 = vmatpush1.bf16.msra.mxu0 0
        %6568 = vmatprep.subr.bf16.mxu0 0
        %6569 = vmatpush1.bf16.msra.mxu0 0
        %6570 = vmatprep.subr.bf16.mxu0 0
        %6571 = vmatpush1.bf16.msra.mxu0 0
        %6572 = vmatprep.subr.bf16.mxu0 0
        %6573 = vmatpush1.bf16.msra.mxu0 0
        %6574 = vmatprep.subr.bf16.mxu0 0
        %6575 = vmatpush1.bf16.msra.mxu0 0
        %6576 = vmatprep.subr.bf16.mxu0 0
        %6577 = vmatpush1.bf16.msra.mxu0 0
        %6578 = vmatprep.subr.bf16.mxu0 0
        %6579 = vmatpush1.bf16.msra.mxu0 0
        %6580 = vmatprep.subr.bf16.mxu0 0
        %6581 = vmatpush1.bf16.msra.mxu0 0
        %6582 = vmatprep.subr.bf16.mxu0 0
        %6583 = vmatpush1.bf16.msra.mxu0 0
        %6584 = vmatprep.subr.bf16.mxu0 0
        %6585 = vmatpush1.bf16.msra.mxu0 0
        %6586 = vmatprep.subr.bf16.mxu0 0
        %6587 = vmatpush1.bf16.msra.mxu0 0
        %6588 = vmatprep.subr.bf16.mxu0 0
        %6589 = vmatpush1.bf16.msra.mxu0 0
        %6590 = vmatprep.subr.bf16.mxu0 0
        %6591 = vmatpush1.bf16.msra.mxu0 0
        %6592 = vmatprep.mubr.bf16.mxu0 0
        %6593 = vmatmul.mubr.bf16.gmra.mrb[0].mxu0 %v6484
        %v6594 = vpop.f32.mrb[0].mxu0
        %v6595 = vadd.f32 %v6530, %v6594
        %v6596 = vpop.f32.mrb[0].mxu0
        %v6597 = vpop.f32.mrb[0].mxu0
        %v6598 = vadd.f32 %v6533, %v6597
        %v6599 = vpop.f32.mrb[0].mxu0
        %6600 = vmatprep.mubr.bf16.mxu0 0
        %6601 = vmatmul.mubr.bf16.gmra.mrb[0].mxu0 %v6487
        %v6602 = vpop.f32.mrb[0].mxu0
        %v6603 = vadd.f32 %v6538, %v6602
        %v6604 = vpop.f32.mrb[0].mxu0
        %v6605 = vpop.f32.mrb[0].mxu0
        %v6606 = vadd.f32 %v6541, %v6605
        %v6607 = vpop.f32.mrb[0].mxu0
        %6608 = vmatprep.mubr.bf16.mxu0 0
        %6609 = vmatmul.mubr.bf16.gmra.mrb[0].mxu0 %v6490
        %v6610 = vpop.f32.mrb[0].mxu0
        %v6611 = vadd.f32 %v6546, %v6610
        %v6612 = vpop.f32.mrb[0].mxu0
        %v6613 = vpop.f32.mrb[0].mxu0
        %v6614 = vadd.f32 %v6549, %v6613
        %v6615 = vpop.f32.mrb[0].mxu0
        %6616 = vmatprep.mubr.bf16.mxu0 0
        %6617 = vmatmul.mubr.bf16.gmra.mrb[0].mxu0 %v6493
        %v6618 = vpop.f32.mrb[0].mxu0
        %v6619 = vadd.f32 %v6554, %v6618
        %v6620 = vpop.f32.mrb[0].mxu0
        %v6621 = vpop.f32.mrb[0].mxu0
        %v6622 = vadd.f32 %v6557, %v6621
        %v6623 = vpop.f32.mrb[0].mxu0
        %6624 = vdwg.mxu0
        %v6625 = vld [vmem:[%s8] sm:$0x1]
        %v6627 = vlaneseq
        %v6628 = vshrl.u32 %v6627, 7
        %v6629 = vsub.s32 0, %v6628
        %v6630 = vrot.slane %v6625, %v6629
        %v6632 = vmul.f32 %v6595, %v6630
        %v6633 = vmul.f32 %v6598, %v6630
        %v6634 = vmul.f32 %v6603, %v6630
        %v6635 = vmul.f32 %v6606, %v6630
        %v6636 = vmul.f32 %v6611, %v6630
        %v6637 = vmul.f32 %v6614, %v6630
        %v6638 = vmul.f32 %v6619, %v6630
        %v6639 = vmul.f32 %v6622, %v6630
        %v6640 = vld [vmem:[%s9] sm:$0x1]
        %v6642 = vlaneseq
        %v6643 = vshrl.u32 %v6642, 7
        %v6644 = vsub.s32 0, %v6643
        %v6645 = vrot.slane %v6640, %v6644
        %v6647 = vadd.f32 %v6632, %v6645
        %v6648 = vadd.f32 %v6633, %v6645
        %v6649 = vadd.f32 %v6634, %v6645
        %v6650 = vadd.f32 %v6635, %v6645
        %v6651 = vadd.f32 %v6636, %v6645
        %v6652 = vadd.f32 %v6637, %v6645
        %v6653 = vadd.f32 %v6638, %v6645
        %v6654 = vadd.f32 %v6639, %v6645
        %v6655 = vmax.f32 %v6647, 0.0
        %v6656 = vmax.f32 %v6648, 0.0
        %v6657 = vmax.f32 %v6649, 0.0
        %v6658 = vmax.f32 %v6650, 0.0
        %v6659 = vmax.f32 %v6651, 0.0
        %v6660 = vmax.f32 %v6652, 0.0
        %v6661 = vmax.f32 %v6653, 0.0
        %v6662 = vmax.f32 %v6654, 0.0
        %v6663 = vpack.c.bf16 %v6655, %v6655
        %v6664 = vpack.c.bf16 %v6656, %v6656
        %v6665 = vpack.c.bf16 %v6657, %v6657
        %v6666 = vpack.c.bf16 %v6658, %v6658
        %v6667 = vpack.c.bf16 %v6659, %v6659
        %v6668 = vpack.c.bf16 %v6660, %v6660
        %v6669 = vpack.c.bf16 %v6661, %v6661
        %v6670 = vpack.c.bf16 %v6662, %v6662
        %vm6671 = vcmask 519168
        %6672 = vst.msk [vmem:[#allocation4] sm:$0xf] %vm6671, 0
        %vm6673 = vcmask 516096
        %6674 = vst.msk [vmem:[#allocation4 + $0x4] sm:$0x1] %vm6673, 0
        %6675 = vst.msk [vmem:[#allocation4 + $0x8] sm:$0xf] %vm6671, 0
        %6676 = vst.msk [vmem:[#allocation4 + $0xc] sm:$0x1] %vm6673, 0
        %6677 = vst.msk [vmem:[#allocation4 + $0x10] sm:$0xf] %vm6671, 0
        %6678 = vst.msk [vmem:[#allocation4 + $0x14] sm:$0x1] %vm6673, 0
        %6679 = vst.msk [vmem:[#allocation4 + $0x18] sm:$0xf] %vm6671, 0
        %6680 = vst.msk [vmem:[#allocation4 + $0x1c] sm:$0x1] %vm6673, 0
        %6681 = vst.msk [vmem:[#allocation4 + $0x20] sm:$0xf] %vm6671, 0
        %6682 = vst.msk [vmem:[#allocation4 + $0x24] sm:$0x1] %vm6673, 0
        %6683 = vst.msk [vmem:[#allocation4 + $0x28] sm:$0xf] %vm6671, 0
        %6684 = vst.msk [vmem:[#allocation4 + $0x2c] sm:$0x1] %vm6673, 0
        %6685 = vst.msk [vmem:[#allocation4 + $0x30] sm:$0xf] %vm6671, 0
        %6686 = vst.msk [vmem:[#allocation4 + $0x34] sm:$0x1] %vm6673, 0
        %6687 = vst.msk [vmem:[#allocation4 + $0x38] sm:$0xf] %vm6671, 0
        %6688 = vst.msk [vmem:[#allocation4 + $0x3c] sm:$0x1] %vm6673, 0
        %6689 = vst.msk [vmem:[#allocation4 + $0x40] sm:$0xf] %vm6671, 0
        %6690 = vst.msk [vmem:[#allocation4 + $0x44] sm:$0x1] %vm6673, 0
        %6691 = vst.msk [vmem:[#allocation4 + $0x48] sm:$0xf] %vm6671, 0
        %6692 = vst.msk [vmem:[#allocation4 + $0x4c] sm:$0x1] %vm6673, 0
        %v6701 = vunpack.c.l.b16 %v6663
        %v6702 = vunpack.c.l.b16 %v6664
        %v6703 = vunpack.c.l.b16 %v6665
        %v6704 = vunpack.c.l.b16 %v6666
        %v6705 = vunpack.c.l.b16 %v6667
        %v6706 = vunpack.c.l.b16 %v6668
        %v6707 = vunpack.c.l.b16 %v6669
        %v6708 = vunpack.c.l.b16 %v6670
        %v6709 = vpack.c.b16 %v6701, %v6701
        %v6710 = vpack.c.b16 %v6702, %v6702
        %v6711 = vpack.c.b16 %v6703, %v6703
        %v6712 = vpack.c.b16 %v6704, %v6704
        %v6713 = vpack.c.b16 %v6705, %v6705
        %v6714 = vpack.c.b16 %v6706, %v6706
        %v6715 = vpack.c.b16 %v6707, %v6707
        %v6716 = vpack.c.b16 %v6708, %v6708
        %v6718 = vshrl.u32 %v6709, 16
        %v6720 = vrot.slane %v6718, 7
        %v6721 = vshll.u32 %v6709, 16
        %v6723 = vor.u32 %v6720, %v6721
        %v6724 = vrot.slane %v6720, 4
        %v6726 = vshrl.u32 %v6710, 16
        %v6728 = vrot.slane %v6726, 7
        %v6729 = vshll.u32 %v6710, 16
        %v6731 = vor.u32 %v6728, %v6729
        %v6732 = vrot.slane %v6728, 4
        %v6734 = vshrl.u32 %v6711, 16
        %v6736 = vrot.slane %v6734, 7
        %v6737 = vshll.u32 %v6711, 16
        %v6739 = vor.u32 %v6736, %v6737
        %v6740 = vrot.slane %v6736, 4
        %v6742 = vshrl.u32 %v6712, 16
        %v6744 = vrot.slane %v6742, 7
        %v6745 = vshll.u32 %v6712, 16
        %v6747 = vor.u32 %v6744, %v6745
        %v6748 = vrot.slane %v6744, 4
        %v6750 = vshrl.u32 %v6713, 16
        %v6752 = vrot.slane %v6750, 7
        %v6753 = vshll.u32 %v6713, 16
        %v6755 = vor.u32 %v6752, %v6753
        %v6756 = vrot.slane %v6752, 4
        %v6758 = vshrl.u32 %v6714, 16
        %v6760 = vrot.slane %v6758, 7
        %v6761 = vshll.u32 %v6714, 16
        %v6763 = vor.u32 %v6760, %v6761
        %v6764 = vrot.slane %v6760, 4
        %v6766 = vshrl.u32 %v6715, 16
        %v6768 = vrot.slane %v6766, 7
        %v6769 = vshll.u32 %v6715, 16
        %v6771 = vor.u32 %v6768, %v6769
        %v6772 = vrot.slane %v6768, 4
        %v6774 = vshrl.u32 %v6716, 16
        %v6776 = vrot.slane %v6774, 7
        %v6777 = vshll.u32 %v6716, 16
        %v6779 = vor.u32 %v6776, %v6777
        %v6780 = vrot.slane %v6776, 4
        %s6797 = scalar_lea.vmem [#allocation4], 8
        %vm6798 = vcmask 519168
        %vm6799 = vmand %vm6798, %vm1553
        %v6800 = vld [vmem:[%s6797] sm:$0xf]
        %v6801 = vsel %vm6799, %v6723, %v6800
        %6802 = vst [vmem:[%s6797] sm:$0xf] %v6801
        %vm6803 = vcmask 516096
        %vm6804 = vmand %vm6803, %vm1228
        %v6805 = vld [vmem:[%s6797 + $0x4] sm:$0x1]
        %v6806 = vsel %vm6804, %v6724, %v6805
        %6807 = vst [vmem:[%s6797 + $0x4] sm:$0x1] %v6806
        %v6808 = vld [vmem:[%s6797 + $0x8] sm:$0xf]
        %v6809 = vsel %vm6799, %v6731, %v6808
        %6810 = vst [vmem:[%s6797 + $0x8] sm:$0xf] %v6809
        %v6811 = vld [vmem:[%s6797 + $0xc] sm:$0x1]
        %v6812 = vsel %vm6804, %v6732, %v6811
        %6813 = vst [vmem:[%s6797 + $0xc] sm:$0x1] %v6812
        %v6814 = vld [vmem:[%s6797 + $0x10] sm:$0xf]
        %v6815 = vsel %vm6799, %v6739, %v6814
        %6816 = vst [vmem:[%s6797 + $0x10] sm:$0xf] %v6815
        %v6817 = vld [vmem:[%s6797 + $0x14] sm:$0x1]
        %v6818 = vsel %vm6804, %v6740, %v6817
        %6819 = vst [vmem:[%s6797 + $0x14] sm:$0x1] %v6818
        %v6820 = vld [vmem:[%s6797 + $0x18] sm:$0xf]
        %v6821 = vsel %vm6799, %v6747, %v6820
        %6822 = vst [vmem:[%s6797 + $0x18] sm:$0xf] %v6821
        %v6823 = vld [vmem:[%s6797 + $0x1c] sm:$0x1]
        %v6824 = vsel %vm6804, %v6748, %v6823
        %6825 = vst [vmem:[%s6797 + $0x1c] sm:$0x1] %v6824
        %v6826 = vld [vmem:[%s6797 + $0x20] sm:$0xf]
        %v6827 = vsel %vm6799, %v6755, %v6826
        %6828 = vst [vmem:[%s6797 + $0x20] sm:$0xf] %v6827
        %v6829 = vld [vmem:[%s6797 + $0x24] sm:$0x1]
        %v6830 = vsel %vm6804, %v6756, %v6829
        %6831 = vst [vmem:[%s6797 + $0x24] sm:$0x1] %v6830
        %v6832 = vld [vmem:[%s6797 + $0x28] sm:$0xf]
        %v6833 = vsel %vm6799, %v6763, %v6832
        %6834 = vst [vmem:[%s6797 + $0x28] sm:$0xf] %v6833
        %v6835 = vld [vmem:[%s6797 + $0x2c] sm:$0x1]
        %v6836 = vsel %vm6804, %v6764, %v6835
        %6837 = vst [vmem:[%s6797 + $0x2c] sm:$0x1] %v6836
        %v6838 = vld [vmem:[%s6797 + $0x30] sm:$0xf]
        %v6839 = vsel %vm6799, %v6771, %v6838
        %6840 = vst [vmem:[%s6797 + $0x30] sm:$0xf] %v6839
        %v6841 = vld [vmem:[%s6797 + $0x34] sm:$0x1]
        %v6842 = vsel %vm6804, %v6772, %v6841
        %6843 = vst [vmem:[%s6797 + $0x34] sm:$0x1] %v6842
        %v6844 = vld [vmem:[%s6797 + $0x38] sm:$0xf]
        %v6845 = vsel %vm6799, %v6779, %v6844
        %6846 = vst [vmem:[%s6797 + $0x38] sm:$0xf] %v6845
        %v6847 = vld [vmem:[%s6797 + $0x3c] sm:$0x1]
        %v6848 = vsel %vm6804, %v6780, %v6847
        %6849 = vst [vmem:[%s6797 + $0x3c] sm:$0x1] %v6848
        %v6850 = vld [vmem:[#allocation4] sm:$0xf]
        %v6851 = vld [vmem:[#allocation4 + $0x8] sm:$0xf]
        %v6852 = vld [vmem:[#allocation4 + $0x10] sm:$0xf]
        %v6853 = vld [vmem:[#allocation4 + $0x18] sm:$0xf]
        %v6854 = vld [vmem:[#allocation4 + $0x20] sm:$0xf]
        %v6855 = vld [vmem:[#allocation4 + $0x28] sm:$0xf]
        %v6856 = vld [vmem:[#allocation4 + $0x30] sm:$0xf]
        %v6857 = vld [vmem:[#allocation4 + $0x38] sm:$0xf]
        %v6858 = vld [vmem:[%s10] sm:$0xf]
        %v6859 = vld [vmem:[%s10 + $0x4] sm:$0xf]
        %v6860 = vld [vmem:[%s10 + $0x8] sm:$0xf]
        %v6861 = vld [vmem:[%s10 + $0xc] sm:$0xf]
        %v6862 = vld [vmem:[%s10 + $0x10] sm:$0xf]
        %v6863 = vld [vmem:[%s10 + $0x14] sm:$0xf]
        %v6864 = vld [vmem:[%s10 + $0x18] sm:$0xf]
        %v6865 = vld [vmem:[%s10 + $0x1c] sm:$0xf]
        %v6866 = vld [vmem:[#allocation4 + $0x4] sm:$0x1]
        %v6867 = vld [vmem:[#allocation4 + $0xc] sm:$0x1]
        %v6868 = vld [vmem:[#allocation4 + $0x14] sm:$0x1]
        %v6869 = vld [vmem:[#allocation4 + $0x1c] sm:$0x1]
        %v6870 = vld [vmem:[#allocation4 + $0x24] sm:$0x1]
        %v6871 = vld [vmem:[#allocation4 + $0x2c] sm:$0x1]
        %v6872 = vld [vmem:[#allocation4 + $0x34] sm:$0x1]
        %v6873 = vld [vmem:[#allocation4 + $0x3c] sm:$0x1]
        %vm6874 = vsmask.f32 3328
        %vm6875 = vsmask.f32 7440
        %vm6876 = vmor %vm6874, %vm6875
        %v6878 = vshrl.u32 %v6850, 16
        %v6880 = vrot.slane %v6878, 4
        %v6881 = vshll.u32 %v6850, 16
        %v6883 = vrot.slane %v6881, 5
        %v6884 = vor.u32 %v6880, %v6883
        %v6885 = vrot.slane %v6884, 4
        %v6887 = vshll.u32 %v6866, 16
        %v6889 = vrot.slane %v6887, 5
        %v6890 = vsel %vm6876, %v6885, %v6889
        %v6892 = vshrl.u32 %v6851, 16
        %v6894 = vrot.slane %v6892, 4
        %v6895 = vshll.u32 %v6851, 16
        %v6897 = vrot.slane %v6895, 5
        %v6898 = vor.u32 %v6894, %v6897
        %v6899 = vrot.slane %v6898, 4
        %v6901 = vshll.u32 %v6867, 16
        %v6903 = vrot.slane %v6901, 5
        %v6904 = vsel %vm6876, %v6899, %v6903
        %v6906 = vshrl.u32 %v6852, 16
        %v6908 = vrot.slane %v6906, 4
        %v6909 = vshll.u32 %v6852, 16
        %v6911 = vrot.slane %v6909, 5
        %v6912 = vor.u32 %v6908, %v6911
        %v6913 = vrot.slane %v6912, 4
        %v6915 = vshll.u32 %v6868, 16
        %v6917 = vrot.slane %v6915, 5
        %v6918 = vsel %vm6876, %v6913, %v6917
        %v6920 = vshrl.u32 %v6853, 16
        %v6922 = vrot.slane %v6920, 4
        %v6923 = vshll.u32 %v6853, 16
        %v6925 = vrot.slane %v6923, 5
        %v6926 = vor.u32 %v6922, %v6925
        %v6927 = vrot.slane %v6926, 4
        %v6929 = vshll.u32 %v6869, 16
        %v6931 = vrot.slane %v6929, 5
        %v6932 = vsel %vm6876, %v6927, %v6931
        %v6934 = vshrl.u32 %v6854, 16
        %v6936 = vrot.slane %v6934, 4
        %v6937 = vshll.u32 %v6854, 16
        %v6939 = vrot.slane %v6937, 5
        %v6940 = vor.u32 %v6936, %v6939
        %v6941 = vrot.slane %v6940, 4
        %v6943 = vshll.u32 %v6870, 16
        %v6945 = vrot.slane %v6943, 5
        %v6946 = vsel %vm6876, %v6941, %v6945
        %v6948 = vshrl.u32 %v6855, 16
        %v6950 = vrot.slane %v6948, 4
        %v6951 = vshll.u32 %v6855, 16
        %v6953 = vrot.slane %v6951, 5
        %v6954 = vor.u32 %v6950, %v6953
        %v6955 = vrot.slane %v6954, 4
        %v6957 = vshll.u32 %v6871, 16
        %v6959 = vrot.slane %v6957, 5
        %v6960 = vsel %vm6876, %v6955, %v6959
        %v6962 = vshrl.u32 %v6856, 16
        %v6964 = vrot.slane %v6962, 4
        %v6965 = vshll.u32 %v6856, 16
        %v6967 = vrot.slane %v6965, 5
        %v6968 = vor.u32 %v6964, %v6967
        %v6969 = vrot.slane %v6968, 4
        %v6971 = vshll.u32 %v6872, 16
        %v6973 = vrot.slane %v6971, 5
        %v6974 = vsel %vm6876, %v6969, %v6973
        %v6976 = vshrl.u32 %v6857, 16
        %v6978 = vrot.slane %v6976, 4
        %v6979 = vshll.u32 %v6857, 16
        %v6981 = vrot.slane %v6979, 5
        %v6982 = vor.u32 %v6978, %v6981
        %v6983 = vrot.slane %v6982, 4
        %v6985 = vshll.u32 %v6873, 16
        %v6987 = vrot.slane %v6985, 5
        %v6988 = vsel %vm6876, %v6983, %v6987
        %v6989 = vld [vmem:[%s10 + $0x20] sm:$0xf]
        %v6990 = vld [vmem:[%s10 + $0x24] sm:$0xf]
        %v6991 = vld [vmem:[%s10 + $0x28] sm:$0xf]
        %v6992 = vld [vmem:[%s10 + $0x2c] sm:$0xf]
        %v6993 = vld [vmem:[%s10 + $0x30] sm:$0xf]
        %v6994 = vld [vmem:[%s10 + $0x34] sm:$0xf]
        %v6995 = vld [vmem:[%s10 + $0x38] sm:$0xf]
        %v6996 = vld [vmem:[%s10 + $0x3c] sm:$0xf]
        %v6997 = vunpack.c.l.b16 %v6890
        %v6998 = vunpack.c.l.b16 %v6904
        %v6999 = vunpack.c.l.b16 %v6918
        %v7000 = vunpack.c.l.b16 %v6932
        %v7001 = vunpack.c.l.b16 %v6946
        %v7002 = vunpack.c.l.b16 %v6960
        %v7003 = vunpack.c.l.b16 %v6974
        %v7004 = vunpack.c.l.b16 %v6988
        %v7005 = vpack.c.b16 %v6998, %v6997
        %v7006 = vpack.c.b16 %v7000, %v6999
        %v7007 = vpack.c.b16 %v7002, %v7001
        %v7008 = vpack.c.b16 %v7004, %v7003
        %v7017 = vunpack.c.l.b16 %v6989
        %v7018 = vunpack.c.l.b16 %v6990
        %v7019 = vunpack.c.l.b16 %v6991
        %v7020 = vunpack.c.l.b16 %v6992
        %v7021 = vunpack.c.l.b16 %v6993
        %v7022 = vunpack.c.l.b16 %v6994
        %v7023 = vunpack.c.l.b16 %v6995
        %v7024 = vunpack.c.l.b16 %v6996
        %v7025 = vpack.c.b16 %v7018, %v7017
        %v7026 = vpack.c.b16 %v7020, %v7019
        %v7027 = vpack.c.b16 %v7022, %v7021
        %v7028 = vpack.c.b16 %v7024, %v7023
        %v7034 = vsel %vm3434, %v7005, 0
        %v7037 = vsel %vm3434, %v7006, 0
        %v7040 = vsel %vm3434, %v7007, 0
        %v7043 = vsel %vm3434, %v7008, 0
        %7045 = vmatprep.subr.bf16.mxu0 0
        %7046 = vmatpush1.bf16.msra.mxu0 %v7025
        %7047 = vmatprep.subr.bf16.mxu0 0
        %7048 = vmatpush1.bf16.msra.mxu0 %v7026
        %7049 = vmatprep.subr.bf16.mxu0 0
        %7050 = vmatpush1.bf16.msra.mxu0 %v7027
        %7051 = vmatprep.subr.bf16.mxu0 0
        %7052 = vmatpush1.bf16.msra.mxu0 %v7028
        %7053 = vmatprep.subr.bf16.mxu0 0
        %7054 = vmatpush1.bf16.msra.mxu0 0
        %7055 = vmatprep.subr.bf16.mxu0 0
        %7056 = vmatpush1.bf16.msra.mxu0 0
        %7057 = vmatprep.subr.bf16.mxu0 0
        %7058 = vmatpush1.bf16.msra.mxu0 0
        %7059 = vmatprep.subr.bf16.mxu0 0
        %7060 = vmatpush1.bf16.msra.mxu0 0
        %7061 = vmatprep.subr.bf16.mxu0 0
        %7062 = vmatpush1.bf16.msra.mxu0 0
        %7063 = vmatprep.subr.bf16.mxu0 0
        %7064 = vmatpush1.bf16.msra.mxu0 0
        %7065 = vmatprep.subr.bf16.mxu0 0
        %7066 = vmatpush1.bf16.msra.mxu0 0
        %7067 = vmatprep.subr.bf16.mxu0 0
        %7068 = vmatpush1.bf16.msra.mxu0 0
        %7069 = vmatprep.subr.bf16.mxu0 0
        %7070 = vmatpush1.bf16.msra.mxu0 0
        %7071 = vmatprep.subr.bf16.mxu0 0
        %7072 = vmatpush1.bf16.msra.mxu0 0
        %7073 = vmatprep.subr.bf16.mxu0 0
        %7074 = vmatpush1.bf16.msra.mxu0 0
        %7075 = vmatprep.subr.bf16.mxu0 0
        %7076 = vmatpush1.bf16.msra.mxu0 0
        %7077 = vmatprep.mubr.bf16.mxu0 0
        %7078 = vmatmul.mubr.bf16.gmra.mrb[0].mxu0 %v7034
        %v7079 = vpop.f32.mrb[0].mxu0
        %v7080 = vadd.f32 0.0, %v7079
        %v7081 = vpop.f32.mrb[0].mxu0
        %v7082 = vpop.f32.mrb[0].mxu0
        %v7083 = vadd.f32 0.0, %v7082
        %v7084 = vpop.f32.mrb[0].mxu0
        %7085 = vmatprep.mubr.bf16.mxu0 0
        %7086 = vmatmul.mubr.bf16.gmra.mrb[0].mxu0 %v7037
        %v7087 = vpop.f32.mrb[0].mxu0
        %v7088 = vadd.f32 0.0, %v7087
        %v7089 = vpop.f32.mrb[0].mxu0
        %v7090 = vpop.f32.mrb[0].mxu0
        %v7091 = vadd.f32 0.0, %v7090
        %v7092 = vpop.f32.mrb[0].mxu0
        %7093 = vmatprep.mubr.bf16.mxu0 0
        %7094 = vmatmul.mubr.bf16.gmra.mrb[0].mxu0 %v7040
        %v7095 = vpop.f32.mrb[0].mxu0
        %v7096 = vadd.f32 0.0, %v7095
        %v7097 = vpop.f32.mrb[0].mxu0
        %v7098 = vpop.f32.mrb[0].mxu0
        %v7099 = vadd.f32 0.0, %v7098
        %v7100 = vpop.f32.mrb[0].mxu0
        %7101 = vmatprep.mubr.bf16.mxu0 0
        %7102 = vmatmul.mubr.bf16.gmra.mrb[0].mxu0 %v7043
        %v7103 = vpop.f32.mrb[0].mxu0
        %v7104 = vadd.f32 0.0, %v7103
        %v7105 = vpop.f32.mrb[0].mxu0
        %v7106 = vpop.f32.mrb[0].mxu0
        %v7107 = vadd.f32 0.0, %v7106
        %v7108 = vpop.f32.mrb[0].mxu0
        %7109 = vdwg.mxu0
        %v7118 = vunpack.c.l.b16 %v6850
        %v7119 = vunpack.c.l.b16 %v6851
        %v7120 = vunpack.c.l.b16 %v6852
        %v7121 = vunpack.c.l.b16 %v6853
        %v7122 = vunpack.c.l.b16 %v6854
        %v7123 = vunpack.c.l.b16 %v6855
        %v7124 = vunpack.c.l.b16 %v6856
        %v7125 = vunpack.c.l.b16 %v6857
        %v7126 = vpack.c.b16 %v7119, %v7118
        %v7127 = vpack.c.b16 %v7121, %v7120
        %v7128 = vpack.c.b16 %v7123, %v7122
        %v7129 = vpack.c.b16 %v7125, %v7124
        %v7138 = vunpack.c.l.b16 %v6858
        %v7139 = vunpack.c.l.b16 %v6859
        %v7140 = vunpack.c.l.b16 %v6860
        %v7141 = vunpack.c.l.b16 %v6861
        %v7142 = vunpack.c.l.b16 %v6862
        %v7143 = vunpack.c.l.b16 %v6863
        %v7144 = vunpack.c.l.b16 %v6864
        %v7145 = vunpack.c.l.b16 %v6865
        %v7146 = vpack.c.b16 %v7139, %v7138
        %v7147 = vpack.c.b16 %v7141, %v7140
        %v7148 = vpack.c.b16 %v7143, %v7142
        %v7149 = vpack.c.b16 %v7145, %v7144
        %v7155 = vsel %vm3434, %v7126, 0
        %v7158 = vsel %vm3434, %v7127, 0
        %v7161 = vsel %vm3434, %v7128, 0
        %v7164 = vsel %vm3434, %v7129, 0
        %7166 = vmatprep.subr.bf16.mxu0 0
        %7167 = vmatpush1.bf16.msra.mxu0 %v7146
        %7168 = vmatprep.subr.bf16.mxu0 0
        %7169 = vmatpush1.bf16.msra.mxu0 %v7147
        %7170 = vmatprep.subr.bf16.mxu0 0
        %7171 = vmatpush1.bf16.msra.mxu0 %v7148
        %7172 = vmatprep.subr.bf16.mxu0 0
        %7173 = vmatpush1.bf16.msra.mxu0 %v7149
        %7174 = vmatprep.subr.bf16.mxu0 0
        %7175 = vmatpush1.bf16.msra.mxu0 0
        %7176 = vmatprep.subr.bf16.mxu0 0
        %7177 = vmatpush1.bf16.msra.mxu0 0
        %7178 = vmatprep.subr.bf16.mxu0 0
        %7179 = vmatpush1.bf16.msra.mxu0 0
        %7180 = vmatprep.subr.bf16.mxu0 0
        %7181 = vmatpush1.bf16.msra.mxu0 0
        %7182 = vmatprep.subr.bf16.mxu0 0
        %7183 = vmatpush1.bf16.msra.mxu0 0
        %7184 = vmatprep.subr.bf16.mxu0 0
        %7185 = vmatpush1.bf16.msra.mxu0 0
        %7186 = vmatprep.subr.bf16.mxu0 0
        %7187 = vmatpush1.bf16.msra.mxu0 0
        %7188 = vmatprep.subr.bf16.mxu0 0
        %7189 = vmatpush1.bf16.msra.mxu0 0
        %7190 = vmatprep.subr.bf16.mxu0 0
        %7191 = vmatpush1.bf16.msra.mxu0 0
        %7192 = vmatprep.subr.bf16.mxu0 0
        %7193 = vmatpush1.bf16.msra.mxu0 0
        %7194 = vmatprep.subr.bf16.mxu0 0
        %7195 = vmatpush1.bf16.msra.mxu0 0
        %7196 = vmatprep.subr.bf16.mxu0 0
        %7197 = vmatpush1.bf16.msra.mxu0 0
        %7198 = vmatprep.mubr.bf16.mxu0 0
        %7199 = vmatmul.mubr.bf16.gmra.mrb[0].mxu0 %v7155
        %v7200 = vpop.f32.mrb[0].mxu0
        %v7201 = vadd.f32 %v7080, %v7200
        %v7202 = vpop.f32.mrb[0].mxu0
        %v7203 = vpop.f32.mrb[0].mxu0
        %v7204 = vadd.f32 %v7083, %v7203
        %v7205 = vpop.f32.mrb[0].mxu0
        %7206 = vmatprep.mubr.bf16.mxu0 0
        %7207 = vmatmul.mubr.bf16.gmra.mrb[0].mxu0 %v7158
        %v7208 = vpop.f32.mrb[0].mxu0
        %v7209 = vadd.f32 %v7088, %v7208
        %v7210 = vpop.f32.mrb[0].mxu0
        %v7211 = vpop.f32.mrb[0].mxu0
        %v7212 = vadd.f32 %v7091, %v7211
        %v7213 = vpop.f32.mrb[0].mxu0
        %7214 = vmatprep.mubr.bf16.mxu0 0
        %7215 = vmatmul.mubr.bf16.gmra.mrb[0].mxu0 %v7161
        %v7216 = vpop.f32.mrb[0].mxu0
        %v7217 = vadd.f32 %v7096, %v7216
        %v7218 = vpop.f32.mrb[0].mxu0
        %v7219 = vpop.f32.mrb[0].mxu0
        %v7220 = vadd.f32 %v7099, %v7219
        %v7221 = vpop.f32.mrb[0].mxu0
        %7222 = vmatprep.mubr.bf16.mxu0 0
        %7223 = vmatmul.mubr.bf16.gmra.mrb[0].mxu0 %v7164
        %v7224 = vpop.f32.mrb[0].mxu0
        %v7225 = vadd.f32 %v7104, %v7224
        %v7226 = vpop.f32.mrb[0].mxu0
        %v7227 = vpop.f32.mrb[0].mxu0
        %v7228 = vadd.f32 %v7107, %v7227
        %v7229 = vpop.f32.mrb[0].mxu0
        %7230 = vdwg.mxu0
        %v7231 = vld [vmem:[#allocation4] sm:$0xe]
        %v7232 = vld [vmem:[#allocation4 + $0x8] sm:$0xe]
        %v7233 = vld [vmem:[#allocation4 + $0x10] sm:$0xe]
        %v7234 = vld [vmem:[#allocation4 + $0x18] sm:$0xe]
        %v7235 = vld [vmem:[#allocation4 + $0x20] sm:$0xe]
        %v7236 = vld [vmem:[#allocation4 + $0x28] sm:$0xe]
        %v7237 = vld [vmem:[#allocation4 + $0x30] sm:$0xe]
        %v7238 = vld [vmem:[#allocation4 + $0x38] sm:$0xe]
        %vm7255 = vcmask 1042432
        %vm7256 = vcmask 1046532
        %vm7257 = vmor %vm7255, %vm7256
        %v7258 = vrot.slane %v7231, 5
        %v7259 = vrot.slane %v7258, 4
        %v7260 = vrot.slane %v6866, 5
        %v7261 = vsel %vm7257, %v7259, %v7260
        %v7262 = vrot.slane %v7232, 5
        %v7263 = vrot.slane %v7262, 4
        %v7264 = vrot.slane %v6867, 5
        %v7265 = vsel %vm7257, %v7263, %v7264
        %v7266 = vrot.slane %v7233, 5
        %v7267 = vrot.slane %v7266, 4
        %v7268 = vrot.slane %v6868, 5
        %v7269 = vsel %vm7257, %v7267, %v7268
        %v7270 = vrot.slane %v7234, 5
        %v7271 = vrot.slane %v7270, 4
        %v7272 = vrot.slane %v6869, 5
        %v7273 = vsel %vm7257, %v7271, %v7272
        %v7274 = vrot.slane %v7235, 5
        %v7275 = vrot.slane %v7274, 4
        %v7276 = vrot.slane %v6870, 5
        %v7277 = vsel %vm7257, %v7275, %v7276
        %v7278 = vrot.slane %v7236, 5
        %v7279 = vrot.slane %v7278, 4
        %v7280 = vrot.slane %v6871, 5
        %v7281 = vsel %vm7257, %v7279, %v7280
        %v7282 = vrot.slane %v7237, 5
        %v7283 = vrot.slane %v7282, 4
        %v7284 = vrot.slane %v6872, 5
        %v7285 = vsel %vm7257, %v7283, %v7284
        %v7286 = vrot.slane %v7238, 5
        %v7287 = vrot.slane %v7286, 4
        %v7288 = vrot.slane %v6873, 5
        %v7289 = vsel %vm7257, %v7287, %v7288
        %v7290 = vld [vmem:[%s10 + $0x40] sm:$0xf]
        %v7291 = vld [vmem:[%s10 + $0x44] sm:$0xf]
        %v7292 = vld [vmem:[%s10 + $0x48] sm:$0xf]
        %v7293 = vld [vmem:[%s10 + $0x4c] sm:$0xf]
        %v7294 = vld [vmem:[%s10 + $0x50] sm:$0xf]
        %v7295 = vld [vmem:[%s10 + $0x54] sm:$0xf]
        %v7296 = vld [vmem:[%s10 + $0x58] sm:$0xf]
        %v7297 = vld [vmem:[%s10 + $0x5c] sm:$0xf]
        %v7298 = vunpack.c.l.b16 %v7261
        %v7299 = vunpack.c.l.b16 %v7265
        %v7300 = vunpack.c.l.b16 %v7269
        %v7301 = vunpack.c.l.b16 %v7273
        %v7302 = vunpack.c.l.b16 %v7277
        %v7303 = vunpack.c.l.b16 %v7281
        %v7304 = vunpack.c.l.b16 %v7285
        %v7305 = vunpack.c.l.b16 %v7289
        %v7306 = vpack.c.b16 %v7299, %v7298
        %v7307 = vpack.c.b16 %v7301, %v7300
        %v7308 = vpack.c.b16 %v7303, %v7302
        %v7309 = vpack.c.b16 %v7305, %v7304
        %v7318 = vunpack.c.l.b16 %v7290
        %v7319 = vunpack.c.l.b16 %v7291
        %v7320 = vunpack.c.l.b16 %v7292
        %v7321 = vunpack.c.l.b16 %v7293
        %v7322 = vunpack.c.l.b16 %v7294
        %v7323 = vunpack.c.l.b16 %v7295
        %v7324 = vunpack.c.l.b16 %v7296
        %v7325 = vunpack.c.l.b16 %v7297
        %v7326 = vpack.c.b16 %v7319, %v7318
        %v7327 = vpack.c.b16 %v7321, %v7320
        %v7328 = vpack.c.b16 %v7323, %v7322
        %v7329 = vpack.c.b16 %v7325, %v7324
        %v7335 = vsel %vm3434, %v7306, 0
        %v7338 = vsel %vm3434, %v7307, 0
        %v7341 = vsel %vm3434, %v7308, 0
        %v7344 = vsel %vm3434, %v7309, 0
        %7346 = vmatprep.subr.bf16.mxu0 0
        %7347 = vmatpush1.bf16.msra.mxu0 %v7326
        %7348 = vmatprep.subr.bf16.mxu0 0
        %7349 = vmatpush1.bf16.msra.mxu0 %v7327
        %7350 = vmatprep.subr.bf16.mxu0 0
        %7351 = vmatpush1.bf16.msra.mxu0 %v7328
        %7352 = vmatprep.subr.bf16.mxu0 0
        %7353 = vmatpush1.bf16.msra.mxu0 %v7329
        %7354 = vmatprep.subr.bf16.mxu0 0
        %7355 = vmatpush1.bf16.msra.mxu0 0
        %7356 = vmatprep.subr.bf16.mxu0 0
        %7357 = vmatpush1.bf16.msra.mxu0 0
        %7358 = vmatprep.subr.bf16.mxu0 0
        %7359 = vmatpush1.bf16.msra.mxu0 0
        %7360 = vmatprep.subr.bf16.mxu0 0
        %7361 = vmatpush1.bf16.msra.mxu0 0
        %7362 = vmatprep.subr.bf16.mxu0 0
        %7363 = vmatpush1.bf16.msra.mxu0 0
        %7364 = vmatprep.subr.bf16.mxu0 0
        %7365 = vmatpush1.bf16.msra.mxu0 0
        %7366 = vmatprep.subr.bf16.mxu0 0
        %7367 = vmatpush1.bf16.msra.mxu0 0
        %7368 = vmatprep.subr.bf16.mxu0 0
        %7369 = vmatpush1.bf16.msra.mxu0 0
        %7370 = vmatprep.subr.bf16.mxu0 0
        %7371 = vmatpush1.bf16.msra.mxu0 0
        %7372 = vmatprep.subr.bf16.mxu0 0
        %7373 = vmatpush1.bf16.msra.mxu0 0
        %7374 = vmatprep.subr.bf16.mxu0 0
        %7375 = vmatpush1.bf16.msra.mxu0 0
        %7376 = vmatprep.subr.bf16.mxu0 0
        %7377 = vmatpush1.bf16.msra.mxu0 0
        %7378 = vmatprep.mubr.bf16.mxu0 0
        %7379 = vmatmul.mubr.bf16.gmra.mrb[0].mxu0 %v7335
        %v7380 = vpop.f32.mrb[0].mxu0
        %v7381 = vadd.f32 0.0, %v7380
        %v7382 = vpop.f32.mrb[0].mxu0
        %v7383 = vpop.f32.mrb[0].mxu0
        %v7384 = vadd.f32 0.0, %v7383
        %v7385 = vpop.f32.mrb[0].mxu0
        %7386 = vmatprep.mubr.bf16.mxu0 0
        %7387 = vmatmul.mubr.bf16.gmra.mrb[0].mxu0 %v7338
        %v7388 = vpop.f32.mrb[0].mxu0
        %v7389 = vadd.f32 0.0, %v7388
        %v7390 = vpop.f32.mrb[0].mxu0
        %v7391 = vpop.f32.mrb[0].mxu0
        %v7392 = vadd.f32 0.0, %v7391
        %v7393 = vpop.f32.mrb[0].mxu0
        %7394 = vmatprep.mubr.bf16.mxu0 0
        %7395 = vmatmul.mubr.bf16.gmra.mrb[0].mxu0 %v7341
        %v7396 = vpop.f32.mrb[0].mxu0
        %v7397 = vadd.f32 0.0, %v7396
        %v7398 = vpop.f32.mrb[0].mxu0
        %v7399 = vpop.f32.mrb[0].mxu0
        %v7400 = vadd.f32 0.0, %v7399
        %v7401 = vpop.f32.mrb[0].mxu0
        %7402 = vmatprep.mubr.bf16.mxu0 0
        %7403 = vmatmul.mubr.bf16.gmra.mrb[0].mxu0 %v7344
        %v7404 = vpop.f32.mrb[0].mxu0
        %v7405 = vadd.f32 0.0, %v7404
        %v7406 = vpop.f32.mrb[0].mxu0
        %v7407 = vpop.f32.mrb[0].mxu0
        %v7408 = vadd.f32 0.0, %v7407
        %v7409 = vpop.f32.mrb[0].mxu0
        %7410 = vdwg.mxu0
        %v7411 = vadd.f32 %v7201, %v7381
        %v7412 = vadd.f32 %v7204, %v7384
        %v7413 = vadd.f32 %v7209, %v7389
        %v7414 = vadd.f32 %v7212, %v7392
        %v7415 = vadd.f32 %v7217, %v7397
        %v7416 = vadd.f32 %v7220, %v7400
        %v7417 = vadd.f32 %v7225, %v7405
        %v7418 = vadd.f32 %v7228, %v7408
        %v7419 = vld [vmem:[%s6797] sm:$0xf]
        %v7420 = vld [vmem:[%s6797 + $0x8] sm:$0xf]
        %v7421 = vld [vmem:[%s6797 + $0x10] sm:$0xf]
        %v7422 = vld [vmem:[%s6797 + $0x18] sm:$0xf]
        %v7423 = vld [vmem:[%s6797 + $0x20] sm:$0xf]
        %v7424 = vld [vmem:[%s6797 + $0x28] sm:$0xf]
        %v7425 = vld [vmem:[%s6797 + $0x30] sm:$0xf]
        %v7426 = vld [vmem:[%s6797 + $0x38] sm:$0xf]
        %v7427 = vld [vmem:[%s10 + $0x60] sm:$0xf]
        %v7428 = vld [vmem:[%s10 + $0x64] sm:$0xf]
        %v7429 = vld [vmem:[%s10 + $0x68] sm:$0xf]
        %v7430 = vld [vmem:[%s10 + $0x6c] sm:$0xf]
        %v7431 = vld [vmem:[%s10 + $0x70] sm:$0xf]
        %v7432 = vld [vmem:[%s10 + $0x74] sm:$0xf]
        %v7433 = vld [vmem:[%s10 + $0x78] sm:$0xf]
        %v7434 = vld [vmem:[%s10 + $0x7c] sm:$0xf]
        %v7443 = vunpack.c.l.b16 %v7419
        %v7444 = vunpack.c.l.b16 %v7420
        %v7445 = vunpack.c.l.b16 %v7421
        %v7446 = vunpack.c.l.b16 %v7422
        %v7447 = vunpack.c.l.b16 %v7423
        %v7448 = vunpack.c.l.b16 %v7424
        %v7449 = vunpack.c.l.b16 %v7425
        %v7450 = vunpack.c.l.b16 %v7426
        %v7451 = vpack.c.b16 %v7444, %v7443
        %v7452 = vpack.c.b16 %v7446, %v7445
        %v7453 = vpack.c.b16 %v7448, %v7447
        %v7454 = vpack.c.b16 %v7450, %v7449
        %v7463 = vunpack.c.l.b16 %v7427
        %v7464 = vunpack.c.l.b16 %v7428
        %v7465 = vunpack.c.l.b16 %v7429
        %v7466 = vunpack.c.l.b16 %v7430
        %v7467 = vunpack.c.l.b16 %v7431
        %v7468 = vunpack.c.l.b16 %v7432
        %v7469 = vunpack.c.l.b16 %v7433
        %v7470 = vunpack.c.l.b16 %v7434
        %v7471 = vpack.c.b16 %v7464, %v7463
        %v7472 = vpack.c.b16 %v7466, %v7465
        %v7473 = vpack.c.b16 %v7468, %v7467
        %v7474 = vpack.c.b16 %v7470, %v7469
        %v7480 = vsel %vm3434, %v7451, 0
        %v7483 = vsel %vm3434, %v7452, 0
        %v7486 = vsel %vm3434, %v7453, 0
        %v7489 = vsel %vm3434, %v7454, 0
        %7491 = vmatprep.subr.bf16.mxu0 0
        %7492 = vmatpush1.bf16.msra.mxu0 %v7471
        %7493 = vmatprep.subr.bf16.mxu0 0
        %7494 = vmatpush1.bf16.msra.mxu0 %v7472
        %7495 = vmatprep.subr.bf16.mxu0 0
        %7496 = vmatpush1.bf16.msra.mxu0 %v7473
        %7497 = vmatprep.subr.bf16.mxu0 0
        %7498 = vmatpush1.bf16.msra.mxu0 %v7474
        %7499 = vmatprep.subr.bf16.mxu0 0
        %7500 = vmatpush1.bf16.msra.mxu0 0
        %7501 = vmatprep.subr.bf16.mxu0 0
        %7502 = vmatpush1.bf16.msra.mxu0 0
        %7503 = vmatprep.subr.bf16.mxu0 0
        %7504 = vmatpush1.bf16.msra.mxu0 0
        %7505 = vmatprep.subr.bf16.mxu0 0
        %7506 = vmatpush1.bf16.msra.mxu0 0
        %7507 = vmatprep.subr.bf16.mxu0 0
        %7508 = vmatpush1.bf16.msra.mxu0 0
        %7509 = vmatprep.subr.bf16.mxu0 0
        %7510 = vmatpush1.bf16.msra.mxu0 0
        %7511 = vmatprep.subr.bf16.mxu0 0
        %7512 = vmatpush1.bf16.msra.mxu0 0
        %7513 = vmatprep.subr.bf16.mxu0 0
        %7514 = vmatpush1.bf16.msra.mxu0 0
        %7515 = vmatprep.subr.bf16.mxu0 0
        %7516 = vmatpush1.bf16.msra.mxu0 0
        %7517 = vmatprep.subr.bf16.mxu0 0
        %7518 = vmatpush1.bf16.msra.mxu0 0
        %7519 = vmatprep.subr.bf16.mxu0 0
        %7520 = vmatpush1.bf16.msra.mxu0 0
        %7521 = vmatprep.subr.bf16.mxu0 0
        %7522 = vmatpush1.bf16.msra.mxu0 0
        %7523 = vmatprep.mubr.bf16.mxu0 0
        %7524 = vmatmul.mubr.bf16.gmra.mrb[0].mxu0 %v7480
        %v7525 = vpop.f32.mrb[0].mxu0
        %v7526 = vadd.f32 0.0, %v7525
        %v7527 = vpop.f32.mrb[0].mxu0
        %v7528 = vpop.f32.mrb[0].mxu0
        %v7529 = vadd.f32 0.0, %v7528
        %v7530 = vpop.f32.mrb[0].mxu0
        %7531 = vmatprep.mubr.bf16.mxu0 0
        %7532 = vmatmul.mubr.bf16.gmra.mrb[0].mxu0 %v7483
        %v7533 = vpop.f32.mrb[0].mxu0
        %v7534 = vadd.f32 0.0, %v7533
        %v7535 = vpop.f32.mrb[0].mxu0
        %v7536 = vpop.f32.mrb[0].mxu0
        %v7537 = vadd.f32 0.0, %v7536
        %v7538 = vpop.f32.mrb[0].mxu0
        %7539 = vmatprep.mubr.bf16.mxu0 0
        %7540 = vmatmul.mubr.bf16.gmra.mrb[0].mxu0 %v7486
        %v7541 = vpop.f32.mrb[0].mxu0
        %v7542 = vadd.f32 0.0, %v7541
        %v7543 = vpop.f32.mrb[0].mxu0
        %v7544 = vpop.f32.mrb[0].mxu0
        %v7545 = vadd.f32 0.0, %v7544
        %v7546 = vpop.f32.mrb[0].mxu0
        %7547 = vmatprep.mubr.bf16.mxu0 0
        %7548 = vmatmul.mubr.bf16.gmra.mrb[0].mxu0 %v7489
        %v7549 = vpop.f32.mrb[0].mxu0
        %v7550 = vadd.f32 0.0, %v7549
        %v7551 = vpop.f32.mrb[0].mxu0
        %v7552 = vpop.f32.mrb[0].mxu0
        %v7553 = vadd.f32 0.0, %v7552
        %v7554 = vpop.f32.mrb[0].mxu0
        %7555 = vdwg.mxu0
        %v7556 = vadd.f32 %v7411, %v7526
        %v7557 = vadd.f32 %v7412, %v7529
        %v7558 = vadd.f32 %v7413, %v7534
        %v7559 = vadd.f32 %v7414, %v7537
        %v7560 = vadd.f32 %v7415, %v7542
        %v7561 = vadd.f32 %v7416, %v7545
        %v7562 = vadd.f32 %v7417, %v7550
        %v7563 = vadd.f32 %v7418, %v7553
        %v7564 = vld [vmem:[%s6797] sm:$0xf]
        %v7565 = vld [vmem:[%s6797 + $0x4] sm:$0x1]
        %v7566 = vld [vmem:[%s6797 + $0x8] sm:$0xf]
        %v7567 = vld [vmem:[%s6797 + $0xc] sm:$0x1]
        %v7568 = vld [vmem:[%s6797 + $0x10] sm:$0xf]
        %v7569 = vld [vmem:[%s6797 + $0x14] sm:$0x1]
        %v7570 = vld [vmem:[%s6797 + $0x18] sm:$0xf]
        %v7571 = vld [vmem:[%s6797 + $0x1c] sm:$0x1]
        %v7572 = vld [vmem:[%s6797 + $0x20] sm:$0xf]
        %v7573 = vld [vmem:[%s6797 + $0x24] sm:$0x1]
        %v7574 = vld [vmem:[%s6797 + $0x28] sm:$0xf]
        %v7575 = vld [vmem:[%s6797 + $0x2c] sm:$0x1]
        %v7576 = vld [vmem:[%s6797 + $0x30] sm:$0xf]
        %v7577 = vld [vmem:[%s6797 + $0x34] sm:$0x1]
        %v7578 = vld [vmem:[%s6797 + $0x38] sm:$0xf]
        %v7579 = vld [vmem:[%s6797 + $0x3c] sm:$0x1]
        %v7581 = vshrl.u32 %v7564, 16
        %v7583 = vrot.slane %v7581, 4
        %v7584 = vshll.u32 %v7564, 16
        %v7586 = vrot.slane %v7584, 5
        %v7587 = vor.u32 %v7583, %v7586
        %v7588 = vrot.slane %v7587, 4
        %v7590 = vshll.u32 %v7565, 16
        %v7592 = vrot.slane %v7590, 5
        %v7593 = vsel %vm6876, %v7588, %v7592
        %v7595 = vshrl.u32 %v7566, 16
        %v7597 = vrot.slane %v7595, 4
        %v7598 = vshll.u32 %v7566, 16
        %v7600 = vrot.slane %v7598, 5
        %v7601 = vor.u32 %v7597, %v7600
        %v7602 = vrot.slane %v7601, 4
        %v7604 = vshll.u32 %v7567, 16
        %v7606 = vrot.slane %v7604, 5
        %v7607 = vsel %vm6876, %v7602, %v7606
        %v7609 = vshrl.u32 %v7568, 16
        %v7611 = vrot.slane %v7609, 4
        %v7612 = vshll.u32 %v7568, 16
        %v7614 = vrot.slane %v7612, 5
        %v7615 = vor.u32 %v7611, %v7614
        %v7616 = vrot.slane %v7615, 4
        %v7618 = vshll.u32 %v7569, 16
        %v7620 = vrot.slane %v7618, 5
        %v7621 = vsel %vm6876, %v7616, %v7620
        %v7623 = vshrl.u32 %v7570, 16
        %v7625 = vrot.slane %v7623, 4
        %v7626 = vshll.u32 %v7570, 16
        %v7628 = vrot.slane %v7626, 5
        %v7629 = vor.u32 %v7625, %v7628
        %v7630 = vrot.slane %v7629, 4
        %v7632 = vshll.u32 %v7571, 16
        %v7634 = vrot.slane %v7632, 5
        %v7635 = vsel %vm6876, %v7630, %v7634
        %v7637 = vshrl.u32 %v7572, 16
        %v7639 = vrot.slane %v7637, 4
        %v7640 = vshll.u32 %v7572, 16
        %v7642 = vrot.slane %v7640, 5
        %v7643 = vor.u32 %v7639, %v7642
        %v7644 = vrot.slane %v7643, 4
        %v7646 = vshll.u32 %v7573, 16
        %v7648 = vrot.slane %v7646, 5
        %v7649 = vsel %vm6876, %v7644, %v7648
        %v7651 = vshrl.u32 %v7574, 16
        %v7653 = vrot.slane %v7651, 4
        %v7654 = vshll.u32 %v7574, 16
        %v7656 = vrot.slane %v7654, 5
        %v7657 = vor.u32 %v7653, %v7656
        %v7658 = vrot.slane %v7657, 4
        %v7660 = vshll.u32 %v7575, 16
        %v7662 = vrot.slane %v7660, 5
        %v7663 = vsel %vm6876, %v7658, %v7662
        %v7665 = vshrl.u32 %v7576, 16
        %v7667 = vrot.slane %v7665, 4
        %v7668 = vshll.u32 %v7576, 16
        %v7670 = vrot.slane %v7668, 5
        %v7671 = vor.u32 %v7667, %v7670
        %v7672 = vrot.slane %v7671, 4
        %v7674 = vshll.u32 %v7577, 16
        %v7676 = vrot.slane %v7674, 5
        %v7677 = vsel %vm6876, %v7672, %v7676
        %v7679 = vshrl.u32 %v7578, 16
        %v7681 = vrot.slane %v7679, 4
        %v7682 = vshll.u32 %v7578, 16
        %v7684 = vrot.slane %v7682, 5
        %v7685 = vor.u32 %v7681, %v7684
        %v7686 = vrot.slane %v7685, 4
        %v7688 = vshll.u32 %v7579, 16
        %v7690 = vrot.slane %v7688, 5
        %v7691 = vsel %vm6876, %v7686, %v7690
        %v7692 = vld [vmem:[%s10 + $0x80] sm:$0xf]
        %v7693 = vld [vmem:[%s10 + $0x84] sm:$0xf]
        %v7694 = vld [vmem:[%s10 + $0x88] sm:$0xf]
        %v7695 = vld [vmem:[%s10 + $0x8c] sm:$0xf]
        %v7696 = vld [vmem:[%s10 + $0x90] sm:$0xf]
        %v7697 = vld [vmem:[%s10 + $0x94] sm:$0xf]
        %v7698 = vld [vmem:[%s10 + $0x98] sm:$0xf]
        %v7699 = vld [vmem:[%s10 + $0x9c] sm:$0xf]
        %v7700 = vunpack.c.l.b16 %v7593
        %v7701 = vunpack.c.l.b16 %v7607
        %v7702 = vunpack.c.l.b16 %v7621
        %v7703 = vunpack.c.l.b16 %v7635
        %v7704 = vunpack.c.l.b16 %v7649
        %v7705 = vunpack.c.l.b16 %v7663
        %v7706 = vunpack.c.l.b16 %v7677
        %v7707 = vunpack.c.l.b16 %v7691
        %v7708 = vpack.c.b16 %v7701, %v7700
        %v7709 = vpack.c.b16 %v7703, %v7702
        %v7710 = vpack.c.b16 %v7705, %v7704
        %v7711 = vpack.c.b16 %v7707, %v7706
        %v7720 = vunpack.c.l.b16 %v7692
        %v7721 = vunpack.c.l.b16 %v7693
        %v7722 = vunpack.c.l.b16 %v7694
        %v7723 = vunpack.c.l.b16 %v7695
        %v7724 = vunpack.c.l.b16 %v7696
        %v7725 = vunpack.c.l.b16 %v7697
        %v7726 = vunpack.c.l.b16 %v7698
        %v7727 = vunpack.c.l.b16 %v7699
        %v7728 = vpack.c.b16 %v7721, %v7720
        %v7729 = vpack.c.b16 %v7723, %v7722
        %v7730 = vpack.c.b16 %v7725, %v7724
        %v7731 = vpack.c.b16 %v7727, %v7726
        %v7737 = vsel %vm3434, %v7708, 0
        %v7740 = vsel %vm3434, %v7709, 0
        %v7743 = vsel %vm3434, %v7710, 0
        %v7746 = vsel %vm3434, %v7711, 0
        %7748 = vmatprep.subr.bf16.mxu0 0
        %7749 = vmatpush1.bf16.msra.mxu0 %v7728
        %7750 = vmatprep.subr.bf16.mxu0 0
        %7751 = vmatpush1.bf16.msra.mxu0 %v7729
        %7752 = vmatprep.subr.bf16.mxu0 0
        %7753 = vmatpush1.bf16.msra.mxu0 %v7730
        %7754 = vmatprep.subr.bf16.mxu0 0
        %7755 = vmatpush1.bf16.msra.mxu0 %v7731
        %7756 = vmatprep.subr.bf16.mxu0 0
        %7757 = vmatpush1.bf16.msra.mxu0 0
        %7758 = vmatprep.subr.bf16.mxu0 0
        %7759 = vmatpush1.bf16.msra.mxu0 0
        %7760 = vmatprep.subr.bf16.mxu0 0
        %7761 = vmatpush1.bf16.msra.mxu0 0
        %7762 = vmatprep.subr.bf16.mxu0 0
        %7763 = vmatpush1.bf16.msra.mxu0 0
        %7764 = vmatprep.subr.bf16.mxu0 0
        %7765 = vmatpush1.bf16.msra.mxu0 0
        %7766 = vmatprep.subr.bf16.mxu0 0
        %7767 = vmatpush1.bf16.msra.mxu0 0
        %7768 = vmatprep.subr.bf16.mxu0 0
        %7769 = vmatpush1.bf16.msra.mxu0 0
        %7770 = vmatprep.subr.bf16.mxu0 0
        %7771 = vmatpush1.bf16.msra.mxu0 0
        %7772 = vmatprep.subr.bf16.mxu0 0
        %7773 = vmatpush1.bf16.msra.mxu0 0
        %7774 = vmatprep.subr.bf16.mxu0 0
        %7775 = vmatpush1.bf16.msra.mxu0 0
        %7776 = vmatprep.subr.bf16.mxu0 0
        %7777 = vmatpush1.bf16.msra.mxu0 0
        %7778 = vmatprep.subr.bf16.mxu0 0
        %7779 = vmatpush1.bf16.msra.mxu0 0
        %7780 = vmatprep.mubr.bf16.mxu0 0
        %7781 = vmatmul.mubr.bf16.gmra.mrb[0].mxu0 %v7737
        %v7782 = vpop.f32.mrb[0].mxu0
        %v7783 = vadd.f32 0.0, %v7782
        %v7784 = vpop.f32.mrb[0].mxu0
        %v7785 = vpop.f32.mrb[0].mxu0
        %v7786 = vadd.f32 0.0, %v7785
        %v7787 = vpop.f32.mrb[0].mxu0
        %7788 = vmatprep.mubr.bf16.mxu0 0
        %7789 = vmatmul.mubr.bf16.gmra.mrb[0].mxu0 %v7740
        %v7790 = vpop.f32.mrb[0].mxu0
        %v7791 = vadd.f32 0.0, %v7790
        %v7792 = vpop.f32.mrb[0].mxu0
        %v7793 = vpop.f32.mrb[0].mxu0
        %v7794 = vadd.f32 0.0, %v7793
        %v7795 = vpop.f32.mrb[0].mxu0
        %7796 = vmatprep.mubr.bf16.mxu0 0
        %7797 = vmatmul.mubr.bf16.gmra.mrb[0].mxu0 %v7743
        %v7798 = vpop.f32.mrb[0].mxu0
        %v7799 = vadd.f32 0.0, %v7798
        %v7800 = vpop.f32.mrb[0].mxu0
        %v7801 = vpop.f32.mrb[0].mxu0
        %v7802 = vadd.f32 0.0, %v7801
        %v7803 = vpop.f32.mrb[0].mxu0
        %7804 = vmatprep.mubr.bf16.mxu0 0
        %7805 = vmatmul.mubr.bf16.gmra.mrb[0].mxu0 %v7746
        %v7806 = vpop.f32.mrb[0].mxu0
        %v7807 = vadd.f32 0.0, %v7806
        %v7808 = vpop.f32.mrb[0].mxu0
        %v7809 = vpop.f32.mrb[0].mxu0
        %v7810 = vadd.f32 0.0, %v7809
        %v7811 = vpop.f32.mrb[0].mxu0
        %7812 = vdwg.mxu0
        %v7813 = vadd.f32 %v7556, %v7783
        %v7814 = vadd.f32 %v7557, %v7786
        %v7815 = vadd.f32 %v7558, %v7791
        %v7816 = vadd.f32 %v7559, %v7794
        %v7817 = vadd.f32 %v7560, %v7799
        %v7818 = vadd.f32 %v7561, %v7802
        %v7819 = vadd.f32 %v7562, %v7807
        %v7820 = vadd.f32 %v7563, %v7810
        %v7821 = vld [vmem:[%s6797] sm:$0xe]
        %v7822 = vld [vmem:[%s6797 + $0x8] sm:$0xe]
        %v7823 = vld [vmem:[%s6797 + $0x10] sm:$0xe]
        %v7824 = vld [vmem:[%s6797 + $0x18] sm:$0xe]
        %v7825 = vld [vmem:[%s6797 + $0x20] sm:$0xe]
        %v7826 = vld [vmem:[%s6797 + $0x28] sm:$0xe]
        %v7827 = vld [vmem:[%s6797 + $0x30] sm:$0xe]
        %v7828 = vld [vmem:[%s6797 + $0x38] sm:$0xe]
        %v7845 = vrot.slane %v7821, 5
        %v7846 = vrot.slane %v7845, 4
        %v7847 = vrot.slane %v7565, 5
        %v7848 = vsel %vm7257, %v7846, %v7847
        %v7849 = vrot.slane %v7822, 5
        %v7850 = vrot.slane %v7849, 4
        %v7851 = vrot.slane %v7567, 5
        %v7852 = vsel %vm7257, %v7850, %v7851
        %v7853 = vrot.slane %v7823, 5
        %v7854 = vrot.slane %v7853, 4
        %v7855 = vrot.slane %v7569, 5
        %v7856 = vsel %vm7257, %v7854, %v7855
        %v7857 = vrot.slane %v7824, 5
        %v7858 = vrot.slane %v7857, 4
        %v7859 = vrot.slane %v7571, 5
        %v7860 = vsel %vm7257, %v7858, %v7859
        %v7861 = vrot.slane %v7825, 5
        %v7862 = vrot.slane %v7861, 4
        %v7863 = vrot.slane %v7573, 5
        %v7864 = vsel %vm7257, %v7862, %v7863
        %v7865 = vrot.slane %v7826, 5
        %v7866 = vrot.slane %v7865, 4
        %v7867 = vrot.slane %v7575, 5
        %v7868 = vsel %vm7257, %v7866, %v7867
        %v7869 = vrot.slane %v7827, 5
        %v7870 = vrot.slane %v7869, 4
        %v7871 = vrot.slane %v7577, 5
        %v7872 = vsel %vm7257, %v7870, %v7871
        %v7873 = vrot.slane %v7828, 5
        %v7874 = vrot.slane %v7873, 4
        %v7875 = vrot.slane %v7579, 5
        %v7876 = vsel %vm7257, %v7874, %v7875
        %v7877 = vld [vmem:[%s10 + $0xa0] sm:$0xf]
        %v7878 = vld [vmem:[%s10 + $0xa4] sm:$0xf]
        %v7879 = vld [vmem:[%s10 + $0xa8] sm:$0xf]
        %v7880 = vld [vmem:[%s10 + $0xac] sm:$0xf]
        %v7881 = vld [vmem:[%s10 + $0xb0] sm:$0xf]
        %v7882 = vld [vmem:[%s10 + $0xb4] sm:$0xf]
        %v7883 = vld [vmem:[%s10 + $0xb8] sm:$0xf]
        %v7884 = vld [vmem:[%s10 + $0xbc] sm:$0xf]
        %v7885 = vunpack.c.l.b16 %v7848
        %v7886 = vunpack.c.l.b16 %v7852
        %v7887 = vunpack.c.l.b16 %v7856
        %v7888 = vunpack.c.l.b16 %v7860
        %v7889 = vunpack.c.l.b16 %v7864
        %v7890 = vunpack.c.l.b16 %v7868
        %v7891 = vunpack.c.l.b16 %v7872
        %v7892 = vunpack.c.l.b16 %v7876
        %v7893 = vpack.c.b16 %v7886, %v7885
        %v7894 = vpack.c.b16 %v7888, %v7887
        %v7895 = vpack.c.b16 %v7890, %v7889
        %v7896 = vpack.c.b16 %v7892, %v7891
        %v7905 = vunpack.c.l.b16 %v7877
        %v7906 = vunpack.c.l.b16 %v7878
        %v7907 = vunpack.c.l.b16 %v7879
        %v7908 = vunpack.c.l.b16 %v7880
        %v7909 = vunpack.c.l.b16 %v7881
        %v7910 = vunpack.c.l.b16 %v7882
        %v7911 = vunpack.c.l.b16 %v7883
        %v7912 = vunpack.c.l.b16 %v7884
        %v7913 = vpack.c.b16 %v7906, %v7905
        %v7914 = vpack.c.b16 %v7908, %v7907
        %v7915 = vpack.c.b16 %v7910, %v7909
        %v7916 = vpack.c.b16 %v7912, %v7911
        %v7922 = vsel %vm3434, %v7893, 0
        %v7925 = vsel %vm3434, %v7894, 0
        %v7928 = vsel %vm3434, %v7895, 0
        %v7931 = vsel %vm3434, %v7896, 0
        %7933 = vmatprep.subr.bf16.mxu0 0
        %7934 = vmatpush1.bf16.msra.mxu0 %v7913
        %7935 = vmatprep.subr.bf16.mxu0 0
        %7936 = vmatpush1.bf16.msra.mxu0 %v7914
        %7937 = vmatprep.subr.bf16.mxu0 0
        %7938 = vmatpush1.bf16.msra.mxu0 %v7915
        %7939 = vmatprep.subr.bf16.mxu0 0
        %7940 = vmatpush1.bf16.msra.mxu0 %v7916
        %7941 = vmatprep.subr.bf16.mxu0 0
        %7942 = vmatpush1.bf16.msra.mxu0 0
        %7943 = vmatprep.subr.bf16.mxu0 0
        %7944 = vmatpush1.bf16.msra.mxu0 0
        %7945 = vmatprep.subr.bf16.mxu0 0
        %7946 = vmatpush1.bf16.msra.mxu0 0
        %7947 = vmatprep.subr.bf16.mxu0 0
        %7948 = vmatpush1.bf16.msra.mxu0 0
        %7949 = vmatprep.subr.bf16.mxu0 0
        %7950 = vmatpush1.bf16.msra.mxu0 0
        %7951 = vmatprep.subr.bf16.mxu0 0
        %7952 = vmatpush1.bf16.msra.mxu0 0
        %7953 = vmatprep.subr.bf16.mxu0 0
        %7954 = vmatpush1.bf16.msra.mxu0 0
        %7955 = vmatprep.subr.bf16.mxu0 0
        %7956 = vmatpush1.bf16.msra.mxu0 0
        %7957 = vmatprep.subr.bf16.mxu0 0
        %7958 = vmatpush1.bf16.msra.mxu0 0
        %7959 = vmatprep.subr.bf16.mxu0 0
        %7960 = vmatpush1.bf16.msra.mxu0 0
        %7961 = vmatprep.subr.bf16.mxu0 0
        %7962 = vmatpush1.bf16.msra.mxu0 0
        %7963 = vmatprep.subr.bf16.mxu0 0
        %7964 = vmatpush1.bf16.msra.mxu0 0
        %7965 = vmatprep.mubr.bf16.mxu0 0
        %7966 = vmatmul.mubr.bf16.gmra.mrb[0].mxu0 %v7922
        %v7967 = vpop.f32.mrb[0].mxu0
        %v7968 = vadd.f32 0.0, %v7967
        %v7969 = vpop.f32.mrb[0].mxu0
        %v7970 = vpop.f32.mrb[0].mxu0
        %v7971 = vadd.f32 0.0, %v7970
        %v7972 = vpop.f32.mrb[0].mxu0
        %7973 = vmatprep.mubr.bf16.mxu0 0
        %7974 = vmatmul.mubr.bf16.gmra.mrb[0].mxu0 %v7925
        %v7975 = vpop.f32.mrb[0].mxu0
        %v7976 = vadd.f32 0.0, %v7975
        %v7977 = vpop.f32.mrb[0].mxu0
        %v7978 = vpop.f32.mrb[0].mxu0
        %v7979 = vadd.f32 0.0, %v7978
        %v7980 = vpop.f32.mrb[0].mxu0
        %7981 = vmatprep.mubr.bf16.mxu0 0
        %7982 = vmatmul.mubr.bf16.gmra.mrb[0].mxu0 %v7928
        %v7983 = vpop.f32.mrb[0].mxu0
        %v7984 = vadd.f32 0.0, %v7983
        %v7985 = vpop.f32.mrb[0].mxu0
        %v7986 = vpop.f32.mrb[0].mxu0
        %v7987 = vadd.f32 0.0, %v7986
        %v7988 = vpop.f32.mrb[0].mxu0
        %7989 = vmatprep.mubr.bf16.mxu0 0
        %7990 = vmatmul.mubr.bf16.gmra.mrb[0].mxu0 %v7931
        %v7991 = vpop.f32.mrb[0].mxu0
        %v7992 = vadd.f32 0.0, %v7991
        %v7993 = vpop.f32.mrb[0].mxu0
        %v7994 = vpop.f32.mrb[0].mxu0
        %v7995 = vadd.f32 0.0, %v7994
        %v7996 = vpop.f32.mrb[0].mxu0
        %7997 = vdwg.mxu0
        %v7998 = vadd.f32 %v7813, %v7968
        %v7999 = vadd.f32 %v7814, %v7971
        %v8000 = vadd.f32 %v7815, %v7976
        %v8001 = vadd.f32 %v7816, %v7979
        %v8002 = vadd.f32 %v7817, %v7984
        %v8003 = vadd.f32 %v7818, %v7987
        %v8004 = vadd.f32 %v7819, %v7992
        %v8005 = vadd.f32 %v7820, %v7995
        %s8006 = scalar_lea.vmem [#allocation4], 16
        %v8007 = vld [vmem:[%s8006] sm:$0xf]
        %v8008 = vld [vmem:[%s8006 + $0x8] sm:$0xf]
        %v8009 = vld [vmem:[%s8006 + $0x10] sm:$0xf]
        %v8010 = vld [vmem:[%s8006 + $0x18] sm:$0xf]
        %v8011 = vld [vmem:[%s8006 + $0x20] sm:$0xf]
        %v8012 = vld [vmem:[%s8006 + $0x28] sm:$0xf]
        %v8013 = vld [vmem:[%s8006 + $0x30] sm:$0xf]
        %v8014 = vld [vmem:[%s8006 + $0x38] sm:$0xf]
        %v8015 = vld [vmem:[%s10 + $0xc0] sm:$0xf]
        %v8016 = vld [vmem:[%s10 + $0xc4] sm:$0xf]
        %v8017 = vld [vmem:[%s10 + $0xc8] sm:$0xf]
        %v8018 = vld [vmem:[%s10 + $0xcc] sm:$0xf]
        %v8019 = vld [vmem:[%s10 + $0xd0] sm:$0xf]
        %v8020 = vld [vmem:[%s10 + $0xd4] sm:$0xf]
        %v8021 = vld [vmem:[%s10 + $0xd8] sm:$0xf]
        %v8022 = vld [vmem:[%s10 + $0xdc] sm:$0xf]
        %v8031 = vunpack.c.l.b16 %v8007
        %v8032 = vunpack.c.l.b16 %v8008
        %v8033 = vunpack.c.l.b16 %v8009
        %v8034 = vunpack.c.l.b16 %v8010
        %v8035 = vunpack.c.l.b16 %v8011
        %v8036 = vunpack.c.l.b16 %v8012
        %v8037 = vunpack.c.l.b16 %v8013
        %v8038 = vunpack.c.l.b16 %v8014
        %v8039 = vpack.c.b16 %v8032, %v8031
        %v8040 = vpack.c.b16 %v8034, %v8033
        %v8041 = vpack.c.b16 %v8036, %v8035
        %v8042 = vpack.c.b16 %v8038, %v8037
        %v8051 = vunpack.c.l.b16 %v8015
        %v8052 = vunpack.c.l.b16 %v8016
        %v8053 = vunpack.c.l.b16 %v8017
        %v8054 = vunpack.c.l.b16 %v8018
        %v8055 = vunpack.c.l.b16 %v8019
        %v8056 = vunpack.c.l.b16 %v8020
        %v8057 = vunpack.c.l.b16 %v8021
        %v8058 = vunpack.c.l.b16 %v8022
        %v8059 = vpack.c.b16 %v8052, %v8051
        %v8060 = vpack.c.b16 %v8054, %v8053
        %v8061 = vpack.c.b16 %v8056, %v8055
        %v8062 = vpack.c.b16 %v8058, %v8057
        %v8068 = vsel %vm3434, %v8039, 0
        %v8071 = vsel %vm3434, %v8040, 0
        %v8074 = vsel %vm3434, %v8041, 0
        %v8077 = vsel %vm3434, %v8042, 0
        %8079 = vmatprep.subr.bf16.mxu0 0
        %8080 = vmatpush1.bf16.msra.mxu0 %v8059
        %8081 = vmatprep.subr.bf16.mxu0 0
        %8082 = vmatpush1.bf16.msra.mxu0 %v8060
        %8083 = vmatprep.subr.bf16.mxu0 0
        %8084 = vmatpush1.bf16.msra.mxu0 %v8061
        %8085 = vmatprep.subr.bf16.mxu0 0
        %8086 = vmatpush1.bf16.msra.mxu0 %v8062
        %8087 = vmatprep.subr.bf16.mxu0 0
        %8088 = vmatpush1.bf16.msra.mxu0 0
        %8089 = vmatprep.subr.bf16.mxu0 0
        %8090 = vmatpush1.bf16.msra.mxu0 0
        %8091 = vmatprep.subr.bf16.mxu0 0
        %8092 = vmatpush1.bf16.msra.mxu0 0
        %8093 = vmatprep.subr.bf16.mxu0 0
        %8094 = vmatpush1.bf16.msra.mxu0 0
        %8095 = vmatprep.subr.bf16.mxu0 0
        %8096 = vmatpush1.bf16.msra.mxu0 0
        %8097 = vmatprep.subr.bf16.mxu0 0
        %8098 = vmatpush1.bf16.msra.mxu0 0
        %8099 = vmatprep.subr.bf16.mxu0 0
        %8100 = vmatpush1.bf16.msra.mxu0 0
        %8101 = vmatprep.subr.bf16.mxu0 0
        %8102 = vmatpush1.bf16.msra.mxu0 0
        %8103 = vmatprep.subr.bf16.mxu0 0
        %8104 = vmatpush1.bf16.msra.mxu0 0
        %8105 = vmatprep.subr.bf16.mxu0 0
        %8106 = vmatpush1.bf16.msra.mxu0 0
        %8107 = vmatprep.subr.bf16.mxu0 0
        %8108 = vmatpush1.bf16.msra.mxu0 0
        %8109 = vmatprep.subr.bf16.mxu0 0
        %8110 = vmatpush1.bf16.msra.mxu0 0
        %8111 = vmatprep.mubr.bf16.mxu0 0
        %8112 = vmatmul.mubr.bf16.gmra.mrb[0].mxu0 %v8068
        %v8113 = vpop.f32.mrb[0].mxu0
        %v8114 = vadd.f32 0.0, %v8113
        %v8115 = vpop.f32.mrb[0].mxu0
        %v8116 = vpop.f32.mrb[0].mxu0
        %v8117 = vadd.f32 0.0, %v8116
        %v8118 = vpop.f32.mrb[0].mxu0
        %8119 = vmatprep.mubr.bf16.mxu0 0
        %8120 = vmatmul.mubr.bf16.gmra.mrb[0].mxu0 %v8071
        %v8121 = vpop.f32.mrb[0].mxu0
        %v8122 = vadd.f32 0.0, %v8121
        %v8123 = vpop.f32.mrb[0].mxu0
        %v8124 = vpop.f32.mrb[0].mxu0
        %v8125 = vadd.f32 0.0, %v8124
        %v8126 = vpop.f32.mrb[0].mxu0
        %8127 = vmatprep.mubr.bf16.mxu0 0
        %8128 = vmatmul.mubr.bf16.gmra.mrb[0].mxu0 %v8074
        %v8129 = vpop.f32.mrb[0].mxu0
        %v8130 = vadd.f32 0.0, %v8129
        %v8131 = vpop.f32.mrb[0].mxu0
        %v8132 = vpop.f32.mrb[0].mxu0
        %v8133 = vadd.f32 0.0, %v8132
        %v8134 = vpop.f32.mrb[0].mxu0
        %8135 = vmatprep.mubr.bf16.mxu0 0
        %8136 = vmatmul.mubr.bf16.gmra.mrb[0].mxu0 %v8077
        %v8137 = vpop.f32.mrb[0].mxu0
        %v8138 = vadd.f32 0.0, %v8137
        %v8139 = vpop.f32.mrb[0].mxu0
        %v8140 = vpop.f32.mrb[0].mxu0
        %v8141 = vadd.f32 0.0, %v8140
        %v8142 = vpop.f32.mrb[0].mxu0
        %8143 = vdwg.mxu0
        %v8144 = vadd.f32 %v7998, %v8114
        %v8145 = vadd.f32 %v7999, %v8117
        %v8146 = vadd.f32 %v8000, %v8122
        %v8147 = vadd.f32 %v8001, %v8125
        %v8148 = vadd.f32 %v8002, %v8130
        %v8149 = vadd.f32 %v8003, %v8133
        %v8150 = vadd.f32 %v8004, %v8138
        %v8151 = vadd.f32 %v8005, %v8141
        %v8152 = vld [vmem:[%s8006] sm:$0xf]
        %v8153 = vld [vmem:[%s8006 + $0x4] sm:$0x1]
        %v8154 = vld [vmem:[%s8006 + $0x8] sm:$0xf]
        %v8155 = vld [vmem:[%s8006 + $0xc] sm:$0x1]
        %v8156 = vld [vmem:[%s8006 + $0x10] sm:$0xf]
        %v8157 = vld [vmem:[%s8006 + $0x14] sm:$0x1]
        %v8158 = vld [vmem:[%s8006 + $0x18] sm:$0xf]
        %v8159 = vld [vmem:[%s8006 + $0x1c] sm:$0x1]
        %v8160 = vld [vmem:[%s8006 + $0x20] sm:$0xf]
        %v8161 = vld [vmem:[%s8006 + $0x24] sm:$0x1]
        %v8162 = vld [vmem:[%s8006 + $0x28] sm:$0xf]
        %v8163 = vld [vmem:[%s8006 + $0x2c] sm:$0x1]
        %v8164 = vld [vmem:[%s8006 + $0x30] sm:$0xf]
        %v8165 = vld [vmem:[%s8006 + $0x34] sm:$0x1]
        %v8166 = vld [vmem:[%s8006 + $0x38] sm:$0xf]
        %v8167 = vld [vmem:[%s8006 + $0x3c] sm:$0x1]
        %v8169 = vshrl.u32 %v8152, 16
        %v8171 = vrot.slane %v8169, 4
        %v8172 = vshll.u32 %v8152, 16
        %v8174 = vrot.slane %v8172, 5
        %v8175 = vor.u32 %v8171, %v8174
        %v8176 = vrot.slane %v8175, 4
        %v8178 = vshll.u32 %v8153, 16
        %v8180 = vrot.slane %v8178, 5
        %v8181 = vsel %vm6876, %v8176, %v8180
        %v8183 = vshrl.u32 %v8154, 16
        %v8185 = vrot.slane %v8183, 4
        %v8186 = vshll.u32 %v8154, 16
        %v8188 = vrot.slane %v8186, 5
        %v8189 = vor.u32 %v8185, %v8188
        %v8190 = vrot.slane %v8189, 4
        %v8192 = vshll.u32 %v8155, 16
        %v8194 = vrot.slane %v8192, 5
        %v8195 = vsel %vm6876, %v8190, %v8194
        %v8197 = vshrl.u32 %v8156, 16
        %v8199 = vrot.slane %v8197, 4
        %v8200 = vshll.u32 %v8156, 16
        %v8202 = vrot.slane %v8200, 5
        %v8203 = vor.u32 %v8199, %v8202
        %v8204 = vrot.slane %v8203, 4
        %v8206 = vshll.u32 %v8157, 16
        %v8208 = vrot.slane %v8206, 5
        %v8209 = vsel %vm6876, %v8204, %v8208
        %v8211 = vshrl.u32 %v8158, 16
        %v8213 = vrot.slane %v8211, 4
        %v8214 = vshll.u32 %v8158, 16
        %v8216 = vrot.slane %v8214, 5
        %v8217 = vor.u32 %v8213, %v8216
        %v8218 = vrot.slane %v8217, 4
        %v8220 = vshll.u32 %v8159, 16
        %v8222 = vrot.slane %v8220, 5
        %v8223 = vsel %vm6876, %v8218, %v8222
        %v8225 = vshrl.u32 %v8160, 16
        %v8227 = vrot.slane %v8225, 4
        %v8228 = vshll.u32 %v8160, 16
        %v8230 = vrot.slane %v8228, 5
        %v8231 = vor.u32 %v8227, %v8230
        %v8232 = vrot.slane %v8231, 4
        %v8234 = vshll.u32 %v8161, 16
        %v8236 = vrot.slane %v8234, 5
        %v8237 = vsel %vm6876, %v8232, %v8236
        %v8239 = vshrl.u32 %v8162, 16
        %v8241 = vrot.slane %v8239, 4
        %v8242 = vshll.u32 %v8162, 16
        %v8244 = vrot.slane %v8242, 5
        %v8245 = vor.u32 %v8241, %v8244
        %v8246 = vrot.slane %v8245, 4
        %v8248 = vshll.u32 %v8163, 16
        %v8250 = vrot.slane %v8248, 5
        %v8251 = vsel %vm6876, %v8246, %v8250
        %v8253 = vshrl.u32 %v8164, 16
        %v8255 = vrot.slane %v8253, 4
        %v8256 = vshll.u32 %v8164, 16
        %v8258 = vrot.slane %v8256, 5
        %v8259 = vor.u32 %v8255, %v8258
        %v8260 = vrot.slane %v8259, 4
        %v8262 = vshll.u32 %v8165, 16
        %v8264 = vrot.slane %v8262, 5
        %v8265 = vsel %vm6876, %v8260, %v8264
        %v8267 = vshrl.u32 %v8166, 16
        %v8269 = vrot.slane %v8267, 4
        %v8270 = vshll.u32 %v8166, 16
        %v8272 = vrot.slane %v8270, 5
        %v8273 = vor.u32 %v8269, %v8272
        %v8274 = vrot.slane %v8273, 4
        %v8276 = vshll.u32 %v8167, 16
        %v8278 = vrot.slane %v8276, 5
        %v8279 = vsel %vm6876, %v8274, %v8278
        %v8280 = vld [vmem:[%s10 + $0xe0] sm:$0xf]
        %v8281 = vld [vmem:[%s10 + $0xe4] sm:$0xf]
        %v8282 = vld [vmem:[%s10 + $0xe8] sm:$0xf]
        %v8283 = vld [vmem:[%s10 + $0xec] sm:$0xf]
        %v8284 = vld [vmem:[%s10 + $0xf0] sm:$0xf]
        %v8285 = vld [vmem:[%s10 + $0xf4] sm:$0xf]
        %v8286 = vld [vmem:[%s10 + $0xf8] sm:$0xf]
        %v8287 = vld [vmem:[%s10 + $0xfc] sm:$0xf]
        %v8288 = vunpack.c.l.b16 %v8181
        %v8289 = vunpack.c.l.b16 %v8195
        %v8290 = vunpack.c.l.b16 %v8209
        %v8291 = vunpack.c.l.b16 %v8223
        %v8292 = vunpack.c.l.b16 %v8237
        %v8293 = vunpack.c.l.b16 %v8251
        %v8294 = vunpack.c.l.b16 %v8265
        %v8295 = vunpack.c.l.b16 %v8279
        %v8296 = vpack.c.b16 %v8289, %v8288
        %v8297 = vpack.c.b16 %v8291, %v8290
        %v8298 = vpack.c.b16 %v8293, %v8292
        %v8299 = vpack.c.b16 %v8295, %v8294
        %v8308 = vunpack.c.l.b16 %v8280
        %v8309 = vunpack.c.l.b16 %v8281
        %v8310 = vunpack.c.l.b16 %v8282
        %v8311 = vunpack.c.l.b16 %v8283
        %v8312 = vunpack.c.l.b16 %v8284
        %v8313 = vunpack.c.l.b16 %v8285
        %v8314 = vunpack.c.l.b16 %v8286
        %v8315 = vunpack.c.l.b16 %v8287
        %v8316 = vpack.c.b16 %v8309, %v8308
        %v8317 = vpack.c.b16 %v8311, %v8310
        %v8318 = vpack.c.b16 %v8313, %v8312
        %v8319 = vpack.c.b16 %v8315, %v8314
        %v8325 = vsel %vm3434, %v8296, 0
        %v8328 = vsel %vm3434, %v8297, 0
        %v8331 = vsel %vm3434, %v8298, 0
        %v8334 = vsel %vm3434, %v8299, 0
        %8336 = vmatprep.subr.bf16.mxu0 0
        %8337 = vmatpush1.bf16.msra.mxu0 %v8316
        %8338 = vmatprep.subr.bf16.mxu0 0
        %8339 = vmatpush1.bf16.msra.mxu0 %v8317
        %8340 = vmatprep.subr.bf16.mxu0 0
        %8341 = vmatpush1.bf16.msra.mxu0 %v8318
        %8342 = vmatprep.subr.bf16.mxu0 0
        %8343 = vmatpush1.bf16.msra.mxu0 %v8319
        %8344 = vmatprep.subr.bf16.mxu0 0
        %8345 = vmatpush1.bf16.msra.mxu0 0
        %8346 = vmatprep.subr.bf16.mxu0 0
        %8347 = vmatpush1.bf16.msra.mxu0 0
        %8348 = vmatprep.subr.bf16.mxu0 0
        %8349 = vmatpush1.bf16.msra.mxu0 0
        %8350 = vmatprep.subr.bf16.mxu0 0
        %8351 = vmatpush1.bf16.msra.mxu0 0
        %8352 = vmatprep.subr.bf16.mxu0 0
        %8353 = vmatpush1.bf16.msra.mxu0 0
        %8354 = vmatprep.subr.bf16.mxu0 0
        %8355 = vmatpush1.bf16.msra.mxu0 0
        %8356 = vmatprep.subr.bf16.mxu0 0
        %8357 = vmatpush1.bf16.msra.mxu0 0
        %8358 = vmatprep.subr.bf16.mxu0 0
        %8359 = vmatpush1.bf16.msra.mxu0 0
        %8360 = vmatprep.subr.bf16.mxu0 0
        %8361 = vmatpush1.bf16.msra.mxu0 0
        %8362 = vmatprep.subr.bf16.mxu0 0
        %8363 = vmatpush1.bf16.msra.mxu0 0
        %8364 = vmatprep.subr.bf16.mxu0 0
        %8365 = vmatpush1.bf16.msra.mxu0 0
        %8366 = vmatprep.subr.bf16.mxu0 0
        %8367 = vmatpush1.bf16.msra.mxu0 0
        %8368 = vmatprep.mubr.bf16.mxu0 0
        %8369 = vmatmul.mubr.bf16.gmra.mrb[0].mxu0 %v8325
        %v8370 = vpop.f32.mrb[0].mxu0
        %v8371 = vadd.f32 0.0, %v8370
        %v8372 = vpop.f32.mrb[0].mxu0
        %v8373 = vpop.f32.mrb[0].mxu0
        %v8374 = vadd.f32 0.0, %v8373
        %v8375 = vpop.f32.mrb[0].mxu0
        %8376 = vmatprep.mubr.bf16.mxu0 0
        %8377 = vmatmul.mubr.bf16.gmra.mrb[0].mxu0 %v8328
        %v8378 = vpop.f32.mrb[0].mxu0
        %v8379 = vadd.f32 0.0, %v8378
        %v8380 = vpop.f32.mrb[0].mxu0
        %v8381 = vpop.f32.mrb[0].mxu0
        %v8382 = vadd.f32 0.0, %v8381
        %v8383 = vpop.f32.mrb[0].mxu0
        %8384 = vmatprep.mubr.bf16.mxu0 0
        %8385 = vmatmul.mubr.bf16.gmra.mrb[0].mxu0 %v8331
        %v8386 = vpop.f32.mrb[0].mxu0
        %v8387 = vadd.f32 0.0, %v8386
        %v8388 = vpop.f32.mrb[0].mxu0
        %v8389 = vpop.f32.mrb[0].mxu0
        %v8390 = vadd.f32 0.0, %v8389
        %v8391 = vpop.f32.mrb[0].mxu0
        %8392 = vmatprep.mubr.bf16.mxu0 0
        %8393 = vmatmul.mubr.bf16.gmra.mrb[0].mxu0 %v8334
        %v8394 = vpop.f32.mrb[0].mxu0
        %v8395 = vadd.f32 0.0, %v8394
        %v8396 = vpop.f32.mrb[0].mxu0
        %v8397 = vpop.f32.mrb[0].mxu0
        %v8398 = vadd.f32 0.0, %v8397
        %v8399 = vpop.f32.mrb[0].mxu0
        %8400 = vdwg.mxu0
        %v8401 = vadd.f32 %v8144, %v8371
        %v8402 = vadd.f32 %v8145, %v8374
        %v8403 = vadd.f32 %v8146, %v8379
        %v8404 = vadd.f32 %v8147, %v8382
        %v8405 = vadd.f32 %v8148, %v8387
        %v8406 = vadd.f32 %v8149, %v8390
        %v8407 = vadd.f32 %v8150, %v8395
        %v8408 = vadd.f32 %v8151, %v8398
        %v8409 = vld [vmem:[%s8006] sm:$0xe]
        %v8410 = vld [vmem:[%s8006 + $0x8] sm:$0xe]
        %v8411 = vld [vmem:[%s8006 + $0x10] sm:$0xe]
        %v8412 = vld [vmem:[%s8006 + $0x18] sm:$0xe]
        %v8413 = vld [vmem:[%s8006 + $0x20] sm:$0xe]
        %v8414 = vld [vmem:[%s8006 + $0x28] sm:$0xe]
        %v8415 = vld [vmem:[%s8006 + $0x30] sm:$0xe]
        %v8416 = vld [vmem:[%s8006 + $0x38] sm:$0xe]
        %v8433 = vrot.slane %v8409, 5
        %v8434 = vrot.slane %v8433, 4
        %v8435 = vrot.slane %v8153, 5
        %v8436 = vsel %vm7257, %v8434, %v8435
        %v8437 = vrot.slane %v8410, 5
        %v8438 = vrot.slane %v8437, 4
        %v8439 = vrot.slane %v8155, 5
        %v8440 = vsel %vm7257, %v8438, %v8439
        %v8441 = vrot.slane %v8411, 5
        %v8442 = vrot.slane %v8441, 4
        %v8443 = vrot.slane %v8157, 5
        %v8444 = vsel %vm7257, %v8442, %v8443
        %v8445 = vrot.slane %v8412, 5
        %v8446 = vrot.slane %v8445, 4
        %v8447 = vrot.slane %v8159, 5
        %v8448 = vsel %vm7257, %v8446, %v8447
        %v8449 = vrot.slane %v8413, 5
        %v8450 = vrot.slane %v8449, 4
        %v8451 = vrot.slane %v8161, 5
        %v8452 = vsel %vm7257, %v8450, %v8451
        %v8453 = vrot.slane %v8414, 5
        %v8454 = vrot.slane %v8453, 4
        %v8455 = vrot.slane %v8163, 5
        %v8456 = vsel %vm7257, %v8454, %v8455
        %v8457 = vrot.slane %v8415, 5
        %v8458 = vrot.slane %v8457, 4
        %v8459 = vrot.slane %v8165, 5
        %v8460 = vsel %vm7257, %v8458, %v8459
        %v8461 = vrot.slane %v8416, 5
        %v8462 = vrot.slane %v8461, 4
        %v8463 = vrot.slane %v8167, 5
        %v8464 = vsel %vm7257, %v8462, %v8463
        %v8465 = vld [vmem:[%s10 + $0x100] sm:$0xf]
        %v8466 = vld [vmem:[%s10 + $0x104] sm:$0xf]
        %v8467 = vld [vmem:[%s10 + $0x108] sm:$0xf]
        %v8468 = vld [vmem:[%s10 + $0x10c] sm:$0xf]
        %v8469 = vld [vmem:[%s10 + $0x110] sm:$0xf]
        %v8470 = vld [vmem:[%s10 + $0x114] sm:$0xf]
        %v8471 = vld [vmem:[%s10 + $0x118] sm:$0xf]
        %v8472 = vld [vmem:[%s10 + $0x11c] sm:$0xf]
        %v8473 = vunpack.c.l.b16 %v8436
        %v8474 = vunpack.c.l.b16 %v8440
        %v8475 = vunpack.c.l.b16 %v8444
        %v8476 = vunpack.c.l.b16 %v8448
        %v8477 = vunpack.c.l.b16 %v8452
        %v8478 = vunpack.c.l.b16 %v8456
        %v8479 = vunpack.c.l.b16 %v8460
        %v8480 = vunpack.c.l.b16 %v8464
        %v8481 = vpack.c.b16 %v8474, %v8473
        %v8482 = vpack.c.b16 %v8476, %v8475
        %v8483 = vpack.c.b16 %v8478, %v8477
        %v8484 = vpack.c.b16 %v8480, %v8479
        %v8493 = vunpack.c.l.b16 %v8465
        %v8494 = vunpack.c.l.b16 %v8466
        %v8495 = vunpack.c.l.b16 %v8467
        %v8496 = vunpack.c.l.b16 %v8468
        %v8497 = vunpack.c.l.b16 %v8469
        %v8498 = vunpack.c.l.b16 %v8470
        %v8499 = vunpack.c.l.b16 %v8471
        %v8500 = vunpack.c.l.b16 %v8472
        %v8501 = vpack.c.b16 %v8494, %v8493
        %v8502 = vpack.c.b16 %v8496, %v8495
        %v8503 = vpack.c.b16 %v8498, %v8497
        %v8504 = vpack.c.b16 %v8500, %v8499
        %v8510 = vsel %vm3434, %v8481, 0
        %v8513 = vsel %vm3434, %v8482, 0
        %v8516 = vsel %vm3434, %v8483, 0
        %v8519 = vsel %vm3434, %v8484, 0
        %8521 = vmatprep.subr.bf16.mxu0 0
        %8522 = vmatpush1.bf16.msra.mxu0 %v8501
        %8523 = vmatprep.subr.bf16.mxu0 0
        %8524 = vmatpush1.bf16.msra.mxu0 %v8502
        %8525 = vmatprep.subr.bf16.mxu0 0
        %8526 = vmatpush1.bf16.msra.mxu0 %v8503
        %8527 = vmatprep.subr.bf16.mxu0 0
        %8528 = vmatpush1.bf16.msra.mxu0 %v8504
        %8529 = vmatprep.subr.bf16.mxu0 0
        %8530 = vmatpush1.bf16.msra.mxu0 0
        %8531 = vmatprep.subr.bf16.mxu0 0
        %8532 = vmatpush1.bf16.msra.mxu0 0
        %8533 = vmatprep.subr.bf16.mxu0 0
        %8534 = vmatpush1.bf16.msra.mxu0 0
        %8535 = vmatprep.subr.bf16.mxu0 0
        %8536 = vmatpush1.bf16.msra.mxu0 0
        %8537 = vmatprep.subr.bf16.mxu0 0
        %8538 = vmatpush1.bf16.msra.mxu0 0
        %8539 = vmatprep.subr.bf16.mxu0 0
        %8540 = vmatpush1.bf16.msra.mxu0 0
        %8541 = vmatprep.subr.bf16.mxu0 0
        %8542 = vmatpush1.bf16.msra.mxu0 0
        %8543 = vmatprep.subr.bf16.mxu0 0
        %8544 = vmatpush1.bf16.msra.mxu0 0
        %8545 = vmatprep.subr.bf16.mxu0 0
        %8546 = vmatpush1.bf16.msra.mxu0 0
        %8547 = vmatprep.subr.bf16.mxu0 0
        %8548 = vmatpush1.bf16.msra.mxu0 0
        %8549 = vmatprep.subr.bf16.mxu0 0
        %8550 = vmatpush1.bf16.msra.mxu0 0
        %8551 = vmatprep.subr.bf16.mxu0 0
        %8552 = vmatpush1.bf16.msra.mxu0 0
        %8553 = vmatprep.mubr.bf16.mxu0 0
        %8554 = vmatmul.mubr.bf16.gmra.mrb[0].mxu0 %v8510
        %v8555 = vpop.f32.mrb[0].mxu0
        %v8556 = vadd.f32 0.0, %v8555
        %v8557 = vpop.f32.mrb[0].mxu0
        %v8558 = vpop.f32.mrb[0].mxu0
        %v8559 = vadd.f32 0.0, %v8558
        %v8560 = vpop.f32.mrb[0].mxu0
        %8561 = vmatprep.mubr.bf16.mxu0 0
        %8562 = vmatmul.mubr.bf16.gmra.mrb[0].mxu0 %v8513
        %v8563 = vpop.f32.mrb[0].mxu0
        %v8564 = vadd.f32 0.0, %v8563
        %v8565 = vpop.f32.mrb[0].mxu0
        %v8566 = vpop.f32.mrb[0].mxu0
        %v8567 = vadd.f32 0.0, %v8566
        %v8568 = vpop.f32.mrb[0].mxu0
        %8569 = vmatprep.mubr.bf16.mxu0 0
        %8570 = vmatmul.mubr.bf16.gmra.mrb[0].mxu0 %v8516
        %v8571 = vpop.f32.mrb[0].mxu0
        %v8572 = vadd.f32 0.0, %v8571
        %v8573 = vpop.f32.mrb[0].mxu0
        %v8574 = vpop.f32.mrb[0].mxu0
        %v8575 = vadd.f32 0.0, %v8574
        %v8576 = vpop.f32.mrb[0].mxu0
        %8577 = vmatprep.mubr.bf16.mxu0 0
        %8578 = vmatmul.mubr.bf16.gmra.mrb[0].mxu0 %v8519
        %v8579 = vpop.f32.mrb[0].mxu0
        %v8580 = vadd.f32 0.0, %v8579
        %v8581 = vpop.f32.mrb[0].mxu0
        %v8582 = vpop.f32.mrb[0].mxu0
        %v8583 = vadd.f32 0.0, %v8582
        %v8584 = vpop.f32.mrb[0].mxu0
        %8585 = vdwg.mxu0
        %v8586 = vadd.f32 %v8401, %v8556
        %v8587 = vadd.f32 %v8402, %v8559
        %v8588 = vadd.f32 %v8403, %v8564
        %v8589 = vadd.f32 %v8404, %v8567
        %v8590 = vadd.f32 %v8405, %v8572
        %v8591 = vadd.f32 %v8406, %v8575
        %v8592 = vadd.f32 %v8407, %v8580
        %v8593 = vadd.f32 %v8408, %v8583
        %v8594 = vld [vmem:[%s11] sm:$0x1]
        %v8596 = vlaneseq
        %v8597 = vshrl.u32 %v8596, 7
        %v8598 = vsub.s32 0, %v8597
        %v8599 = vrot.slane %v8594, %v8598
        %v8601 = vmul.f32 %v8586, %v8599
        %v8602 = vmul.f32 %v8587, %v8599
        %v8603 = vmul.f32 %v8588, %v8599
        %v8604 = vmul.f32 %v8589, %v8599
        %v8605 = vmul.f32 %v8590, %v8599
        %v8606 = vmul.f32 %v8591, %v8599
        %v8607 = vmul.f32 %v8592, %v8599
        %v8608 = vmul.f32 %v8593, %v8599
        %v8609 = vld [vmem:[%s12] sm:$0x1]
        %v8611 = vlaneseq
        %v8612 = vshrl.u32 %v8611, 7
        %v8613 = vsub.s32 0, %v8612
        %v8614 = vrot.slane %v8609, %v8613
        %v8616 = vadd.f32 %v8601, %v8614
        %v8617 = vadd.f32 %v8602, %v8614
        %v8618 = vadd.f32 %v8603, %v8614
        %v8619 = vadd.f32 %v8604, %v8614
        %v8620 = vadd.f32 %v8605, %v8614
        %v8621 = vadd.f32 %v8606, %v8614
        %v8622 = vadd.f32 %v8607, %v8614
        %v8623 = vadd.f32 %v8608, %v8614
        %v8624 = vmax.f32 %v8616, 0.0
        %v8625 = vmax.f32 %v8617, 0.0
        %v8626 = vmax.f32 %v8618, 0.0
        %v8627 = vmax.f32 %v8619, 0.0
        %v8628 = vmax.f32 %v8620, 0.0
        %v8629 = vmax.f32 %v8621, 0.0
        %v8630 = vmax.f32 %v8622, 0.0
        %v8631 = vmax.f32 %v8623, 0.0
        %v8640 = vcombine.high %v8624, %v8624
        %v8642 = vunpack.c.l.s4 1983009808
        %v8643 = vunpack.c.0.s8 %v8642
        %v8644 = vlaneseq
        %v8645 = vshrl.u32 %v8644, 7
        %v8646 = vsub.s32 %v8643, %v8645
        %v8647 = vrot.slane %v8624, %v8646
        %v8649 = vunpack.c.l.s4 1983009808
        %v8650 = vunpack.c.0.s8 %v8649
        %v8651 = vlaneseq
        %v8652 = vshrl.u32 %v8651, 7
        %v8653 = vsub.s32 %v8650, %v8652
        %v8654 = vrot.slane %v8640, %v8653
        %v8655 = vcombine.high %v8647, %v8647
        %v8656 = vcombine.high %v8654, %v8654
        %v8657 = vcombine.high %v8625, %v8625
        %v8659 = vunpack.c.l.s4 1983009808
        %v8660 = vunpack.c.0.s8 %v8659
        %v8661 = vlaneseq
        %v8662 = vshrl.u32 %v8661, 7
        %v8663 = vsub.s32 %v8660, %v8662
        %v8664 = vrot.slane %v8625, %v8663
        %v8666 = vunpack.c.l.s4 1983009808
        %v8667 = vunpack.c.0.s8 %v8666
        %v8668 = vlaneseq
        %v8669 = vshrl.u32 %v8668, 7
        %v8670 = vsub.s32 %v8667, %v8669
        %v8671 = vrot.slane %v8657, %v8670
        %v8672 = vcombine.high %v8664, %v8664
        %v8673 = vcombine.high %v8671, %v8671
        %v8674 = vcombine.high %v8626, %v8626
        %v8676 = vunpack.c.l.s4 1983009808
        %v8677 = vunpack.c.0.s8 %v8676
        %v8678 = vlaneseq
        %v8679 = vshrl.u32 %v8678, 7
        %v8680 = vsub.s32 %v8677, %v8679
        %v8681 = vrot.slane %v8626, %v8680
        %v8683 = vunpack.c.l.s4 1983009808
        %v8684 = vunpack.c.0.s8 %v8683
        %v8685 = vlaneseq
        %v8686 = vshrl.u32 %v8685, 7
        %v8687 = vsub.s32 %v8684, %v8686
        %v8688 = vrot.slane %v8674, %v8687
        %v8689 = vcombine.high %v8681, %v8681
        %v8690 = vcombine.high %v8688, %v8688
        %v8691 = vcombine.high %v8627, %v8627
        %v8693 = vunpack.c.l.s4 1983009808
        %v8694 = vunpack.c.0.s8 %v8693
        %v8695 = vlaneseq
        %v8696 = vshrl.u32 %v8695, 7
        %v8697 = vsub.s32 %v8694, %v8696
        %v8698 = vrot.slane %v8627, %v8697
        %v8700 = vunpack.c.l.s4 1983009808
        %v8701 = vunpack.c.0.s8 %v8700
        %v8702 = vlaneseq
        %v8703 = vshrl.u32 %v8702, 7
        %v8704 = vsub.s32 %v8701, %v8703
        %v8705 = vrot.slane %v8691, %v8704
        %v8706 = vcombine.high %v8698, %v8698
        %v8707 = vcombine.high %v8705, %v8705
        %v8708 = vcombine.high %v8628, %v8628
        %v8710 = vunpack.c.l.s4 1983009808
        %v8711 = vunpack.c.0.s8 %v8710
        %v8712 = vlaneseq
        %v8713 = vshrl.u32 %v8712, 7
        %v8714 = vsub.s32 %v8711, %v8713
        %v8715 = vrot.slane %v8628, %v8714
        %v8717 = vunpack.c.l.s4 1983009808
        %v8718 = vunpack.c.0.s8 %v8717
        %v8719 = vlaneseq
        %v8720 = vshrl.u32 %v8719, 7
        %v8721 = vsub.s32 %v8718, %v8720
        %v8722 = vrot.slane %v8708, %v8721
        %v8723 = vcombine.high %v8715, %v8715
        %v8724 = vcombine.high %v8722, %v8722
        %v8725 = vcombine.high %v8629, %v8629
        %v8727 = vunpack.c.l.s4 1983009808
        %v8728 = vunpack.c.0.s8 %v8727
        %v8729 = vlaneseq
        %v8730 = vshrl.u32 %v8729, 7
        %v8731 = vsub.s32 %v8728, %v8730
        %v8732 = vrot.slane %v8629, %v8731
        %v8734 = vunpack.c.l.s4 1983009808
        %v8735 = vunpack.c.0.s8 %v8734
        %v8736 = vlaneseq
        %v8737 = vshrl.u32 %v8736, 7
        %v8738 = vsub.s32 %v8735, %v8737
        %v8739 = vrot.slane %v8725, %v8738
        %v8740 = vcombine.high %v8732, %v8732
        %v8741 = vcombine.high %v8739, %v8739
        %v8742 = vcombine.high %v8630, %v8630
        %v8744 = vunpack.c.l.s4 1983009808
        %v8745 = vunpack.c.0.s8 %v8744
        %v8746 = vlaneseq
        %v8747 = vshrl.u32 %v8746, 7
        %v8748 = vsub.s32 %v8745, %v8747
        %v8749 = vrot.slane %v8630, %v8748
        %v8751 = vunpack.c.l.s4 1983009808
        %v8752 = vunpack.c.0.s8 %v8751
        %v8753 = vlaneseq
        %v8754 = vshrl.u32 %v8753, 7
        %v8755 = vsub.s32 %v8752, %v8754
        %v8756 = vrot.slane %v8742, %v8755
        %v8757 = vcombine.high %v8749, %v8749
        %v8758 = vcombine.high %v8756, %v8756
        %v8759 = vcombine.high %v8631, %v8631
        %v8761 = vunpack.c.l.s4 1983009808
        %v8762 = vunpack.c.0.s8 %v8761
        %v8763 = vlaneseq
        %v8764 = vshrl.u32 %v8763, 7
        %v8765 = vsub.s32 %v8762, %v8764
        %v8766 = vrot.slane %v8631, %v8765
        %v8768 = vunpack.c.l.s4 1983009808
        %v8769 = vunpack.c.0.s8 %v8768
        %v8770 = vlaneseq
        %v8771 = vshrl.u32 %v8770, 7
        %v8772 = vsub.s32 %v8769, %v8771
        %v8773 = vrot.slane %v8759, %v8772
        %v8774 = vcombine.high %v8766, %v8766
        %v8775 = vcombine.high %v8773, %v8773
        %v8808 = vmax.f32 %v8647, %v8664
        %v8809 = vmax.f32 %v8655, %v8672
        %v8810 = vmax.f32 %v8654, %v8671
        %v8811 = vmax.f32 %v8656, %v8673
        %v8812 = vmax.f32 %v8681, %v8698
        %v8813 = vmax.f32 %v8689, %v8706
        %v8814 = vmax.f32 %v8688, %v8705
        %v8815 = vmax.f32 %v8690, %v8707
        %v8816 = vmax.f32 %v8715, %v8732
        %v8817 = vmax.f32 %v8723, %v8740
        %v8818 = vmax.f32 %v8722, %v8739
        %v8819 = vmax.f32 %v8724, %v8741
        %v8820 = vmax.f32 %v8749, %v8766
        %v8821 = vmax.f32 %v8757, %v8774
        %v8822 = vmax.f32 %v8756, %v8773
        %v8823 = vmax.f32 %v8758, %v8775
        %v8840 = vrot.slane %v8808, 7
        %v8841 = vrot.slane %v8840, 2
        %v8842 = vrot.slane %v8809, 7
        %v8843 = vrot.slane %v8842, 2
        %v8844 = vrot.slane %v8810, 7
        %v8845 = vrot.slane %v8844, 2
        %v8846 = vrot.slane %v8811, 7
        %v8847 = vrot.slane %v8846, 2
        %v8848 = vrot.slane %v8812, 7
        %v8849 = vrot.slane %v8848, 2
        %v8850 = vrot.slane %v8813, 7
        %v8851 = vrot.slane %v8850, 2
        %v8852 = vrot.slane %v8814, 7
        %v8853 = vrot.slane %v8852, 2
        %v8854 = vrot.slane %v8815, 7
        %v8855 = vrot.slane %v8854, 2
        %v8856 = vrot.slane %v8816, 7
        %v8857 = vrot.slane %v8856, 2
        %v8858 = vrot.slane %v8817, 7
        %v8859 = vrot.slane %v8858, 2
        %v8860 = vrot.slane %v8818, 7
        %v8861 = vrot.slane %v8860, 2
        %v8862 = vrot.slane %v8819, 7
        %v8863 = vrot.slane %v8862, 2
        %v8864 = vrot.slane %v8820, 7
        %v8865 = vrot.slane %v8864, 2
        %v8866 = vrot.slane %v8821, 7
        %v8867 = vrot.slane %v8866, 2
        %v8868 = vrot.slane %v8822, 7
        %v8869 = vrot.slane %v8868, 2
        %v8870 = vrot.slane %v8823, 7
        %v8871 = vrot.slane %v8870, 2
        %v8888 = vmax.f32 %v8808, %v8841
        %v8889 = vmax.f32 %v8809, %v8843
        %v8890 = vmax.f32 %v8810, %v8845
        %v8891 = vmax.f32 %v8811, %v8847
        %v8892 = vmax.f32 %v8812, %v8849
        %v8893 = vmax.f32 %v8813, %v8851
        %v8894 = vmax.f32 %v8814, %v8853
        %v8895 = vmax.f32 %v8815, %v8855
        %v8896 = vmax.f32 %v8816, %v8857
        %v8897 = vmax.f32 %v8817, %v8859
        %v8898 = vmax.f32 %v8818, %v8861
        %v8899 = vmax.f32 %v8819, %v8863
        %v8900 = vmax.f32 %v8820, %v8865
        %v8901 = vmax.f32 %v8821, %v8867
        %v8902 = vmax.f32 %v8822, %v8869
        %v8903 = vmax.f32 %v8823, %v8871
        %v8904 = vpack.c.bf16 %v8888, %v8888
        %v8905 = vpack.c.bf16 %v8889, %v8889
        %v8906 = vpack.c.bf16 %v8890, %v8890
        %v8907 = vpack.c.bf16 %v8891, %v8891
        %v8908 = vpack.c.bf16 %v8892, %v8892
        %v8909 = vpack.c.bf16 %v8893, %v8893
        %v8910 = vpack.c.bf16 %v8894, %v8894
        %v8911 = vpack.c.bf16 %v8895, %v8895
        %v8912 = vpack.c.bf16 %v8896, %v8896
        %v8913 = vpack.c.bf16 %v8897, %v8897
        %v8914 = vpack.c.bf16 %v8898, %v8898
        %v8915 = vpack.c.bf16 %v8899, %v8899
        %v8916 = vpack.c.bf16 %v8900, %v8900
        %v8917 = vpack.c.bf16 %v8901, %v8901
        %v8918 = vpack.c.bf16 %v8902, %v8902
        %v8919 = vpack.c.bf16 %v8903, %v8903
        %8920 = vst [vmem:[#allocation5] sm:$0x7] 0
        %8921 = vst [vmem:[#allocation5 + $0x4] sm:$0x7] 0
        %8922 = vst [vmem:[#allocation5 + $0x8] sm:$0x7] 0
        %8923 = vst [vmem:[#allocation5 + $0xc] sm:$0x7] 0
        %8924 = vst [vmem:[#allocation5 + $0x10] sm:$0x7] 0
        %8925 = vst [vmem:[#allocation5 + $0x14] sm:$0x7] 0
        %v8942 = vunpack.c.l.b16 %v8904
        %v8943 = vunpack.c.l.b16 %v8905
        %v8944 = vunpack.c.l.b16 %v8906
        %v8945 = vunpack.c.l.b16 %v8907
        %v8946 = vunpack.c.l.b16 %v8908
        %v8947 = vunpack.c.l.b16 %v8909
        %v8948 = vunpack.c.l.b16 %v8910
        %v8949 = vunpack.c.l.b16 %v8911
        %v8950 = vunpack.c.l.b16 %v8912
        %v8951 = vunpack.c.l.b16 %v8913
        %v8952 = vunpack.c.l.b16 %v8914
        %v8953 = vunpack.c.l.b16 %v8915
        %v8954 = vunpack.c.l.b16 %v8916
        %v8955 = vunpack.c.l.b16 %v8917
        %v8956 = vunpack.c.l.b16 %v8918
        %v8957 = vunpack.c.l.b16 %v8919
        %v8958 = vpack.c.b16 %v8942, %v8942
        %v8959 = vpack.c.b16 %v8943, %v8943
        %v8960 = vpack.c.b16 %v8944, %v8944
        %v8961 = vpack.c.b16 %v8945, %v8945
        %v8962 = vpack.c.b16 %v8946, %v8946
        %v8963 = vpack.c.b16 %v8947, %v8947
        %v8964 = vpack.c.b16 %v8948, %v8948
        %v8965 = vpack.c.b16 %v8949, %v8949
        %v8966 = vpack.c.b16 %v8950, %v8950
        %v8967 = vpack.c.b16 %v8951, %v8951
        %v8968 = vpack.c.b16 %v8952, %v8952
        %v8969 = vpack.c.b16 %v8953, %v8953
        %v8970 = vpack.c.b16 %v8954, %v8954
        %v8971 = vpack.c.b16 %v8955, %v8955
        %v8972 = vpack.c.b16 %v8956, %v8956
        %v8973 = vpack.c.b16 %v8957, %v8957
        %v8974 = vunpack.c.l.b16 %v8958
        %v8975 = vunpack.c.l.b16 %v8959
        %v8976 = vunpack.c.l.b16 %v8960
        %v8977 = vunpack.c.l.b16 %v8961
        %v8978 = vunpack.c.l.b16 %v8962
        %v8979 = vunpack.c.l.b16 %v8963
        %v8980 = vunpack.c.l.b16 %v8964
        %v8981 = vunpack.c.l.b16 %v8965
        %v8982 = vunpack.c.l.b16 %v8966
        %v8983 = vunpack.c.l.b16 %v8967
        %v8984 = vunpack.c.l.b16 %v8968
        %v8985 = vunpack.c.l.b16 %v8969
        %v8986 = vunpack.c.l.b16 %v8970
        %v8987 = vunpack.c.l.b16 %v8971
        %v8988 = vunpack.c.l.b16 %v8972
        %v8989 = vunpack.c.l.b16 %v8973
        %v8990 = vrot.slane %v8974, 7
        %v8991 = vrot.slane %v8975, 6
        %v8992 = vsel %vm5405, %v8991, %v8990
        %v8993 = vrot.slane %v8976, 5
        %v8994 = vsel %vm5408, %v8993, %v8992
        %v8995 = vrot.slane %v8977, 4
        %v8996 = vsel %vm5411, %v8995, %v8994
        %v8997 = vrot.slane %v8978, 7
        %v8998 = vrot.slane %v8979, 6
        %v8999 = vsel %vm5405, %v8998, %v8997
        %v9000 = vrot.slane %v8980, 5
        %v9001 = vsel %vm5408, %v9000, %v8999
        %v9002 = vrot.slane %v8981, 4
        %v9003 = vsel %vm5411, %v9002, %v9001
        %v9004 = vrot.slane %v8982, 7
        %v9005 = vrot.slane %v8983, 6
        %v9006 = vsel %vm5405, %v9005, %v9004
        %v9007 = vrot.slane %v8984, 5
        %v9008 = vsel %vm5408, %v9007, %v9006
        %v9009 = vrot.slane %v8985, 4
        %v9010 = vsel %vm5411, %v9009, %v9008
        %v9011 = vrot.slane %v8986, 7
        %v9012 = vrot.slane %v8987, 6
        %v9013 = vsel %vm5405, %v9012, %v9011
        %v9014 = vrot.slane %v8988, 5
        %v9015 = vsel %vm5408, %v9014, %v9013
        %v9016 = vrot.slane %v8989, 4
        %v9017 = vsel %vm5411, %v9016, %v9015
        %v9018 = vpack.c.b16 %v8996, %v8996
        %v9019 = vpack.c.b16 %v9003, %v9003
        %v9020 = vpack.c.b16 %v9010, %v9010
        %v9021 = vpack.c.b16 %v9017, %v9017
        %s9026 = scalar_lea.vmem [#allocation5], 4
        %vm9027 = vsmask.f32 2306
        %vm9028 = vmand %vm7255, %vm9027
        %v9029 = vld [vmem:[%s9026] sm:$0x7]
        %v9030 = vsel %vm9028, %v9018, %v9029
        %9031 = vst [vmem:[%s9026] sm:$0x7] %v9030
        %v9032 = vld [vmem:[%s9026 + $0x4] sm:$0x7]
        %v9033 = vsel %vm9028, %v9019, %v9032
        %9034 = vst [vmem:[%s9026 + $0x4] sm:$0x7] %v9033
        %v9035 = vld [vmem:[%s9026 + $0x8] sm:$0x7]
        %v9036 = vsel %vm9028, %v9020, %v9035
        %9037 = vst [vmem:[%s9026 + $0x8] sm:$0x7] %v9036
        %v9038 = vld [vmem:[%s9026 + $0xc] sm:$0x7]
        %v9039 = vsel %vm9028, %v9021, %v9038
        %9040 = vst [vmem:[%s9026 + $0xc] sm:$0x7] %v9039
        %v9041 = vld [vmem:[#allocation5] sm:$0x3]
        %v9042 = vld [vmem:[#allocation5 + $0x4] sm:$0x3]
        %v9043 = vld [vmem:[#allocation5 + $0x8] sm:$0x3]
        %v9044 = vld [vmem:[#allocation5 + $0xc] sm:$0x3]
        %v9045 = vld [vmem:[%s13] sm:$0xff]
        %v9046 = vld [vmem:[%s13 + $0x8] sm:$0xff]
        %v9047 = vld [vmem:[%s13 + $0x10] sm:$0xff]
        %v9048 = vld [vmem:[%s13 + $0x18] sm:$0xff]
        %v9049 = vld [vmem:[%s13 + $0x20] sm:$0xff]
        %v9050 = vld [vmem:[%s13 + $0x28] sm:$0xff]
        %v9051 = vld [vmem:[%s13 + $0x30] sm:$0xff]
        %v9052 = vld [vmem:[%s13 + $0x38] sm:$0xff]
        %v9053 = vld [vmem:[%s13 + $0x40] sm:$0xff]
        %v9054 = vld [vmem:[%s13 + $0x48] sm:$0xff]
        %v9055 = vld [vmem:[%s13 + $0x50] sm:$0xff]
        %v9056 = vld [vmem:[%s13 + $0x58] sm:$0xff]
        %v9057 = vld [vmem:[%s13 + $0x60] sm:$0xff]
        %v9058 = vld [vmem:[%s13 + $0x68] sm:$0xff]
        %v9059 = vld [vmem:[%s13 + $0x70] sm:$0xff]
        %v9060 = vld [vmem:[%s13 + $0x78] sm:$0xff]
        %v9061 = vld [vmem:[#allocation5] sm:$0x7]
        %v9062 = vld [vmem:[#allocation5 + $0x4] sm:$0x7]
        %v9063 = vld [vmem:[#allocation5 + $0x8] sm:$0x7]
        %v9064 = vld [vmem:[#allocation5 + $0xc] sm:$0x7]
        %v9070 = vunpack.c.l.s4 1983009808
        %v9071 = vunpack.c.0.s8 %v9070
        %v9072 = vlaneseq
        %v9073 = vshrl.u32 %v9072, 7
        %v9074 = vsub.s32 %v9071, %v9073
        %v9075 = vrot.slane %v9061, %v9074
        %v9076 = vcombine.high %v9075, %v9075
        %v9078 = vunpack.c.l.s4 1983009808
        %v9079 = vunpack.c.0.s8 %v9078
        %v9080 = vlaneseq
        %v9081 = vshrl.u32 %v9080, 7
        %v9082 = vsub.s32 %v9079, %v9081
        %v9083 = vrot.slane %v9062, %v9082
        %v9084 = vcombine.high %v9083, %v9083
        %v9086 = vunpack.c.l.s4 1983009808
        %v9087 = vunpack.c.0.s8 %v9086
        %v9088 = vlaneseq
        %v9089 = vshrl.u32 %v9088, 7
        %v9090 = vsub.s32 %v9087, %v9089
        %v9091 = vrot.slane %v9063, %v9090
        %v9092 = vcombine.high %v9091, %v9091
        %v9094 = vunpack.c.l.s4 1983009808
        %v9095 = vunpack.c.0.s8 %v9094
        %v9096 = vlaneseq
        %v9097 = vshrl.u32 %v9096, 7
        %v9098 = vsub.s32 %v9095, %v9097
        %v9099 = vrot.slane %v9064, %v9098
        %v9100 = vcombine.high %v9099, %v9099
        %vm9101 = vsmask.f32 1280
        %vm9102 = vsmask.f32 3336
        %vm9103 = vmor %vm9101, %vm9102
        %vm9104 = vsmask.f32 5392
        %vm9105 = vmor %vm9103, %vm9104
        %vm9106 = vsmask.f32 7448
        %vm9107 = vmor %vm9105, %vm9106
        %v9109 = vshrl.u32 %v9075, 16
        %v9111 = vrot.slane %v9109, 6
        %v9112 = vshll.u32 %v9075, 16
        %v9114 = vrot.slane %v9112, 7
        %v9115 = vor.u32 %v9111, %v9114
        %v9116 = vrot.slane %v9115, 2
        %v9118 = vshll.u32 %v9076, 16
        %v9120 = vrot.slane %v9118, 7
        %v9121 = vsel %vm9107, %v9116, %v9120
        %v9123 = vshrl.u32 %v9083, 16
        %v9125 = vrot.slane %v9123, 6
        %v9126 = vshll.u32 %v9083, 16
        %v9128 = vrot.slane %v9126, 7
        %v9129 = vor.u32 %v9125, %v9128
        %v9130 = vrot.slane %v9129, 2
        %v9132 = vshll.u32 %v9084, 16
        %v9134 = vrot.slane %v9132, 7
        %v9135 = vsel %vm9107, %v9130, %v9134
        %v9137 = vshrl.u32 %v9091, 16
        %v9139 = vrot.slane %v9137, 6
        %v9140 = vshll.u32 %v9091, 16
        %v9142 = vrot.slane %v9140, 7
        %v9143 = vor.u32 %v9139, %v9142
        %v9144 = vrot.slane %v9143, 2
        %v9146 = vshll.u32 %v9092, 16
        %v9148 = vrot.slane %v9146, 7
        %v9149 = vsel %vm9107, %v9144, %v9148
        %v9151 = vshrl.u32 %v9099, 16
        %v9153 = vrot.slane %v9151, 6
        %v9154 = vshll.u32 %v9099, 16
        %v9156 = vrot.slane %v9154, 7
        %v9157 = vor.u32 %v9153, %v9156
        %v9158 = vrot.slane %v9157, 2
        %v9160 = vshll.u32 %v9100, 16
        %v9162 = vrot.slane %v9160, 7
        %v9163 = vsel %vm9107, %v9158, %v9162
        %v9164 = vld [vmem:[%s13 + $0x80] sm:$0xff]
        %v9165 = vld [vmem:[%s13 + $0x88] sm:$0xff]
        %v9166 = vld [vmem:[%s13 + $0x90] sm:$0xff]
        %v9167 = vld [vmem:[%s13 + $0x98] sm:$0xff]
        %v9168 = vld [vmem:[%s13 + $0xa0] sm:$0xff]
        %v9169 = vld [vmem:[%s13 + $0xa8] sm:$0xff]
        %v9170 = vld [vmem:[%s13 + $0xb0] sm:$0xff]
        %v9171 = vld [vmem:[%s13 + $0xb8] sm:$0xff]
        %v9172 = vld [vmem:[%s13 + $0xc0] sm:$0xff]
        %v9173 = vld [vmem:[%s13 + $0xc8] sm:$0xff]
        %v9174 = vld [vmem:[%s13 + $0xd0] sm:$0xff]
        %v9175 = vld [vmem:[%s13 + $0xd8] sm:$0xff]
        %v9176 = vld [vmem:[%s13 + $0xe0] sm:$0xff]
        %v9177 = vld [vmem:[%s13 + $0xe8] sm:$0xff]
        %v9178 = vld [vmem:[%s13 + $0xf0] sm:$0xff]
        %v9179 = vld [vmem:[%s13 + $0xf8] sm:$0xff]
        %v9180 = vcombine.low %v9121, %v9135
        %v9181 = vcombine.low %v9149, %v9163
        %v9183 = vunpack.c.l.s4 1983009808
        %v9184 = vunpack.c.0.s8 %v9183
        %v9185 = vlaneseq
        %v9186 = vshrl.u32 %v9185, 7
        %v9187 = vsub.s32 %v9184, %v9186
        %v9188 = vrot.slane %v9180, %v9187
        %v9190 = vunpack.c.l.s4 1983009808
        %v9191 = vunpack.c.0.s8 %v9190
        %v9192 = vlaneseq
        %v9193 = vshrl.u32 %v9192, 7
        %v9194 = vsub.s32 %v9191, %v9193
        %v9195 = vrot.slane %v9181, %v9194
        %v9196 = vcombine.low %v9188, %v9195
        %v9214 = vunpack.c.l.b16 %v9164
        %v9215 = vunpack.c.h.b16 %v9164
        %v9216 = vunpack.c.l.b16 %v9165
        %v9217 = vunpack.c.h.b16 %v9165
        %v9218 = vunpack.c.l.b16 %v9166
        %v9219 = vunpack.c.h.b16 %v9166
        %v9220 = vunpack.c.l.b16 %v9167
        %v9221 = vunpack.c.h.b16 %v9167
        %v9222 = vunpack.c.l.b16 %v9168
        %v9223 = vunpack.c.h.b16 %v9168
        %v9224 = vunpack.c.l.b16 %v9169
        %v9225 = vunpack.c.h.b16 %v9169
        %v9226 = vunpack.c.l.b16 %v9170
        %v9227 = vunpack.c.h.b16 %v9170
        %v9228 = vunpack.c.l.b16 %v9171
        %v9229 = vunpack.c.h.b16 %v9171
        %v9230 = vunpack.c.l.b16 %v9172
        %v9231 = vunpack.c.h.b16 %v9172
        %v9232 = vunpack.c.l.b16 %v9173
        %v9233 = vunpack.c.h.b16 %v9173
        %v9234 = vunpack.c.l.b16 %v9174
        %v9235 = vunpack.c.h.b16 %v9174
        %v9236 = vunpack.c.l.b16 %v9175
        %v9237 = vunpack.c.h.b16 %v9175
        %v9238 = vunpack.c.l.b16 %v9176
        %v9239 = vunpack.c.h.b16 %v9176
        %v9240 = vunpack.c.l.b16 %v9177
        %v9241 = vunpack.c.h.b16 %v9177
        %v9242 = vunpack.c.l.b16 %v9178
        %v9243 = vunpack.c.h.b16 %v9178
        %v9244 = vunpack.c.l.b16 %v9179
        %v9245 = vunpack.c.h.b16 %v9179
        %v9246 = vpack.c.b16 %v9216, %v9214
        %v9247 = vpack.c.b16 %v9217, %v9215
        %v9248 = vpack.c.b16 %v9220, %v9218
        %v9249 = vpack.c.b16 %v9221, %v9219
        %v9250 = vpack.c.b16 %v9224, %v9222
        %v9251 = vpack.c.b16 %v9225, %v9223
        %v9252 = vpack.c.b16 %v9228, %v9226
        %v9253 = vpack.c.b16 %v9229, %v9227
        %v9254 = vpack.c.b16 %v9232, %v9230
        %v9255 = vpack.c.b16 %v9233, %v9231
        %v9256 = vpack.c.b16 %v9236, %v9234
        %v9257 = vpack.c.b16 %v9237, %v9235
        %v9258 = vpack.c.b16 %v9240, %v9238
        %v9259 = vpack.c.b16 %v9241, %v9239
        %v9260 = vpack.c.b16 %v9244, %v9242
        %v9261 = vpack.c.b16 %v9245, %v9243
        %9278 = vmatprep.subr.bf16.mxu0 %v9247
        %9279 = vmatpush1.bf16.msra.mxu0 %v9246
        %9280 = vmatprep.subr.bf16.mxu0 %v9249
        %9281 = vmatpush1.bf16.msra.mxu0 %v9248
        %9282 = vmatprep.subr.bf16.mxu0 %v9251
        %9283 = vmatpush1.bf16.msra.mxu0 %v9250
        %9284 = vmatprep.subr.bf16.mxu0 %v9253
        %9285 = vmatpush1.bf16.msra.mxu0 %v9252
        %9286 = vmatprep.subr.bf16.mxu0 %v9255
        %9287 = vmatpush1.bf16.msra.mxu0 %v9254
        %9288 = vmatprep.subr.bf16.mxu0 %v9257
        %9289 = vmatpush1.bf16.msra.mxu0 %v9256
        %9290 = vmatprep.subr.bf16.mxu0 %v9259
        %9291 = vmatpush1.bf16.msra.mxu0 %v9258
        %9292 = vmatprep.subr.bf16.mxu0 %v9261
        %9293 = vmatpush1.bf16.msra.mxu0 %v9260
        %9294 = vmatprep.subr.bf16.mxu0 0
        %9295 = vmatpush1.bf16.msra.mxu0 0
        %9296 = vmatprep.subr.bf16.mxu0 0
        %9297 = vmatpush1.bf16.msra.mxu0 0
        %9298 = vmatprep.subr.bf16.mxu0 0
        %9299 = vmatpush1.bf16.msra.mxu0 0
        %9300 = vmatprep.subr.bf16.mxu0 0
        %9301 = vmatpush1.bf16.msra.mxu0 0
        %9302 = vmatprep.subr.bf16.mxu0 0
        %9303 = vmatpush1.bf16.msra.mxu0 0
        %9304 = vmatprep.subr.bf16.mxu0 0
        %9305 = vmatpush1.bf16.msra.mxu0 0
        %9306 = vmatprep.subr.bf16.mxu0 0
        %9307 = vmatpush1.bf16.msra.mxu0 0
        %9308 = vmatprep.subr.bf16.mxu0 0
        %9309 = vmatpush1.bf16.msra.mxu0 0
        %9310 = vmatprep.mubr.bf16.mxu0 0
        %9311 = vmatmul.mubr.bf16.gmra.mrb[0].mxu0 %v9196
        %v9312 = vpop.f32.mrb[0].mxu0
        %v9313 = vadd.f32 0.0, %v9312
        %v9314 = vpop.f32.mrb[0].mxu0
        %v9315 = vadd.f32 0.0, %v9314
        %v9316 = vpop.f32.mrb[0].mxu0
        %v9317 = vadd.f32 0.0, %v9316
        %v9318 = vpop.f32.mrb[0].mxu0
        %v9319 = vadd.f32 0.0, %v9318
        %9320 = vdwg.mxu0
        %v9325 = vcombine.low %v9041, %v9042
        %v9326 = vcombine.low %v9043, %v9044
        %v9328 = vunpack.c.l.s4 1983009808
        %v9329 = vunpack.c.0.s8 %v9328
        %v9330 = vlaneseq
        %v9331 = vshrl.u32 %v9330, 7
        %v9332 = vsub.s32 %v9329, %v9331
        %v9333 = vrot.slane %v9325, %v9332
        %v9335 = vunpack.c.l.s4 1983009808
        %v9336 = vunpack.c.0.s8 %v9335
        %v9337 = vlaneseq
        %v9338 = vshrl.u32 %v9337, 7
        %v9339 = vsub.s32 %v9336, %v9338
        %v9340 = vrot.slane %v9326, %v9339
        %v9341 = vcombine.low %v9333, %v9340
        %v9359 = vunpack.c.l.b16 %v9045
        %v9360 = vunpack.c.h.b16 %v9045
        %v9361 = vunpack.c.l.b16 %v9046
        %v9362 = vunpack.c.h.b16 %v9046
        %v9363 = vunpack.c.l.b16 %v9047
        %v9364 = vunpack.c.h.b16 %v9047
        %v9365 = vunpack.c.l.b16 %v9048
        %v9366 = vunpack.c.h.b16 %v9048
        %v9367 = vunpack.c.l.b16 %v9049
        %v9368 = vunpack.c.h.b16 %v9049
        %v9369 = vunpack.c.l.b16 %v9050
        %v9370 = vunpack.c.h.b16 %v9050
        %v9371 = vunpack.c.l.b16 %v9051
        %v9372 = vunpack.c.h.b16 %v9051
        %v9373 = vunpack.c.l.b16 %v9052
        %v9374 = vunpack.c.h.b16 %v9052
        %v9375 = vunpack.c.l.b16 %v9053
        %v9376 = vunpack.c.h.b16 %v9053
        %v9377 = vunpack.c.l.b16 %v9054
        %v9378 = vunpack.c.h.b16 %v9054
        %v9379 = vunpack.c.l.b16 %v9055
        %v9380 = vunpack.c.h.b16 %v9055
        %v9381 = vunpack.c.l.b16 %v9056
        %v9382 = vunpack.c.h.b16 %v9056
        %v9383 = vunpack.c.l.b16 %v9057
        %v9384 = vunpack.c.h.b16 %v9057
        %v9385 = vunpack.c.l.b16 %v9058
        %v9386 = vunpack.c.h.b16 %v9058
        %v9387 = vunpack.c.l.b16 %v9059
        %v9388 = vunpack.c.h.b16 %v9059
        %v9389 = vunpack.c.l.b16 %v9060
        %v9390 = vunpack.c.h.b16 %v9060
        %v9391 = vpack.c.b16 %v9361, %v9359
        %v9392 = vpack.c.b16 %v9362, %v9360
        %v9393 = vpack.c.b16 %v9365, %v9363
        %v9394 = vpack.c.b16 %v9366, %v9364
        %v9395 = vpack.c.b16 %v9369, %v9367
        %v9396 = vpack.c.b16 %v9370, %v9368
        %v9397 = vpack.c.b16 %v9373, %v9371
        %v9398 = vpack.c.b16 %v9374, %v9372
        %v9399 = vpack.c.b16 %v9377, %v9375
        %v9400 = vpack.c.b16 %v9378, %v9376
        %v9401 = vpack.c.b16 %v9381, %v9379
        %v9402 = vpack.c.b16 %v9382, %v9380
        %v9403 = vpack.c.b16 %v9385, %v9383
        %v9404 = vpack.c.b16 %v9386, %v9384
        %v9405 = vpack.c.b16 %v9389, %v9387
        %v9406 = vpack.c.b16 %v9390, %v9388
        %9423 = vmatprep.subr.bf16.mxu0 %v9392
        %9424 = vmatpush1.bf16.msra.mxu0 %v9391
        %9425 = vmatprep.subr.bf16.mxu0 %v9394
        %9426 = vmatpush1.bf16.msra.mxu0 %v9393
        %9427 = vmatprep.subr.bf16.mxu0 %v9396
        %9428 = vmatpush1.bf16.msra.mxu0 %v9395
        %9429 = vmatprep.subr.bf16.mxu0 %v9398
        %9430 = vmatpush1.bf16.msra.mxu0 %v9397
        %9431 = vmatprep.subr.bf16.mxu0 %v9400
        %9432 = vmatpush1.bf16.msra.mxu0 %v9399
        %9433 = vmatprep.subr.bf16.mxu0 %v9402
        %9434 = vmatpush1.bf16.msra.mxu0 %v9401
        %9435 = vmatprep.subr.bf16.mxu0 %v9404
        %9436 = vmatpush1.bf16.msra.mxu0 %v9403
        %9437 = vmatprep.subr.bf16.mxu0 %v9406
        %9438 = vmatpush1.bf16.msra.mxu0 %v9405
        %9439 = vmatprep.subr.bf16.mxu0 0
        %9440 = vmatpush1.bf16.msra.mxu0 0
        %9441 = vmatprep.subr.bf16.mxu0 0
        %9442 = vmatpush1.bf16.msra.mxu0 0
        %9443 = vmatprep.subr.bf16.mxu0 0
        %9444 = vmatpush1.bf16.msra.mxu0 0
        %9445 = vmatprep.subr.bf16.mxu0 0
        %9446 = vmatpush1.bf16.msra.mxu0 0
        %9447 = vmatprep.subr.bf16.mxu0 0
        %9448 = vmatpush1.bf16.msra.mxu0 0
        %9449 = vmatprep.subr.bf16.mxu0 0
        %9450 = vmatpush1.bf16.msra.mxu0 0
        %9451 = vmatprep.subr.bf16.mxu0 0
        %9452 = vmatpush1.bf16.msra.mxu0 0
        %9453 = vmatprep.subr.bf16.mxu0 0
        %9454 = vmatpush1.bf16.msra.mxu0 0
        %9455 = vmatprep.mubr.bf16.mxu0 0
        %9456 = vmatmul.mubr.bf16.gmra.mrb[0].mxu0 %v9341
        %v9457 = vpop.f32.mrb[0].mxu0
        %v9458 = vadd.f32 %v9313, %v9457
        %v9459 = vpop.f32.mrb[0].mxu0
        %v9460 = vadd.f32 %v9315, %v9459
        %v9461 = vpop.f32.mrb[0].mxu0
        %v9462 = vadd.f32 %v9317, %v9461
        %v9463 = vpop.f32.mrb[0].mxu0
        %v9464 = vadd.f32 %v9319, %v9463
        %9465 = vdwg.mxu0
        %v9466 = vld [vmem:[#allocation5] sm:$0x6]
        %v9467 = vld [vmem:[#allocation5 + $0x4] sm:$0x6]
        %v9468 = vld [vmem:[#allocation5 + $0x8] sm:$0x6]
        %v9469 = vld [vmem:[#allocation5 + $0xc] sm:$0x6]
        %v9475 = vunpack.c.l.s4 1983009808
        %v9476 = vunpack.c.0.s8 %v9475
        %v9477 = vlaneseq
        %v9478 = vshrl.u32 %v9477, 7
        %v9479 = vsub.s32 %v9476, %v9478
        %v9480 = vrot.slane %v9466, %v9479
        %v9481 = vcombine.high %v9480, %v9480
        %v9483 = vunpack.c.l.s4 1983009808
        %v9484 = vunpack.c.0.s8 %v9483
        %v9485 = vlaneseq
        %v9486 = vshrl.u32 %v9485, 7
        %v9487 = vsub.s32 %v9484, %v9486
        %v9488 = vrot.slane %v9467, %v9487
        %v9489 = vcombine.high %v9488, %v9488
        %v9491 = vunpack.c.l.s4 1983009808
        %v9492 = vunpack.c.0.s8 %v9491
        %v9493 = vlaneseq
        %v9494 = vshrl.u32 %v9493, 7
        %v9495 = vsub.s32 %v9492, %v9494
        %v9496 = vrot.slane %v9468, %v9495
        %v9497 = vcombine.high %v9496, %v9496
        %v9499 = vunpack.c.l.s4 1983009808
        %v9500 = vunpack.c.0.s8 %v9499
        %v9501 = vlaneseq
        %v9502 = vshrl.u32 %v9501, 7
        %v9503 = vsub.s32 %v9500, %v9502
        %v9504 = vrot.slane %v9469, %v9503
        %v9505 = vcombine.high %v9504, %v9504
        %vm9506 = vcmask 1040384
        %vm9507 = vcmask 1042434
        %vm9508 = vmor %vm9506, %vm9507
        %vm9509 = vcmask 1044484
        %vm9510 = vmor %vm9508, %vm9509
        %vm9511 = vcmask 1046534
        %vm9512 = vmor %vm9510, %vm9511
        %v9513 = vrot.slane %v9480, 7
        %v9514 = vrot.slane %v9513, 2
        %v9515 = vrot.slane %v9481, 7
        %v9516 = vsel %vm9512, %v9514, %v9515
        %v9517 = vrot.slane %v9488, 7
        %v9518 = vrot.slane %v9517, 2
        %v9519 = vrot.slane %v9489, 7
        %v9520 = vsel %vm9512, %v9518, %v9519
        %v9521 = vrot.slane %v9496, 7
        %v9522 = vrot.slane %v9521, 2
        %v9523 = vrot.slane %v9497, 7
        %v9524 = vsel %vm9512, %v9522, %v9523
        %v9525 = vrot.slane %v9504, 7
        %v9526 = vrot.slane %v9525, 2
        %v9527 = vrot.slane %v9505, 7
        %v9528 = vsel %vm9512, %v9526, %v9527
        %v9529 = vld [vmem:[%s13 + $0x100] sm:$0xff]
        %v9530 = vld [vmem:[%s13 + $0x108] sm:$0xff]
        %v9531 = vld [vmem:[%s13 + $0x110] sm:$0xff]
        %v9532 = vld [vmem:[%s13 + $0x118] sm:$0xff]
        %v9533 = vld [vmem:[%s13 + $0x120] sm:$0xff]
        %v9534 = vld [vmem:[%s13 + $0x128] sm:$0xff]
        %v9535 = vld [vmem:[%s13 + $0x130] sm:$0xff]
        %v9536 = vld [vmem:[%s13 + $0x138] sm:$0xff]
        %v9537 = vld [vmem:[%s13 + $0x140] sm:$0xff]
        %v9538 = vld [vmem:[%s13 + $0x148] sm:$0xff]
        %v9539 = vld [vmem:[%s13 + $0x150] sm:$0xff]
        %v9540 = vld [vmem:[%s13 + $0x158] sm:$0xff]
        %v9541 = vld [vmem:[%s13 + $0x160] sm:$0xff]
        %v9542 = vld [vmem:[%s13 + $0x168] sm:$0xff]
        %v9543 = vld [vmem:[%s13 + $0x170] sm:$0xff]
        %v9544 = vld [vmem:[%s13 + $0x178] sm:$0xff]
        %v9545 = vcombine.low %v9516, %v9520
        %v9546 = vcombine.low %v9524, %v9528
        %v9548 = vunpack.c.l.s4 1983009808
        %v9549 = vunpack.c.0.s8 %v9548
        %v9550 = vlaneseq
        %v9551 = vshrl.u32 %v9550, 7
        %v9552 = vsub.s32 %v9549, %v9551
        %v9553 = vrot.slane %v9545, %v9552
        %v9555 = vunpack.c.l.s4 1983009808
        %v9556 = vunpack.c.0.s8 %v9555
        %v9557 = vlaneseq
        %v9558 = vshrl.u32 %v9557, 7
        %v9559 = vsub.s32 %v9556, %v9558
        %v9560 = vrot.slane %v9546, %v9559
        %v9561 = vcombine.low %v9553, %v9560
        %v9579 = vunpack.c.l.b16 %v9529
        %v9580 = vunpack.c.h.b16 %v9529
        %v9581 = vunpack.c.l.b16 %v9530
        %v9582 = vunpack.c.h.b16 %v9530
        %v9583 = vunpack.c.l.b16 %v9531
        %v9584 = vunpack.c.h.b16 %v9531
        %v9585 = vunpack.c.l.b16 %v9532
        %v9586 = vunpack.c.h.b16 %v9532
        %v9587 = vunpack.c.l.b16 %v9533
        %v9588 = vunpack.c.h.b16 %v9533
        %v9589 = vunpack.c.l.b16 %v9534
        %v9590 = vunpack.c.h.b16 %v9534
        %v9591 = vunpack.c.l.b16 %v9535
        %v9592 = vunpack.c.h.b16 %v9535
        %v9593 = vunpack.c.l.b16 %v9536
        %v9594 = vunpack.c.h.b16 %v9536
        %v9595 = vunpack.c.l.b16 %v9537
        %v9596 = vunpack.c.h.b16 %v9537
        %v9597 = vunpack.c.l.b16 %v9538
        %v9598 = vunpack.c.h.b16 %v9538
        %v9599 = vunpack.c.l.b16 %v9539
        %v9600 = vunpack.c.h.b16 %v9539
        %v9601 = vunpack.c.l.b16 %v9540
        %v9602 = vunpack.c.h.b16 %v9540
        %v9603 = vunpack.c.l.b16 %v9541
        %v9604 = vunpack.c.h.b16 %v9541
        %v9605 = vunpack.c.l.b16 %v9542
        %v9606 = vunpack.c.h.b16 %v9542
        %v9607 = vunpack.c.l.b16 %v9543
        %v9608 = vunpack.c.h.b16 %v9543
        %v9609 = vunpack.c.l.b16 %v9544
        %v9610 = vunpack.c.h.b16 %v9544
        %v9611 = vpack.c.b16 %v9581, %v9579
        %v9612 = vpack.c.b16 %v9582, %v9580
        %v9613 = vpack.c.b16 %v9585, %v9583
        %v9614 = vpack.c.b16 %v9586, %v9584
        %v9615 = vpack.c.b16 %v9589, %v9587
        %v9616 = vpack.c.b16 %v9590, %v9588
        %v9617 = vpack.c.b16 %v9593, %v9591
        %v9618 = vpack.c.b16 %v9594, %v9592
        %v9619 = vpack.c.b16 %v9597, %v9595
        %v9620 = vpack.c.b16 %v9598, %v9596
        %v9621 = vpack.c.b16 %v9601, %v9599
        %v9622 = vpack.c.b16 %v9602, %v9600
        %v9623 = vpack.c.b16 %v9605, %v9603
        %v9624 = vpack.c.b16 %v9606, %v9604
        %v9625 = vpack.c.b16 %v9609, %v9607
        %v9626 = vpack.c.b16 %v9610, %v9608
        %9643 = vmatprep.subr.bf16.mxu0 %v9612
        %9644 = vmatpush1.bf16.msra.mxu0 %v9611
        %9645 = vmatprep.subr.bf16.mxu0 %v9614
        %9646 = vmatpush1.bf16.msra.mxu0 %v9613
        %9647 = vmatprep.subr.bf16.mxu0 %v9616
        %9648 = vmatpush1.bf16.msra.mxu0 %v9615
        %9649 = vmatprep.subr.bf16.mxu0 %v9618
        %9650 = vmatpush1.bf16.msra.mxu0 %v9617
        %9651 = vmatprep.subr.bf16.mxu0 %v9620
        %9652 = vmatpush1.bf16.msra.mxu0 %v9619
        %9653 = vmatprep.subr.bf16.mxu0 %v9622
        %9654 = vmatpush1.bf16.msra.mxu0 %v9621
        %9655 = vmatprep.subr.bf16.mxu0 %v9624
        %9656 = vmatpush1.bf16.msra.mxu0 %v9623
        %9657 = vmatprep.subr.bf16.mxu0 %v9626
        %9658 = vmatpush1.bf16.msra.mxu0 %v9625
        %9659 = vmatprep.subr.bf16.mxu0 0
        %9660 = vmatpush1.bf16.msra.mxu0 0
        %9661 = vmatprep.subr.bf16.mxu0 0
        %9662 = vmatpush1.bf16.msra.mxu0 0
        %9663 = vmatprep.subr.bf16.mxu0 0
        %9664 = vmatpush1.bf16.msra.mxu0 0
        %9665 = vmatprep.subr.bf16.mxu0 0
        %9666 = vmatpush1.bf16.msra.mxu0 0
        %9667 = vmatprep.subr.bf16.mxu0 0
        %9668 = vmatpush1.bf16.msra.mxu0 0
        %9669 = vmatprep.subr.bf16.mxu0 0
        %9670 = vmatpush1.bf16.msra.mxu0 0
        %9671 = vmatprep.subr.bf16.mxu0 0
        %9672 = vmatpush1.bf16.msra.mxu0 0
        %9673 = vmatprep.subr.bf16.mxu0 0
        %9674 = vmatpush1.bf16.msra.mxu0 0
        %9675 = vmatprep.mubr.bf16.mxu0 0
        %9676 = vmatmul.mubr.bf16.gmra.mrb[0].mxu0 %v9561
        %v9677 = vpop.f32.mrb[0].mxu0
        %v9678 = vadd.f32 0.0, %v9677
        %v9679 = vpop.f32.mrb[0].mxu0
        %v9680 = vadd.f32 0.0, %v9679
        %v9681 = vpop.f32.mrb[0].mxu0
        %v9682 = vadd.f32 0.0, %v9681
        %v9683 = vpop.f32.mrb[0].mxu0
        %v9684 = vadd.f32 0.0, %v9683
        %9685 = vdwg.mxu0
        %v9686 = vadd.f32 %v9458, %v9678
        %v9687 = vadd.f32 %v9460, %v9680
        %v9688 = vadd.f32 %v9462, %v9682
        %v9689 = vadd.f32 %v9464, %v9684
        %v9690 = vld [vmem:[%s9026] sm:$0x3]
        %v9691 = vld [vmem:[%s9026 + $0x4] sm:$0x3]
        %v9692 = vld [vmem:[%s9026 + $0x8] sm:$0x3]
        %v9693 = vld [vmem:[%s9026 + $0xc] sm:$0x3]
        %v9694 = vld [vmem:[%s13 + $0x180] sm:$0xff]
        %v9695 = vld [vmem:[%s13 + $0x188] sm:$0xff]
        %v9696 = vld [vmem:[%s13 + $0x190] sm:$0xff]
        %v9697 = vld [vmem:[%s13 + $0x198] sm:$0xff]
        %v9698 = vld [vmem:[%s13 + $0x1a0] sm:$0xff]
        %v9699 = vld [vmem:[%s13 + $0x1a8] sm:$0xff]
        %v9700 = vld [vmem:[%s13 + $0x1b0] sm:$0xff]
        %v9701 = vld [vmem:[%s13 + $0x1b8] sm:$0xff]
        %v9702 = vld [vmem:[%s13 + $0x1c0] sm:$0xff]
        %v9703 = vld [vmem:[%s13 + $0x1c8] sm:$0xff]
        %v9704 = vld [vmem:[%s13 + $0x1d0] sm:$0xff]
        %v9705 = vld [vmem:[%s13 + $0x1d8] sm:$0xff]
        %v9706 = vld [vmem:[%s13 + $0x1e0] sm:$0xff]
        %v9707 = vld [vmem:[%s13 + $0x1e8] sm:$0xff]
        %v9708 = vld [vmem:[%s13 + $0x1f0] sm:$0xff]
        %v9709 = vld [vmem:[%s13 + $0x1f8] sm:$0xff]
        %v9714 = vcombine.low %v9690, %v9691
        %v9715 = vcombine.low %v9692, %v9693
        %v9717 = vunpack.c.l.s4 1983009808
        %v9718 = vunpack.c.0.s8 %v9717
        %v9719 = vlaneseq
        %v9720 = vshrl.u32 %v9719, 7
        %v9721 = vsub.s32 %v9718, %v9720
        %v9722 = vrot.slane %v9714, %v9721
        %v9724 = vunpack.c.l.s4 1983009808
        %v9725 = vunpack.c.0.s8 %v9724
        %v9726 = vlaneseq
        %v9727 = vshrl.u32 %v9726, 7
        %v9728 = vsub.s32 %v9725, %v9727
        %v9729 = vrot.slane %v9715, %v9728
        %v9730 = vcombine.low %v9722, %v9729
        %v9748 = vunpack.c.l.b16 %v9694
        %v9749 = vunpack.c.h.b16 %v9694
        %v9750 = vunpack.c.l.b16 %v9695
        %v9751 = vunpack.c.h.b16 %v9695
        %v9752 = vunpack.c.l.b16 %v9696
        %v9753 = vunpack.c.h.b16 %v9696
        %v9754 = vunpack.c.l.b16 %v9697
        %v9755 = vunpack.c.h.b16 %v9697
        %v9756 = vunpack.c.l.b16 %v9698
        %v9757 = vunpack.c.h.b16 %v9698
        %v9758 = vunpack.c.l.b16 %v9699
        %v9759 = vunpack.c.h.b16 %v9699
        %v9760 = vunpack.c.l.b16 %v9700
        %v9761 = vunpack.c.h.b16 %v9700
        %v9762 = vunpack.c.l.b16 %v9701
        %v9763 = vunpack.c.h.b16 %v9701
        %v9764 = vunpack.c.l.b16 %v9702
        %v9765 = vunpack.c.h.b16 %v9702
        %v9766 = vunpack.c.l.b16 %v9703
        %v9767 = vunpack.c.h.b16 %v9703
        %v9768 = vunpack.c.l.b16 %v9704
        %v9769 = vunpack.c.h.b16 %v9704
        %v9770 = vunpack.c.l.b16 %v9705
        %v9771 = vunpack.c.h.b16 %v9705
        %v9772 = vunpack.c.l.b16 %v9706
        %v9773 = vunpack.c.h.b16 %v9706
        %v9774 = vunpack.c.l.b16 %v9707
        %v9775 = vunpack.c.h.b16 %v9707
        %v9776 = vunpack.c.l.b16 %v9708
        %v9777 = vunpack.c.h.b16 %v9708
        %v9778 = vunpack.c.l.b16 %v9709
        %v9779 = vunpack.c.h.b16 %v9709
        %v9780 = vpack.c.b16 %v9750, %v9748
        %v9781 = vpack.c.b16 %v9751, %v9749
        %v9782 = vpack.c.b16 %v9754, %v9752
        %v9783 = vpack.c.b16 %v9755, %v9753
        %v9784 = vpack.c.b16 %v9758, %v9756
        %v9785 = vpack.c.b16 %v9759, %v9757
        %v9786 = vpack.c.b16 %v9762, %v9760
        %v9787 = vpack.c.b16 %v9763, %v9761
        %v9788 = vpack.c.b16 %v9766, %v9764
        %v9789 = vpack.c.b16 %v9767, %v9765
        %v9790 = vpack.c.b16 %v9770, %v9768
        %v9791 = vpack.c.b16 %v9771, %v9769
        %v9792 = vpack.c.b16 %v9774, %v9772
        %v9793 = vpack.c.b16 %v9775, %v9773
        %v9794 = vpack.c.b16 %v9778, %v9776
        %v9795 = vpack.c.b16 %v9779, %v9777
        %9812 = vmatprep.subr.bf16.mxu0 %v9781
        %9813 = vmatpush1.bf16.msra.mxu0 %v9780
        %9814 = vmatprep.subr.bf16.mxu0 %v9783
        %9815 = vmatpush1.bf16.msra.mxu0 %v9782
        %9816 = vmatprep.subr.bf16.mxu0 %v9785
        %9817 = vmatpush1.bf16.msra.mxu0 %v9784
        %9818 = vmatprep.subr.bf16.mxu0 %v9787
        %9819 = vmatpush1.bf16.msra.mxu0 %v9786
        %9820 = vmatprep.subr.bf16.mxu0 %v9789
        %9821 = vmatpush1.bf16.msra.mxu0 %v9788
        %9822 = vmatprep.subr.bf16.mxu0 %v9791
        %9823 = vmatpush1.bf16.msra.mxu0 %v9790
        %9824 = vmatprep.subr.bf16.mxu0 %v9793
        %9825 = vmatpush1.bf16.msra.mxu0 %v9792
        %9826 = vmatprep.subr.bf16.mxu0 %v9795
        %9827 = vmatpush1.bf16.msra.mxu0 %v9794
        %9828 = vmatprep.subr.bf16.mxu0 0
        %9829 = vmatpush1.bf16.msra.mxu0 0
        %9830 = vmatprep.subr.bf16.mxu0 0
        %9831 = vmatpush1.bf16.msra.mxu0 0
        %9832 = vmatprep.subr.bf16.mxu0 0
        %9833 = vmatpush1.bf16.msra.mxu0 0
        %9834 = vmatprep.subr.bf16.mxu0 0
        %9835 = vmatpush1.bf16.msra.mxu0 0
        %9836 = vmatprep.subr.bf16.mxu0 0
        %9837 = vmatpush1.bf16.msra.mxu0 0
        %9838 = vmatprep.subr.bf16.mxu0 0
        %9839 = vmatpush1.bf16.msra.mxu0 0
        %9840 = vmatprep.subr.bf16.mxu0 0
        %9841 = vmatpush1.bf16.msra.mxu0 0
        %9842 = vmatprep.subr.bf16.mxu0 0
        %9843 = vmatpush1.bf16.msra.mxu0 0
        %9844 = vmatprep.mubr.bf16.mxu0 0
        %9845 = vmatmul.mubr.bf16.gmra.mrb[0].mxu0 %v9730
        %v9846 = vpop.f32.mrb[0].mxu0
        %v9847 = vadd.f32 0.0, %v9846
        %v9848 = vpop.f32.mrb[0].mxu0
        %v9849 = vadd.f32 0.0, %v9848
        %v9850 = vpop.f32.mrb[0].mxu0
        %v9851 = vadd.f32 0.0, %v9850
        %v9852 = vpop.f32.mrb[0].mxu0
        %v9853 = vadd.f32 0.0, %v9852
        %9854 = vdwg.mxu0
        %v9855 = vadd.f32 %v9686, %v9847
        %v9856 = vadd.f32 %v9687, %v9849
        %v9857 = vadd.f32 %v9688, %v9851
        %v9858 = vadd.f32 %v9689, %v9853
        %v9859 = vld [vmem:[%s9026] sm:$0x7]
        %v9860 = vld [vmem:[%s9026 + $0x4] sm:$0x7]
        %v9861 = vld [vmem:[%s9026 + $0x8] sm:$0x7]
        %v9862 = vld [vmem:[%s9026 + $0xc] sm:$0x7]
        %v9868 = vunpack.c.l.s4 1983009808
        %v9869 = vunpack.c.0.s8 %v9868
        %v9870 = vlaneseq
        %v9871 = vshrl.u32 %v9870, 7
        %v9872 = vsub.s32 %v9869, %v9871
        %v9873 = vrot.slane %v9859, %v9872
        %v9874 = vcombine.high %v9873, %v9873
        %v9876 = vunpack.c.l.s4 1983009808
        %v9877 = vunpack.c.0.s8 %v9876
        %v9878 = vlaneseq
        %v9879 = vshrl.u32 %v9878, 7
        %v9880 = vsub.s32 %v9877, %v9879
        %v9881 = vrot.slane %v9860, %v9880
        %v9882 = vcombine.high %v9881, %v9881
        %v9884 = vunpack.c.l.s4 1983009808
        %v9885 = vunpack.c.0.s8 %v9884
        %v9886 = vlaneseq
        %v9887 = vshrl.u32 %v9886, 7
        %v9888 = vsub.s32 %v9885, %v9887
        %v9889 = vrot.slane %v9861, %v9888
        %v9890 = vcombine.high %v9889, %v9889
        %v9892 = vunpack.c.l.s4 1983009808
        %v9893 = vunpack.c.0.s8 %v9892
        %v9894 = vlaneseq
        %v9895 = vshrl.u32 %v9894, 7
        %v9896 = vsub.s32 %v9893, %v9895
        %v9897 = vrot.slane %v9862, %v9896
        %v9898 = vcombine.high %v9897, %v9897
        %v9900 = vshrl.u32 %v9873, 16
        %v9902 = vrot.slane %v9900, 6
        %v9903 = vshll.u32 %v9873, 16
        %v9905 = vrot.slane %v9903, 7
        %v9906 = vor.u32 %v9902, %v9905
        %v9907 = vrot.slane %v9906, 2
        %v9909 = vshll.u32 %v9874, 16
        %v9911 = vrot.slane %v9909, 7
        %v9912 = vsel %vm9107, %v9907, %v9911
        %v9914 = vshrl.u32 %v9881, 16
        %v9916 = vrot.slane %v9914, 6
        %v9917 = vshll.u32 %v9881, 16
        %v9919 = vrot.slane %v9917, 7
        %v9920 = vor.u32 %v9916, %v9919
        %v9921 = vrot.slane %v9920, 2
        %v9923 = vshll.u32 %v9882, 16
        %v9925 = vrot.slane %v9923, 7
        %v9926 = vsel %vm9107, %v9921, %v9925
        %v9928 = vshrl.u32 %v9889, 16
        %v9930 = vrot.slane %v9928, 6
        %v9931 = vshll.u32 %v9889, 16
        %v9933 = vrot.slane %v9931, 7
        %v9934 = vor.u32 %v9930, %v9933
        %v9935 = vrot.slane %v9934, 2
        %v9937 = vshll.u32 %v9890, 16
        %v9939 = vrot.slane %v9937, 7
        %v9940 = vsel %vm9107, %v9935, %v9939
        %v9942 = vshrl.u32 %v9897, 16
        %v9944 = vrot.slane %v9942, 6
        %v9945 = vshll.u32 %v9897, 16
        %v9947 = vrot.slane %v9945, 7
        %v9948 = vor.u32 %v9944, %v9947
        %v9949 = vrot.slane %v9948, 2
        %v9951 = vshll.u32 %v9898, 16
        %v9953 = vrot.slane %v9951, 7
        %v9954 = vsel %vm9107, %v9949, %v9953
        %v9955 = vld [vmem:[%s13 + $0x200] sm:$0xff]
        %v9956 = vld [vmem:[%s13 + $0x208] sm:$0xff]
        %v9957 = vld [vmem:[%s13 + $0x210] sm:$0xff]
        %v9958 = vld [vmem:[%s13 + $0x218] sm:$0xff]
        %v9959 = vld [vmem:[%s13 + $0x220] sm:$0xff]
        %v9960 = vld [vmem:[%s13 + $0x228] sm:$0xff]
        %v9961 = vld [vmem:[%s13 + $0x230] sm:$0xff]
        %v9962 = vld [vmem:[%s13 + $0x238] sm:$0xff]
        %v9963 = vld [vmem:[%s13 + $0x240] sm:$0xff]
        %v9964 = vld [vmem:[%s13 + $0x248] sm:$0xff]
        %v9965 = vld [vmem:[%s13 + $0x250] sm:$0xff]
        %v9966 = vld [vmem:[%s13 + $0x258] sm:$0xff]
        %v9967 = vld [vmem:[%s13 + $0x260] sm:$0xff]
        %v9968 = vld [vmem:[%s13 + $0x268] sm:$0xff]
        %v9969 = vld [vmem:[%s13 + $0x270] sm:$0xff]
        %v9970 = vld [vmem:[%s13 + $0x278] sm:$0xff]
        %v9971 = vcombine.low %v9912, %v9926
        %v9972 = vcombine.low %v9940, %v9954
        %v9974 = vunpack.c.l.s4 1983009808
        %v9975 = vunpack.c.0.s8 %v9974
        %v9976 = vlaneseq
        %v9977 = vshrl.u32 %v9976, 7
        %v9978 = vsub.s32 %v9975, %v9977
        %v9979 = vrot.slane %v9971, %v9978
        %v9981 = vunpack.c.l.s4 1983009808
        %v9982 = vunpack.c.0.s8 %v9981
        %v9983 = vlaneseq
        %v9984 = vshrl.u32 %v9983, 7
        %v9985 = vsub.s32 %v9982, %v9984
        %v9986 = vrot.slane %v9972, %v9985
        %v9987 = vcombine.low %v9979, %v9986
        %v10005 = vunpack.c.l.b16 %v9955
        %v10006 = vunpack.c.h.b16 %v9955
        %v10007 = vunpack.c.l.b16 %v9956
        %v10008 = vunpack.c.h.b16 %v9956
        %v10009 = vunpack.c.l.b16 %v9957
        %v10010 = vunpack.c.h.b16 %v9957
        %v10011 = vunpack.c.l.b16 %v9958
        %v10012 = vunpack.c.h.b16 %v9958
        %v10013 = vunpack.c.l.b16 %v9959
        %v10014 = vunpack.c.h.b16 %v9959
        %v10015 = vunpack.c.l.b16 %v9960
        %v10016 = vunpack.c.h.b16 %v9960
        %v10017 = vunpack.c.l.b16 %v9961
        %v10018 = vunpack.c.h.b16 %v9961
        %v10019 = vunpack.c.l.b16 %v9962
        %v10020 = vunpack.c.h.b16 %v9962
        %v10021 = vunpack.c.l.b16 %v9963
        %v10022 = vunpack.c.h.b16 %v9963
        %v10023 = vunpack.c.l.b16 %v9964
        %v10024 = vunpack.c.h.b16 %v9964
        %v10025 = vunpack.c.l.b16 %v9965
        %v10026 = vunpack.c.h.b16 %v9965
        %v10027 = vunpack.c.l.b16 %v9966
        %v10028 = vunpack.c.h.b16 %v9966
        %v10029 = vunpack.c.l.b16 %v9967
        %v10030 = vunpack.c.h.b16 %v9967
        %v10031 = vunpack.c.l.b16 %v9968
        %v10032 = vunpack.c.h.b16 %v9968
        %v10033 = vunpack.c.l.b16 %v9969
        %v10034 = vunpack.c.h.b16 %v9969
        %v10035 = vunpack.c.l.b16 %v9970
        %v10036 = vunpack.c.h.b16 %v9970
        %v10037 = vpack.c.b16 %v10007, %v10005
        %v10038 = vpack.c.b16 %v10008, %v10006
        %v10039 = vpack.c.b16 %v10011, %v10009
        %v10040 = vpack.c.b16 %v10012, %v10010
        %v10041 = vpack.c.b16 %v10015, %v10013
        %v10042 = vpack.c.b16 %v10016, %v10014
        %v10043 = vpack.c.b16 %v10019, %v10017
        %v10044 = vpack.c.b16 %v10020, %v10018
        %v10045 = vpack.c.b16 %v10023, %v10021
        %v10046 = vpack.c.b16 %v10024, %v10022
        %v10047 = vpack.c.b16 %v10027, %v10025
        %v10048 = vpack.c.b16 %v10028, %v10026
        %v10049 = vpack.c.b16 %v10031, %v10029
        %v10050 = vpack.c.b16 %v10032, %v10030
        %v10051 = vpack.c.b16 %v10035, %v10033
        %v10052 = vpack.c.b16 %v10036, %v10034
        %10069 = vmatprep.subr.bf16.mxu0 %v10038
        %10070 = vmatpush1.bf16.msra.mxu0 %v10037
        %10071 = vmatprep.subr.bf16.mxu0 %v10040
        %10072 = vmatpush1.bf16.msra.mxu0 %v10039
        %10073 = vmatprep.subr.bf16.mxu0 %v10042
        %10074 = vmatpush1.bf16.msra.mxu0 %v10041
        %10075 = vmatprep.subr.bf16.mxu0 %v10044
        %10076 = vmatpush1.bf16.msra.mxu0 %v10043
        %10077 = vmatprep.subr.bf16.mxu0 %v10046
        %10078 = vmatpush1.bf16.msra.mxu0 %v10045
        %10079 = vmatprep.subr.bf16.mxu0 %v10048
        %10080 = vmatpush1.bf16.msra.mxu0 %v10047
        %10081 = vmatprep.subr.bf16.mxu0 %v10050
        %10082 = vmatpush1.bf16.msra.mxu0 %v10049
        %10083 = vmatprep.subr.bf16.mxu0 %v10052
        %10084 = vmatpush1.bf16.msra.mxu0 %v10051
        %10085 = vmatprep.subr.bf16.mxu0 0
        %10086 = vmatpush1.bf16.msra.mxu0 0
        %10087 = vmatprep.subr.bf16.mxu0 0
        %10088 = vmatpush1.bf16.msra.mxu0 0
        %10089 = vmatprep.subr.bf16.mxu0 0
        %10090 = vmatpush1.bf16.msra.mxu0 0
        %10091 = vmatprep.subr.bf16.mxu0 0
        %10092 = vmatpush1.bf16.msra.mxu0 0
        %10093 = vmatprep.subr.bf16.mxu0 0
        %10094 = vmatpush1.bf16.msra.mxu0 0
        %10095 = vmatprep.subr.bf16.mxu0 0
        %10096 = vmatpush1.bf16.msra.mxu0 0
        %10097 = vmatprep.subr.bf16.mxu0 0
        %10098 = vmatpush1.bf16.msra.mxu0 0
        %10099 = vmatprep.subr.bf16.mxu0 0
        %10100 = vmatpush1.bf16.msra.mxu0 0
        %10101 = vmatprep.mubr.bf16.mxu0 0
        %10102 = vmatmul.mubr.bf16.gmra.mrb[0].mxu0 %v9987
        %v10103 = vpop.f32.mrb[0].mxu0
        %v10104 = vadd.f32 0.0, %v10103
        %v10105 = vpop.f32.mrb[0].mxu0
        %v10106 = vadd.f32 0.0, %v10105
        %v10107 = vpop.f32.mrb[0].mxu0
        %v10108 = vadd.f32 0.0, %v10107
        %v10109 = vpop.f32.mrb[0].mxu0
        %v10110 = vadd.f32 0.0, %v10109
        %10111 = vdwg.mxu0
        %v10112 = vadd.f32 %v9855, %v10104
        %v10113 = vadd.f32 %v9856, %v10106
        %v10114 = vadd.f32 %v9857, %v10108
        %v10115 = vadd.f32 %v9858, %v10110
        %v10116 = vld [vmem:[%s9026] sm:$0x6]
        %v10117 = vld [vmem:[%s9026 + $0x4] sm:$0x6]
        %v10118 = vld [vmem:[%s9026 + $0x8] sm:$0x6]
        %v10119 = vld [vmem:[%s9026 + $0xc] sm:$0x6]
        %v10125 = vunpack.c.l.s4 1983009808
        %v10126 = vunpack.c.0.s8 %v10125
        %v10127 = vlaneseq
        %v10128 = vshrl.u32 %v10127, 7
        %v10129 = vsub.s32 %v10126, %v10128
        %v10130 = vrot.slane %v10116, %v10129
        %v10131 = vcombine.high %v10130, %v10130
        %v10133 = vunpack.c.l.s4 1983009808
        %v10134 = vunpack.c.0.s8 %v10133
        %v10135 = vlaneseq
        %v10136 = vshrl.u32 %v10135, 7
        %v10137 = vsub.s32 %v10134, %v10136
        %v10138 = vrot.slane %v10117, %v10137
        %v10139 = vcombine.high %v10138, %v10138
        %v10141 = vunpack.c.l.s4 1983009808
        %v10142 = vunpack.c.0.s8 %v10141
        %v10143 = vlaneseq
        %v10144 = vshrl.u32 %v10143, 7
        %v10145 = vsub.s32 %v10142, %v10144
        %v10146 = vrot.slane %v10118, %v10145
        %v10147 = vcombine.high %v10146, %v10146
        %v10149 = vunpack.c.l.s4 1983009808
        %v10150 = vunpack.c.0.s8 %v10149
        %v10151 = vlaneseq
        %v10152 = vshrl.u32 %v10151, 7
        %v10153 = vsub.s32 %v10150, %v10152
        %v10154 = vrot.slane %v10119, %v10153
        %v10155 = vcombine.high %v10154, %v10154
        %v10156 = vrot.slane %v10130, 7
        %v10157 = vrot.slane %v10156, 2
        %v10158 = vrot.slane %v10131, 7
        %v10159 = vsel %vm9512, %v10157, %v10158
        %v10160 = vrot.slane %v10138, 7
        %v10161 = vrot.slane %v10160, 2
        %v10162 = vrot.slane %v10139, 7
        %v10163 = vsel %vm9512, %v10161, %v10162
        %v10164 = vrot.slane %v10146, 7
        %v10165 = vrot.slane %v10164, 2
        %v10166 = vrot.slane %v10147, 7
        %v10167 = vsel %vm9512, %v10165, %v10166
        %v10168 = vrot.slane %v10154, 7
        %v10169 = vrot.slane %v10168, 2
        %v10170 = vrot.slane %v10155, 7
        %v10171 = vsel %vm9512, %v10169, %v10170
        %v10172 = vld [vmem:[%s13 + $0x280] sm:$0xff]
        %v10173 = vld [vmem:[%s13 + $0x288] sm:$0xff]
        %v10174 = vld [vmem:[%s13 + $0x290] sm:$0xff]
        %v10175 = vld [vmem:[%s13 + $0x298] sm:$0xff]
        %v10176 = vld [vmem:[%s13 + $0x2a0] sm:$0xff]
        %v10177 = vld [vmem:[%s13 + $0x2a8] sm:$0xff]
        %v10178 = vld [vmem:[%s13 + $0x2b0] sm:$0xff]
        %v10179 = vld [vmem:[%s13 + $0x2b8] sm:$0xff]
        %v10180 = vld [vmem:[%s13 + $0x2c0] sm:$0xff]
        %v10181 = vld [vmem:[%s13 + $0x2c8] sm:$0xff]
        %v10182 = vld [vmem:[%s13 + $0x2d0] sm:$0xff]
        %v10183 = vld [vmem:[%s13 + $0x2d8] sm:$0xff]
        %v10184 = vld [vmem:[%s13 + $0x2e0] sm:$0xff]
        %v10185 = vld [vmem:[%s13 + $0x2e8] sm:$0xff]
        %v10186 = vld [vmem:[%s13 + $0x2f0] sm:$0xff]
        %v10187 = vld [vmem:[%s13 + $0x2f8] sm:$0xff]
        %v10188 = vcombine.low %v10159, %v10163
        %v10189 = vcombine.low %v10167, %v10171
        %v10191 = vunpack.c.l.s4 1983009808
        %v10192 = vunpack.c.0.s8 %v10191
        %v10193 = vlaneseq
        %v10194 = vshrl.u32 %v10193, 7
        %v10195 = vsub.s32 %v10192, %v10194
        %v10196 = vrot.slane %v10188, %v10195
        %v10198 = vunpack.c.l.s4 1983009808
        %v10199 = vunpack.c.0.s8 %v10198
        %v10200 = vlaneseq
        %v10201 = vshrl.u32 %v10200, 7
        %v10202 = vsub.s32 %v10199, %v10201
        %v10203 = vrot.slane %v10189, %v10202
        %v10204 = vcombine.low %v10196, %v10203
        %v10222 = vunpack.c.l.b16 %v10172
        %v10223 = vunpack.c.h.b16 %v10172
        %v10224 = vunpack.c.l.b16 %v10173
        %v10225 = vunpack.c.h.b16 %v10173
        %v10226 = vunpack.c.l.b16 %v10174
        %v10227 = vunpack.c.h.b16 %v10174
        %v10228 = vunpack.c.l.b16 %v10175
        %v10229 = vunpack.c.h.b16 %v10175
        %v10230 = vunpack.c.l.b16 %v10176
        %v10231 = vunpack.c.h.b16 %v10176
        %v10232 = vunpack.c.l.b16 %v10177
        %v10233 = vunpack.c.h.b16 %v10177
        %v10234 = vunpack.c.l.b16 %v10178
        %v10235 = vunpack.c.h.b16 %v10178
        %v10236 = vunpack.c.l.b16 %v10179
        %v10237 = vunpack.c.h.b16 %v10179
        %v10238 = vunpack.c.l.b16 %v10180
        %v10239 = vunpack.c.h.b16 %v10180
        %v10240 = vunpack.c.l.b16 %v10181
        %v10241 = vunpack.c.h.b16 %v10181
        %v10242 = vunpack.c.l.b16 %v10182
        %v10243 = vunpack.c.h.b16 %v10182
        %v10244 = vunpack.c.l.b16 %v10183
        %v10245 = vunpack.c.h.b16 %v10183
        %v10246 = vunpack.c.l.b16 %v10184
        %v10247 = vunpack.c.h.b16 %v10184
        %v10248 = vunpack.c.l.b16 %v10185
        %v10249 = vunpack.c.h.b16 %v10185
        %v10250 = vunpack.c.l.b16 %v10186
        %v10251 = vunpack.c.h.b16 %v10186
        %v10252 = vunpack.c.l.b16 %v10187
        %v10253 = vunpack.c.h.b16 %v10187
        %v10254 = vpack.c.b16 %v10224, %v10222
        %v10255 = vpack.c.b16 %v10225, %v10223
        %v10256 = vpack.c.b16 %v10228, %v10226
        %v10257 = vpack.c.b16 %v10229, %v10227
        %v10258 = vpack.c.b16 %v10232, %v10230
        %v10259 = vpack.c.b16 %v10233, %v10231
        %v10260 = vpack.c.b16 %v10236, %v10234
        %v10261 = vpack.c.b16 %v10237, %v10235
        %v10262 = vpack.c.b16 %v10240, %v10238
        %v10263 = vpack.c.b16 %v10241, %v10239
        %v10264 = vpack.c.b16 %v10244, %v10242
        %v10265 = vpack.c.b16 %v10245, %v10243
        %v10266 = vpack.c.b16 %v10248, %v10246
        %v10267 = vpack.c.b16 %v10249, %v10247
        %v10268 = vpack.c.b16 %v10252, %v10250
        %v10269 = vpack.c.b16 %v10253, %v10251
        %10286 = vmatprep.subr.bf16.mxu0 %v10255
        %10287 = vmatpush1.bf16.msra.mxu0 %v10254
        %10288 = vmatprep.subr.bf16.mxu0 %v10257
        %10289 = vmatpush1.bf16.msra.mxu0 %v10256
        %10290 = vmatprep.subr.bf16.mxu0 %v10259
        %10291 = vmatpush1.bf16.msra.mxu0 %v10258
        %10292 = vmatprep.subr.bf16.mxu0 %v10261
        %10293 = vmatpush1.bf16.msra.mxu0 %v10260
        %10294 = vmatprep.subr.bf16.mxu0 %v10263
        %10295 = vmatpush1.bf16.msra.mxu0 %v10262
        %10296 = vmatprep.subr.bf16.mxu0 %v10265
        %10297 = vmatpush1.bf16.msra.mxu0 %v10264
        %10298 = vmatprep.subr.bf16.mxu0 %v10267
        %10299 = vmatpush1.bf16.msra.mxu0 %v10266
        %10300 = vmatprep.subr.bf16.mxu0 %v10269
        %10301 = vmatpush1.bf16.msra.mxu0 %v10268
        %10302 = vmatprep.subr.bf16.mxu0 0
        %10303 = vmatpush1.bf16.msra.mxu0 0
        %10304 = vmatprep.subr.bf16.mxu0 0
        %10305 = vmatpush1.bf16.msra.mxu0 0
        %10306 = vmatprep.subr.bf16.mxu0 0
        %10307 = vmatpush1.bf16.msra.mxu0 0
        %10308 = vmatprep.subr.bf16.mxu0 0
        %10309 = vmatpush1.bf16.msra.mxu0 0
        %10310 = vmatprep.subr.bf16.mxu0 0
        %10311 = vmatpush1.bf16.msra.mxu0 0
        %10312 = vmatprep.subr.bf16.mxu0 0
        %10313 = vmatpush1.bf16.msra.mxu0 0
        %10314 = vmatprep.subr.bf16.mxu0 0
        %10315 = vmatpush1.bf16.msra.mxu0 0
        %10316 = vmatprep.subr.bf16.mxu0 0
        %10317 = vmatpush1.bf16.msra.mxu0 0
        %10318 = vmatprep.mubr.bf16.mxu0 0
        %10319 = vmatmul.mubr.bf16.gmra.mrb[0].mxu0 %v10204
        %v10320 = vpop.f32.mrb[0].mxu0
        %v10321 = vadd.f32 0.0, %v10320
        %v10322 = vpop.f32.mrb[0].mxu0
        %v10323 = vadd.f32 0.0, %v10322
        %v10324 = vpop.f32.mrb[0].mxu0
        %v10325 = vadd.f32 0.0, %v10324
        %v10326 = vpop.f32.mrb[0].mxu0
        %v10327 = vadd.f32 0.0, %v10326
        %10328 = vdwg.mxu0
        %v10329 = vadd.f32 %v10112, %v10321
        %v10330 = vadd.f32 %v10113, %v10323
        %v10331 = vadd.f32 %v10114, %v10325
        %v10332 = vadd.f32 %v10115, %v10327
        %s10333 = scalar_lea.vmem [#allocation5], 8
        %v10334 = vld [vmem:[%s10333] sm:$0x3]
        %v10335 = vld [vmem:[%s10333 + $0x4] sm:$0x3]
        %v10336 = vld [vmem:[%s10333 + $0x8] sm:$0x3]
        %v10337 = vld [vmem:[%s10333 + $0xc] sm:$0x3]
        %v10338 = vld [vmem:[%s13 + $0x300] sm:$0xff]
        %v10339 = vld [vmem:[%s13 + $0x308] sm:$0xff]
        %v10340 = vld [vmem:[%s13 + $0x310] sm:$0xff]
        %v10341 = vld [vmem:[%s13 + $0x318] sm:$0xff]
        %v10342 = vld [vmem:[%s13 + $0x320] sm:$0xff]
        %v10343 = vld [vmem:[%s13 + $0x328] sm:$0xff]
        %v10344 = vld [vmem:[%s13 + $0x330] sm:$0xff]
        %v10345 = vld [vmem:[%s13 + $0x338] sm:$0xff]
        %v10346 = vld [vmem:[%s13 + $0x340] sm:$0xff]
        %v10347 = vld [vmem:[%s13 + $0x348] sm:$0xff]
        %v10348 = vld [vmem:[%s13 + $0x350] sm:$0xff]
        %v10349 = vld [vmem:[%s13 + $0x358] sm:$0xff]
        %v10350 = vld [vmem:[%s13 + $0x360] sm:$0xff]
        %v10351 = vld [vmem:[%s13 + $0x368] sm:$0xff]
        %v10352 = vld [vmem:[%s13 + $0x370] sm:$0xff]
        %v10353 = vld [vmem:[%s13 + $0x378] sm:$0xff]
        %v10358 = vcombine.low %v10334, %v10335
        %v10359 = vcombine.low %v10336, %v10337
        %v10361 = vunpack.c.l.s4 1983009808
        %v10362 = vunpack.c.0.s8 %v10361
        %v10363 = vlaneseq
        %v10364 = vshrl.u32 %v10363, 7
        %v10365 = vsub.s32 %v10362, %v10364
        %v10366 = vrot.slane %v10358, %v10365
        %v10368 = vunpack.c.l.s4 1983009808
        %v10369 = vunpack.c.0.s8 %v10368
        %v10370 = vlaneseq
        %v10371 = vshrl.u32 %v10370, 7
        %v10372 = vsub.s32 %v10369, %v10371
        %v10373 = vrot.slane %v10359, %v10372
        %v10374 = vcombine.low %v10366, %v10373
        %v10392 = vunpack.c.l.b16 %v10338
        %v10393 = vunpack.c.h.b16 %v10338
        %v10394 = vunpack.c.l.b16 %v10339
        %v10395 = vunpack.c.h.b16 %v10339
        %v10396 = vunpack.c.l.b16 %v10340
        %v10397 = vunpack.c.h.b16 %v10340
        %v10398 = vunpack.c.l.b16 %v10341
        %v10399 = vunpack.c.h.b16 %v10341
        %v10400 = vunpack.c.l.b16 %v10342
        %v10401 = vunpack.c.h.b16 %v10342
        %v10402 = vunpack.c.l.b16 %v10343
        %v10403 = vunpack.c.h.b16 %v10343
        %v10404 = vunpack.c.l.b16 %v10344
        %v10405 = vunpack.c.h.b16 %v10344
        %v10406 = vunpack.c.l.b16 %v10345
        %v10407 = vunpack.c.h.b16 %v10345
        %v10408 = vunpack.c.l.b16 %v10346
        %v10409 = vunpack.c.h.b16 %v10346
        %v10410 = vunpack.c.l.b16 %v10347
        %v10411 = vunpack.c.h.b16 %v10347
        %v10412 = vunpack.c.l.b16 %v10348
        %v10413 = vunpack.c.h.b16 %v10348
        %v10414 = vunpack.c.l.b16 %v10349
        %v10415 = vunpack.c.h.b16 %v10349
        %v10416 = vunpack.c.l.b16 %v10350
        %v10417 = vunpack.c.h.b16 %v10350
        %v10418 = vunpack.c.l.b16 %v10351
        %v10419 = vunpack.c.h.b16 %v10351
        %v10420 = vunpack.c.l.b16 %v10352
        %v10421 = vunpack.c.h.b16 %v10352
        %v10422 = vunpack.c.l.b16 %v10353
        %v10423 = vunpack.c.h.b16 %v10353
        %v10424 = vpack.c.b16 %v10394, %v10392
        %v10425 = vpack.c.b16 %v10395, %v10393
        %v10426 = vpack.c.b16 %v10398, %v10396
        %v10427 = vpack.c.b16 %v10399, %v10397
        %v10428 = vpack.c.b16 %v10402, %v10400
        %v10429 = vpack.c.b16 %v10403, %v10401
        %v10430 = vpack.c.b16 %v10406, %v10404
        %v10431 = vpack.c.b16 %v10407, %v10405
        %v10432 = vpack.c.b16 %v10410, %v10408
        %v10433 = vpack.c.b16 %v10411, %v10409
        %v10434 = vpack.c.b16 %v10414, %v10412
        %v10435 = vpack.c.b16 %v10415, %v10413
        %v10436 = vpack.c.b16 %v10418, %v10416
        %v10437 = vpack.c.b16 %v10419, %v10417
        %v10438 = vpack.c.b16 %v10422, %v10420
        %v10439 = vpack.c.b16 %v10423, %v10421
        %10456 = vmatprep.subr.bf16.mxu0 %v10425
        %10457 = vmatpush1.bf16.msra.mxu0 %v10424
        %10458 = vmatprep.subr.bf16.mxu0 %v10427
        %10459 = vmatpush1.bf16.msra.mxu0 %v10426
        %10460 = vmatprep.subr.bf16.mxu0 %v10429
        %10461 = vmatpush1.bf16.msra.mxu0 %v10428
        %10462 = vmatprep.subr.bf16.mxu0 %v10431
        %10463 = vmatpush1.bf16.msra.mxu0 %v10430
        %10464 = vmatprep.subr.bf16.mxu0 %v10433
        %10465 = vmatpush1.bf16.msra.mxu0 %v10432
        %10466 = vmatprep.subr.bf16.mxu0 %v10435
        %10467 = vmatpush1.bf16.msra.mxu0 %v10434
        %10468 = vmatprep.subr.bf16.mxu0 %v10437
        %10469 = vmatpush1.bf16.msra.mxu0 %v10436
        %10470 = vmatprep.subr.bf16.mxu0 %v10439
        %10471 = vmatpush1.bf16.msra.mxu0 %v10438
        %10472 = vmatprep.subr.bf16.mxu0 0
        %10473 = vmatpush1.bf16.msra.mxu0 0
        %10474 = vmatprep.subr.bf16.mxu0 0
        %10475 = vmatpush1.bf16.msra.mxu0 0
        %10476 = vmatprep.subr.bf16.mxu0 0
        %10477 = vmatpush1.bf16.msra.mxu0 0
        %10478 = vmatprep.subr.bf16.mxu0 0
        %10479 = vmatpush1.bf16.msra.mxu0 0
        %10480 = vmatprep.subr.bf16.mxu0 0
        %10481 = vmatpush1.bf16.msra.mxu0 0
        %10482 = vmatprep.subr.bf16.mxu0 0
        %10483 = vmatpush1.bf16.msra.mxu0 0
        %10484 = vmatprep.subr.bf16.mxu0 0
        %10485 = vmatpush1.bf16.msra.mxu0 0
        %10486 = vmatprep.subr.bf16.mxu0 0
        %10487 = vmatpush1.bf16.msra.mxu0 0
        %10488 = vmatprep.mubr.bf16.mxu0 0
        %10489 = vmatmul.mubr.bf16.gmra.mrb[0].mxu0 %v10374
        %v10490 = vpop.f32.mrb[0].mxu0
        %v10491 = vadd.f32 0.0, %v10490
        %v10492 = vpop.f32.mrb[0].mxu0
        %v10493 = vadd.f32 0.0, %v10492
        %v10494 = vpop.f32.mrb[0].mxu0
        %v10495 = vadd.f32 0.0, %v10494
        %v10496 = vpop.f32.mrb[0].mxu0
        %v10497 = vadd.f32 0.0, %v10496
        %10498 = vdwg.mxu0
        %v10499 = vadd.f32 %v10329, %v10491
        %v10500 = vadd.f32 %v10330, %v10493
        %v10501 = vadd.f32 %v10331, %v10495
        %v10502 = vadd.f32 %v10332, %v10497
        %v10503 = vld [vmem:[%s10333] sm:$0x7]
        %v10504 = vld [vmem:[%s10333 + $0x4] sm:$0x7]
        %v10505 = vld [vmem:[%s10333 + $0x8] sm:$0x7]
        %v10506 = vld [vmem:[%s10333 + $0xc] sm:$0x7]
        %v10512 = vunpack.c.l.s4 1983009808
        %v10513 = vunpack.c.0.s8 %v10512
        %v10514 = vlaneseq
        %v10515 = vshrl.u32 %v10514, 7
        %v10516 = vsub.s32 %v10513, %v10515
        %v10517 = vrot.slane %v10503, %v10516
        %v10518 = vcombine.high %v10517, %v10517
        %v10520 = vunpack.c.l.s4 1983009808
        %v10521 = vunpack.c.0.s8 %v10520
        %v10522 = vlaneseq
        %v10523 = vshrl.u32 %v10522, 7
        %v10524 = vsub.s32 %v10521, %v10523
        %v10525 = vrot.slane %v10504, %v10524
        %v10526 = vcombine.high %v10525, %v10525
        %v10528 = vunpack.c.l.s4 1983009808
        %v10529 = vunpack.c.0.s8 %v10528
        %v10530 = vlaneseq
        %v10531 = vshrl.u32 %v10530, 7
        %v10532 = vsub.s32 %v10529, %v10531
        %v10533 = vrot.slane %v10505, %v10532
        %v10534 = vcombine.high %v10533, %v10533
        %v10536 = vunpack.c.l.s4 1983009808
        %v10537 = vunpack.c.0.s8 %v10536
        %v10538 = vlaneseq
        %v10539 = vshrl.u32 %v10538, 7
        %v10540 = vsub.s32 %v10537, %v10539
        %v10541 = vrot.slane %v10506, %v10540
        %v10542 = vcombine.high %v10541, %v10541
        %v10544 = vshrl.u32 %v10517, 16
        %v10546 = vrot.slane %v10544, 6
        %v10547 = vshll.u32 %v10517, 16
        %v10549 = vrot.slane %v10547, 7
        %v10550 = vor.u32 %v10546, %v10549
        %v10551 = vrot.slane %v10550, 2
        %v10553 = vshll.u32 %v10518, 16
        %v10555 = vrot.slane %v10553, 7
        %v10556 = vsel %vm9107, %v10551, %v10555
        %v10558 = vshrl.u32 %v10525, 16
        %v10560 = vrot.slane %v10558, 6
        %v10561 = vshll.u32 %v10525, 16
        %v10563 = vrot.slane %v10561, 7
        %v10564 = vor.u32 %v10560, %v10563
        %v10565 = vrot.slane %v10564, 2
        %v10567 = vshll.u32 %v10526, 16
        %v10569 = vrot.slane %v10567, 7
        %v10570 = vsel %vm9107, %v10565, %v10569
        %v10572 = vshrl.u32 %v10533, 16
        %v10574 = vrot.slane %v10572, 6
        %v10575 = vshll.u32 %v10533, 16
        %v10577 = vrot.slane %v10575, 7
        %v10578 = vor.u32 %v10574, %v10577
        %v10579 = vrot.slane %v10578, 2
        %v10581 = vshll.u32 %v10534, 16
        %v10583 = vrot.slane %v10581, 7
        %v10584 = vsel %vm9107, %v10579, %v10583
        %v10586 = vshrl.u32 %v10541, 16
        %v10588 = vrot.slane %v10586, 6
        %v10589 = vshll.u32 %v10541, 16
        %v10591 = vrot.slane %v10589, 7
        %v10592 = vor.u32 %v10588, %v10591
        %v10593 = vrot.slane %v10592, 2
        %v10595 = vshll.u32 %v10542, 16
        %v10597 = vrot.slane %v10595, 7
        %v10598 = vsel %vm9107, %v10593, %v10597
        %v10599 = vld [vmem:[%s13 + $0x380] sm:$0xff]
        %v10600 = vld [vmem:[%s13 + $0x388] sm:$0xff]
        %v10601 = vld [vmem:[%s13 + $0x390] sm:$0xff]
        %v10602 = vld [vmem:[%s13 + $0x398] sm:$0xff]
        %v10603 = vld [vmem:[%s13 + $0x3a0] sm:$0xff]
        %v10604 = vld [vmem:[%s13 + $0x3a8] sm:$0xff]
        %v10605 = vld [vmem:[%s13 + $0x3b0] sm:$0xff]
        %v10606 = vld [vmem:[%s13 + $0x3b8] sm:$0xff]
        %v10607 = vld [vmem:[%s13 + $0x3c0] sm:$0xff]
        %v10608 = vld [vmem:[%s13 + $0x3c8] sm:$0xff]
        %v10609 = vld [vmem:[%s13 + $0x3d0] sm:$0xff]
        %v10610 = vld [vmem:[%s13 + $0x3d8] sm:$0xff]
        %v10611 = vld [vmem:[%s13 + $0x3e0] sm:$0xff]
        %v10612 = vld [vmem:[%s13 + $0x3e8] sm:$0xff]
        %v10613 = vld [vmem:[%s13 + $0x3f0] sm:$0xff]
        %v10614 = vld [vmem:[%s13 + $0x3f8] sm:$0xff]
        %v10615 = vcombine.low %v10556, %v10570
        %v10616 = vcombine.low %v10584, %v10598
        %v10618 = vunpack.c.l.s4 1983009808
        %v10619 = vunpack.c.0.s8 %v10618
        %v10620 = vlaneseq
        %v10621 = vshrl.u32 %v10620, 7
        %v10622 = vsub.s32 %v10619, %v10621
        %v10623 = vrot.slane %v10615, %v10622
        %v10625 = vunpack.c.l.s4 1983009808
        %v10626 = vunpack.c.0.s8 %v10625
        %v10627 = vlaneseq
        %v10628 = vshrl.u32 %v10627, 7
        %v10629 = vsub.s32 %v10626, %v10628
        %v10630 = vrot.slane %v10616, %v10629
        %v10631 = vcombine.low %v10623, %v10630
        %v10649 = vunpack.c.l.b16 %v10599
        %v10650 = vunpack.c.h.b16 %v10599
        %v10651 = vunpack.c.l.b16 %v10600
        %v10652 = vunpack.c.h.b16 %v10600
        %v10653 = vunpack.c.l.b16 %v10601
        %v10654 = vunpack.c.h.b16 %v10601
        %v10655 = vunpack.c.l.b16 %v10602
        %v10656 = vunpack.c.h.b16 %v10602
        %v10657 = vunpack.c.l.b16 %v10603
        %v10658 = vunpack.c.h.b16 %v10603
        %v10659 = vunpack.c.l.b16 %v10604
        %v10660 = vunpack.c.h.b16 %v10604
        %v10661 = vunpack.c.l.b16 %v10605
        %v10662 = vunpack.c.h.b16 %v10605
        %v10663 = vunpack.c.l.b16 %v10606
        %v10664 = vunpack.c.h.b16 %v10606
        %v10665 = vunpack.c.l.b16 %v10607
        %v10666 = vunpack.c.h.b16 %v10607
        %v10667 = vunpack.c.l.b16 %v10608
        %v10668 = vunpack.c.h.b16 %v10608
        %v10669 = vunpack.c.l.b16 %v10609
        %v10670 = vunpack.c.h.b16 %v10609
        %v10671 = vunpack.c.l.b16 %v10610
        %v10672 = vunpack.c.h.b16 %v10610
        %v10673 = vunpack.c.l.b16 %v10611
        %v10674 = vunpack.c.h.b16 %v10611
        %v10675 = vunpack.c.l.b16 %v10612
        %v10676 = vunpack.c.h.b16 %v10612
        %v10677 = vunpack.c.l.b16 %v10613
        %v10678 = vunpack.c.h.b16 %v10613
        %v10679 = vunpack.c.l.b16 %v10614
        %v10680 = vunpack.c.h.b16 %v10614
        %v10681 = vpack.c.b16 %v10651, %v10649
        %v10682 = vpack.c.b16 %v10652, %v10650
        %v10683 = vpack.c.b16 %v10655, %v10653
        %v10684 = vpack.c.b16 %v10656, %v10654
        %v10685 = vpack.c.b16 %v10659, %v10657
        %v10686 = vpack.c.b16 %v10660, %v10658
        %v10687 = vpack.c.b16 %v10663, %v10661
        %v10688 = vpack.c.b16 %v10664, %v10662
        %v10689 = vpack.c.b16 %v10667, %v10665
        %v10690 = vpack.c.b16 %v10668, %v10666
        %v10691 = vpack.c.b16 %v10671, %v10669
        %v10692 = vpack.c.b16 %v10672, %v10670
        %v10693 = vpack.c.b16 %v10675, %v10673
        %v10694 = vpack.c.b16 %v10676, %v10674
        %v10695 = vpack.c.b16 %v10679, %v10677
        %v10696 = vpack.c.b16 %v10680, %v10678
        %10713 = vmatprep.subr.bf16.mxu0 %v10682
        %10714 = vmatpush1.bf16.msra.mxu0 %v10681
        %10715 = vmatprep.subr.bf16.mxu0 %v10684
        %10716 = vmatpush1.bf16.msra.mxu0 %v10683
        %10717 = vmatprep.subr.bf16.mxu0 %v10686
        %10718 = vmatpush1.bf16.msra.mxu0 %v10685
        %10719 = vmatprep.subr.bf16.mxu0 %v10688
        %10720 = vmatpush1.bf16.msra.mxu0 %v10687
        %10721 = vmatprep.subr.bf16.mxu0 %v10690
        %10722 = vmatpush1.bf16.msra.mxu0 %v10689
        %10723 = vmatprep.subr.bf16.mxu0 %v10692
        %10724 = vmatpush1.bf16.msra.mxu0 %v10691
        %10725 = vmatprep.subr.bf16.mxu0 %v10694
        %10726 = vmatpush1.bf16.msra.mxu0 %v10693
        %10727 = vmatprep.subr.bf16.mxu0 %v10696
        %10728 = vmatpush1.bf16.msra.mxu0 %v10695
        %10729 = vmatprep.subr.bf16.mxu0 0
        %10730 = vmatpush1.bf16.msra.mxu0 0
        %10731 = vmatprep.subr.bf16.mxu0 0
        %10732 = vmatpush1.bf16.msra.mxu0 0
        %10733 = vmatprep.subr.bf16.mxu0 0
        %10734 = vmatpush1.bf16.msra.mxu0 0
        %10735 = vmatprep.subr.bf16.mxu0 0
        %10736 = vmatpush1.bf16.msra.mxu0 0
        %10737 = vmatprep.subr.bf16.mxu0 0
        %10738 = vmatpush1.bf16.msra.mxu0 0
        %10739 = vmatprep.subr.bf16.mxu0 0
        %10740 = vmatpush1.bf16.msra.mxu0 0
        %10741 = vmatprep.subr.bf16.mxu0 0
        %10742 = vmatpush1.bf16.msra.mxu0 0
        %10743 = vmatprep.subr.bf16.mxu0 0
        %10744 = vmatpush1.bf16.msra.mxu0 0
        %10745 = vmatprep.mubr.bf16.mxu0 0
        %10746 = vmatmul.mubr.bf16.gmra.mrb[0].mxu0 %v10631
        %v10747 = vpop.f32.mrb[0].mxu0
        %v10748 = vadd.f32 0.0, %v10747
        %v10749 = vpop.f32.mrb[0].mxu0
        %v10750 = vadd.f32 0.0, %v10749
        %v10751 = vpop.f32.mrb[0].mxu0
        %v10752 = vadd.f32 0.0, %v10751
        %v10753 = vpop.f32.mrb[0].mxu0
        %v10754 = vadd.f32 0.0, %v10753
        %10755 = vdwg.mxu0
        %v10756 = vadd.f32 %v10499, %v10748
        %v10757 = vadd.f32 %v10500, %v10750
        %v10758 = vadd.f32 %v10501, %v10752
        %v10759 = vadd.f32 %v10502, %v10754
        %v10760 = vld [vmem:[%s10333] sm:$0x6]
        %v10761 = vld [vmem:[%s10333 + $0x4] sm:$0x6]
        %v10762 = vld [vmem:[%s10333 + $0x8] sm:$0x6]
        %v10763 = vld [vmem:[%s10333 + $0xc] sm:$0x6]
        %v10769 = vunpack.c.l.s4 1983009808
        %v10770 = vunpack.c.0.s8 %v10769
        %v10771 = vlaneseq
        %v10772 = vshrl.u32 %v10771, 7
        %v10773 = vsub.s32 %v10770, %v10772
        %v10774 = vrot.slane %v10760, %v10773
        %v10775 = vcombine.high %v10774, %v10774
        %v10777 = vunpack.c.l.s4 1983009808
        %v10778 = vunpack.c.0.s8 %v10777
        %v10779 = vlaneseq
        %v10780 = vshrl.u32 %v10779, 7
        %v10781 = vsub.s32 %v10778, %v10780
        %v10782 = vrot.slane %v10761, %v10781
        %v10783 = vcombine.high %v10782, %v10782
        %v10785 = vunpack.c.l.s4 1983009808
        %v10786 = vunpack.c.0.s8 %v10785
        %v10787 = vlaneseq
        %v10788 = vshrl.u32 %v10787, 7
        %v10789 = vsub.s32 %v10786, %v10788
        %v10790 = vrot.slane %v10762, %v10789
        %v10791 = vcombine.high %v10790, %v10790
        %v10793 = vunpack.c.l.s4 1983009808
        %v10794 = vunpack.c.0.s8 %v10793
        %v10795 = vlaneseq
        %v10796 = vshrl.u32 %v10795, 7
        %v10797 = vsub.s32 %v10794, %v10796
        %v10798 = vrot.slane %v10763, %v10797
        %v10799 = vcombine.high %v10798, %v10798
        %v10800 = vrot.slane %v10774, 7
        %v10801 = vrot.slane %v10800, 2
        %v10802 = vrot.slane %v10775, 7
        %v10803 = vsel %vm9512, %v10801, %v10802
        %v10804 = vrot.slane %v10782, 7
        %v10805 = vrot.slane %v10804, 2
        %v10806 = vrot.slane %v10783, 7
        %v10807 = vsel %vm9512, %v10805, %v10806
        %v10808 = vrot.slane %v10790, 7
        %v10809 = vrot.slane %v10808, 2
        %v10810 = vrot.slane %v10791, 7
        %v10811 = vsel %vm9512, %v10809, %v10810
        %v10812 = vrot.slane %v10798, 7
        %v10813 = vrot.slane %v10812, 2
        %v10814 = vrot.slane %v10799, 7
        %v10815 = vsel %vm9512, %v10813, %v10814
        %v10816 = vld [vmem:[%s13 + $0x400] sm:$0xff]
        %v10817 = vld [vmem:[%s13 + $0x408] sm:$0xff]
        %v10818 = vld [vmem:[%s13 + $0x410] sm:$0xff]
        %v10819 = vld [vmem:[%s13 + $0x418] sm:$0xff]
        %v10820 = vld [vmem:[%s13 + $0x420] sm:$0xff]
        %v10821 = vld [vmem:[%s13 + $0x428] sm:$0xff]
        %v10822 = vld [vmem:[%s13 + $0x430] sm:$0xff]
        %v10823 = vld [vmem:[%s13 + $0x438] sm:$0xff]
        %v10824 = vld [vmem:[%s13 + $0x440] sm:$0xff]
        %v10825 = vld [vmem:[%s13 + $0x448] sm:$0xff]
        %v10826 = vld [vmem:[%s13 + $0x450] sm:$0xff]
        %v10827 = vld [vmem:[%s13 + $0x458] sm:$0xff]
        %v10828 = vld [vmem:[%s13 + $0x460] sm:$0xff]
        %v10829 = vld [vmem:[%s13 + $0x468] sm:$0xff]
        %v10830 = vld [vmem:[%s13 + $0x470] sm:$0xff]
        %v10831 = vld [vmem:[%s13 + $0x478] sm:$0xff]
        %v10832 = vcombine.low %v10803, %v10807
        %v10833 = vcombine.low %v10811, %v10815
        %v10835 = vunpack.c.l.s4 1983009808
        %v10836 = vunpack.c.0.s8 %v10835
        %v10837 = vlaneseq
        %v10838 = vshrl.u32 %v10837, 7
        %v10839 = vsub.s32 %v10836, %v10838
        %v10840 = vrot.slane %v10832, %v10839
        %v10842 = vunpack.c.l.s4 1983009808
        %v10843 = vunpack.c.0.s8 %v10842
        %v10844 = vlaneseq
        %v10845 = vshrl.u32 %v10844, 7
        %v10846 = vsub.s32 %v10843, %v10845
        %v10847 = vrot.slane %v10833, %v10846
        %v10848 = vcombine.low %v10840, %v10847
        %v10866 = vunpack.c.l.b16 %v10816
        %v10867 = vunpack.c.h.b16 %v10816
        %v10868 = vunpack.c.l.b16 %v10817
        %v10869 = vunpack.c.h.b16 %v10817
        %v10870 = vunpack.c.l.b16 %v10818
        %v10871 = vunpack.c.h.b16 %v10818
        %v10872 = vunpack.c.l.b16 %v10819
        %v10873 = vunpack.c.h.b16 %v10819
        %v10874 = vunpack.c.l.b16 %v10820
        %v10875 = vunpack.c.h.b16 %v10820
        %v10876 = vunpack.c.l.b16 %v10821
        %v10877 = vunpack.c.h.b16 %v10821
        %v10878 = vunpack.c.l.b16 %v10822
        %v10879 = vunpack.c.h.b16 %v10822
        %v10880 = vunpack.c.l.b16 %v10823
        %v10881 = vunpack.c.h.b16 %v10823
        %v10882 = vunpack.c.l.b16 %v10824
        %v10883 = vunpack.c.h.b16 %v10824
        %v10884 = vunpack.c.l.b16 %v10825
        %v10885 = vunpack.c.h.b16 %v10825
        %v10886 = vunpack.c.l.b16 %v10826
        %v10887 = vunpack.c.h.b16 %v10826
        %v10888 = vunpack.c.l.b16 %v10827
        %v10889 = vunpack.c.h.b16 %v10827
        %v10890 = vunpack.c.l.b16 %v10828
        %v10891 = vunpack.c.h.b16 %v10828
        %v10892 = vunpack.c.l.b16 %v10829
        %v10893 = vunpack.c.h.b16 %v10829
        %v10894 = vunpack.c.l.b16 %v10830
        %v10895 = vunpack.c.h.b16 %v10830
        %v10896 = vunpack.c.l.b16 %v10831
        %v10897 = vunpack.c.h.b16 %v10831
        %v10898 = vpack.c.b16 %v10868, %v10866
        %v10899 = vpack.c.b16 %v10869, %v10867
        %v10900 = vpack.c.b16 %v10872, %v10870
        %v10901 = vpack.c.b16 %v10873, %v10871
        %v10902 = vpack.c.b16 %v10876, %v10874
        %v10903 = vpack.c.b16 %v10877, %v10875
        %v10904 = vpack.c.b16 %v10880, %v10878
        %v10905 = vpack.c.b16 %v10881, %v10879
        %v10906 = vpack.c.b16 %v10884, %v10882
        %v10907 = vpack.c.b16 %v10885, %v10883
        %v10908 = vpack.c.b16 %v10888, %v10886
        %v10909 = vpack.c.b16 %v10889, %v10887
        %v10910 = vpack.c.b16 %v10892, %v10890
        %v10911 = vpack.c.b16 %v10893, %v10891
        %v10912 = vpack.c.b16 %v10896, %v10894
        %v10913 = vpack.c.b16 %v10897, %v10895
        %10930 = vmatprep.subr.bf16.mxu0 %v10899
        %10931 = vmatpush1.bf16.msra.mxu0 %v10898
        %10932 = vmatprep.subr.bf16.mxu0 %v10901
        %10933 = vmatpush1.bf16.msra.mxu0 %v10900
        %10934 = vmatprep.subr.bf16.mxu0 %v10903
        %10935 = vmatpush1.bf16.msra.mxu0 %v10902
        %10936 = vmatprep.subr.bf16.mxu0 %v10905
        %10937 = vmatpush1.bf16.msra.mxu0 %v10904
        %10938 = vmatprep.subr.bf16.mxu0 %v10907
        %10939 = vmatpush1.bf16.msra.mxu0 %v10906
        %10940 = vmatprep.subr.bf16.mxu0 %v10909
        %10941 = vmatpush1.bf16.msra.mxu0 %v10908
        %10942 = vmatprep.subr.bf16.mxu0 %v10911
        %10943 = vmatpush1.bf16.msra.mxu0 %v10910
        %10944 = vmatprep.subr.bf16.mxu0 %v10913
        %10945 = vmatpush1.bf16.msra.mxu0 %v10912
        %10946 = vmatprep.subr.bf16.mxu0 0
        %10947 = vmatpush1.bf16.msra.mxu0 0
        %10948 = vmatprep.subr.bf16.mxu0 0
        %10949 = vmatpush1.bf16.msra.mxu0 0
        %10950 = vmatprep.subr.bf16.mxu0 0
        %10951 = vmatpush1.bf16.msra.mxu0 0
        %10952 = vmatprep.subr.bf16.mxu0 0
        %10953 = vmatpush1.bf16.msra.mxu0 0
        %10954 = vmatprep.subr.bf16.mxu0 0
        %10955 = vmatpush1.bf16.msra.mxu0 0
        %10956 = vmatprep.subr.bf16.mxu0 0
        %10957 = vmatpush1.bf16.msra.mxu0 0
        %10958 = vmatprep.subr.bf16.mxu0 0
        %10959 = vmatpush1.bf16.msra.mxu0 0
        %10960 = vmatprep.subr.bf16.mxu0 0
        %10961 = vmatpush1.bf16.msra.mxu0 0
        %10962 = vmatprep.mubr.bf16.mxu0 0
        %10963 = vmatmul.mubr.bf16.gmra.mrb[0].mxu0 %v10848
        %v10964 = vpop.f32.mrb[0].mxu0
        %v10965 = vadd.f32 0.0, %v10964
        %v10966 = vpop.f32.mrb[0].mxu0
        %v10967 = vadd.f32 0.0, %v10966
        %v10968 = vpop.f32.mrb[0].mxu0
        %v10969 = vadd.f32 0.0, %v10968
        %v10970 = vpop.f32.mrb[0].mxu0
        %v10971 = vadd.f32 0.0, %v10970
        %10972 = vdwg.mxu0
        %v10973 = vadd.f32 %v10756, %v10965
        %v10974 = vadd.f32 %v10757, %v10967
        %v10975 = vadd.f32 %v10758, %v10969
        %v10976 = vadd.f32 %v10759, %v10971
        %v10977 = vld [vmem:[%s14] sm:$0x3]
        %v10979 = vlaneseq
        %v10980 = vshrl.u32 %v10979, 7
        %v10981 = vsub.s32 0, %v10980
        %v10982 = vrot.slane %v10977, %v10981
        %v10983 = vlaneseq
        %v10984 = vshrl.u32 %v10983, 7
        %v10985 = vsub.s32 1, %v10984
        %v10986 = vrot.slane %v10977, %v10985
        %v10989 = vmul.f32 %v10973, %v10982
        %v10990 = vmul.f32 %v10974, %v10986
        %v10991 = vmul.f32 %v10975, %v10982
        %v10992 = vmul.f32 %v10976, %v10986
        %v10993 = vld [vmem:[%s15] sm:$0x3]
        %v10995 = vlaneseq
        %v10996 = vshrl.u32 %v10995, 7
        %v10997 = vsub.s32 0, %v10996
        %v10998 = vrot.slane %v10993, %v10997
        %v10999 = vlaneseq
        %v11000 = vshrl.u32 %v10999, 7
        %v11001 = vsub.s32 1, %v11000
        %v11002 = vrot.slane %v10993, %v11001
        %v11005 = vadd.f32 %v10989, %v10998
        %v11006 = vadd.f32 %v10990, %v11002
        %v11007 = vadd.f32 %v10991, %v10998
        %v11008 = vadd.f32 %v10992, %v11002
        %v11009 = vmax.f32 %v11005, 0.0
        %v11010 = vmax.f32 %v11006, 0.0
        %v11011 = vmax.f32 %v11007, 0.0
        %v11012 = vmax.f32 %v11008, 0.0
        %v11013 = vadd.f32 %v11009, %v11011
        %v11014 = vrot.slane %v11013, 4
        %v11015 = vadd.f32 %v11013, %v11014
        %v11016 = vrot.slane %v11015, 2
        %v11017 = vadd.f32 %v11015, %v11016
        %v11018 = vrot.slane %v11017, 1
        %v11019 = vadd.f32 %v11017, %v11018
        %v11020 = vadd.f32 %v11010, %v11012
        %v11021 = vrot.slane %v11020, 4
        %v11022 = vadd.f32 %v11020, %v11021
        %v11023 = vrot.slane %v11022, 2
        %v11024 = vadd.f32 %v11022, %v11023
        %v11025 = vrot.slane %v11024, 1
        %v11026 = vadd.f32 %v11024, %v11025
        %v11027 = vpack.c.bf16 %v11019, %v11019
        %v11028 = vpack.c.bf16 %v11026, %v11026
        %v11029 = vld [vmem:[%s16] sm:$0xf]
        %v11030 = vld [vmem:[%s16 + $0x4] sm:$0xf]
        %v11031 = vld [vmem:[%s16 + $0x8] sm:$0xf]
        %v11032 = vld [vmem:[%s16 + $0xc] sm:$0xf]
        %v11033 = vld [vmem:[%s16 + $0x10] sm:$0xf]
        %v11034 = vld [vmem:[%s16 + $0x14] sm:$0xf]
        %v11035 = vld [vmem:[%s16 + $0x18] sm:$0xf]
        %v11036 = vld [vmem:[%s16 + $0x1c] sm:$0xf]
        %v11037 = vld [vmem:[%s16 + $0x20] sm:$0xf]
        %v11038 = vld [vmem:[%s16 + $0x24] sm:$0xf]
        %v11039 = vld [vmem:[%s16 + $0x28] sm:$0xf]
        %v11040 = vld [vmem:[%s16 + $0x2c] sm:$0xf]
        %v11041 = vld [vmem:[%s16 + $0x30] sm:$0xf]
        %v11042 = vld [vmem:[%s16 + $0x34] sm:$0xf]
        %v11043 = vld [vmem:[%s16 + $0x38] sm:$0xf]
        %v11044 = vld [vmem:[%s16 + $0x3c] sm:$0xf]
        %v11045 = vld [vmem:[%s16 + $0x40] sm:$0xf]
        %v11046 = vld [vmem:[%s16 + $0x44] sm:$0xf]
        %v11047 = vld [vmem:[%s16 + $0x48] sm:$0xf]
        %v11048 = vld [vmem:[%s16 + $0x4c] sm:$0xf]
        %v11049 = vld [vmem:[%s16 + $0x50] sm:$0xf]
        %v11050 = vld [vmem:[%s16 + $0x54] sm:$0xf]
        %v11051 = vld [vmem:[%s16 + $0x58] sm:$0xf]
        %v11052 = vld [vmem:[%s16 + $0x5c] sm:$0xf]
        %v11053 = vld [vmem:[%s16 + $0x60] sm:$0xf]
        %v11054 = vld [vmem:[%s16 + $0x64] sm:$0xf]
        %v11055 = vld [vmem:[%s16 + $0x68] sm:$0xf]
        %v11056 = vld [vmem:[%s16 + $0x6c] sm:$0xf]
        %v11057 = vld [vmem:[%s16 + $0x70] sm:$0xf]
        %v11058 = vld [vmem:[%s16 + $0x74] sm:$0xf]
        %v11059 = vld [vmem:[%s16 + $0x78] sm:$0xf]
        %v11060 = vld [vmem:[%s16 + $0x7c] sm:$0xf]
        %v11061 = vld [vmem:[%s17] sm:$0x1]
        %v11094 = vunpack.c.l.b16 %v11029
        %v11095 = vunpack.c.l.b16 %v11030
        %v11096 = vunpack.c.l.b16 %v11031
        %v11097 = vunpack.c.l.b16 %v11032
        %v11098 = vunpack.c.l.b16 %v11033
        %v11099 = vunpack.c.l.b16 %v11034
        %v11100 = vunpack.c.l.b16 %v11035
        %v11101 = vunpack.c.l.b16 %v11036
        %v11102 = vunpack.c.l.b16 %v11037
        %v11103 = vunpack.c.l.b16 %v11038
        %v11104 = vunpack.c.l.b16 %v11039
        %v11105 = vunpack.c.l.b16 %v11040
        %v11106 = vunpack.c.l.b16 %v11041
        %v11107 = vunpack.c.l.b16 %v11042
        %v11108 = vunpack.c.l.b16 %v11043
        %v11109 = vunpack.c.l.b16 %v11044
        %v11110 = vunpack.c.l.b16 %v11045
        %v11111 = vunpack.c.l.b16 %v11046
        %v11112 = vunpack.c.l.b16 %v11047
        %v11113 = vunpack.c.l.b16 %v11048
        %v11114 = vunpack.c.l.b16 %v11049
        %v11115 = vunpack.c.l.b16 %v11050
        %v11116 = vunpack.c.l.b16 %v11051
        %v11117 = vunpack.c.l.b16 %v11052
        %v11118 = vunpack.c.l.b16 %v11053
        %v11119 = vunpack.c.l.b16 %v11054
        %v11120 = vunpack.c.l.b16 %v11055
        %v11121 = vunpack.c.l.b16 %v11056
        %v11122 = vunpack.c.l.b16 %v11057
        %v11123 = vunpack.c.l.b16 %v11058
        %v11124 = vunpack.c.l.b16 %v11059
        %v11125 = vunpack.c.l.b16 %v11060
        %v11126 = vpack.c.b16 %v11095, %v11094
        %v11127 = vpack.c.b16 %v11097, %v11096
        %v11128 = vpack.c.b16 %v11099, %v11098
        %v11129 = vpack.c.b16 %v11101, %v11100
        %v11130 = vpack.c.b16 %v11103, %v11102
        %v11131 = vpack.c.b16 %v11105, %v11104
        %v11132 = vpack.c.b16 %v11107, %v11106
        %v11133 = vpack.c.b16 %v11109, %v11108
        %v11134 = vpack.c.b16 %v11111, %v11110
        %v11135 = vpack.c.b16 %v11113, %v11112
        %v11136 = vpack.c.b16 %v11115, %v11114
        %v11137 = vpack.c.b16 %v11117, %v11116
        %v11138 = vpack.c.b16 %v11119, %v11118
        %v11139 = vpack.c.b16 %v11121, %v11120
        %v11140 = vpack.c.b16 %v11123, %v11122
        %v11141 = vpack.c.b16 %v11125, %v11124
        %11158 = vmatprep.subr.bf16.mxu0 0
        %11159 = vmatpush1.bf16.msra.mxu0 %v11126
        %11160 = vmatprep.subr.bf16.mxu0 0
        %11161 = vmatpush1.bf16.msra.mxu0 %v11127
        %11162 = vmatprep.subr.bf16.mxu0 0
        %11163 = vmatpush1.bf16.msra.mxu0 %v11128
        %11164 = vmatprep.subr.bf16.mxu0 0
        %11165 = vmatpush1.bf16.msra.mxu0 %v11129
        %11166 = vmatprep.subr.bf16.mxu0 0
        %11167 = vmatpush1.bf16.msra.mxu0 %v11130
        %11168 = vmatprep.subr.bf16.mxu0 0
        %11169 = vmatpush1.bf16.msra.mxu0 %v11131
        %11170 = vmatprep.subr.bf16.mxu0 0
        %11171 = vmatpush1.bf16.msra.mxu0 %v11132
        %11172 = vmatprep.subr.bf16.mxu0 0
        %11173 = vmatpush1.bf16.msra.mxu0 %v11133
        %11174 = vmatprep.subr.bf16.mxu0 0
        %11175 = vmatpush1.bf16.msra.mxu0 %v11134
        %11176 = vmatprep.subr.bf16.mxu0 0
        %11177 = vmatpush1.bf16.msra.mxu0 %v11135
        %11178 = vmatprep.subr.bf16.mxu0 0
        %11179 = vmatpush1.bf16.msra.mxu0 %v11136
        %11180 = vmatprep.subr.bf16.mxu0 0
        %11181 = vmatpush1.bf16.msra.mxu0 %v11137
        %11182 = vmatprep.subr.bf16.mxu0 0
        %11183 = vmatpush1.bf16.msra.mxu0 %v11138
        %11184 = vmatprep.subr.bf16.mxu0 0
        %11185 = vmatpush1.bf16.msra.mxu0 %v11139
        %11186 = vmatprep.subr.bf16.mxu0 0
        %11187 = vmatpush1.bf16.msra.mxu0 %v11140
        %11188 = vmatprep.subr.bf16.mxu0 0
        %11189 = vmatpush1.bf16.msra.mxu0 %v11141
        %11190 = vmatprep.mubr.bf16.mxu0 %v11028
        %11191 = vmatmul.mubr.bf16.gmra.mrb[0].mxu0 %v11027
        %v11192 = vpop.f32.mrb[0].mxu0
        %v11193 = vadd.f32 %v11061, %v11192
        %v11194 = vpop.f32.mrb[0].mxu0
        %v11195 = vpop.f32.mrb[0].mxu0
        %v11196 = vpop.f32.mrb[0].mxu0
        %11197 = vdwg.mxu0
        %v11198 = vmax.f32 %v11193, 0.0
        %v11199 = vpack.c.bf16 %v11198, %v11198
        %v11200 = vld [vmem:[%s18] sm:$0xf]
        %v11201 = vld [vmem:[%s18 + $0x4] sm:$0xf]
        %v11202 = vld [vmem:[%s18 + $0x8] sm:$0xf]
        %v11203 = vld [vmem:[%s18 + $0xc] sm:$0xf]
        %v11204 = vld [vmem:[%s18 + $0x10] sm:$0xf]
        %v11205 = vld [vmem:[%s18 + $0x14] sm:$0xf]
        %v11206 = vld [vmem:[%s18 + $0x18] sm:$0xf]
        %v11207 = vld [vmem:[%s18 + $0x1c] sm:$0xf]
        %v11208 = vld [vmem:[%s18 + $0x20] sm:$0xf]
        %v11209 = vld [vmem:[%s18 + $0x24] sm:$0xf]
        %v11210 = vld [vmem:[%s18 + $0x28] sm:$0xf]
        %v11211 = vld [vmem:[%s18 + $0x2c] sm:$0xf]
        %v11212 = vld [vmem:[%s18 + $0x30] sm:$0xf]
        %v11213 = vld [vmem:[%s18 + $0x34] sm:$0xf]
        %v11214 = vld [vmem:[%s18 + $0x38] sm:$0xf]
        %v11215 = vld [vmem:[%s18 + $0x3c] sm:$0xf]
        %v11216 = vld [vmem:[%s19] sm:$0x1]
        %v11233 = vunpack.c.l.b16 %v11200
        %v11234 = vunpack.c.l.b16 %v11201
        %v11235 = vunpack.c.l.b16 %v11202
        %v11236 = vunpack.c.l.b16 %v11203
        %v11237 = vunpack.c.l.b16 %v11204
        %v11238 = vunpack.c.l.b16 %v11205
        %v11239 = vunpack.c.l.b16 %v11206
        %v11240 = vunpack.c.l.b16 %v11207
        %v11241 = vunpack.c.l.b16 %v11208
        %v11242 = vunpack.c.l.b16 %v11209
        %v11243 = vunpack.c.l.b16 %v11210
        %v11244 = vunpack.c.l.b16 %v11211
        %v11245 = vunpack.c.l.b16 %v11212
        %v11246 = vunpack.c.l.b16 %v11213
        %v11247 = vunpack.c.l.b16 %v11214
        %v11248 = vunpack.c.l.b16 %v11215
        %v11249 = vpack.c.b16 %v11234, %v11233
        %v11250 = vpack.c.b16 %v11236, %v11235
        %v11251 = vpack.c.b16 %v11238, %v11237
        %v11252 = vpack.c.b16 %v11240, %v11239
        %v11253 = vpack.c.b16 %v11242, %v11241
        %v11254 = vpack.c.b16 %v11244, %v11243
        %v11255 = vpack.c.b16 %v11246, %v11245
        %v11256 = vpack.c.b16 %v11248, %v11247
        %11265 = vmatprep.subr.bf16.mxu0 0
        %11266 = vmatpush1.bf16.msra.mxu0 %v11249
        %11267 = vmatprep.subr.bf16.mxu0 0
        %11268 = vmatpush1.bf16.msra.mxu0 %v11250
        %11269 = vmatprep.subr.bf16.mxu0 0
        %11270 = vmatpush1.bf16.msra.mxu0 %v11251
        %11271 = vmatprep.subr.bf16.mxu0 0
        %11272 = vmatpush1.bf16.msra.mxu0 %v11252
        %11273 = vmatprep.subr.bf16.mxu0 0
        %11274 = vmatpush1.bf16.msra.mxu0 %v11253
        %11275 = vmatprep.subr.bf16.mxu0 0
        %11276 = vmatpush1.bf16.msra.mxu0 %v11254
        %11277 = vmatprep.subr.bf16.mxu0 0
        %11278 = vmatpush1.bf16.msra.mxu0 %v11255
        %11279 = vmatprep.subr.bf16.mxu0 0
        %11280 = vmatpush1.bf16.msra.mxu0 %v11256
        %11281 = vmatprep.subr.bf16.mxu0 0
        %11282 = vmatpush1.bf16.msra.mxu0 0
        %11283 = vmatprep.subr.bf16.mxu0 0
        %11284 = vmatpush1.bf16.msra.mxu0 0
        %11285 = vmatprep.subr.bf16.mxu0 0
        %11286 = vmatpush1.bf16.msra.mxu0 0
        %11287 = vmatprep.subr.bf16.mxu0 0
        %11288 = vmatpush1.bf16.msra.mxu0 0
        %11289 = vmatprep.subr.bf16.mxu0 0
        %11290 = vmatpush1.bf16.msra.mxu0 0
        %11291 = vmatprep.subr.bf16.mxu0 0
        %11292 = vmatpush1.bf16.msra.mxu0 0
        %11293 = vmatprep.subr.bf16.mxu0 0
        %11294 = vmatpush1.bf16.msra.mxu0 0
        %11295 = vmatprep.subr.bf16.mxu0 0
        %11296 = vmatpush1.bf16.msra.mxu0 0
        %11297 = vmatprep.mubr.bf16.mxu0 0
        %11298 = vmatmul.mubr.bf16.gmra.mrb[0].mxu0 %v11199
        %v11299 = vpop.f32.mrb[0].mxu0
        %v11300 = vadd.f32 %v11216, %v11299
        %v11301 = vpop.f32.mrb[0].mxu0
        %v11302 = vpop.f32.mrb[0].mxu0
        %v11303 = vpop.f32.mrb[0].mxu0
        %11304 = vdwg.mxu0
        %11305 = vst [vmem:[%s621] sm:$0x1] %v11300
        %s11306 = sand.u32 %s467, 1
        %s11307 = scalar_lea.sflag [#allocation7], %s11306
        %s11308 = sand.u32 %s467, 1
        %s11309 = scalar_lea.vmem [#allocation6], %s11308
        // Predicated region
        $region101: #{_lambda_.1} parent=99 // pred_check
          %p11310 = pneg %p477
        $region102: #{_lambda_.1} parent=99 // pred_check_branch
          %11312 = sbr.rel (%p11310) target = $region104
        $region103: #{_lambda_.1} parent=99 // pred_region
          %s11314 = ssub.s32 16, 16
          %11315 = vsyncadd %s11307, %s11314
          %s11316 = smul.addr %s34, 16
          %s11317 = scalar_lea.hbm %s20, %s11316
          %s11319 = sshll.u32 %s11309, 4
          %s11320 = int_to_ptr.vmem [resolvable:$true] %s11319
          %11322 = dma.vmem_to_hbm [thread:$0]  %s11320, 16, %s11317, %s11307
        $region104: #{_lambda_.1} parent=99 // pred_fallthru
          _
      $region100: #{_lambda_.1} parent=5 // pred_fallthru
        _
      %p11323 = scmp.le.s32.totalorder 2, %s29
      // Predicated region
      $region105: #{_lambda_.1} parent=5 // pred_check
        %p11324 = pneg %p11323
      $region106: #{_lambda_.1} parent=5 // pred_check_branch
        %11326 = sbr.rel (%p11324) target = $region108
      $region107: #{_lambda_.1} parent=5 // pred_region
        %s11327 = ssub.s32 %s29, 2
        // Predicated region
        $region109: #{_lambda_.1} parent=107 // pred_check
          %p11328 = pneg %p483
        $region110: #{_lambda_.1} parent=107 // pred_check_branch
          %11330 = sbr.rel (%p11328) target = $region112
        $region111: #{_lambda_.1} parent=107 // pred_region
          %s11331 = sand.u32 %s468, 1
          %s11332 = scalar_lea.sflag [#allocation7], %s11331
          %s11333 = sand.u32 %s468, 1
          %s11334 = scalar_lea.vmem [#allocation6], %s11333
          %11335 = dma.done %s11332, 16
        $region112: #{_lambda_.1} parent=107 // pred_fallthru
          _
      $region108: #{_lambda_.1} parent=5 // pred_fallthru
        _
    $region6: #{_lambda_.1} parent=1 // loop_footer
      %s33 = sadd.s32 1, %s29
    $region7: #{_lambda_.1} parent=1 // loop_footer_branch
      %28 = sbr.rel target = $region3
    $region8: #{_lambda_.1} parent=1 // loop_exit
      _
    %11336 = vsyncpa [#allocation7], 1
    %s11337 = scalar_lea.sflag [#allocation7], 1
    %11338 = vsyncpa %s11337, 1

</llo_original>
